<compile_context>
chip_gen: v5e
topology: v5e:2x2
jax: 0.10.0
libtpu: 0.0.40
codegen_flags: <defaults>
</compile_context>

<pallas_src>
import functools

import numpy as np
import jax
import jax.numpy as jnp
from jax.experimental import pallas as pl
from jax.experimental.pallas import tpu as pltpu

F32 = jnp.float32
BF16 = jnp.bfloat16


# ----------------------------- host-side constant builders -----------------------------

def _group_avg_matrix(channels, groups):
    """(C, C) matrix A with A[i, j] = 1/Cg if i, j share a GroupNorm group (contiguous groups)."""
    cg = channels // groups
    idx = np.arange(channels) // cg
    a = (idx[:, None] == idx[None, :]).astype(np.float32) / cg
    return jnp.asarray(a)


def _pool_expand_matrices(H, W):
    """Matmul operators for AdaptiveAvgPool((None,1))/((1,None)) and their broadcast inverses."""
    HW = H * W
    rows = np.arange(HW) // W
    cols = np.arange(HW) % W
    pool_h = (rows[:, None] == np.arange(H)[None, :]).astype(np.float32) / W   # (HW, H)
    pool_w = (cols[:, None] == np.arange(W)[None, :]).astype(np.float32) / H   # (HW, W)
    exp_h = (np.arange(H)[:, None] == rows[None, :]).astype(np.float32)        # (H, HW)
    exp_w = (np.arange(W)[:, None] == cols[None, :]).astype(np.float32)        # (W, HW)
    return (jnp.asarray(pool_h), jnp.asarray(pool_w),
            jnp.asarray(exp_h), jnp.asarray(exp_w))


def _conv3x3_masks(H, W):
    """(9, 1, HW) boundary masks implementing zero padding for the 9 conv taps."""
    HW = H * W
    y = np.arange(HW) // W
    x = np.arange(HW) % W
    m = np.zeros((9, 1, HW), np.float32)
    for t in range(9):
        dy, dx = t // 3 - 1, t % 3 - 1
        ok = (y + dy >= 0) & (y + dy < H) & (x + dx >= 0) & (x + dx < W)
        m[t, 0, :] = ok.astype(np.float32)
    return jnp.asarray(m)


# ----------------------------- in-kernel helpers -----------------------------

def _stack_taps(x, mask_ref, *, img_w):
    """3x3 / stride-1 / pad-1 conv input as ONE stacked-tap tensor.

    x: (Cin, HW) f32; mask_ref: (9, 1, HW) f32 boundary masks.
    Returns (9*Cin, HW) bf16 with tap t in rows [t*Cin, (t+1)*Cin).  A single matmul against a
    (Cout, 9*Cin) weight replaces 9 tiny K=Cin MXU push/drain cycles.
    """
    _, hw = x.shape
    taps = []
    for t in range(9):                               # static unroll
        dy, dx = t // 3 - 1, t % 3 - 1
        s = dy * img_w + dx                          # flattened source offset of this tap
        xs = x if s == 0 else pltpu.roll(x, (-s) % hw, 1)
        taps.append(xs * mask_ref[t])                # zero-padding at the image border
    return jnp.concatenate(taps, axis=0).astype(BF16)


def _group_norm(acc, a, gamma, beta, eps):
    """GroupNorm over contiguous channel groups.

    Reduce over HW first (XLU lane reduction), then group-average with a tiny (C,C)@(C,1) matvec
    -- mathematically identical to, and much cheaper than, dot(A, acc) reductions.
    """
    gmean = jnp.dot(a, jnp.mean(acc, axis=1, keepdims=True), preferred_element_type=F32)
    d = acc - gmean
    gvar = jnp.dot(a, jnp.mean(d * d, axis=1, keepdims=True), preferred_element_type=F32)
    return d * jax.lax.rsqrt(gvar + eps) * gamma + beta


def _softmax_channels(v):
    v = v - jnp.max(v, axis=0, keepdims=True)
    e = jnp.exp(v)
    return e / jnp.sum(e, axis=0, keepdims=True)


# ----------------------------- Pallas kernels -----------------------------

def _conv1_gn_kernel(x_ref, w_ref, gamma_ref, beta_ref, a_ref, o_ref, *, eps):
    """Bottleneck conv1 (1x1, bf16 MXU, f32 acc) + fused GroupNorm(bn1).  One batch item/step."""
    acc = jnp.dot(w_ref[...], x_ref[...].astype(BF16), preferred_element_type=F32)
    out = _group_norm(acc, a_ref[...], gamma_ref[...], beta_ref[...], eps)
    o_ref[...] = out.astype(o_ref.dtype)


def _grouped_conv_bn_kernel(mask_ref, x_ref, w_ref, scale_ref, shift_ref, o_ref, *, img_w):
    """SegRSBlock grouped (groups=radix) 3x3 conv as one block-diagonal stacked-tap matmul,
    with the folded eval-BatchNorm (bn0) epilogue.  One batch item per step."""
    stacked = _stack_taps(x_ref[...].astype(F32), mask_ref, img_w=img_w)
    acc = jnp.dot(w_ref[...], stacked, preferred_element_type=F32)
    o_ref[...] = (acc * scale_ref[...] + shift_ref[...]).astype(o_ref.dtype)


def _segrs_attn_kernel(sq_ref, x_ref, mask_ref,
                       ph_ref, pw_ref, eh_ref, ew_ref,
                       fc1w_ref, fc1b_ref, fc20w_ref, fc20b_ref, fc21w_ref, fc21b_ref,
                       atta_ref, attg_ref, attb_ref,
                       w2_ref, b2_ref, acw_ref, acb_ref,
                       w3_ref, b3_ref, g3a_ref, g3g_ref, g3b_ref,
                       oattn_ref, oxs_ref, *, radix, img_w, eps):
    """Whole SegRS radix-attention block for one batch item (radix items unrolled in-kernel).

    attention path : coord attention (pool_h/pool_w -> fc1 -> fc2_0/fc2_1 -> sigmoid gates)
                     -> att_norm GroupNorm -> conv2 (3x3) -> channel-softmax cross attention
                     -> avg/max squeeze gating -> attn_conv (1x1 + bias)
    main path      : radix sum -> conv3 (3x3 + bias) -> gn3 GroupNorm
    """
    C, HW = x_ref.shape
    cr = C // radix
    x = x_ref[...].astype(F32)

    attn_parts = []
    for r in range(radix):                                          # static unroll over radix
        xg = x[r * cr:(r + 1) * cr, :]                              # (Cr, HW)
        # coordinate attention
        ph = jnp.dot(xg, ph_ref[...], preferred_element_type=F32)   # mean over W -> (Cr, H)
        pw = jnp.dot(xg, pw_ref[...], preferred_element_type=F32)   # mean over H -> (Cr, W)
        th = jnp.dot(fc1w_ref[...], ph, preferred_element_type=F32) + fc1b_ref[...]
        tw = jnp.dot(fc1w_ref[...], pw, preferred_element_type=F32) + fc1b_ref[...]
        a_h = jax.nn.sigmoid(jnp.dot(fc20w_ref[...], th, preferred_element_type=F32)
                             + fc20b_ref[...])
        a_w = jax.nn.sigmoid(jnp.dot(fc21w_ref[...], tw, preferred_element_type=F32)
                             + fc21b_ref[...])
        gate = (jnp.dot(a_h, eh_ref[...], preferred_element_type=F32)
                * jnp.dot(a_w, ew_ref[...], preferred_element_type=F32))   # a_h * a_w  (Cr, HW)
        x1 = _group_norm(gate * xg, atta_ref[...], attg_ref[...], attb_ref[...], eps)
        # conv2 (3x3) as one stacked-tap matmul
        x2 = jnp.dot(w2_ref[...], _stack_taps(x1, mask_ref, img_w=img_w),
                     preferred_element_type=F32) + b2_ref[...]
        # channel-softmax cross attention + avg/max squeeze gating
        p1 = _softmax_channels(jnp.mean(x1, axis=1, keepdims=True))
        p2 = _softmax_channels(jnp.mean(x2, axis=1, keepdims=True))
        wgt = jax.nn.sigmoid(jnp.sum(p1 * x2, axis=0, keepdims=True)
                             + jnp.sum(p2 * x1, axis=0, keepdims=True))    # (1, HW)
        aggre = jax.nn.sigmoid(sq_ref[0] * jnp.mean(x2, axis=0, keepdims=True)
                               + sq_ref[1] * jnp.max(x2, axis=0, keepdims=True)
                               + sq_ref[2])
        attn_parts.append(x1 * wgt * aggre)

    # attn_conv (1x1 + bias) over the regrouped (C, HW) attention tensor
    attn = jnp.concatenate(attn_parts, axis=0).astype(BF16)
    attn = jnp.dot(acw_ref[...], attn, preferred_element_type=F32) + acb_ref[...]
    oattn_ref[...] = attn.astype(oattn_ref.dtype)

    # main path: radix sum -> conv3 (3x3 + bias) -> gn3
    xs = x[0:cr, :]
    for r in range(1, radix):
        xs = xs + x[r * cr:(r + 1) * cr, :]
    acc = jnp.dot(w3_ref[...], _stack_taps(xs, mask_ref, img_w=img_w),
                  preferred_element_type=F32) + b3_ref[...]
    out = _group_norm(acc, g3a_ref[...], g3g_ref[...], g3b_ref[...], eps)
    oxs_ref[...] = out.astype(oxs_ref.dtype)


def _conv3_bn_res_kernel(xs_ref, attn_ref, w_ref, scale_ref, shift_ref, res_ref, o_ref):
    """Fused (gelu(xs) * x_attn) gating prologue + bottleneck conv3 (1x1) + folded eval-BN (bn3)
    + residual add.  One batch item per step."""
    xin = (xs_ref[...].astype(F32) * attn_ref[...].astype(F32)).astype(BF16)
    acc = jnp.dot(w_ref[...], xin, preferred_element_type=F32)
    o_ref[...] = (acc * scale_ref[...] + shift_ref[...] + res_ref[...]).astype(o_ref.dtype)


# ----------------------------- pallas_call wrappers -----------------------------

def _cparams(n_grid):
    # explicit VMEM limit: safe on every generation (v7x has only 64 MiB physical VMEM)
    return pltpu.CompilerParams(dimension_semantics=("parallel",) * n_grid,
                                vmem_limit_bytes=32 * 1024 * 1024)


def _const_spec(arr):
    return pl.BlockSpec(arr.shape, lambda b, nd=arr.ndim: (0,) * nd)


def conv1_gn(x, w, gamma, beta, a, *, eps=1e-5):
    B, Cin, HW = x.shape
    C = w.shape[0]
    return pl.pallas_call(
        functools.partial(_conv1_gn_kernel, eps=eps),
        out_shape=jax.ShapeDtypeStruct((B, C, HW), BF16),
        grid=(B,),
        in_specs=[pl.BlockSpec((None, Cin, HW), lambda b: (b, 0, 0)),
                  _const_spec(w), _const_spec(gamma), _const_spec(beta), _const_spec(a)],
        out_specs=pl.BlockSpec((None, C, HW), lambda b: (b, 0, 0)),
        compiler_params=_cparams(1),
    )(x, w, gamma, beta, a)


def grouped_conv3x3_bn(x, w_bd, scale, shift, masks, *, img_w):
    B, C, HW = x.shape
    return pl.pallas_call(
        functools.partial(_grouped_conv_bn_kernel, img_w=img_w),
        out_shape=jax.ShapeDtypeStruct((B, C, HW), BF16),
        grid=(B,),
        in_specs=[_const_spec(masks),
                  pl.BlockSpec((None, C, HW), lambda b: (b, 0, 0)),
                  _const_spec(w_bd), _const_spec(scale), _const_spec(shift)],
        out_specs=pl.BlockSpec((None, C, HW), lambda b: (b, 0, 0)),
        compiler_params=_cparams(1),
    )(masks, x, w_bd, scale, shift)


def segrs_attn_main(xg, kp, *, radix, img_w, eps=1e-5):
    B, C, HW = xg.shape
    consts = [kp["pool_h"], kp["pool_w"], kp["exp_h"], kp["exp_w"],
              kp["fc1_w"], kp["fc1_b"], kp["fc20_w"], kp["fc20_b"],
              kp["fc21_w"], kp["fc21_b"],
              kp["attnorm_A"], kp["attnorm_gamma"], kp["attnorm_beta"],
              kp["blk_conv2_w"], kp["blk_conv2_b"],
              kp["attnconv_w"], kp["attnconv_b"],
              kp["blk_conv3_w"], kp["blk_conv3_b"],
              kp["gn3_A"], kp["gn3_gamma"], kp["gn3_beta"]]
    return pl.pallas_call(
        functools.partial(_segrs_attn_kernel, radix=radix, img_w=img_w, eps=eps),
        out_shape=(jax.ShapeDtypeStruct((B, C, HW), BF16),
                   jax.ShapeDtypeStruct((B, C, HW), BF16)),
        grid=(B,),
        in_specs=[pl.BlockSpec(memory_space=pltpu.MemorySpace.SMEM),
                  pl.BlockSpec((None, C, HW), lambda b: (b, 0, 0)),
                  _const_spec(kp["masks"])] + [_const_spec(c) for c in consts],
        out_specs=[pl.BlockSpec((None, C, HW), lambda b: (b, 0, 0)),
                   pl.BlockSpec((None, C, HW), lambda b: (b, 0, 0))],
        compiler_params=_cparams(1),
    )(kp["sq"], xg, kp["masks"], *consts)


def conv3_bn_residual(xs_g, attn, w, scale, shift, residual):
    B, C, HW = xs_g.shape
    Cout = w.shape[0]
    return pl.pallas_call(
        _conv3_bn_res_kernel,
        out_shape=jax.ShapeDtypeStruct((B, Cout, HW), F32),
        grid=(B,),
        in_specs=[pl.BlockSpec((None, C, HW), lambda b: (b, 0, 0)),
                  pl.BlockSpec((None, C, HW), lambda b: (b, 0, 0)),
                  _const_spec(w), _const_spec(scale), _const_spec(shift),
                  pl.BlockSpec((None, Cout, HW), lambda b: (b, 0, 0))],
        out_specs=pl.BlockSpec((None, Cout, HW), lambda b: (b, 0, 0)),
        compiler_params=_cparams(1),
    )(xs_g, attn, w, scale, shift, residual)


# ----------------------------- parameter preparation / forward -----------------------------

def gelu(x):
    return jax.nn.gelu(x, approximate=False)          # exact erf GELU == torch nn.GELU


def bn_scale_shift(gamma, beta, mean, var, eps=1e-5):
    s = gamma / jnp.sqrt(var + eps)
    return s, beta - mean * s


def prepare_params(p, *, radix, H, W):
    """Convert PyTorch-layout params into kernel-ready arrays (stacked-tap bf16 weights, folded BN)."""
    R = radix
    C = p["conv1_w"].shape[0]                        # group_width
    Cr = C // R
    Cf = p["conv3_w"].shape[0]
    attn = p["fc1_w"].shape[0]

    def col(v):
        return jnp.asarray(v, F32).reshape(-1, 1)

    def stack_w(w):                                  # (Cout, Cin, 3, 3) -> (Cout, 9*Cin)
        co, ci = w.shape[0], w.shape[1]
        return jnp.transpose(w.reshape(co, ci, 9), (0, 2, 1)).reshape(co, 9 * ci)

    bn0_s, bn0_t = bn_scale_shift(p["bn0_gamma"], p["bn0_beta"], p["bn0_mean"], p["bn0_var"])
    bn3_s, bn3_t = bn_scale_shift(p["bn3_gamma"], p["bn3_beta"], p["bn3_mean"], p["bn3_var"])
    pool_h, pool_w, exp_h, exp_w = _pool_expand_matrices(H, W)

    # block-diagonal stacked-tap weight for the grouped (groups = radix) 3x3 conv
    wg = jnp.transpose(p["blk_conv_w"].reshape(R, Cr, Cr, 9), (0, 1, 3, 2))   # (R, Cr_o, 9, Cr_i)
    w_bd = jnp.zeros((R, Cr, 9, R, Cr), F32)
    for r in range(R):
        w_bd = w_bd.at[r, :, :, r, :].set(wg[r])
    w_bd = w_bd.reshape(C, 9 * C)

    return dict(
        masks=_conv3x3_masks(H, W),
        pool_h=pool_h, pool_w=pool_w, exp_h=exp_h, exp_w=exp_w,
        # bottleneck conv1 + GroupNorm(bn1)
        conv1_w=p["conv1_w"].reshape(C, -1).astype(BF16),
        gn1_gamma=col(p["gn1_gamma"]), gn1_beta=col(p["gn1_beta"]),
        gn1_A=_group_avg_matrix(C, C // R),
        # SegRSBlock grouped conv (block-diagonal stacked taps) + folded eval-BatchNorm bn0
        blk_conv_w=w_bd.astype(BF16),
        bn0_scale=col(bn0_s), bn0_shift=col(bn0_t),
        # coordinate attention MLP (kept f32: negligible work, best fidelity)
        fc1_w=p["fc1_w"].reshape(attn, Cr).astype(F32), fc1_b=col(p["fc1_b"]),
        fc20_w=p["fc20_w"].reshape(Cr, attn).astype(F32), fc20_b=col(p["fc20_b"]),
        fc21_w=p["fc21_w"].reshape(Cr, attn).astype(F32), fc21_b=col(p["fc21_b"]),
        attnorm_A=_group_avg_matrix(Cr, max(Cr // R, 1)),
        attnorm_gamma=col(p["attnorm_gamma"]), attnorm_beta=col(p["attnorm_beta"]),
        # conv2 (stacked taps) + cross attention squeeze projector
        blk_conv2_w=stack_w(p["blk_conv2_w"]).astype(BF16),
        blk_conv2_b=col(p["blk_conv2_b"]),
        sq=jnp.stack([p["sq_w"][0, 0, 0, 0], p["sq_w"][0, 1, 0, 0], p["sq_b"][0]]).astype(F32),
        # attn_conv (1x1 with bias)
        attnconv_w=p["attnconv_w"].reshape(C, C).astype(BF16),
        attnconv_b=col(p["attnconv_b"]),
        # block conv3 (stacked taps, with bias) + gn3
        blk_conv3_w=stack_w(p["blk_conv3_w"]).astype(BF16),
        blk_conv3_b=col(p["blk_conv3_b"]),
        gn3_A=_group_avg_matrix(C, C // R),
        gn3_gamma=col(p["gn3_gamma"]), gn3_beta=col(p["gn3_beta"]),
        # bottleneck conv3 + folded eval-BatchNorm bn3
        conv3_w=p["conv3_w"].reshape(Cf, C).astype(BF16),
        bn3_scale=col(bn3_s), bn3_shift=col(bn3_t),
    )


def bottleneck_forward(x, params, radix=4):
    B, Cin, H, W = x.shape
    kp = prepare_params(params, radix=radix, H=H, W=W)
    xf = x.reshape(B, Cin, H * W).astype(F32)

    # conv1 (1x1) + GroupNorm(bn1), then exact erf-GELU (act1; plain-JAX, see TODO above)
    out = conv1_gn(xf, kp["conv1_w"], kp["gn1_gamma"], kp["gn1_beta"], kp["gn1_A"])
    out = gelu(out)

    # SegRSBlock grouped 3x3 conv (block-diagonal stacked taps) + folded bn0, then GELU (act0)
    xg = grouped_conv3x3_bn(out, kp["blk_conv_w"], kp["bn0_scale"], kp["bn0_shift"],
                            kp["masks"], img_w=W)
    xg = gelu(xg)

    # whole radix-attention block (attention path + radix-sum/conv3/gn3 main path) in one kernel
    attn, xs = segrs_attn_main(xg, kp, radix=radix, img_w=W)

    # act3 of the block (exact GELU, plain JAX); the gating multiply, bottleneck conv3, folded
    # bn3 and the residual add are all fused into the last kernel
    xs_g = gelu(xs)
    out = conv3_bn_residual(xs_g, attn, kp["conv3_w"], kp["bn3_scale"], kp["bn3_shift"], xf)
    out = gelu(out)                                   # bottleneck act3
    return out.reshape(B, -1, H, W)


# ----------------------------- deterministic parameter init -----------------------------

def make_divisible(v, divisor=8, min_value=None, round_limit=0.9):
    min_value = min_value or divisor
    new_v = max(min_value, int(v + divisor / 2) // divisor * divisor)
    if new_v < round_limit * v:
        new_v += divisor
    return new_v


def init_params(key, inplanes, planes, radix=4):
    gw = planes                                      # group_width (cardinality=1, base_width=64)
    Cr = gw // radix
    attn = make_divisible(gw * radix * 0.25, divisor=8, min_value=32)
    ks = iter(jax.random.split(key, 64))

    def rnd(shape, s=0.1):
        return s * jax.random.normal(next(ks), shape, F32)

    def gamma(n): return 1.0 + rnd((n,), 0.05)
    def beta(n): return rnd((n,), 0.05)
    def bnvar(n): return 1.0 + jnp.abs(rnd((n,), 0.1))

    return dict(
        conv1_w=rnd((gw, inplanes, 1, 1)),
        gn1_gamma=gamma(gw), gn1_beta=beta(gw),
        blk_conv_w=rnd((gw, Cr, 3, 3)),
        bn0_gamma=gamma(gw), bn0_beta=beta(gw), bn0_mean=rnd((gw,), 0.05), bn0_var=bnvar(gw),
        fc1_w=rnd((attn, Cr, 1, 1)), fc1_b=beta(attn),
        fc20_w=rnd((Cr, attn, 1, 1)), fc20_b=beta(Cr),
        fc21_w=rnd((Cr, attn, 1, 1)), fc21_b=beta(Cr),
        attnorm_gamma=gamma(Cr), attnorm_beta=beta(Cr),
        blk_conv2_w=rnd((Cr, Cr, 3, 3)), blk_conv2_b=beta(Cr),
        blk_conv3_w=rnd((gw, Cr, 3, 3)), blk_conv3_b=beta(gw),
        gn3_gamma=gamma(gw), gn3_beta=beta(gw),
        sq_w=rnd((1, 2, 1, 1)), sq_b=beta(1),
        attnconv_w=rnd((gw, gw, 1, 1)), attnconv_b=beta(gw),
        conv3_w=rnd((planes * 4, gw, 1, 1)),
        bn3_gamma=gamma(planes * 4), bn3_beta=beta(planes * 4),
        bn3_mean=rnd((planes * 4,), 0.05), bn3_var=bnvar(planes * 4),
    )


if __name__ == "__main__":
    inplanes, planes, radix = 64, 16, 4              # inplanes == planes*4 so the residual applies
    B, H, W = 2, 16, 16
    key = jax.random.PRNGKey(0)
    kx, kparam = jax.random.split(key)
    x = jax.random.normal(kx, (B, inplanes, H, W), F32)
    params = init_params(kparam, inplanes, planes, radix)

    fwd = jax.jit(functools.partial(bottleneck_forward, radix=radix))
    out = jax.block_until_ready(fwd(x, params))

    assert out.shape == (B, planes * 4, H, W), out.shape
    assert bool(jnp.all(jnp.isfinite(out)))
    print("KERNEL_OK")
</pallas_src>

<mosaic_0001>
module attributes {stable_mosaic.version = 11 : i64} {
  func.func @_conv1_gn_kernel(%arg0: i32, %arg1: memref<1x64x256xf32, #tpu.memory_space<vmem>>, %arg2: memref<16x64xbf16, #tpu.memory_space<vmem>>, %arg3: memref<16x1xf32, #tpu.memory_space<vmem>>, %arg4: memref<16x1xf32, #tpu.memory_space<vmem>>, %arg5: memref<16x16xf32, #tpu.memory_space<vmem>>, %arg6: memref<1x16x256xbf16, #tpu.memory_space<vmem>>) attributes {dimension_semantics = [#tpu.dimension_semantics<parallel>], iteration_bounds = array<i64: 2>, scalar_prefetch = 0 : i64, scratch_operands = 0 : i64, tpu.core_type = #tpu.core_type<tc>, window_params = [{transform_indices = @transform_0, window_bounds = array<i64: 1, 64, 256>}, {pipeline_mode = #tpu.pipeline_mode<synchronous>, transform_indices = @transform_1, window_bounds = array<i64: 16, 64>}, {pipeline_mode = #tpu.pipeline_mode<synchronous>, transform_indices = @transform_2, window_bounds = array<i64: 16, 1>}, {pipeline_mode = #tpu.pipeline_mode<synchronous>, transform_indices = @transform_3, window_bounds = array<i64: 16, 1>}, {pipeline_mode = #tpu.pipeline_mode<synchronous>, transform_indices = @transform_4, window_bounds = array<i64: 16, 16>}, {transform_indices = @transform_5, window_bounds = array<i64: 1, 16, 256>}]} {
    %c0 = arith.constant 0 : index
    %c0_0 = arith.constant 0 : index
    %0 = vector.load %arg2[%c0, %c0_0] : memref<16x64xbf16, #tpu.memory_space<vmem>>, vector<16x64xbf16>
    %c0_1 = arith.constant 0 : index
    %c0_2 = arith.constant 0 : index
    %c0_3 = arith.constant 0 : index
    %1 = vector.load %arg1[%c0_1, %c0_2, %c0_3] : memref<1x64x256xf32, #tpu.memory_space<vmem>>, vector<1x64x256xf32>
    %2 = vector.shape_cast %1 : vector<1x64x256xf32> to vector<64x256xf32>
    %3 = arith.truncf %2 : vector<64x256xf32> to vector<64x256xbf16>
    %cst = arith.constant dense<0.000000e+00> : vector<16x256xf32>
    %4 = tpu.matmul %0, %3, %cst {dimension_numbers = #tpu.dot_dimension_numbers<[1], [0], [0], [1], [0, 0, 1, 1], [], []>} : vector<16x64xbf16>, vector<64x256xbf16>, vector<16x256xf32> -> vector<16x256xf32>
    %c0_4 = arith.constant 0 : index
    %c0_5 = arith.constant 0 : index
    %5 = vector.load %arg5[%c0_4, %c0_5] : memref<16x16xf32, #tpu.memory_space<vmem>>, vector<16x16xf32>
    %c0_6 = arith.constant 0 : index
    %c0_7 = arith.constant 0 : index
    %6 = vector.load %arg3[%c0_6, %c0_7] : memref<16x1xf32, #tpu.memory_space<vmem>>, vector<16x1xf32>
    %c0_8 = arith.constant 0 : index
    %c0_9 = arith.constant 0 : index
    %7 = vector.load %arg4[%c0_8, %c0_9] : memref<16x1xf32, #tpu.memory_space<vmem>>, vector<16x1xf32>
    %cst_10 = arith.constant dense<0.000000e+00> : vector<16xf32>
    %8 = vector.multi_reduction <add>, %4, %cst_10 [1] : vector<16x256xf32> to vector<16xf32>
    %9 = vector.shape_cast %8 : vector<16xf32> to vector<16x1xf32>
    %cst_11 = arith.constant 2.560000e+02 : f32
    %10 = vector.broadcast %cst_11 : f32 to vector<16x1xf32>
    %11 = arith.divf %9, %10 : vector<16x1xf32>
    %cst_12 = arith.constant dense<0.000000e+00> : vector<16x1xf32>
    %12 = tpu.matmul %5, %11, %cst_12 {dimension_numbers = #tpu.dot_dimension_numbers<[1], [0], [0], [1], [0, 0, 1, 1], [], []>} : vector<16x16xf32>, vector<16x1xf32>, vector<16x1xf32> -> vector<16x1xf32>
    %13 = vector.broadcast %12 : vector<16x1xf32> to vector<16x256xf32>
    %14 = arith.subf %4, %13 : vector<16x256xf32>
    %15 = arith.mulf %14, %14 : vector<16x256xf32>
    %cst_13 = arith.constant dense<0.000000e+00> : vector<16xf32>
    %16 = vector.multi_reduction <add>, %15, %cst_13 [1] : vector<16x256xf32> to vector<16xf32>
    %17 = vector.shape_cast %16 : vector<16xf32> to vector<16x1xf32>
    %cst_14 = arith.constant 2.560000e+02 : f32
    %18 = vector.broadcast %cst_14 : f32 to vector<16x1xf32>
    %19 = arith.divf %17, %18 : vector<16x1xf32>
    %cst_15 = arith.constant dense<0.000000e+00> : vector<16x1xf32>
    %20 = tpu.matmul %5, %19, %cst_15 {dimension_numbers = #tpu.dot_dimension_numbers<[1], [0], [0], [1], [0, 0, 1, 1], [], []>} : vector<16x16xf32>, vector<16x1xf32>, vector<16x1xf32> -> vector<16x1xf32>
    %cst_16 = arith.constant 9.99999974E-6 : f32
    %21 = vector.broadcast %cst_16 : f32 to vector<16x1xf32>
    %22 = arith.addf %20, %21 : vector<16x1xf32>
    %23 = math.rsqrt %22 : vector<16x1xf32>
    %24 = vector.broadcast %23 : vector<16x1xf32> to vector<16x256xf32>
    %25 = arith.mulf %14, %24 : vector<16x256xf32>
    %26 = vector.broadcast %6 : vector<16x1xf32> to vector<16x256xf32>
    %27 = arith.mulf %25, %26 : vector<16x256xf32>
    %28 = vector.broadcast %7 : vector<16x1xf32> to vector<16x256xf32>
    %29 = arith.addf %27, %28 : vector<16x256xf32>
    %30 = arith.truncf %29 : vector<16x256xf32> to vector<16x256xbf16>
    %c0_17 = arith.constant 0 : index
    %c0_18 = arith.constant 0 : index
    %c0_19 = arith.constant 0 : index
    %31 = vector.load %arg6[%c0_17, %c0_18, %c0_19] : memref<1x16x256xbf16, #tpu.memory_space<vmem>>, vector<1x16x256xbf16>
    %32 = vector.shape_cast %31 : vector<1x16x256xbf16> to vector<16x256xbf16>
    %33 = vector.shape_cast %30 : vector<16x256xbf16> to vector<1x16x256xbf16>
    tpu.vector_store %arg6[%c0_17, %c0_18, %c0_19], %33 {strides = array<i32>} : memref<1x16x256xbf16, #tpu.memory_space<vmem>>, vector<1x16x256xbf16>,
    return
  }
  func.func @transform_0(%arg0: i32) -> (i32, i32, i32) {
    %c0_i32 = arith.constant 0 : i32
    %c0_i32_0 = arith.constant 0 : i32
    %c0_i32_1 = arith.constant 0 : i32
    return %arg0, %c0_i32, %c0_i32_0 : i32, i32, i32
  }
  func.func @transform_1(%arg0: i32) -> (i32, i32) {
    %c0_i32 = arith.constant 0 : i32
    %c0_i32_0 = arith.constant 0 : i32
    %c0_i32_1 = arith.constant 0 : i32
    return %c0_i32, %c0_i32_0 : i32, i32
  }
  func.func @transform_2(%arg0: i32) -> (i32, i32) {
    %c0_i32 = arith.constant 0 : i32
    %c0_i32_0 = arith.constant 0 : i32
    %c0_i32_1 = arith.constant 0 : i32
    return %c0_i32, %c0_i32_0 : i32, i32
  }
  func.func @transform_3(%arg0: i32) -> (i32, i32) {
    %c0_i32 = arith.constant 0 : i32
    %c0_i32_0 = arith.constant 0 : i32
    %c0_i32_1 = arith.constant 0 : i32
    return %c0_i32, %c0_i32_0 : i32, i32
  }
  func.func @transform_4(%arg0: i32) -> (i32, i32) {
    %c0_i32 = arith.constant 0 : i32
    %c0_i32_0 = arith.constant 0 : i32
    %c0_i32_1 = arith.constant 0 : i32
    return %c0_i32, %c0_i32_0 : i32, i32
  }
  func.func @transform_5(%arg0: i32) -> (i32, i32, i32) {
    %c0_i32 = arith.constant 0 : i32
    %c0_i32_0 = arith.constant 0 : i32
    %c0_i32_1 = arith.constant 0 : i32
    return %arg0, %c0_i32, %c0_i32_0 : i32, i32, i32
  }
}

module attributes {stable_mosaic.version = 11 : i64} {
  func.func @_grouped_conv_bn_kernel(%arg0: i32, %arg1: memref<9x1x256xf32, #tpu.memory_space<vmem>>, %arg2: memref<1x16x256xbf16, #tpu.memory_space<vmem>>, %arg3: memref<16x144xbf16, #tpu.memory_space<vmem>>, %arg4: memref<16x1xf32, #tpu.memory_space<vmem>>, %arg5: memref<16x1xf32, #tpu.memory_space<vmem>>, %arg6: memref<1x16x256xbf16, #tpu.memory_space<vmem>>) attributes {dimension_semantics = [#tpu.dimension_semantics<parallel>], iteration_bounds = array<i64: 2>, scalar_prefetch = 0 : i64, scratch_operands = 0 : i64, tpu.core_type = #tpu.core_type<tc>, window_params = [{pipeline_mode = #tpu.pipeline_mode<synchronous>, transform_indices = @transform_0, window_bounds = array<i64: 9, 1, 256>}, {transform_indices = @transform_1, window_bounds = array<i64: 1, 16, 256>}, {pipeline_mode = #tpu.pipeline_mode<synchronous>, transform_indices = @transform_2, window_bounds = array<i64: 16, 144>}, {pipeline_mode = #tpu.pipeline_mode<synchronous>, transform_indices = @transform_3, window_bounds = array<i64: 16, 1>}, {pipeline_mode = #tpu.pipeline_mode<synchronous>, transform_indices = @transform_4, window_bounds = array<i64: 16, 1>}, {transform_indices = @transform_5, window_bounds = array<i64: 1, 16, 256>}]} {
    %c0 = arith.constant 0 : index
    %c0_0 = arith.constant 0 : index
    %c0_1 = arith.constant 0 : index
    %0 = vector.load %arg2[%c0, %c0_0, %c0_1] : memref<1x16x256xbf16, #tpu.memory_space<vmem>>, vector<1x16x256xbf16>
    %1 = vector.shape_cast %0 : vector<1x16x256xbf16> to vector<16x256xbf16>
    %2 = arith.extf %1 : vector<16x256xbf16> to vector<16x256xf32>
    %c17_i32 = arith.constant 17 : i32
    %3 = tpu.dynamic_rotate %2 by %c17_i32 dim 1 : vector<16x256xf32>, i32 -> vector<16x256xf32>
    %c0_2 = arith.constant 0 : index
    %c0_3 = arith.constant 0 : index
    %c0_4 = arith.constant 0 : index
    %4 = vector.load %arg1[%c0_2, %c0_3, %c0_4] : memref<9x1x256xf32, #tpu.memory_space<vmem>>, vector<1x1x256xf32>
    %5 = vector.shape_cast %4 : vector<1x1x256xf32> to vector<1x256xf32>
    %6 = vector.broadcast %5 : vector<1x256xf32> to vector<16x256xf32>
    %7 = arith.mulf %3, %6 : vector<16x256xf32>
    %c16_i32 = arith.constant 16 : i32
    %8 = tpu.dynamic_rotate %2 by %c16_i32 dim 1 : vector<16x256xf32>, i32 -> vector<16x256xf32>
    %c1 = arith.constant 1 : index
    %c0_5 = arith.constant 0 : index
    %c0_6 = arith.constant 0 : index
    %9 = vector.load %arg1[%c1, %c0_5, %c0_6] : memref<9x1x256xf32, #tpu.memory_space<vmem>>, vector<1x1x256xf32>
    %10 = vector.shape_cast %9 : vector<1x1x256xf32> to vector<1x256xf32>
    %11 = vector.broadcast %10 : vector<1x256xf32> to vector<16x256xf32>
    %12 = arith.mulf %8, %11 : vector<16x256xf32>
    %c15_i32 = arith.constant 15 : i32
    %13 = tpu.dynamic_rotate %2 by %c15_i32 dim 1 : vector<16x256xf32>, i32 -> vector<16x256xf32>
    %c2 = arith.constant 2 : index
    %c0_7 = arith.constant 0 : index
    %c0_8 = arith.constant 0 : index
    %14 = vector.load %arg1[%c2, %c0_7, %c0_8] : memref<9x1x256xf32, #tpu.memory_space<vmem>>, vector<1x1x256xf32>
    %15 = vector.shape_cast %14 : vector<1x1x256xf32> to vector<1x256xf32>
    %16 = vector.broadcast %15 : vector<1x256xf32> to vector<16x256xf32>
    %17 = arith.mulf %13, %16 : vector<16x256xf32>
    %c1_i32 = arith.constant 1 : i32
    %18 = tpu.dynamic_rotate %2 by %c1_i32 dim 1 : vector<16x256xf32>, i32 -> vector<16x256xf32>
    %c3 = arith.constant 3 : index
    %c0_9 = arith.constant 0 : index
    %c0_10 = arith.constant 0 : index
    %19 = vector.load %arg1[%c3, %c0_9, %c0_10] : memref<9x1x256xf32, #tpu.memory_space<vmem>>, vector<1x1x256xf32>
    %20 = vector.shape_cast %19 : vector<1x1x256xf32> to vector<1x256xf32>
    %21 = vector.broadcast %20 : vector<1x256xf32> to vector<16x256xf32>
    %22 = arith.mulf %18, %21 : vector<16x256xf32>
    %c4 = arith.constant 4 : index
    %c0_11 = arith.constant 0 : index
    %c0_12 = arith.constant 0 : index
    %23 = vector.load %arg1[%c4, %c0_11, %c0_12] : memref<9x1x256xf32, #tpu.memory_space<vmem>>, vector<1x1x256xf32>
    %24 = vector.shape_cast %23 : vector<1x1x256xf32> to vector<1x256xf32>
    %25 = vector.broadcast %24 : vector<1x256xf32> to vector<16x256xf32>
    %26 = arith.mulf %2, %25 : vector<16x256xf32>
    %c255_i32 = arith.constant 255 : i32
    %27 = tpu.dynamic_rotate %2 by %c255_i32 dim 1 : vector<16x256xf32>, i32 -> vector<16x256xf32>
    %c5 = arith.constant 5 : index
    %c0_13 = arith.constant 0 : index
    %c0_14 = arith.constant 0 : index
    %28 = vector.load %arg1[%c5, %c0_13, %c0_14] : memref<9x1x256xf32, #tpu.memory_space<vmem>>, vector<1x1x256xf32>
    %29 = vector.shape_cast %28 : vector<1x1x256xf32> to vector<1x256xf32>
    %30 = vector.broadcast %29 : vector<1x256xf32> to vector<16x256xf32>
    %31 = arith.mulf %27, %30 : vector<16x256xf32>
    %c241_i32 = arith.constant 241 : i32
    %32 = tpu.dynamic_rotate %2 by %c241_i32 dim 1 : vector<16x256xf32>, i32 -> vector<16x256xf32>
    %c6 = arith.constant 6 : index
    %c0_15 = arith.constant 0 : index
    %c0_16 = arith.constant 0 : index
    %33 = vector.load %arg1[%c6, %c0_15, %c0_16] : memref<9x1x256xf32, #tpu.memory_space<vmem>>, vector<1x1x256xf32>
    %34 = vector.shape_cast %33 : vector<1x1x256xf32> to vector<1x256xf32>
    %35 = vector.broadcast %34 : vector<1x256xf32> to vector<16x256xf32>
    %36 = arith.mulf %32, %35 : vector<16x256xf32>
    %c240_i32 = arith.constant 240 : i32
    %37 = tpu.dynamic_rotate %2 by %c240_i32 dim 1 : vector<16x256xf32>, i32 -> vector<16x256xf32>
    %c7 = arith.constant 7 : index
    %c0_17 = arith.constant 0 : index
    %c0_18 = arith.constant 0 : index
    %38 = vector.load %arg1[%c7, %c0_17, %c0_18] : memref<9x1x256xf32, #tpu.memory_space<vmem>>, vector<1x1x256xf32>
    %39 = vector.shape_cast %38 : vector<1x1x256xf32> to vector<1x256xf32>
    %40 = vector.broadcast %39 : vector<1x256xf32> to vector<16x256xf32>
    %41 = arith.mulf %37, %40 : vector<16x256xf32>
    %c239_i32 = arith.constant 239 : i32
    %42 = tpu.dynamic_rotate %2 by %c239_i32 dim 1 : vector<16x256xf32>, i32 -> vector<16x256xf32>
    %c8 = arith.constant 8 : index
    %c0_19 = arith.constant 0 : index
    %c0_20 = arith.constant 0 : index
    %43 = vector.load %arg1[%c8, %c0_19, %c0_20] : memref<9x1x256xf32, #tpu.memory_space<vmem>>, vector<1x1x256xf32>
    %44 = vector.shape_cast %43 : vector<1x1x256xf32> to vector<1x256xf32>
    %45 = vector.broadcast %44 : vector<1x256xf32> to vector<16x256xf32>
    %46 = arith.mulf %42, %45 : vector<16x256xf32>
    %47 = tpu.concatenate %7, %12, %17, %22, %26, %31, %36, %41, %46 in 0 : vector<16x256xf32>, vector<16x256xf32>, vector<16x256xf32>, vector<16x256xf32>, vector<16x256xf32>, vector<16x256xf32>, vector<16x256xf32>, vector<16x256xf32>, vector<16x256xf32> -> vector<144x256xf32>
    %48 = arith.truncf %47 : vector<144x256xf32> to vector<144x256xbf16>
    %c0_21 = arith.constant 0 : index
    %c0_22 = arith.constant 0 : index
    %49 = vector.load %arg3[%c0_21, %c0_22] : memref<16x144xbf16, #tpu.memory_space<vmem>>, vector<16x144xbf16>
    %cst = arith.constant dense<0.000000e+00> : vector<16x256xf32>
    %50 = tpu.matmul %49, %48, %cst {dimension_numbers = #tpu.dot_dimension_numbers<[1], [0], [0], [1], [0, 0, 1, 1], [], []>} : vector<16x144xbf16>, vector<144x256xbf16>, vector<16x256xf32> -> vector<16x256xf32>
    %c0_23 = arith.constant 0 : index
    %c0_24 = arith.constant 0 : index
    %51 = vector.load %arg4[%c0_23, %c0_24] : memref<16x1xf32, #tpu.memory_space<vmem>>, vector<16x1xf32>
    %52 = vector.broadcast %51 : vector<16x1xf32> to vector<16x256xf32>
    %53 = arith.mulf %50, %52 : vector<16x256xf32>
    %c0_25 = arith.constant 0 : index
    %c0_26 = arith.constant 0 : index
    %54 = vector.load %arg5[%c0_25, %c0_26] : memref<16x1xf32, #tpu.memory_space<vmem>>, vector<16x1xf32>
    %55 = vector.broadcast %54 : vector<16x1xf32> to vector<16x256xf32>
    %56 = arith.addf %53, %55 : vector<16x256xf32>
    %57 = arith.truncf %56 : vector<16x256xf32> to vector<16x256xbf16>
    %c0_27 = arith.constant 0 : index
    %c0_28 = arith.constant 0 : index
    %c0_29 = arith.constant 0 : index
    %58 = vector.load %arg6[%c0_27, %c0_28, %c0_29] : memref<1x16x256xbf16, #tpu.memory_space<vmem>>, vector<1x16x256xbf16>
    %59 = vector.shape_cast %58 : vector<1x16x256xbf16> to vector<16x256xbf16>
    %60 = vector.shape_cast %57 : vector<16x256xbf16> to vector<1x16x256xbf16>
    tpu.vector_store %arg6[%c0_27, %c0_28, %c0_29], %60 {strides = array<i32>} : memref<1x16x256xbf16, #tpu.memory_space<vmem>>, vector<1x16x256xbf16>,
    return
  }
  func.func @transform_0(%arg0: i32) -> (i32, i32, i32) {
    %c0_i32 = arith.constant 0 : i32
    %c0_i32_0 = arith.constant 0 : i32
    %c0_i32_1 = arith.constant 0 : i32
    %c0_i32_2 = arith.constant 0 : i32
    return %c0_i32, %c0_i32_0, %c0_i32_1 : i32, i32, i32
  }
  func.func @transform_1(%arg0: i32) -> (i32, i32, i32) {
    %c0_i32 = arith.constant 0 : i32
    %c0_i32_0 = arith.constant 0 : i32
    %c0_i32_1 = arith.constant 0 : i32
    return %arg0, %c0_i32, %c0_i32_0 : i32, i32, i32
  }
  func.func @transform_2(%arg0: i32) -> (i32, i32) {
    %c0_i32 = arith.constant 0 : i32
    %c0_i32_0 = arith.constant 0 : i32
    %c0_i32_1 = arith.constant 0 : i32
    return %c0_i32, %c0_i32_0 : i32, i32
  }
  func.func @transform_3(%arg0: i32) -> (i32, i32) {
    %c0_i32 = arith.constant 0 : i32
    %c0_i32_0 = arith.constant 0 : i32
    %c0_i32_1 = arith.constant 0 : i32
    return %c0_i32, %c0_i32_0 : i32, i32
  }
  func.func @transform_4(%arg0: i32) -> (i32, i32) {
    %c0_i32 = arith.constant 0 : i32
    %c0_i32_0 = arith.constant 0 : i32
    %c0_i32_1 = arith.constant 0 : i32
    return %c0_i32, %c0_i32_0 : i32, i32
  }
  func.func @transform_5(%arg0: i32) -> (i32, i32, i32) {
    %c0_i32 = arith.constant 0 : i32
    %c0_i32_0 = arith.constant 0 : i32
    %c0_i32_1 = arith.constant 0 : i32
    return %arg0, %c0_i32, %c0_i32_0 : i32, i32, i32
  }
}

module attributes {stable_mosaic.version = 11 : i64} {
  func.func @_conv3_bn_res_kernel(%arg0: i32, %arg1: memref<1x16x256xbf16, #tpu.memory_space<vmem>>, %arg2: memref<1x16x256xbf16, #tpu.memory_space<vmem>>, %arg3: memref<64x16xbf16, #tpu.memory_space<vmem>>, %arg4: memref<64x1xf32, #tpu.memory_space<vmem>>, %arg5: memref<64x1xf32, #tpu.memory_space<vmem>>, %arg6: memref<1x64x256xf32, #tpu.memory_space<vmem>>, %arg7: memref<1x64x256xf32, #tpu.memory_space<vmem>>) attributes {dimension_semantics = [#tpu.dimension_semantics<parallel>], iteration_bounds = array<i64: 2>, scalar_prefetch = 0 : i64, scratch_operands = 0 : i64, tpu.core_type = #tpu.core_type<tc>, window_params = [{transform_indices = @transform_0, window_bounds = array<i64: 1, 16, 256>}, {transform_indices = @transform_1, window_bounds = array<i64: 1, 16, 256>}, {pipeline_mode = #tpu.pipeline_mode<synchronous>, transform_indices = @transform_2, window_bounds = array<i64: 64, 16>}, {pipeline_mode = #tpu.pipeline_mode<synchronous>, transform_indices = @transform_3, window_bounds = array<i64: 64, 1>}, {pipeline_mode = #tpu.pipeline_mode<synchronous>, transform_indices = @transform_4, window_bounds = array<i64: 64, 1>}, {transform_indices = @transform_5, window_bounds = array<i64: 1, 64, 256>}, {transform_indices = @transform_6, window_bounds = array<i64: 1, 64, 256>}]} {
    %c0 = arith.constant 0 : index
    %c0_0 = arith.constant 0 : index
    %c0_1 = arith.constant 0 : index
    %0 = vector.load %arg1[%c0, %c0_0, %c0_1] : memref<1x16x256xbf16, #tpu.memory_space<vmem>>, vector<1x16x256xbf16>
    %1 = vector.shape_cast %0 : vector<1x16x256xbf16> to vector<16x256xbf16>
    %2 = arith.extf %1 : vector<16x256xbf16> to vector<16x256xf32>
    %c0_2 = arith.constant 0 : index
    %c0_3 = arith.constant 0 : index
    %c0_4 = arith.constant 0 : index
    %3 = vector.load %arg2[%c0_2, %c0_3, %c0_4] : memref<1x16x256xbf16, #tpu.memory_space<vmem>>, vector<1x16x256xbf16>
    %4 = vector.shape_cast %3 : vector<1x16x256xbf16> to vector<16x256xbf16>
    %5 = arith.extf %4 : vector<16x256xbf16> to vector<16x256xf32>
    %6 = arith.mulf %2, %5 : vector<16x256xf32>
    %7 = arith.truncf %6 : vector<16x256xf32> to vector<16x256xbf16>
    %c0_5 = arith.constant 0 : index
    %c0_6 = arith.constant 0 : index
    %8 = vector.load %arg3[%c0_5, %c0_6] : memref<64x16xbf16, #tpu.memory_space<vmem>>, vector<64x16xbf16>
    %cst = arith.constant dense<0.000000e+00> : vector<64x256xf32>
    %9 = tpu.matmul %8, %7, %cst {dimension_numbers = #tpu.dot_dimension_numbers<[1], [0], [0], [1], [0, 0, 1, 1], [], []>} : vector<64x16xbf16>, vector<16x256xbf16>, vector<64x256xf32> -> vector<64x256xf32>
    %c0_7 = arith.constant 0 : index
    %c0_8 = arith.constant 0 : index
    %10 = vector.load %arg4[%c0_7, %c0_8] : memref<64x1xf32, #tpu.memory_space<vmem>>, vector<64x1xf32>
    %11 = vector.broadcast %10 : vector<64x1xf32> to vector<64x256xf32>
    %12 = arith.mulf %9, %11 : vector<64x256xf32>
    %c0_9 = arith.constant 0 : index
    %c0_10 = arith.constant 0 : index
    %13 = vector.load %arg5[%c0_9, %c0_10] : memref<64x1xf32, #tpu.memory_space<vmem>>, vector<64x1xf32>
    %14 = vector.broadcast %13 : vector<64x1xf32> to vector<64x256xf32>
    %15 = arith.addf %12, %14 : vector<64x256xf32>
    %c0_11 = arith.constant 0 : index
    %c0_12 = arith.constant 0 : index
    %c0_13 = arith.constant 0 : index
    %16 = vector.load %arg6[%c0_11, %c0_12, %c0_13] : memref<1x64x256xf32, #tpu.memory_space<vmem>>, vector<1x64x256xf32>
    %17 = vector.shape_cast %16 : vector<1x64x256xf32> to vector<64x256xf32>
    %18 = arith.addf %15, %17 : vector<64x256xf32>
    %c0_14 = arith.constant 0 : index
    %c0_15 = arith.constant 0 : index
    %c0_16 = arith.constant 0 : index
    %19 = vector.load %arg7[%c0_14, %c0_15, %c0_16] : memref<1x64x256xf32, #tpu.memory_space<vmem>>, vector<1x64x256xf32>
    %20 = vector.shape_cast %19 : vector<1x64x256xf32> to vector<64x256xf32>
    %21 = vector.shape_cast %18 : vector<64x256xf32> to vector<1x64x256xf32>
    tpu.vector_store %arg7[%c0_14, %c0_15, %c0_16], %21 {strides = array<i32>} : memref<1x64x256xf32, #tpu.memory_space<vmem>>, vector<1x64x256xf32>,
    return
  }
  func.func @transform_0(%arg0: i32) -> (i32, i32, i32) {
    %c0_i32 = arith.constant 0 : i32
    %c0_i32_0 = arith.constant 0 : i32
    %c0_i32_1 = arith.constant 0 : i32
    return %arg0, %c0_i32, %c0_i32_0 : i32, i32, i32
  }
  func.func @transform_1(%arg0: i32) -> (i32, i32, i32) {
    %c0_i32 = arith.constant 0 : i32
    %c0_i32_0 = arith.constant 0 : i32
    %c0_i32_1 = arith.constant 0 : i32
    return %arg0, %c0_i32, %c0_i32_0 : i32, i32, i32
  }
  func.func @transform_2(%arg0: i32) -> (i32, i32) {
    %c0_i32 = arith.constant 0 : i32
    %c0_i32_0 = arith.constant 0 : i32
    %c0_i32_1 = arith.constant 0 : i32
    return %c0_i32, %c0_i32_0 : i32, i32
  }
  func.func @transform_3(%arg0: i32) -> (i32, i32) {
    %c0_i32 = arith.constant 0 : i32
    %c0_i32_0 = arith.constant 0 : i32
    %c0_i32_1 = arith.constant 0 : i32
    return %c0_i32, %c0_i32_0 : i32, i32
  }
  func.func @transform_4(%arg0: i32) -> (i32, i32) {
    %c0_i32 = arith.constant 0 : i32
    %c0_i32_0 = arith.constant 0 : i32
    %c0_i32_1 = arith.constant 0 : i32
    return %c0_i32, %c0_i32_0 : i32, i32
  }
  func.func @transform_5(%arg0: i32) -> (i32, i32, i32) {
    %c0_i32 = arith.constant 0 : i32
    %c0_i32_0 = arith.constant 0 : i32
    %c0_i32_1 = arith.constant 0 : i32
    return %arg0, %c0_i32, %c0_i32_0 : i32, i32, i32
  }
  func.func @transform_6(%arg0: i32) -> (i32, i32, i32) {
    %c0_i32 = arith.constant 0 : i32
    %c0_i32_0 = arith.constant 0 : i32
    %c0_i32_1 = arith.constant 0 : i32
    return %arg0, %c0_i32, %c0_i32_0 : i32, i32, i32
  }
}

module attributes {stable_mosaic.version = 11 : i64} {
  func.func @_segrs_attn_kernel(%arg0: i32, %arg1: memref<3xf32, #tpu.memory_space<smem>>, %arg2: memref<1x16x256xbf16, #tpu.memory_space<vmem>>, %arg3: memref<9x1x256xf32, #tpu.memory_space<vmem>>, %arg4: memref<256x16xf32, #tpu.memory_space<vmem>>, %arg5: memref<256x16xf32, #tpu.memory_space<vmem>>, %arg6: memref<16x256xf32, #tpu.memory_space<vmem>>, %arg7: memref<16x256xf32, #tpu.memory_space<vmem>>, %arg8: memref<32x4xf32, #tpu.memory_space<vmem>>, %arg9: memref<32x1xf32, #tpu.memory_space<vmem>>, %arg10: memref<4x32xf32, #tpu.memory_space<vmem>>, %arg11: memref<4x1xf32, #tpu.memory_space<vmem>>, %arg12: memref<4x32xf32, #tpu.memory_space<vmem>>, %arg13: memref<4x1xf32, #tpu.memory_space<vmem>>, %arg14: memref<4x4xf32, #tpu.memory_space<vmem>>, %arg15: memref<4x1xf32, #tpu.memory_space<vmem>>, %arg16: memref<4x1xf32, #tpu.memory_space<vmem>>, %arg17: memref<4x36xbf16, #tpu.memory_space<vmem>>, %arg18: memref<4x1xf32, #tpu.memory_space<vmem>>, %arg19: memref<16x16xbf16, #tpu.memory_space<vmem>>, %arg20: memref<16x1xf32, #tpu.memory_space<vmem>>, %arg21: memref<16x36xbf16, #tpu.memory_space<vmem>>, %arg22: memref<16x1xf32, #tpu.memory_space<vmem>>, %arg23: memref<16x16xf32, #tpu.memory_space<vmem>>, %arg24: memref<16x1xf32, #tpu.memory_space<vmem>>, %arg25: memref<16x1xf32, #tpu.memory_space<vmem>>, %arg26: memref<1x16x256xbf16, #tpu.memory_space<vmem>>, %arg27: memref<1x16x256xbf16, #tpu.memory_space<vmem>>) attributes {dimension_semantics = [#tpu.dimension_semantics<parallel>], iteration_bounds = array<i64: 2>, scalar_prefetch = 0 : i64, scratch_operands = 0 : i64, tpu.core_type = #tpu.core_type<tc>, window_params = [{transform_indices = @transform_0, window_bounds = array<i64: 3>}, {transform_indices = @transform_1, window_bounds = array<i64: 1, 16, 256>}, {pipeline_mode = #tpu.pipeline_mode<synchronous>, transform_indices = @transform_2, window_bounds = array<i64: 9, 1, 256>}, {pipeline_mode = #tpu.pipeline_mode<synchronous>, transform_indices = @transform_3, window_bounds = array<i64: 256, 16>}, {pipeline_mode = #tpu.pipeline_mode<synchronous>, transform_indices = @transform_4, window_bounds = array<i64: 256, 16>}, {pipeline_mode = #tpu.pipeline_mode<synchronous>, transform_indices = @transform_5, window_bounds = array<i64: 16, 256>}, {pipeline_mode = #tpu.pipeline_mode<synchronous>, transform_indices = @transform_6, window_bounds = array<i64: 16, 256>}, {pipeline_mode = #tpu.pipeline_mode<synchronous>, transform_indices = @transform_7, window_bounds = array<i64: 32, 4>}, {pipeline_mode = #tpu.pipeline_mode<synchronous>, transform_indices = @transform_8, window_bounds = array<i64: 32, 1>}, {pipeline_mode = #tpu.pipeline_mode<synchronous>, transform_indices = @transform_9, window_bounds = array<i64: 4, 32>}, {pipeline_mode = #tpu.pipeline_mode<synchronous>, transform_indices = @transform_10, window_bounds = array<i64: 4, 1>}, {pipeline_mode = #tpu.pipeline_mode<synchronous>, transform_indices = @transform_11, window_bounds = array<i64: 4, 32>}, {pipeline_mode = #tpu.pipeline_mode<synchronous>, transform_indices = @transform_12, window_bounds = array<i64: 4, 1>}, {pipeline_mode = #tpu.pipeline_mode<synchronous>, transform_indices = @transform_13, window_bounds = array<i64: 4, 4>}, {pipeline_mode = #tpu.pipeline_mode<synchronous>, transform_indices = @transform_14, window_bounds = array<i64: 4, 1>}, {pipeline_mode = #tpu.pipeline_mode<synchronous>, transform_indices = @transform_15, window_bounds = array<i64: 4, 1>}, {pipeline_mode = #tpu.pipeline_mode<synchronous>, transform_indices = @transform_16, window_bounds = array<i64: 4, 36>}, {pipeline_mode = #tpu.pipeline_mode<synchronous>, transform_indices = @transform_17, window_bounds = array<i64: 4, 1>}, {pipeline_mode = #tpu.pipeline_mode<synchronous>, transform_indices = @transform_18, window_bounds = array<i64: 16, 16>}, {pipeline_mode = #tpu.pipeline_mode<synchronous>, transform_indices = @transform_19, window_bounds = array<i64: 16, 1>}, {pipeline_mode = #tpu.pipeline_mode<synchronous>, transform_indices = @transform_20, window_bounds = array<i64: 16, 36>}, {pipeline_mode = #tpu.pipeline_mode<synchronous>, transform_indices = @transform_21, window_bounds = array<i64: 16, 1>}, {pipeline_mode = #tpu.pipeline_mode<synchronous>, transform_indices = @transform_22, window_bounds = array<i64: 16, 16>}, {pipeline_mode = #tpu.pipeline_mode<synchronous>, transform_indices = @transform_23, window_bounds = array<i64: 16, 1>}, {pipeline_mode = #tpu.pipeline_mode<synchronous>, transform_indices = @transform_24, window_bounds = array<i64: 16, 1>}, {transform_indices = @transform_25, window_bounds = array<i64: 1, 16, 256>}, {transform_indices = @transform_26, window_bounds = array<i64: 1, 16, 256>}]} {
    %c0 = arith.constant 0 : index
    %c0_0 = arith.constant 0 : index
    %c0_1 = arith.constant 0 : index
    %0 = vector.load %arg2[%c0, %c0_0, %c0_1] : memref<1x16x256xbf16, #tpu.memory_space<vmem>>, vector<1x16x256xbf16>
    %1 = vector.shape_cast %0 : vector<1x16x256xbf16> to vector<16x256xbf16>
    %2 = arith.extf %1 : vector<16x256xbf16> to vector<16x256xf32>
    %3 = vector.extract_strided_slice %2 {offsets = [0, 0], sizes = [4, 256], strides = [1, 1]} : vector<16x256xf32> to vector<4x256xf32>
    %c0_2 = arith.constant 0 : index
    %c0_3 = arith.constant 0 : index
    %4 = vector.load %arg4[%c0_2, %c0_3] : memref<256x16xf32, #tpu.memory_space<vmem>>, vector<256x16xf32>
    %cst = arith.constant dense<0.000000e+00> : vector<4x16xf32>
    %5 = tpu.matmul %3, %4, %cst {dimension_numbers = #tpu.dot_dimension_numbers<[1], [0], [0], [1], [0, 0, 1, 1], [], []>} : vector<4x256xf32>, vector<256x16xf32>, vector<4x16xf32> -> vector<4x16xf32>
    %c0_4 = arith.constant 0 : index
    %c0_5 = arith.constant 0 : index
    %6 = vector.load %arg5[%c0_4, %c0_5] : memref<256x16xf32, #tpu.memory_space<vmem>>, vector<256x16xf32>
    %cst_6 = arith.constant dense<0.000000e+00> : vector<4x16xf32>
    %7 = tpu.matmul %3, %6, %cst_6 {dimension_numbers = #tpu.dot_dimension_numbers<[1], [0], [0], [1], [0, 0, 1, 1], [], []>} : vector<4x256xf32>, vector<256x16xf32>, vector<4x16xf32> -> vector<4x16xf32>
    %c0_7 = arith.constant 0 : index
    %c0_8 = arith.constant 0 : index
    %8 = vector.load %arg8[%c0_7, %c0_8] : memref<32x4xf32, #tpu.memory_space<vmem>>, vector<32x4xf32>
    %cst_9 = arith.constant dense<0.000000e+00> : vector<32x16xf32>
    %9 = tpu.matmul %8, %5, %cst_9 {dimension_numbers = #tpu.dot_dimension_numbers<[1], [0], [0], [1], [0, 0, 1, 1], [], []>} : vector<32x4xf32>, vector<4x16xf32>, vector<32x16xf32> -> vector<32x16xf32>
    %c0_10 = arith.constant 0 : index
    %c0_11 = arith.constant 0 : index
    %10 = vector.load %arg9[%c0_10, %c0_11] : memref<32x1xf32, #tpu.memory_space<vmem>>, vector<32x1xf32>
    %11 = vector.broadcast %10 : vector<32x1xf32> to vector<32x16xf32>
    %12 = arith.addf %9, %11 : vector<32x16xf32>
    %c0_12 = arith.constant 0 : index
    %c0_13 = arith.constant 0 : index
    %13 = vector.load %arg8[%c0_12, %c0_13] : memref<32x4xf32, #tpu.memory_space<vmem>>, vector<32x4xf32>
    %cst_14 = arith.constant dense<0.000000e+00> : vector<32x16xf32>
    %14 = tpu.matmul %13, %7, %cst_14 {dimension_numbers = #tpu.dot_dimension_numbers<[1], [0], [0], [1], [0, 0, 1, 1], [], []>} : vector<32x4xf32>, vector<4x16xf32>, vector<32x16xf32> -> vector<32x16xf32>
    %c0_15 = arith.constant 0 : index
    %c0_16 = arith.constant 0 : index
    %15 = vector.load %arg9[%c0_15, %c0_16] : memref<32x1xf32, #tpu.memory_space<vmem>>, vector<32x1xf32>
    %16 = vector.broadcast %15 : vector<32x1xf32> to vector<32x16xf32>
    %17 = arith.addf %14, %16 : vector<32x16xf32>
    %c0_17 = arith.constant 0 : index
    %c0_18 = arith.constant 0 : index
    %18 = vector.load %arg10[%c0_17, %c0_18] : memref<4x32xf32, #tpu.memory_space<vmem>>, vector<4x32xf32>
    %cst_19 = arith.constant dense<0.000000e+00> : vector<4x16xf32>
    %19 = tpu.matmul %18, %12, %cst_19 {dimension_numbers = #tpu.dot_dimension_numbers<[1], [0], [0], [1], [0, 0, 1, 1], [], []>} : vector<4x32xf32>, vector<32x16xf32>, vector<4x16xf32> -> vector<4x16xf32>
    %c0_20 = arith.constant 0 : index
    %c0_21 = arith.constant 0 : index
    %20 = vector.load %arg11[%c0_20, %c0_21] : memref<4x1xf32, #tpu.memory_space<vmem>>, vector<4x1xf32>
    %21 = vector.broadcast %20 : vector<4x1xf32> to vector<4x16xf32>
    %22 = arith.addf %19, %21 : vector<4x16xf32>
    %23 = arith.negf %22 : vector<4x16xf32>
    %24 = math.exp %23 : vector<4x16xf32>
    %cst_22 = arith.constant 1.000000e+00 : f32
    %25 = vector.broadcast %cst_22 : f32 to vector<4x16xf32>
    %26 = arith.addf %25, %24 : vector<4x16xf32>
    %27 = arith.divf %25, %26 : vector<4x16xf32>
    %c0_23 = arith.constant 0 : index
    %c0_24 = arith.constant 0 : index
    %28 = vector.load %arg12[%c0_23, %c0_24] : memref<4x32xf32, #tpu.memory_space<vmem>>, vector<4x32xf32>
    %cst_25 = arith.constant dense<0.000000e+00> : vector<4x16xf32>
    %29 = tpu.matmul %28, %17, %cst_25 {dimension_numbers = #tpu.dot_dimension_numbers<[1], [0], [0], [1], [0, 0, 1, 1], [], []>} : vector<4x32xf32>, vector<32x16xf32>, vector<4x16xf32> -> vector<4x16xf32>
    %c0_26 = arith.constant 0 : index
    %c0_27 = arith.constant 0 : index
    %30 = vector.load %arg13[%c0_26, %c0_27] : memref<4x1xf32, #tpu.memory_space<vmem>>, vector<4x1xf32>
    %31 = vector.broadcast %30 : vector<4x1xf32> to vector<4x16xf32>
    %32 = arith.addf %29, %31 : vector<4x16xf32>
    %33 = arith.negf %32 : vector<4x16xf32>
    %34 = math.exp %33 : vector<4x16xf32>
    %cst_28 = arith.constant 1.000000e+00 : f32
    %35 = vector.broadcast %cst_28 : f32 to vector<4x16xf32>
    %36 = arith.addf %35, %34 : vector<4x16xf32>
    %37 = arith.divf %35, %36 : vector<4x16xf32>
    %c0_29 = arith.constant 0 : index
    %c0_30 = arith.constant 0 : index
    %38 = vector.load %arg6[%c0_29, %c0_30] : memref<16x256xf32, #tpu.memory_space<vmem>>, vector<16x256xf32>
    %cst_31 = arith.constant dense<0.000000e+00> : vector<4x256xf32>
    %39 = tpu.matmul %27, %38, %cst_31 {dimension_numbers = #tpu.dot_dimension_numbers<[1], [0], [0], [1], [0, 0, 1, 1], [], []>} : vector<4x16xf32>, vector<16x256xf32>, vector<4x256xf32> -> vector<4x256xf32>
    %c0_32 = arith.constant 0 : index
    %c0_33 = arith.constant 0 : index
    %40 = vector.load %arg7[%c0_32, %c0_33] : memref<16x256xf32, #tpu.memory_space<vmem>>, vector<16x256xf32>
    %cst_34 = arith.constant dense<0.000000e+00> : vector<4x256xf32>
    %41 = tpu.matmul %37, %40, %cst_34 {dimension_numbers = #tpu.dot_dimension_numbers<[1], [0], [0], [1], [0, 0, 1, 1], [], []>} : vector<4x16xf32>, vector<16x256xf32>, vector<4x256xf32> -> vector<4x256xf32>
    %42 = arith.mulf %39, %41 : vector<4x256xf32>
    %43 = arith.mulf %42, %3 : vector<4x256xf32>
    %c0_35 = arith.constant 0 : index
    %c0_36 = arith.constant 0 : index
    %44 = vector.load %arg14[%c0_35, %c0_36] : memref<4x4xf32, #tpu.memory_space<vmem>>, vector<4x4xf32>
    %c0_37 = arith.constant 0 : index
    %c0_38 = arith.constant 0 : index
    %45 = vector.load %arg15[%c0_37, %c0_38] : memref<4x1xf32, #tpu.memory_space<vmem>>, vector<4x1xf32>
    %c0_39 = arith.constant 0 : index
    %c0_40 = arith.constant 0 : index
    %46 = vector.load %arg16[%c0_39, %c0_40] : memref<4x1xf32, #tpu.memory_space<vmem>>, vector<4x1xf32>
    %cst_41 = arith.constant dense<0.000000e+00> : vector<4xf32>
    %47 = vector.multi_reduction <add>, %43, %cst_41 [1] : vector<4x256xf32> to vector<4xf32>
    %48 = vector.shape_cast %47 : vector<4xf32> to vector<4x1xf32>
    %cst_42 = arith.constant 2.560000e+02 : f32
    %49 = vector.broadcast %cst_42 : f32 to vector<4x1xf32>
    %50 = arith.divf %48, %49 : vector<4x1xf32>
    %cst_43 = arith.constant dense<0.000000e+00> : vector<4x1xf32>
    %51 = tpu.matmul %44, %50, %cst_43 {dimension_numbers = #tpu.dot_dimension_numbers<[1], [0], [0], [1], [0, 0, 1, 1], [], []>} : vector<4x4xf32>, vector<4x1xf32>, vector<4x1xf32> -> vector<4x1xf32>
    %52 = vector.broadcast %51 : vector<4x1xf32> to vector<4x256xf32>
    %53 = arith.subf %43, %52 : vector<4x256xf32>
    %54 = arith.mulf %53, %53 : vector<4x256xf32>
    %cst_44 = arith.constant dense<0.000000e+00> : vector<4xf32>
    %55 = vector.multi_reduction <add>, %54, %cst_44 [1] : vector<4x256xf32> to vector<4xf32>
    %56 = vector.shape_cast %55 : vector<4xf32> to vector<4x1xf32>
    %cst_45 = arith.constant 2.560000e+02 : f32
    %57 = vector.broadcast %cst_45 : f32 to vector<4x1xf32>
    %58 = arith.divf %56, %57 : vector<4x1xf32>
    %cst_46 = arith.constant dense<0.000000e+00> : vector<4x1xf32>
    %59 = tpu.matmul %44, %58, %cst_46 {dimension_numbers = #tpu.dot_dimension_numbers<[1], [0], [0], [1], [0, 0, 1, 1], [], []>} : vector<4x4xf32>, vector<4x1xf32>, vector<4x1xf32> -> vector<4x1xf32>
    %cst_47 = arith.constant 9.99999974E-6 : f32
    %60 = vector.broadcast %cst_47 : f32 to vector<4x1xf32>
    %61 = arith.addf %59, %60 : vector<4x1xf32>
    %62 = math.rsqrt %61 : vector<4x1xf32>
    %63 = vector.broadcast %62 : vector<4x1xf32> to vector<4x256xf32>
    %64 = arith.mulf %53, %63 : vector<4x256xf32>
    %65 = vector.broadcast %45 : vector<4x1xf32> to vector<4x256xf32>
    %66 = arith.mulf %64, %65 : vector<4x256xf32>
    %67 = vector.broadcast %46 : vector<4x1xf32> to vector<4x256xf32>
    %68 = arith.addf %66, %67 : vector<4x256xf32>
    %c0_48 = arith.constant 0 : index
    %c0_49 = arith.constant 0 : index
    %69 = vector.load %arg17[%c0_48, %c0_49] : memref<4x36xbf16, #tpu.memory_space<vmem>>, vector<4x36xbf16>
    %c17_i32 = arith.constant 17 : i32
    %70 = tpu.dynamic_rotate %68 by %c17_i32 dim 1 : vector<4x256xf32>, i32 -> vector<4x256xf32>
    %c0_50 = arith.constant 0 : index
    %c0_51 = arith.constant 0 : index
    %c0_52 = arith.constant 0 : index
    %71 = vector.load %arg3[%c0_50, %c0_51, %c0_52] : memref<9x1x256xf32, #tpu.memory_space<vmem>>, vector<1x1x256xf32>
    %72 = vector.shape_cast %71 : vector<1x1x256xf32> to vector<1x256xf32>
    %73 = vector.broadcast %72 : vector<1x256xf32> to vector<4x256xf32>
    %74 = arith.mulf %70, %73 : vector<4x256xf32>
    %c16_i32 = arith.constant 16 : i32
    %75 = tpu.dynamic_rotate %68 by %c16_i32 dim 1 : vector<4x256xf32>, i32 -> vector<4x256xf32>
    %c1 = arith.constant 1 : index
    %c0_53 = arith.constant 0 : index
    %c0_54 = arith.constant 0 : index
    %76 = vector.load %arg3[%c1, %c0_53, %c0_54] : memref<9x1x256xf32, #tpu.memory_space<vmem>>, vector<1x1x256xf32>
    %77 = vector.shape_cast %76 : vector<1x1x256xf32> to vector<1x256xf32>
    %78 = vector.broadcast %77 : vector<1x256xf32> to vector<4x256xf32>
    %79 = arith.mulf %75, %78 : vector<4x256xf32>
    %c15_i32 = arith.constant 15 : i32
    %80 = tpu.dynamic_rotate %68 by %c15_i32 dim 1 : vector<4x256xf32>, i32 -> vector<4x256xf32>
    %c2 = arith.constant 2 : index
    %c0_55 = arith.constant 0 : index
    %c0_56 = arith.constant 0 : index
    %81 = vector.load %arg3[%c2, %c0_55, %c0_56] : memref<9x1x256xf32, #tpu.memory_space<vmem>>, vector<1x1x256xf32>
    %82 = vector.shape_cast %81 : vector<1x1x256xf32> to vector<1x256xf32>
    %83 = vector.broadcast %82 : vector<1x256xf32> to vector<4x256xf32>
    %84 = arith.mulf %80, %83 : vector<4x256xf32>
    %c1_i32 = arith.constant 1 : i32
    %85 = tpu.dynamic_rotate %68 by %c1_i32 dim 1 : vector<4x256xf32>, i32 -> vector<4x256xf32>
    %c3 = arith.constant 3 : index
    %c0_57 = arith.constant 0 : index
    %c0_58 = arith.constant 0 : index
    %86 = vector.load %arg3[%c3, %c0_57, %c0_58] : memref<9x1x256xf32, #tpu.memory_space<vmem>>, vector<1x1x256xf32>
    %87 = vector.shape_cast %86 : vector<1x1x256xf32> to vector<1x256xf32>
    %88 = vector.broadcast %87 : vector<1x256xf32> to vector<4x256xf32>
    %89 = arith.mulf %85, %88 : vector<4x256xf32>
    %c4 = arith.constant 4 : index
    %c0_59 = arith.constant 0 : index
    %c0_60 = arith.constant 0 : index
    %90 = vector.load %arg3[%c4, %c0_59, %c0_60] : memref<9x1x256xf32, #tpu.memory_space<vmem>>, vector<1x1x256xf32>
    %91 = vector.shape_cast %90 : vector<1x1x256xf32> to vector<1x256xf32>
    %92 = vector.broadcast %91 : vector<1x256xf32> to vector<4x256xf32>
    %93 = arith.mulf %68, %92 : vector<4x256xf32>
    %c255_i32 = arith.constant 255 : i32
    %94 = tpu.dynamic_rotate %68 by %c255_i32 dim 1 : vector<4x256xf32>, i32 -> vector<4x256xf32>
    %c5 = arith.constant 5 : index
    %c0_61 = arith.constant 0 : index
    %c0_62 = arith.constant 0 : index
    %95 = vector.load %arg3[%c5, %c0_61, %c0_62] : memref<9x1x256xf32, #tpu.memory_space<vmem>>, vector<1x1x256xf32>
    %96 = vector.shape_cast %95 : vector<1x1x256xf32> to vector<1x256xf32>
    %97 = vector.broadcast %96 : vector<1x256xf32> to vector<4x256xf32>
    %98 = arith.mulf %94, %97 : vector<4x256xf32>
    %c241_i32 = arith.constant 241 : i32
    %99 = tpu.dynamic_rotate %68 by %c241_i32 dim 1 : vector<4x256xf32>, i32 -> vector<4x256xf32>
    %c6 = arith.constant 6 : index
    %c0_63 = arith.constant 0 : index
    %c0_64 = arith.constant 0 : index
    %100 = vector.load %arg3[%c6, %c0_63, %c0_64] : memref<9x1x256xf32, #tpu.memory_space<vmem>>, vector<1x1x256xf32>
    %101 = vector.shape_cast %100 : vector<1x1x256xf32> to vector<1x256xf32>
    %102 = vector.broadcast %101 : vector<1x256xf32> to vector<4x256xf32>
    %103 = arith.mulf %99, %102 : vector<4x256xf32>
    %c240_i32 = arith.constant 240 : i32
    %104 = tpu.dynamic_rotate %68 by %c240_i32 dim 1 : vector<4x256xf32>, i32 -> vector<4x256xf32>
    %c7 = arith.constant 7 : index
    %c0_65 = arith.constant 0 : index
    %c0_66 = arith.constant 0 : index
    %105 = vector.load %arg3[%c7, %c0_65, %c0_66] : memref<9x1x256xf32, #tpu.memory_space<vmem>>, vector<1x1x256xf32>
    %106 = vector.shape_cast %105 : vector<1x1x256xf32> to vector<1x256xf32>
    %107 = vector.broadcast %106 : vector<1x256xf32> to vector<4x256xf32>
    %108 = arith.mulf %104, %107 : vector<4x256xf32>
    %c239_i32 = arith.constant 239 : i32
    %109 = tpu.dynamic_rotate %68 by %c239_i32 dim 1 : vector<4x256xf32>, i32 -> vector<4x256xf32>
    %c8 = arith.constant 8 : index
    %c0_67 = arith.constant 0 : index
    %c0_68 = arith.constant 0 : index
    %110 = vector.load %arg3[%c8, %c0_67, %c0_68] : memref<9x1x256xf32, #tpu.memory_space<vmem>>, vector<1x1x256xf32>
    %111 = vector.shape_cast %110 : vector<1x1x256xf32> to vector<1x256xf32>
    %112 = vector.broadcast %111 : vector<1x256xf32> to vector<4x256xf32>
    %113 = arith.mulf %109, %112 : vector<4x256xf32>
    %114 = tpu.concatenate %74, %79, %84, %89, %93, %98, %103, %108, %113 in 0 : vector<4x256xf32>, vector<4x256xf32>, vector<4x256xf32>, vector<4x256xf32>, vector<4x256xf32>, vector<4x256xf32>, vector<4x256xf32>, vector<4x256xf32>, vector<4x256xf32> -> vector<36x256xf32>
    %115 = arith.truncf %114 : vector<36x256xf32> to vector<36x256xbf16>
    %cst_69 = arith.constant dense<0.000000e+00> : vector<4x256xf32>
    %116 = tpu.matmul %69, %115, %cst_69 {dimension_numbers = #tpu.dot_dimension_numbers<[1], [0], [0], [1], [0, 0, 1, 1], [], []>} : vector<4x36xbf16>, vector<36x256xbf16>, vector<4x256xf32> -> vector<4x256xf32>
    %c0_70 = arith.constant 0 : index
    %c0_71 = arith.constant 0 : index
    %117 = vector.load %arg18[%c0_70, %c0_71] : memref<4x1xf32, #tpu.memory_space<vmem>>, vector<4x1xf32>
    %118 = vector.broadcast %117 : vector<4x1xf32> to vector<4x256xf32>
    %119 = arith.addf %116, %118 : vector<4x256xf32>
    %cst_72 = arith.constant dense<0.000000e+00> : vector<4xf32>
    %120 = vector.multi_reduction <add>, %68, %cst_72 [1] : vector<4x256xf32> to vector<4xf32>
    %121 = vector.shape_cast %120 : vector<4xf32> to vector<4x1xf32>
    %cst_73 = arith.constant 2.560000e+02 : f32
    %122 = vector.broadcast %cst_73 : f32 to vector<4x1xf32>
    %123 = arith.divf %121, %122 : vector<4x1xf32>
    %cst_74 = arith.constant dense<0xFF800000> : vector<1xf32>
    %124 = vector.multi_reduction <maximumf>, %123, %cst_74 [0] : vector<4x1xf32> to vector<1xf32>
    %125 = vector.shape_cast %124 : vector<1xf32> to vector<1x1xf32>
    %126 = vector.broadcast %125 : vector<1x1xf32> to vector<4x1xf32>
    %127 = arith.subf %123, %126 : vector<4x1xf32>
    %128 = math.exp %127 : vector<4x1xf32>
    %cst_75 = arith.constant dense<0.000000e+00> : vector<1xf32>
    %129 = vector.multi_reduction <add>, %128, %cst_75 [0] : vector<4x1xf32> to vector<1xf32>
    %130 = vector.shape_cast %129 : vector<1xf32> to vector<1x1xf32>
    %131 = vector.broadcast %130 : vector<1x1xf32> to vector<4x1xf32>
    %132 = arith.divf %128, %131 : vector<4x1xf32>
    %cst_76 = arith.constant dense<0.000000e+00> : vector<4xf32>
    %133 = vector.multi_reduction <add>, %119, %cst_76 [1] : vector<4x256xf32> to vector<4xf32>
    %134 = vector.shape_cast %133 : vector<4xf32> to vector<4x1xf32>
    %cst_77 = arith.constant 2.560000e+02 : f32
    %135 = vector.broadcast %cst_77 : f32 to vector<4x1xf32>
    %136 = arith.divf %134, %135 : vector<4x1xf32>
    %cst_78 = arith.constant dense<0xFF800000> : vector<1xf32>
    %137 = vector.multi_reduction <maximumf>, %136, %cst_78 [0] : vector<4x1xf32> to vector<1xf32>
    %138 = vector.shape_cast %137 : vector<1xf32> to vector<1x1xf32>
    %139 = vector.broadcast %138 : vector<1x1xf32> to vector<4x1xf32>
    %140 = arith.subf %136, %139 : vector<4x1xf32>
    %141 = math.exp %140 : vector<4x1xf32>
    %cst_79 = arith.constant dense<0.000000e+00> : vector<1xf32>
    %142 = vector.multi_reduction <add>, %141, %cst_79 [0] : vector<4x1xf32> to vector<1xf32>
    %143 = vector.shape_cast %142 : vector<1xf32> to vector<1x1xf32>
    %144 = vector.broadcast %143 : vector<1x1xf32> to vector<4x1xf32>
    %145 = arith.divf %141, %144 : vector<4x1xf32>
    %146 = vector.broadcast %132 : vector<4x1xf32> to vector<4x256xf32>
    %147 = arith.mulf %146, %119 : vector<4x256xf32>
    %cst_80 = arith.constant dense<0.000000e+00> : vector<256xf32>
    %148 = vector.multi_reduction <add>, %147, %cst_80 [0] : vector<4x256xf32> to vector<256xf32>
    %149 = vector.shape_cast %148 : vector<256xf32> to vector<1x256xf32>
    %150 = vector.broadcast %145 : vector<4x1xf32> to vector<4x256xf32>
    %151 = arith.mulf %150, %68 : vector<4x256xf32>
    %cst_81 = arith.constant dense<0.000000e+00> : vector<256xf32>
    %152 = vector.multi_reduction <add>, %151, %cst_81 [0] : vector<4x256xf32> to vector<256xf32>
    %153 = vector.shape_cast %152 : vector<256xf32> to vector<1x256xf32>
    %154 = arith.addf %149, %153 : vector<1x256xf32>
    %155 = arith.negf %154 : vector<1x256xf32>
    %156 = math.exp %155 : vector<1x256xf32>
    %cst_82 = arith.constant 1.000000e+00 : f32
    %157 = vector.broadcast %cst_82 : f32 to vector<1x256xf32>
    %158 = arith.addf %157, %156 : vector<1x256xf32>
    %159 = arith.divf %157, %158 : vector<1x256xf32>
    %c0_83 = arith.constant 0 : index
    %160 = memref.load %arg1[%c0_83] : memref<3xf32, #tpu.memory_space<smem>>
    %cst_84 = arith.constant dense<0.000000e+00> : vector<256xf32>
    %161 = vector.multi_reduction <add>, %119, %cst_84 [0] : vector<4x256xf32> to vector<256xf32>
    %162 = vector.shape_cast %161 : vector<256xf32> to vector<1x256xf32>
    %cst_85 = arith.constant 4.000000e+00 : f32
    %163 = vector.broadcast %cst_85 : f32 to vector<1x256xf32>
    %164 = arith.divf %162, %163 : vector<1x256xf32>
    %165 = vector.broadcast %160 : f32 to vector<1x256xf32>
    %166 = arith.mulf %165, %164 : vector<1x256xf32>
    %c1_86 = arith.constant 1 : index
    %167 = memref.load %arg1[%c1_86] : memref<3xf32, #tpu.memory_space<smem>>
    %cst_87 = arith.constant dense<0xFF800000> : vector<256xf32>
    %168 = vector.multi_reduction <maximumf>, %119, %cst_87 [0] : vector<4x256xf32> to vector<256xf32>
    %169 = vector.shape_cast %168 : vector<256xf32> to vector<1x256xf32>
    %170 = vector.broadcast %167 : f32 to vector<1x256xf32>
    %171 = arith.mulf %170, %169 : vector<1x256xf32>
    %172 = arith.addf %166, %171 : vector<1x256xf32>
    %c2_88 = arith.constant 2 : index
    %173 = memref.load %arg1[%c2_88] : memref<3xf32, #tpu.memory_space<smem>>
    %174 = vector.broadcast %173 : f32 to vector<1x256xf32>
    %175 = arith.addf %172, %174 : vector<1x256xf32>
    %176 = arith.negf %175 : vector<1x256xf32>
    %177 = math.exp %176 : vector<1x256xf32>
    %cst_89 = arith.constant 1.000000e+00 : f32
    %178 = vector.broadcast %cst_89 : f32 to vector<1x256xf32>
    %179 = arith.addf %178, %177 : vector<1x256xf32>
    %180 = arith.divf %178, %179 : vector<1x256xf32>
    %181 = vector.broadcast %159 : vector<1x256xf32> to vector<4x256xf32>
    %182 = arith.mulf %68, %181 : vector<4x256xf32>
    %183 = vector.broadcast %180 : vector<1x256xf32> to vector<4x256xf32>
    %184 = arith.mulf %182, %183 : vector<4x256xf32>
    %185 = vector.extract_strided_slice %2 {offsets = [4, 0], sizes = [4, 256], strides = [1, 1]} : vector<16x256xf32> to vector<4x256xf32>
    %c0_90 = arith.constant 0 : index
    %c0_91 = arith.constant 0 : index
    %186 = vector.load %arg4[%c0_90, %c0_91] : memref<256x16xf32, #tpu.memory_space<vmem>>, vector<256x16xf32>
    %cst_92 = arith.constant dense<0.000000e+00> : vector<4x16xf32>
    %187 = tpu.matmul %185, %186, %cst_92 {dimension_numbers = #tpu.dot_dimension_numbers<[1], [0], [0], [1], [0, 0, 1, 1], [], []>} : vector<4x256xf32>, vector<256x16xf32>, vector<4x16xf32> -> vector<4x16xf32>
    %c0_93 = arith.constant 0 : index
    %c0_94 = arith.constant 0 : index
    %188 = vector.load %arg5[%c0_93, %c0_94] : memref<256x16xf32, #tpu.memory_space<vmem>>, vector<256x16xf32>
    %cst_95 = arith.constant dense<0.000000e+00> : vector<4x16xf32>
    %189 = tpu.matmul %185, %188, %cst_95 {dimension_numbers = #tpu.dot_dimension_numbers<[1], [0], [0], [1], [0, 0, 1, 1], [], []>} : vector<4x256xf32>, vector<256x16xf32>, vector<4x16xf32> -> vector<4x16xf32>
    %c0_96 = arith.constant 0 : index
    %c0_97 = arith.constant 0 : index
    %190 = vector.load %arg8[%c0_96, %c0_97] : memref<32x4xf32, #tpu.memory_space<vmem>>, vector<32x4xf32>
    %cst_98 = arith.constant dense<0.000000e+00> : vector<32x16xf32>
    %191 = tpu.matmul %190, %187, %cst_98 {dimension_numbers = #tpu.dot_dimension_numbers<[1], [0], [0], [1], [0, 0, 1, 1], [], []>} : vector<32x4xf32>, vector<4x16xf32>, vector<32x16xf32> -> vector<32x16xf32>
    %c0_99 = arith.constant 0 : index
    %c0_100 = arith.constant 0 : index
    %192 = vector.load %arg9[%c0_99, %c0_100] : memref<32x1xf32, #tpu.memory_space<vmem>>, vector<32x1xf32>
    %193 = vector.broadcast %192 : vector<32x1xf32> to vector<32x16xf32>
    %194 = arith.addf %191, %193 : vector<32x16xf32>
    %c0_101 = arith.constant 0 : index
    %c0_102 = arith.constant 0 : index
    %195 = vector.load %arg8[%c0_101, %c0_102] : memref<32x4xf32, #tpu.memory_space<vmem>>, vector<32x4xf32>
    %cst_103 = arith.constant dense<0.000000e+00> : vector<32x16xf32>
    %196 = tpu.matmul %195, %189, %cst_103 {dimension_numbers = #tpu.dot_dimension_numbers<[1], [0], [0], [1], [0, 0, 1, 1], [], []>} : vector<32x4xf32>, vector<4x16xf32>, vector<32x16xf32> -> vector<32x16xf32>
    %c0_104 = arith.constant 0 : index
    %c0_105 = arith.constant 0 : index
    %197 = vector.load %arg9[%c0_104, %c0_105] : memref<32x1xf32, #tpu.memory_space<vmem>>, vector<32x1xf32>
    %198 = vector.broadcast %197 : vector<32x1xf32> to vector<32x16xf32>
    %199 = arith.addf %196, %198 : vector<32x16xf32>
    %c0_106 = arith.constant 0 : index
    %c0_107 = arith.constant 0 : index
    %200 = vector.load %arg10[%c0_106, %c0_107] : memref<4x32xf32, #tpu.memory_space<vmem>>, vector<4x32xf32>
    %cst_108 = arith.constant dense<0.000000e+00> : vector<4x16xf32>
    %201 = tpu.matmul %200, %194, %cst_108 {dimension_numbers = #tpu.dot_dimension_numbers<[1], [0], [0], [1], [0, 0, 1, 1], [], []>} : vector<4x32xf32>, vector<32x16xf32>, vector<4x16xf32> -> vector<4x16xf32>
    %c0_109 = arith.constant 0 : index
    %c0_110 = arith.constant 0 : index
    %202 = vector.load %arg11[%c0_109, %c0_110] : memref<4x1xf32, #tpu.memory_space<vmem>>, vector<4x1xf32>
    %203 = vector.broadcast %202 : vector<4x1xf32> to vector<4x16xf32>
    %204 = arith.addf %201, %203 : vector<4x16xf32>
    %205 = arith.negf %204 : vector<4x16xf32>
    %206 = math.exp %205 : vector<4x16xf32>
    %cst_111 = arith.constant 1.000000e+00 : f32
    %207 = vector.broadcast %cst_111 : f32 to vector<4x16xf32>
    %208 = arith.addf %207, %206 : vector<4x16xf32>
    %209 = arith.divf %207, %208 : vector<4x16xf32>
    %c0_112 = arith.constant 0 : index
    %c0_113 = arith.constant 0 : index
    %210 = vector.load %arg12[%c0_112, %c0_113] : memref<4x32xf32, #tpu.memory_space<vmem>>, vector<4x32xf32>
    %cst_114 = arith.constant dense<0.000000e+00> : vector<4x16xf32>
    %211 = tpu.matmul %210, %199, %cst_114 {dimension_numbers = #tpu.dot_dimension_numbers<[1], [0], [0], [1], [0, 0, 1, 1], [], []>} : vector<4x32xf32>, vector<32x16xf32>, vector<4x16xf32> -> vector<4x16xf32>
    %c0_115 = arith.constant 0 : index
    %c0_116 = arith.constant 0 : index
    %212 = vector.load %arg13[%c0_115, %c0_116] : memref<4x1xf32, #tpu.memory_space<vmem>>, vector<4x1xf32>
    %213 = vector.broadcast %212 : vector<4x1xf32> to vector<4x16xf32>
    %214 = arith.addf %211, %213 : vector<4x16xf32>
    %215 = arith.negf %214 : vector<4x16xf32>
    %216 = math.exp %215 : vector<4x16xf32>
    %cst_117 = arith.constant 1.000000e+00 : f32
    %217 = vector.broadcast %cst_117 : f32 to vector<4x16xf32>
    %218 = arith.addf %217, %216 : vector<4x16xf32>
    %219 = arith.divf %217, %218 : vector<4x16xf32>
    %c0_118 = arith.constant 0 : index
    %c0_119 = arith.constant 0 : index
    %220 = vector.load %arg6[%c0_118, %c0_119] : memref<16x256xf32, #tpu.memory_space<vmem>>, vector<16x256xf32>
    %cst_120 = arith.constant dense<0.000000e+00> : vector<4x256xf32>
    %221 = tpu.matmul %209, %220, %cst_120 {dimension_numbers = #tpu.dot_dimension_numbers<[1], [0], [0], [1], [0, 0, 1, 1], [], []>} : vector<4x16xf32>, vector<16x256xf32>, vector<4x256xf32> -> vector<4x256xf32>
    %c0_121 = arith.constant 0 : index
    %c0_122 = arith.constant 0 : index
    %222 = vector.load %arg7[%c0_121, %c0_122] : memref<16x256xf32, #tpu.memory_space<vmem>>, vector<16x256xf32>
    %cst_123 = arith.constant dense<0.000000e+00> : vector<4x256xf32>
    %223 = tpu.matmul %219, %222, %cst_123 {dimension_numbers = #tpu.dot_dimension_numbers<[1], [0], [0], [1], [0, 0, 1, 1], [], []>} : vector<4x16xf32>, vector<16x256xf32>, vector<4x256xf32> -> vector<4x256xf32>
    %224 = arith.mulf %221, %223 : vector<4x256xf32>
    %225 = arith.mulf %224, %185 : vector<4x256xf32>
    %c0_124 = arith.constant 0 : index
    %c0_125 = arith.constant 0 : index
    %226 = vector.load %arg14[%c0_124, %c0_125] : memref<4x4xf32, #tpu.memory_space<vmem>>, vector<4x4xf32>
    %c0_126 = arith.constant 0 : index
    %c0_127 = arith.constant 0 : index
    %227 = vector.load %arg15[%c0_126, %c0_127] : memref<4x1xf32, #tpu.memory_space<vmem>>, vector<4x1xf32>
    %c0_128 = arith.constant 0 : index
    %c0_129 = arith.constant 0 : index
    %228 = vector.load %arg16[%c0_128, %c0_129] : memref<4x1xf32, #tpu.memory_space<vmem>>, vector<4x1xf32>
    %cst_130 = arith.constant dense<0.000000e+00> : vector<4xf32>
    %229 = vector.multi_reduction <add>, %225, %cst_130 [1] : vector<4x256xf32> to vector<4xf32>
    %230 = vector.shape_cast %229 : vector<4xf32> to vector<4x1xf32>
    %cst_131 = arith.constant 2.560000e+02 : f32
    %231 = vector.broadcast %cst_131 : f32 to vector<4x1xf32>
    %232 = arith.divf %230, %231 : vector<4x1xf32>
    %cst_132 = arith.constant dense<0.000000e+00> : vector<4x1xf32>
    %233 = tpu.matmul %226, %232, %cst_132 {dimension_numbers = #tpu.dot_dimension_numbers<[1], [0], [0], [1], [0, 0, 1, 1], [], []>} : vector<4x4xf32>, vector<4x1xf32>, vector<4x1xf32> -> vector<4x1xf32>
    %234 = vector.broadcast %233 : vector<4x1xf32> to vector<4x256xf32>
    %235 = arith.subf %225, %234 : vector<4x256xf32>
    %236 = arith.mulf %235, %235 : vector<4x256xf32>
    %cst_133 = arith.constant dense<0.000000e+00> : vector<4xf32>
    %237 = vector.multi_reduction <add>, %236, %cst_133 [1] : vector<4x256xf32> to vector<4xf32>
    %238 = vector.shape_cast %237 : vector<4xf32> to vector<4x1xf32>
    %cst_134 = arith.constant 2.560000e+02 : f32
    %239 = vector.broadcast %cst_134 : f32 to vector<4x1xf32>
    %240 = arith.divf %238, %239 : vector<4x1xf32>
    %cst_135 = arith.constant dense<0.000000e+00> : vector<4x1xf32>
    %241 = tpu.matmul %226, %240, %cst_135 {dimension_numbers = #tpu.dot_dimension_numbers<[1], [0], [0], [1], [0, 0, 1, 1], [], []>} : vector<4x4xf32>, vector<4x1xf32>, vector<4x1xf32> -> vector<4x1xf32>
    %cst_136 = arith.constant 9.99999974E-6 : f32
    %242 = vector.broadcast %cst_136 : f32 to vector<4x1xf32>
    %243 = arith.addf %241, %242 : vector<4x1xf32>
    %244 = math.rsqrt %243 : vector<4x1xf32>
    %245 = vector.broadcast %244 : vector<4x1xf32> to vector<4x256xf32>
    %246 = arith.mulf %235, %245 : vector<4x256xf32>
    %247 = vector.broadcast %227 : vector<4x1xf32> to vector<4x256xf32>
    %248 = arith.mulf %246, %247 : vector<4x256xf32>
    %249 = vector.broadcast %228 : vector<4x1xf32> to vector<4x256xf32>
    %250 = arith.addf %248, %249 : vector<4x256xf32>
    %c0_137 = arith.constant 0 : index
    %c0_138 = arith.constant 0 : index
    %251 = vector.load %arg17[%c0_137, %c0_138] : memref<4x36xbf16, #tpu.memory_space<vmem>>, vector<4x36xbf16>
    %c17_i32_139 = arith.constant 17 : i32
    %252 = tpu.dynamic_rotate %250 by %c17_i32_139 dim 1 : vector<4x256xf32>, i32 -> vector<4x256xf32>
    %c0_140 = arith.constant 0 : index
    %c0_141 = arith.constant 0 : index
    %c0_142 = arith.constant 0 : index
    %253 = vector.load %arg3[%c0_140, %c0_141, %c0_142] : memref<9x1x256xf32, #tpu.memory_space<vmem>>, vector<1x1x256xf32>
    %254 = vector.shape_cast %253 : vector<1x1x256xf32> to vector<1x256xf32>
    %255 = vector.broadcast %254 : vector<1x256xf32> to vector<4x256xf32>
    %256 = arith.mulf %252, %255 : vector<4x256xf32>
    %c16_i32_143 = arith.constant 16 : i32
    %257 = tpu.dynamic_rotate %250 by %c16_i32_143 dim 1 : vector<4x256xf32>, i32 -> vector<4x256xf32>
    %c1_144 = arith.constant 1 : index
    %c0_145 = arith.constant 0 : index
    %c0_146 = arith.constant 0 : index
    %258 = vector.load %arg3[%c1_144, %c0_145, %c0_146] : memref<9x1x256xf32, #tpu.memory_space<vmem>>, vector<1x1x256xf32>
    %259 = vector.shape_cast %258 : vector<1x1x256xf32> to vector<1x256xf32>
    %260 = vector.broadcast %259 : vector<1x256xf32> to vector<4x256xf32>
    %261 = arith.mulf %257, %260 : vector<4x256xf32>
    %c15_i32_147 = arith.constant 15 : i32
    %262 = tpu.dynamic_rotate %250 by %c15_i32_147 dim 1 : vector<4x256xf32>, i32 -> vector<4x256xf32>
    %c2_148 = arith.constant 2 : index
    %c0_149 = arith.constant 0 : index
    %c0_150 = arith.constant 0 : index
    %263 = vector.load %arg3[%c2_148, %c0_149, %c0_150] : memref<9x1x256xf32, #tpu.memory_space<vmem>>, vector<1x1x256xf32>
    %264 = vector.shape_cast %263 : vector<1x1x256xf32> to vector<1x256xf32>
    %265 = vector.broadcast %264 : vector<1x256xf32> to vector<4x256xf32>
    %266 = arith.mulf %262, %265 : vector<4x256xf32>
    %c1_i32_151 = arith.constant 1 : i32
    %267 = tpu.dynamic_rotate %250 by %c1_i32_151 dim 1 : vector<4x256xf32>, i32 -> vector<4x256xf32>
    %c3_152 = arith.constant 3 : index
    %c0_153 = arith.constant 0 : index
    %c0_154 = arith.constant 0 : index
    %268 = vector.load %arg3[%c3_152, %c0_153, %c0_154] : memref<9x1x256xf32, #tpu.memory_space<vmem>>, vector<1x1x256xf32>
    %269 = vector.shape_cast %268 : vector<1x1x256xf32> to vector<1x256xf32>
    %270 = vector.broadcast %269 : vector<1x256xf32> to vector<4x256xf32>
    %271 = arith.mulf %267, %270 : vector<4x256xf32>
    %c4_155 = arith.constant 4 : index
    %c0_156 = arith.constant 0 : index
    %c0_157 = arith.constant 0 : index
    %272 = vector.load %arg3[%c4_155, %c0_156, %c0_157] : memref<9x1x256xf32, #tpu.memory_space<vmem>>, vector<1x1x256xf32>
    %273 = vector.shape_cast %272 : vector<1x1x256xf32> to vector<1x256xf32>
    %274 = vector.broadcast %273 : vector<1x256xf32> to vector<4x256xf32>
    %275 = arith.mulf %250, %274 : vector<4x256xf32>
    %c255_i32_158 = arith.constant 255 : i32
    %276 = tpu.dynamic_rotate %250 by %c255_i32_158 dim 1 : vector<4x256xf32>, i32 -> vector<4x256xf32>
    %c5_159 = arith.constant 5 : index
    %c0_160 = arith.constant 0 : index
    %c0_161 = arith.constant 0 : index
    %277 = vector.load %arg3[%c5_159, %c0_160, %c0_161] : memref<9x1x256xf32, #tpu.memory_space<vmem>>, vector<1x1x256xf32>
    %278 = vector.shape_cast %277 : vector<1x1x256xf32> to vector<1x256xf32>
    %279 = vector.broadcast %278 : vector<1x256xf32> to vector<4x256xf32>
    %280 = arith.mulf %276, %279 : vector<4x256xf32>
    %c241_i32_162 = arith.constant 241 : i32
    %281 = tpu.dynamic_rotate %250 by %c241_i32_162 dim 1 : vector<4x256xf32>, i32 -> vector<4x256xf32>
    %c6_163 = arith.constant 6 : index
    %c0_164 = arith.constant 0 : index
    %c0_165 = arith.constant 0 : index
    %282 = vector.load %arg3[%c6_163, %c0_164, %c0_165] : memref<9x1x256xf32, #tpu.memory_space<vmem>>, vector<1x1x256xf32>
    %283 = vector.shape_cast %282 : vector<1x1x256xf32> to vector<1x256xf32>
    %284 = vector.broadcast %283 : vector<1x256xf32> to vector<4x256xf32>
    %285 = arith.mulf %281, %284 : vector<4x256xf32>
    %c240_i32_166 = arith.constant 240 : i32
    %286 = tpu.dynamic_rotate %250 by %c240_i32_166 dim 1 : vector<4x256xf32>, i32 -> vector<4x256xf32>
    %c7_167 = arith.constant 7 : index
    %c0_168 = arith.constant 0 : index
    %c0_169 = arith.constant 0 : index
    %287 = vector.load %arg3[%c7_167, %c0_168, %c0_169] : memref<9x1x256xf32, #tpu.memory_space<vmem>>, vector<1x1x256xf32>
    %288 = vector.shape_cast %287 : vector<1x1x256xf32> to vector<1x256xf32>
    %289 = vector.broadcast %288 : vector<1x256xf32> to vector<4x256xf32>
    %290 = arith.mulf %286, %289 : vector<4x256xf32>
    %c239_i32_170 = arith.constant 239 : i32
    %291 = tpu.dynamic_rotate %250 by %c239_i32_170 dim 1 : vector<4x256xf32>, i32 -> vector<4x256xf32>
    %c8_171 = arith.constant 8 : index
    %c0_172 = arith.constant 0 : index
    %c0_173 = arith.constant 0 : index
    %292 = vector.load %arg3[%c8_171, %c0_172, %c0_173] : memref<9x1x256xf32, #tpu.memory_space<vmem>>, vector<1x1x256xf32>
    %293 = vector.shape_cast %292 : vector<1x1x256xf32> to vector<1x256xf32>
    %294 = vector.broadcast %293 : vector<1x256xf32> to vector<4x256xf32>
    %295 = arith.mulf %291, %294 : vector<4x256xf32>
    %296 = tpu.concatenate %256, %261, %266, %271, %275, %280, %285, %290, %295 in 0 : vector<4x256xf32>, vector<4x256xf32>, vector<4x256xf32>, vector<4x256xf32>, vector<4x256xf32>, vector<4x256xf32>, vector<4x256xf32>, vector<4x256xf32>, vector<4x256xf32> -> vector<36x256xf32>
    %297 = arith.truncf %296 : vector<36x256xf32> to vector<36x256xbf16>
    %cst_174 = arith.constant dense<0.000000e+00> : vector<4x256xf32>
    %298 = tpu.matmul %251, %297, %cst_174 {dimension_numbers = #tpu.dot_dimension_numbers<[1], [0], [0], [1], [0, 0, 1, 1], [], []>} : vector<4x36xbf16>, vector<36x256xbf16>, vector<4x256xf32> -> vector<4x256xf32>
    %c0_175 = arith.constant 0 : index
    %c0_176 = arith.constant 0 : index
    %299 = vector.load %arg18[%c0_175, %c0_176] : memref<4x1xf32, #tpu.memory_space<vmem>>, vector<4x1xf32>
    %300 = vector.broadcast %299 : vector<4x1xf32> to vector<4x256xf32>
    %301 = arith.addf %298, %300 : vector<4x256xf32>
    %cst_177 = arith.constant dense<0.000000e+00> : vector<4xf32>
    %302 = vector.multi_reduction <add>, %250, %cst_177 [1] : vector<4x256xf32> to vector<4xf32>
    %303 = vector.shape_cast %302 : vector<4xf32> to vector<4x1xf32>
    %cst_178 = arith.constant 2.560000e+02 : f32
    %304 = vector.broadcast %cst_178 : f32 to vector<4x1xf32>
    %305 = arith.divf %303, %304 : vector<4x1xf32>
    %cst_179 = arith.constant dense<0xFF800000> : vector<1xf32>
    %306 = vector.multi_reduction <maximumf>, %305, %cst_179 [0] : vector<4x1xf32> to vector<1xf32>
    %307 = vector.shape_cast %306 : vector<1xf32> to vector<1x1xf32>
    %308 = vector.broadcast %307 : vector<1x1xf32> to vector<4x1xf32>
    %309 = arith.subf %305, %308 : vector<4x1xf32>
    %310 = math.exp %309 : vector<4x1xf32>
    %cst_180 = arith.constant dense<0.000000e+00> : vector<1xf32>
    %311 = vector.multi_reduction <add>, %310, %cst_180 [0] : vector<4x1xf32> to vector<1xf32>
    %312 = vector.shape_cast %311 : vector<1xf32> to vector<1x1xf32>
    %313 = vector.broadcast %312 : vector<1x1xf32> to vector<4x1xf32>
    %314 = arith.divf %310, %313 : vector<4x1xf32>
    %cst_181 = arith.constant dense<0.000000e+00> : vector<4xf32>
    %315 = vector.multi_reduction <add>, %301, %cst_181 [1] : vector<4x256xf32> to vector<4xf32>
    %316 = vector.shape_cast %315 : vector<4xf32> to vector<4x1xf32>
    %cst_182 = arith.constant 2.560000e+02 : f32
    %317 = vector.broadcast %cst_182 : f32 to vector<4x1xf32>
    %318 = arith.divf %316, %317 : vector<4x1xf32>
    %cst_183 = arith.constant dense<0xFF800000> : vector<1xf32>
    %319 = vector.multi_reduction <maximumf>, %318, %cst_183 [0] : vector<4x1xf32> to vector<1xf32>
    %320 = vector.shape_cast %319 : vector<1xf32> to vector<1x1xf32>
    %321 = vector.broadcast %320 : vector<1x1xf32> to vector<4x1xf32>
    %322 = arith.subf %318, %321 : vector<4x1xf32>
    %323 = math.exp %322 : vector<4x1xf32>
    %cst_184 = arith.constant dense<0.000000e+00> : vector<1xf32>
    %324 = vector.multi_reduction <add>, %323, %cst_184 [0] : vector<4x1xf32> to vector<1xf32>
    %325 = vector.shape_cast %324 : vector<1xf32> to vector<1x1xf32>
    %326 = vector.broadcast %325 : vector<1x1xf32> to vector<4x1xf32>
    %327 = arith.divf %323, %326 : vector<4x1xf32>
    %328 = vector.broadcast %314 : vector<4x1xf32> to vector<4x256xf32>
    %329 = arith.mulf %328, %301 : vector<4x256xf32>
    %cst_185 = arith.constant dense<0.000000e+00> : vector<256xf32>
    %330 = vector.multi_reduction <add>, %329, %cst_185 [0] : vector<4x256xf32> to vector<256xf32>
    %331 = vector.shape_cast %330 : vector<256xf32> to vector<1x256xf32>
    %332 = vector.broadcast %327 : vector<4x1xf32> to vector<4x256xf32>
    %333 = arith.mulf %332, %250 : vector<4x256xf32>
    %cst_186 = arith.constant dense<0.000000e+00> : vector<256xf32>
    %334 = vector.multi_reduction <add>, %333, %cst_186 [0] : vector<4x256xf32> to vector<256xf32>
    %335 = vector.shape_cast %334 : vector<256xf32> to vector<1x256xf32>
    %336 = arith.addf %331, %335 : vector<1x256xf32>
    %337 = arith.negf %336 : vector<1x256xf32>
    %338 = math.exp %337 : vector<1x256xf32>
    %cst_187 = arith.constant 1.000000e+00 : f32
    %339 = vector.broadcast %cst_187 : f32 to vector<1x256xf32>
    %340 = arith.addf %339, %338 : vector<1x256xf32>
    %341 = arith.divf %339, %340 : vector<1x256xf32>
    %c0_188 = arith.constant 0 : index
    %342 = memref.load %arg1[%c0_188] : memref<3xf32, #tpu.memory_space<smem>>
    %cst_189 = arith.constant dense<0.000000e+00> : vector<256xf32>
    %343 = vector.multi_reduction <add>, %301, %cst_189 [0] : vector<4x256xf32> to vector<256xf32>
    %344 = vector.shape_cast %343 : vector<256xf32> to vector<1x256xf32>
    %cst_190 = arith.constant 4.000000e+00 : f32
    %345 = vector.broadcast %cst_190 : f32 to vector<1x256xf32>
    %346 = arith.divf %344, %345 : vector<1x256xf32>
    %347 = vector.broadcast %342 : f32 to vector<1x256xf32>
    %348 = arith.mulf %347, %346 : vector<1x256xf32>
    %c1_191 = arith.constant 1 : index
    %349 = memref.load %arg1[%c1_191] : memref<3xf32, #tpu.memory_space<smem>>
    %cst_192 = arith.constant dense<0xFF800000> : vector<256xf32>
    %350 = vector.multi_reduction <maximumf>, %301, %cst_192 [0] : vector<4x256xf32> to vector<256xf32>
    %351 = vector.shape_cast %350 : vector<256xf32> to vector<1x256xf32>
    %352 = vector.broadcast %349 : f32 to vector<1x256xf32>
    %353 = arith.mulf %352, %351 : vector<1x256xf32>
    %354 = arith.addf %348, %353 : vector<1x256xf32>
    %c2_193 = arith.constant 2 : index
    %355 = memref.load %arg1[%c2_193] : memref<3xf32, #tpu.memory_space<smem>>
    %356 = vector.broadcast %355 : f32 to vector<1x256xf32>
    %357 = arith.addf %354, %356 : vector<1x256xf32>
    %358 = arith.negf %357 : vector<1x256xf32>
    %359 = math.exp %358 : vector<1x256xf32>
    %cst_194 = arith.constant 1.000000e+00 : f32
    %360 = vector.broadcast %cst_194 : f32 to vector<1x256xf32>
    %361 = arith.addf %360, %359 : vector<1x256xf32>
    %362 = arith.divf %360, %361 : vector<1x256xf32>
    %363 = vector.broadcast %341 : vector<1x256xf32> to vector<4x256xf32>
    %364 = arith.mulf %250, %363 : vector<4x256xf32>
    %365 = vector.broadcast %362 : vector<1x256xf32> to vector<4x256xf32>
    %366 = arith.mulf %364, %365 : vector<4x256xf32>
    %367 = vector.extract_strided_slice %2 {offsets = [8, 0], sizes = [4, 256], strides = [1, 1]} : vector<16x256xf32> to vector<4x256xf32>
    %c0_195 = arith.constant 0 : index
    %c0_196 = arith.constant 0 : index
    %368 = vector.load %arg4[%c0_195, %c0_196] : memref<256x16xf32, #tpu.memory_space<vmem>>, vector<256x16xf32>
    %cst_197 = arith.constant dense<0.000000e+00> : vector<4x16xf32>
    %369 = tpu.matmul %367, %368, %cst_197 {dimension_numbers = #tpu.dot_dimension_numbers<[1], [0], [0], [1], [0, 0, 1, 1], [], []>} : vector<4x256xf32>, vector<256x16xf32>, vector<4x16xf32> -> vector<4x16xf32>
    %c0_198 = arith.constant 0 : index
    %c0_199 = arith.constant 0 : index
    %370 = vector.load %arg5[%c0_198, %c0_199] : memref<256x16xf32, #tpu.memory_space<vmem>>, vector<256x16xf32>
    %cst_200 = arith.constant dense<0.000000e+00> : vector<4x16xf32>
    %371 = tpu.matmul %367, %370, %cst_200 {dimension_numbers = #tpu.dot_dimension_numbers<[1], [0], [0], [1], [0, 0, 1, 1], [], []>} : vector<4x256xf32>, vector<256x16xf32>, vector<4x16xf32> -> vector<4x16xf32>
    %c0_201 = arith.constant 0 : index
    %c0_202 = arith.constant 0 : index
    %372 = vector.load %arg8[%c0_201, %c0_202] : memref<32x4xf32, #tpu.memory_space<vmem>>, vector<32x4xf32>
    %cst_203 = arith.constant dense<0.000000e+00> : vector<32x16xf32>
    %373 = tpu.matmul %372, %369, %cst_203 {dimension_numbers = #tpu.dot_dimension_numbers<[1], [0], [0], [1], [0, 0, 1, 1], [], []>} : vector<32x4xf32>, vector<4x16xf32>, vector<32x16xf32> -> vector<32x16xf32>
    %c0_204 = arith.constant 0 : index
    %c0_205 = arith.constant 0 : index
    %374 = vector.load %arg9[%c0_204, %c0_205] : memref<32x1xf32, #tpu.memory_space<vmem>>, vector<32x1xf32>
    %375 = vector.broadcast %374 : vector<32x1xf32> to vector<32x16xf32>
    %376 = arith.addf %373, %375 : vector<32x16xf32>
    %c0_206 = arith.constant 0 : index
    %c0_207 = arith.constant 0 : index
    %377 = vector.load %arg8[%c0_206, %c0_207] : memref<32x4xf32, #tpu.memory_space<vmem>>, vector<32x4xf32>
    %cst_208 = arith.constant dense<0.000000e+00> : vector<32x16xf32>
    %378 = tpu.matmul %377, %371, %cst_208 {dimension_numbers = #tpu.dot_dimension_numbers<[1], [0], [0], [1], [0, 0, 1, 1], [], []>} : vector<32x4xf32>, vector<4x16xf32>, vector<32x16xf32> -> vector<32x16xf32>
    %c0_209 = arith.constant 0 : index
    %c0_210 = arith.constant 0 : index
    %379 = vector.load %arg9[%c0_209, %c0_210] : memref<32x1xf32, #tpu.memory_space<vmem>>, vector<32x1xf32>
    %380 = vector.broadcast %379 : vector<32x1xf32> to vector<32x16xf32>
    %381 = arith.addf %378, %380 : vector<32x16xf32>
    %c0_211 = arith.constant 0 : index
    %c0_212 = arith.constant 0 : index
    %382 = vector.load %arg10[%c0_211, %c0_212] : memref<4x32xf32, #tpu.memory_space<vmem>>, vector<4x32xf32>
    %cst_213 = arith.constant dense<0.000000e+00> : vector<4x16xf32>
    %383 = tpu.matmul %382, %376, %cst_213 {dimension_numbers = #tpu.dot_dimension_numbers<[1], [0], [0], [1], [0, 0, 1, 1], [], []>} : vector<4x32xf32>, vector<32x16xf32>, vector<4x16xf32> -> vector<4x16xf32>
    %c0_214 = arith.constant 0 : index
    %c0_215 = arith.constant 0 : index
    %384 = vector.load %arg11[%c0_214, %c0_215] : memref<4x1xf32, #tpu.memory_space<vmem>>, vector<4x1xf32>
    %385 = vector.broadcast %384 : vector<4x1xf32> to vector<4x16xf32>
    %386 = arith.addf %383, %385 : vector<4x16xf32>
    %387 = arith.negf %386 : vector<4x16xf32>
    %388 = math.exp %387 : vector<4x16xf32>
    %cst_216 = arith.constant 1.000000e+00 : f32
    %389 = vector.broadcast %cst_216 : f32 to vector<4x16xf32>
    %390 = arith.addf %389, %388 : vector<4x16xf32>
    %391 = arith.divf %389, %390 : vector<4x16xf32>
    %c0_217 = arith.constant 0 : index
    %c0_218 = arith.constant 0 : index
    %392 = vector.load %arg12[%c0_217, %c0_218] : memref<4x32xf32, #tpu.memory_space<vmem>>, vector<4x32xf32>
    %cst_219 = arith.constant dense<0.000000e+00> : vector<4x16xf32>
    %393 = tpu.matmul %392, %381, %cst_219 {dimension_numbers = #tpu.dot_dimension_numbers<[1], [0], [0], [1], [0, 0, 1, 1], [], []>} : vector<4x32xf32>, vector<32x16xf32>, vector<4x16xf32> -> vector<4x16xf32>
    %c0_220 = arith.constant 0 : index
    %c0_221 = arith.constant 0 : index
    %394 = vector.load %arg13[%c0_220, %c0_221] : memref<4x1xf32, #tpu.memory_space<vmem>>, vector<4x1xf32>
    %395 = vector.broadcast %394 : vector<4x1xf32> to vector<4x16xf32>
    %396 = arith.addf %393, %395 : vector<4x16xf32>
    %397 = arith.negf %396 : vector<4x16xf32>
    %398 = math.exp %397 : vector<4x16xf32>
    %cst_222 = arith.constant 1.000000e+00 : f32
    %399 = vector.broadcast %cst_222 : f32 to vector<4x16xf32>
    %400 = arith.addf %399, %398 : vector<4x16xf32>
    %401 = arith.divf %399, %400 : vector<4x16xf32>
    %c0_223 = arith.constant 0 : index
    %c0_224 = arith.constant 0 : index
    %402 = vector.load %arg6[%c0_223, %c0_224] : memref<16x256xf32, #tpu.memory_space<vmem>>, vector<16x256xf32>
    %cst_225 = arith.constant dense<0.000000e+00> : vector<4x256xf32>
    %403 = tpu.matmul %391, %402, %cst_225 {dimension_numbers = #tpu.dot_dimension_numbers<[1], [0], [0], [1], [0, 0, 1, 1], [], []>} : vector<4x16xf32>, vector<16x256xf32>, vector<4x256xf32> -> vector<4x256xf32>
    %c0_226 = arith.constant 0 : index
    %c0_227 = arith.constant 0 : index
    %404 = vector.load %arg7[%c0_226, %c0_227] : memref<16x256xf32, #tpu.memory_space<vmem>>, vector<16x256xf32>
    %cst_228 = arith.constant dense<0.000000e+00> : vector<4x256xf32>
    %405 = tpu.matmul %401, %404, %cst_228 {dimension_numbers = #tpu.dot_dimension_numbers<[1], [0], [0], [1], [0, 0, 1, 1], [], []>} : vector<4x16xf32>, vector<16x256xf32>, vector<4x256xf32> -> vector<4x256xf32>
    %406 = arith.mulf %403, %405 : vector<4x256xf32>
    %407 = arith.mulf %406, %367 : vector<4x256xf32>
    %c0_229 = arith.constant 0 : index
    %c0_230 = arith.constant 0 : index
    %408 = vector.load %arg14[%c0_229, %c0_230] : memref<4x4xf32, #tpu.memory_space<vmem>>, vector<4x4xf32>
    %c0_231 = arith.constant 0 : index
    %c0_232 = arith.constant 0 : index
    %409 = vector.load %arg15[%c0_231, %c0_232] : memref<4x1xf32, #tpu.memory_space<vmem>>, vector<4x1xf32>
    %c0_233 = arith.constant 0 : index
    %c0_234 = arith.constant 0 : index
    %410 = vector.load %arg16[%c0_233, %c0_234] : memref<4x1xf32, #tpu.memory_space<vmem>>, vector<4x1xf32>
    %cst_235 = arith.constant dense<0.000000e+00> : vector<4xf32>
    %411 = vector.multi_reduction <add>, %407, %cst_235 [1] : vector<4x256xf32> to vector<4xf32>
    %412 = vector.shape_cast %411 : vector<4xf32> to vector<4x1xf32>
    %cst_236 = arith.constant 2.560000e+02 : f32
    %413 = vector.broadcast %cst_236 : f32 to vector<4x1xf32>
    %414 = arith.divf %412, %413 : vector<4x1xf32>
    %cst_237 = arith.constant dense<0.000000e+00> : vector<4x1xf32>
    %415 = tpu.matmul %408, %414, %cst_237 {dimension_numbers = #tpu.dot_dimension_numbers<[1], [0], [0], [1], [0, 0, 1, 1], [], []>} : vector<4x4xf32>, vector<4x1xf32>, vector<4x1xf32> -> vector<4x1xf32>
    %416 = vector.broadcast %415 : vector<4x1xf32> to vector<4x256xf32>
    %417 = arith.subf %407, %416 : vector<4x256xf32>
    %418 = arith.mulf %417, %417 : vector<4x256xf32>
    %cst_238 = arith.constant dense<0.000000e+00> : vector<4xf32>
    %419 = vector.multi_reduction <add>, %418, %cst_238 [1] : vector<4x256xf32> to vector<4xf32>
    %420 = vector.shape_cast %419 : vector<4xf32> to vector<4x1xf32>
    %cst_239 = arith.constant 2.560000e+02 : f32
    %421 = vector.broadcast %cst_239 : f32 to vector<4x1xf32>
    %422 = arith.divf %420, %421 : vector<4x1xf32>
    %cst_240 = arith.constant dense<0.000000e+00> : vector<4x1xf32>
    %423 = tpu.matmul %408, %422, %cst_240 {dimension_numbers = #tpu.dot_dimension_numbers<[1], [0], [0], [1], [0, 0, 1, 1], [], []>} : vector<4x4xf32>, vector<4x1xf32>, vector<4x1xf32> -> vector<4x1xf32>
    %cst_241 = arith.constant 9.99999974E-6 : f32
    %424 = vector.broadcast %cst_241 : f32 to vector<4x1xf32>
    %425 = arith.addf %423, %424 : vector<4x1xf32>
    %426 = math.rsqrt %425 : vector<4x1xf32>
    %427 = vector.broadcast %426 : vector<4x1xf32> to vector<4x256xf32>
    %428 = arith.mulf %417, %427 : vector<4x256xf32>
    %429 = vector.broadcast %409 : vector<4x1xf32> to vector<4x256xf32>
    %430 = arith.mulf %428, %429 : vector<4x256xf32>
    %431 = vector.broadcast %410 : vector<4x1xf32> to vector<4x256xf32>
    %432 = arith.addf %430, %431 : vector<4x256xf32>
    %c0_242 = arith.constant 0 : index
    %c0_243 = arith.constant 0 : index
    %433 = vector.load %arg17[%c0_242, %c0_243] : memref<4x36xbf16, #tpu.memory_space<vmem>>, vector<4x36xbf16>
    %c17_i32_244 = arith.constant 17 : i32
    %434 = tpu.dynamic_rotate %432 by %c17_i32_244 dim 1 : vector<4x256xf32>, i32 -> vector<4x256xf32>
    %c0_245 = arith.constant 0 : index
    %c0_246 = arith.constant 0 : index
    %c0_247 = arith.constant 0 : index
    %435 = vector.load %arg3[%c0_245, %c0_246, %c0_247] : memref<9x1x256xf32, #tpu.memory_space<vmem>>, vector<1x1x256xf32>
    %436 = vector.shape_cast %435 : vector<1x1x256xf32> to vector<1x256xf32>
    %437 = vector.broadcast %436 : vector<1x256xf32> to vector<4x256xf32>
    %438 = arith.mulf %434, %437 : vector<4x256xf32>
    %c16_i32_248 = arith.constant 16 : i32
    %439 = tpu.dynamic_rotate %432 by %c16_i32_248 dim 1 : vector<4x256xf32>, i32 -> vector<4x256xf32>
    %c1_249 = arith.constant 1 : index
    %c0_250 = arith.constant 0 : index
    %c0_251 = arith.constant 0 : index
    %440 = vector.load %arg3[%c1_249, %c0_250, %c0_251] : memref<9x1x256xf32, #tpu.memory_space<vmem>>, vector<1x1x256xf32>
    %441 = vector.shape_cast %440 : vector<1x1x256xf32> to vector<1x256xf32>
    %442 = vector.broadcast %441 : vector<1x256xf32> to vector<4x256xf32>
    %443 = arith.mulf %439, %442 : vector<4x256xf32>
    %c15_i32_252 = arith.constant 15 : i32
    %444 = tpu.dynamic_rotate %432 by %c15_i32_252 dim 1 : vector<4x256xf32>, i32 -> vector<4x256xf32>
    %c2_253 = arith.constant 2 : index
    %c0_254 = arith.constant 0 : index
    %c0_255 = arith.constant 0 : index
    %445 = vector.load %arg3[%c2_253, %c0_254, %c0_255] : memref<9x1x256xf32, #tpu.memory_space<vmem>>, vector<1x1x256xf32>
    %446 = vector.shape_cast %445 : vector<1x1x256xf32> to vector<1x256xf32>
    %447 = vector.broadcast %446 : vector<1x256xf32> to vector<4x256xf32>
    %448 = arith.mulf %444, %447 : vector<4x256xf32>
    %c1_i32_256 = arith.constant 1 : i32
    %449 = tpu.dynamic_rotate %432 by %c1_i32_256 dim 1 : vector<4x256xf32>, i32 -> vector<4x256xf32>
    %c3_257 = arith.constant 3 : index
    %c0_258 = arith.constant 0 : index
    %c0_259 = arith.constant 0 : index
    %450 = vector.load %arg3[%c3_257, %c0_258, %c0_259] : memref<9x1x256xf32, #tpu.memory_space<vmem>>, vector<1x1x256xf32>
    %451 = vector.shape_cast %450 : vector<1x1x256xf32> to vector<1x256xf32>
    %452 = vector.broadcast %451 : vector<1x256xf32> to vector<4x256xf32>
    %453 = arith.mulf %449, %452 : vector<4x256xf32>
    %c4_260 = arith.constant 4 : index
    %c0_261 = arith.constant 0 : index
    %c0_262 = arith.constant 0 : index
    %454 = vector.load %arg3[%c4_260, %c0_261, %c0_262] : memref<9x1x256xf32, #tpu.memory_space<vmem>>, vector<1x1x256xf32>
    %455 = vector.shape_cast %454 : vector<1x1x256xf32> to vector<1x256xf32>
    %456 = vector.broadcast %455 : vector<1x256xf32> to vector<4x256xf32>
    %457 = arith.mulf %432, %456 : vector<4x256xf32>
    %c255_i32_263 = arith.constant 255 : i32
    %458 = tpu.dynamic_rotate %432 by %c255_i32_263 dim 1 : vector<4x256xf32>, i32 -> vector<4x256xf32>
    %c5_264 = arith.constant 5 : index
    %c0_265 = arith.constant 0 : index
    %c0_266 = arith.constant 0 : index
    %459 = vector.load %arg3[%c5_264, %c0_265, %c0_266] : memref<9x1x256xf32, #tpu.memory_space<vmem>>, vector<1x1x256xf32>
    %460 = vector.shape_cast %459 : vector<1x1x256xf32> to vector<1x256xf32>
    %461 = vector.broadcast %460 : vector<1x256xf32> to vector<4x256xf32>
    %462 = arith.mulf %458, %461 : vector<4x256xf32>
    %c241_i32_267 = arith.constant 241 : i32
    %463 = tpu.dynamic_rotate %432 by %c241_i32_267 dim 1 : vector<4x256xf32>, i32 -> vector<4x256xf32>
    %c6_268 = arith.constant 6 : index
    %c0_269 = arith.constant 0 : index
    %c0_270 = arith.constant 0 : index
    %464 = vector.load %arg3[%c6_268, %c0_269, %c0_270] : memref<9x1x256xf32, #tpu.memory_space<vmem>>, vector<1x1x256xf32>
    %465 = vector.shape_cast %464 : vector<1x1x256xf32> to vector<1x256xf32>
    %466 = vector.broadcast %465 : vector<1x256xf32> to vector<4x256xf32>
    %467 = arith.mulf %463, %466 : vector<4x256xf32>
    %c240_i32_271 = arith.constant 240 : i32
    %468 = tpu.dynamic_rotate %432 by %c240_i32_271 dim 1 : vector<4x256xf32>, i32 -> vector<4x256xf32>
    %c7_272 = arith.constant 7 : index
    %c0_273 = arith.constant 0 : index
    %c0_274 = arith.constant 0 : index
    %469 = vector.load %arg3[%c7_272, %c0_273, %c0_274] : memref<9x1x256xf32, #tpu.memory_space<vmem>>, vector<1x1x256xf32>
    %470 = vector.shape_cast %469 : vector<1x1x256xf32> to vector<1x256xf32>
    %471 = vector.broadcast %470 : vector<1x256xf32> to vector<4x256xf32>
    %472 = arith.mulf %468, %471 : vector<4x256xf32>
    %c239_i32_275 = arith.constant 239 : i32
    %473 = tpu.dynamic_rotate %432 by %c239_i32_275 dim 1 : vector<4x256xf32>, i32 -> vector<4x256xf32>
    %c8_276 = arith.constant 8 : index
    %c0_277 = arith.constant 0 : index
    %c0_278 = arith.constant 0 : index
    %474 = vector.load %arg3[%c8_276, %c0_277, %c0_278] : memref<9x1x256xf32, #tpu.memory_space<vmem>>, vector<1x1x256xf32>
    %475 = vector.shape_cast %474 : vector<1x1x256xf32> to vector<1x256xf32>
    %476 = vector.broadcast %475 : vector<1x256xf32> to vector<4x256xf32>
    %477 = arith.mulf %473, %476 : vector<4x256xf32>
    %478 = tpu.concatenate %438, %443, %448, %453, %457, %462, %467, %472, %477 in 0 : vector<4x256xf32>, vector<4x256xf32>, vector<4x256xf32>, vector<4x256xf32>, vector<4x256xf32>, vector<4x256xf32>, vector<4x256xf32>, vector<4x256xf32>, vector<4x256xf32> -> vector<36x256xf32>
    %479 = arith.truncf %478 : vector<36x256xf32> to vector<36x256xbf16>
    %cst_279 = arith.constant dense<0.000000e+00> : vector<4x256xf32>
    %480 = tpu.matmul %433, %479, %cst_279 {dimension_numbers = #tpu.dot_dimension_numbers<[1], [0], [0], [1], [0, 0, 1, 1], [], []>} : vector<4x36xbf16>, vector<36x256xbf16>, vector<4x256xf32> -> vector<4x256xf32>
    %c0_280 = arith.constant 0 : index
    %c0_281 = arith.constant 0 : index
    %481 = vector.load %arg18[%c0_280, %c0_281] : memref<4x1xf32, #tpu.memory_space<vmem>>, vector<4x1xf32>
    %482 = vector.broadcast %481 : vector<4x1xf32> to vector<4x256xf32>
    %483 = arith.addf %480, %482 : vector<4x256xf32>
    %cst_282 = arith.constant dense<0.000000e+00> : vector<4xf32>
    %484 = vector.multi_reduction <add>, %432, %cst_282 [1] : vector<4x256xf32> to vector<4xf32>
    %485 = vector.shape_cast %484 : vector<4xf32> to vector<4x1xf32>
    %cst_283 = arith.constant 2.560000e+02 : f32
    %486 = vector.broadcast %cst_283 : f32 to vector<4x1xf32>
    %487 = arith.divf %485, %486 : vector<4x1xf32>
    %cst_284 = arith.constant dense<0xFF800000> : vector<1xf32>
    %488 = vector.multi_reduction <maximumf>, %487, %cst_284 [0] : vector<4x1xf32> to vector<1xf32>
    %489 = vector.shape_cast %488 : vector<1xf32> to vector<1x1xf32>
    %490 = vector.broadcast %489 : vector<1x1xf32> to vector<4x1xf32>
    %491 = arith.subf %487, %490 : vector<4x1xf32>
    %492 = math.exp %491 : vector<4x1xf32>
    %cst_285 = arith.constant dense<0.000000e+00> : vector<1xf32>
    %493 = vector.multi_reduction <add>, %492, %cst_285 [0] : vector<4x1xf32> to vector<1xf32>
    %494 = vector.shape_cast %493 : vector<1xf32> to vector<1x1xf32>
    %495 = vector.broadcast %494 : vector<1x1xf32> to vector<4x1xf32>
    %496 = arith.divf %492, %495 : vector<4x1xf32>
    %cst_286 = arith.constant dense<0.000000e+00> : vector<4xf32>
    %497 = vector.multi_reduction <add>, %483, %cst_286 [1] : vector<4x256xf32> to vector<4xf32>
    %498 = vector.shape_cast %497 : vector<4xf32> to vector<4x1xf32>
    %cst_287 = arith.constant 2.560000e+02 : f32
    %499 = vector.broadcast %cst_287 : f32 to vector<4x1xf32>
    %500 = arith.divf %498, %499 : vector<4x1xf32>
    %cst_288 = arith.constant dense<0xFF800000> : vector<1xf32>
    %501 = vector.multi_reduction <maximumf>, %500, %cst_288 [0] : vector<4x1xf32> to vector<1xf32>
    %502 = vector.shape_cast %501 : vector<1xf32> to vector<1x1xf32>
    %503 = vector.broadcast %502 : vector<1x1xf32> to vector<4x1xf32>
    %504 = arith.subf %500, %503 : vector<4x1xf32>
    %505 = math.exp %504 : vector<4x1xf32>
    %cst_289 = arith.constant dense<0.000000e+00> : vector<1xf32>
    %506 = vector.multi_reduction <add>, %505, %cst_289 [0] : vector<4x1xf32> to vector<1xf32>
    %507 = vector.shape_cast %506 : vector<1xf32> to vector<1x1xf32>
    %508 = vector.broadcast %507 : vector<1x1xf32> to vector<4x1xf32>
    %509 = arith.divf %505, %508 : vector<4x1xf32>
    %510 = vector.broadcast %496 : vector<4x1xf32> to vector<4x256xf32>
    %511 = arith.mulf %510, %483 : vector<4x256xf32>
    %cst_290 = arith.constant dense<0.000000e+00> : vector<256xf32>
    %512 = vector.multi_reduction <add>, %511, %cst_290 [0] : vector<4x256xf32> to vector<256xf32>
    %513 = vector.shape_cast %512 : vector<256xf32> to vector<1x256xf32>
    %514 = vector.broadcast %509 : vector<4x1xf32> to vector<4x256xf32>
    %515 = arith.mulf %514, %432 : vector<4x256xf32>
    %cst_291 = arith.constant dense<0.000000e+00> : vector<256xf32>
    %516 = vector.multi_reduction <add>, %515, %cst_291 [0] : vector<4x256xf32> to vector<256xf32>
    %517 = vector.shape_cast %516 : vector<256xf32> to vector<1x256xf32>
    %518 = arith.addf %513, %517 : vector<1x256xf32>
    %519 = arith.negf %518 : vector<1x256xf32>
    %520 = math.exp %519 : vector<1x256xf32>
    %cst_292 = arith.constant 1.000000e+00 : f32
    %521 = vector.broadcast %cst_292 : f32 to vector<1x256xf32>
    %522 = arith.addf %521, %520 : vector<1x256xf32>
    %523 = arith.divf %521, %522 : vector<1x256xf32>
    %c0_293 = arith.constant 0 : index
    %524 = memref.load %arg1[%c0_293] : memref<3xf32, #tpu.memory_space<smem>>
    %cst_294 = arith.constant dense<0.000000e+00> : vector<256xf32>
    %525 = vector.multi_reduction <add>, %483, %cst_294 [0] : vector<4x256xf32> to vector<256xf32>
    %526 = vector.shape_cast %525 : vector<256xf32> to vector<1x256xf32>
    %cst_295 = arith.constant 4.000000e+00 : f32
    %527 = vector.broadcast %cst_295 : f32 to vector<1x256xf32>
    %528 = arith.divf %526, %527 : vector<1x256xf32>
    %529 = vector.broadcast %524 : f32 to vector<1x256xf32>
    %530 = arith.mulf %529, %528 : vector<1x256xf32>
    %c1_296 = arith.constant 1 : index
    %531 = memref.load %arg1[%c1_296] : memref<3xf32, #tpu.memory_space<smem>>
    %cst_297 = arith.constant dense<0xFF800000> : vector<256xf32>
    %532 = vector.multi_reduction <maximumf>, %483, %cst_297 [0] : vector<4x256xf32> to vector<256xf32>
    %533 = vector.shape_cast %532 : vector<256xf32> to vector<1x256xf32>
    %534 = vector.broadcast %531 : f32 to vector<1x256xf32>
    %535 = arith.mulf %534, %533 : vector<1x256xf32>
    %536 = arith.addf %530, %535 : vector<1x256xf32>
    %c2_298 = arith.constant 2 : index
    %537 = memref.load %arg1[%c2_298] : memref<3xf32, #tpu.memory_space<smem>>
    %538 = vector.broadcast %537 : f32 to vector<1x256xf32>
    %539 = arith.addf %536, %538 : vector<1x256xf32>
    %540 = arith.negf %539 : vector<1x256xf32>
    %541 = math.exp %540 : vector<1x256xf32>
    %cst_299 = arith.constant 1.000000e+00 : f32
    %542 = vector.broadcast %cst_299 : f32 to vector<1x256xf32>
    %543 = arith.addf %542, %541 : vector<1x256xf32>
    %544 = arith.divf %542, %543 : vector<1x256xf32>
    %545 = vector.broadcast %523 : vector<1x256xf32> to vector<4x256xf32>
    %546 = arith.mulf %432, %545 : vector<4x256xf32>
    %547 = vector.broadcast %544 : vector<1x256xf32> to vector<4x256xf32>
    %548 = arith.mulf %546, %547 : vector<4x256xf32>
    %549 = vector.extract_strided_slice %2 {offsets = [12, 0], sizes = [4, 256], strides = [1, 1]} : vector<16x256xf32> to vector<4x256xf32>
    %c0_300 = arith.constant 0 : index
    %c0_301 = arith.constant 0 : index
    %550 = vector.load %arg4[%c0_300, %c0_301] : memref<256x16xf32, #tpu.memory_space<vmem>>, vector<256x16xf32>
    %cst_302 = arith.constant dense<0.000000e+00> : vector<4x16xf32>
    %551 = tpu.matmul %549, %550, %cst_302 {dimension_numbers = #tpu.dot_dimension_numbers<[1], [0], [0], [1], [0, 0, 1, 1], [], []>} : vector<4x256xf32>, vector<256x16xf32>, vector<4x16xf32> -> vector<4x16xf32>
    %c0_303 = arith.constant 0 : index
    %c0_304 = arith.constant 0 : index
    %552 = vector.load %arg5[%c0_303, %c0_304] : memref<256x16xf32, #tpu.memory_space<vmem>>, vector<256x16xf32>
    %cst_305 = arith.constant dense<0.000000e+00> : vector<4x16xf32>
    %553 = tpu.matmul %549, %552, %cst_305 {dimension_numbers = #tpu.dot_dimension_numbers<[1], [0], [0], [1], [0, 0, 1, 1], [], []>} : vector<4x256xf32>, vector<256x16xf32>, vector<4x16xf32> -> vector<4x16xf32>
    %c0_306 = arith.constant 0 : index
    %c0_307 = arith.constant 0 : index
    %554 = vector.load %arg8[%c0_306, %c0_307] : memref<32x4xf32, #tpu.memory_space<vmem>>, vector<32x4xf32>
    %cst_308 = arith.constant dense<0.000000e+00> : vector<32x16xf32>
    %555 = tpu.matmul %554, %551, %cst_308 {dimension_numbers = #tpu.dot_dimension_numbers<[1], [0], [0], [1], [0, 0, 1, 1], [], []>} : vector<32x4xf32>, vector<4x16xf32>, vector<32x16xf32> -> vector<32x16xf32>
    %c0_309 = arith.constant 0 : index
    %c0_310 = arith.constant 0 : index
    %556 = vector.load %arg9[%c0_309, %c0_310] : memref<32x1xf32, #tpu.memory_space<vmem>>, vector<32x1xf32>
    %557 = vector.broadcast %556 : vector<32x1xf32> to vector<32x16xf32>
    %558 = arith.addf %555, %557 : vector<32x16xf32>
    %c0_311 = arith.constant 0 : index
    %c0_312 = arith.constant 0 : index
    %559 = vector.load %arg8[%c0_311, %c0_312] : memref<32x4xf32, #tpu.memory_space<vmem>>, vector<32x4xf32>
    %cst_313 = arith.constant dense<0.000000e+00> : vector<32x16xf32>
    %560 = tpu.matmul %559, %553, %cst_313 {dimension_numbers = #tpu.dot_dimension_numbers<[1], [0], [0], [1], [0, 0, 1, 1], [], []>} : vector<32x4xf32>, vector<4x16xf32>, vector<32x16xf32> -> vector<32x16xf32>
    %c0_314 = arith.constant 0 : index
    %c0_315 = arith.constant 0 : index
    %561 = vector.load %arg9[%c0_314, %c0_315] : memref<32x1xf32, #tpu.memory_space<vmem>>, vector<32x1xf32>
    %562 = vector.broadcast %561 : vector<32x1xf32> to vector<32x16xf32>
    %563 = arith.addf %560, %562 : vector<32x16xf32>
    %c0_316 = arith.constant 0 : index
    %c0_317 = arith.constant 0 : index
    %564 = vector.load %arg10[%c0_316, %c0_317] : memref<4x32xf32, #tpu.memory_space<vmem>>, vector<4x32xf32>
    %cst_318 = arith.constant dense<0.000000e+00> : vector<4x16xf32>
    %565 = tpu.matmul %564, %558, %cst_318 {dimension_numbers = #tpu.dot_dimension_numbers<[1], [0], [0], [1], [0, 0, 1, 1], [], []>} : vector<4x32xf32>, vector<32x16xf32>, vector<4x16xf32> -> vector<4x16xf32>
    %c0_319 = arith.constant 0 : index
    %c0_320 = arith.constant 0 : index
    %566 = vector.load %arg11[%c0_319, %c0_320] : memref<4x1xf32, #tpu.memory_space<vmem>>, vector<4x1xf32>
    %567 = vector.broadcast %566 : vector<4x1xf32> to vector<4x16xf32>
    %568 = arith.addf %565, %567 : vector<4x16xf32>
    %569 = arith.negf %568 : vector<4x16xf32>
    %570 = math.exp %569 : vector<4x16xf32>
    %cst_321 = arith.constant 1.000000e+00 : f32
    %571 = vector.broadcast %cst_321 : f32 to vector<4x16xf32>
    %572 = arith.addf %571, %570 : vector<4x16xf32>
    %573 = arith.divf %571, %572 : vector<4x16xf32>
    %c0_322 = arith.constant 0 : index
    %c0_323 = arith.constant 0 : index
    %574 = vector.load %arg12[%c0_322, %c0_323] : memref<4x32xf32, #tpu.memory_space<vmem>>, vector<4x32xf32>
    %cst_324 = arith.constant dense<0.000000e+00> : vector<4x16xf32>
    %575 = tpu.matmul %574, %563, %cst_324 {dimension_numbers = #tpu.dot_dimension_numbers<[1], [0], [0], [1], [0, 0, 1, 1], [], []>} : vector<4x32xf32>, vector<32x16xf32>, vector<4x16xf32> -> vector<4x16xf32>
    %c0_325 = arith.constant 0 : index
    %c0_326 = arith.constant 0 : index
    %576 = vector.load %arg13[%c0_325, %c0_326] : memref<4x1xf32, #tpu.memory_space<vmem>>, vector<4x1xf32>
    %577 = vector.broadcast %576 : vector<4x1xf32> to vector<4x16xf32>
    %578 = arith.addf %575, %577 : vector<4x16xf32>
    %579 = arith.negf %578 : vector<4x16xf32>
    %580 = math.exp %579 : vector<4x16xf32>
    %cst_327 = arith.constant 1.000000e+00 : f32
    %581 = vector.broadcast %cst_327 : f32 to vector<4x16xf32>
    %582 = arith.addf %581, %580 : vector<4x16xf32>
    %583 = arith.divf %581, %582 : vector<4x16xf32>
    %c0_328 = arith.constant 0 : index
    %c0_329 = arith.constant 0 : index
    %584 = vector.load %arg6[%c0_328, %c0_329] : memref<16x256xf32, #tpu.memory_space<vmem>>, vector<16x256xf32>
    %cst_330 = arith.constant dense<0.000000e+00> : vector<4x256xf32>
    %585 = tpu.matmul %573, %584, %cst_330 {dimension_numbers = #tpu.dot_dimension_numbers<[1], [0], [0], [1], [0, 0, 1, 1], [], []>} : vector<4x16xf32>, vector<16x256xf32>, vector<4x256xf32> -> vector<4x256xf32>
    %c0_331 = arith.constant 0 : index
    %c0_332 = arith.constant 0 : index
    %586 = vector.load %arg7[%c0_331, %c0_332] : memref<16x256xf32, #tpu.memory_space<vmem>>, vector<16x256xf32>
    %cst_333 = arith.constant dense<0.000000e+00> : vector<4x256xf32>
    %587 = tpu.matmul %583, %586, %cst_333 {dimension_numbers = #tpu.dot_dimension_numbers<[1], [0], [0], [1], [0, 0, 1, 1], [], []>} : vector<4x16xf32>, vector<16x256xf32>, vector<4x256xf32> -> vector<4x256xf32>
    %588 = arith.mulf %585, %587 : vector<4x256xf32>
    %589 = arith.mulf %588, %549 : vector<4x256xf32>
    %c0_334 = arith.constant 0 : index
    %c0_335 = arith.constant 0 : index
    %590 = vector.load %arg14[%c0_334, %c0_335] : memref<4x4xf32, #tpu.memory_space<vmem>>, vector<4x4xf32>
    %c0_336 = arith.constant 0 : index
    %c0_337 = arith.constant 0 : index
    %591 = vector.load %arg15[%c0_336, %c0_337] : memref<4x1xf32, #tpu.memory_space<vmem>>, vector<4x1xf32>
    %c0_338 = arith.constant 0 : index
    %c0_339 = arith.constant 0 : index
    %592 = vector.load %arg16[%c0_338, %c0_339] : memref<4x1xf32, #tpu.memory_space<vmem>>, vector<4x1xf32>
    %cst_340 = arith.constant dense<0.000000e+00> : vector<4xf32>
    %593 = vector.multi_reduction <add>, %589, %cst_340 [1] : vector<4x256xf32> to vector<4xf32>
    %594 = vector.shape_cast %593 : vector<4xf32> to vector<4x1xf32>
    %cst_341 = arith.constant 2.560000e+02 : f32
    %595 = vector.broadcast %cst_341 : f32 to vector<4x1xf32>
    %596 = arith.divf %594, %595 : vector<4x1xf32>
    %cst_342 = arith.constant dense<0.000000e+00> : vector<4x1xf32>
    %597 = tpu.matmul %590, %596, %cst_342 {dimension_numbers = #tpu.dot_dimension_numbers<[1], [0], [0], [1], [0, 0, 1, 1], [], []>} : vector<4x4xf32>, vector<4x1xf32>, vector<4x1xf32> -> vector<4x1xf32>
    %598 = vector.broadcast %597 : vector<4x1xf32> to vector<4x256xf32>
    %599 = arith.subf %589, %598 : vector<4x256xf32>
    %600 = arith.mulf %599, %599 : vector<4x256xf32>
    %cst_343 = arith.constant dense<0.000000e+00> : vector<4xf32>
    %601 = vector.multi_reduction <add>, %600, %cst_343 [1] : vector<4x256xf32> to vector<4xf32>
    %602 = vector.shape_cast %601 : vector<4xf32> to vector<4x1xf32>
    %cst_344 = arith.constant 2.560000e+02 : f32
    %603 = vector.broadcast %cst_344 : f32 to vector<4x1xf32>
    %604 = arith.divf %602, %603 : vector<4x1xf32>
    %cst_345 = arith.constant dense<0.000000e+00> : vector<4x1xf32>
    %605 = tpu.matmul %590, %604, %cst_345 {dimension_numbers = #tpu.dot_dimension_numbers<[1], [0], [0], [1], [0, 0, 1, 1], [], []>} : vector<4x4xf32>, vector<4x1xf32>, vector<4x1xf32> -> vector<4x1xf32>
    %cst_346 = arith.constant 9.99999974E-6 : f32
    %606 = vector.broadcast %cst_346 : f32 to vector<4x1xf32>
    %607 = arith.addf %605, %606 : vector<4x1xf32>
    %608 = math.rsqrt %607 : vector<4x1xf32>
    %609 = vector.broadcast %608 : vector<4x1xf32> to vector<4x256xf32>
    %610 = arith.mulf %599, %609 : vector<4x256xf32>
    %611 = vector.broadcast %591 : vector<4x1xf32> to vector<4x256xf32>
    %612 = arith.mulf %610, %611 : vector<4x256xf32>
    %613 = vector.broadcast %592 : vector<4x1xf32> to vector<4x256xf32>
    %614 = arith.addf %612, %613 : vector<4x256xf32>
    %c0_347 = arith.constant 0 : index
    %c0_348 = arith.constant 0 : index
    %615 = vector.load %arg17[%c0_347, %c0_348] : memref<4x36xbf16, #tpu.memory_space<vmem>>, vector<4x36xbf16>
    %c17_i32_349 = arith.constant 17 : i32
    %616 = tpu.dynamic_rotate %614 by %c17_i32_349 dim 1 : vector<4x256xf32>, i32 -> vector<4x256xf32>
    %c0_350 = arith.constant 0 : index
    %c0_351 = arith.constant 0 : index
    %c0_352 = arith.constant 0 : index
    %617 = vector.load %arg3[%c0_350, %c0_351, %c0_352] : memref<9x1x256xf32, #tpu.memory_space<vmem>>, vector<1x1x256xf32>
    %618 = vector.shape_cast %617 : vector<1x1x256xf32> to vector<1x256xf32>
    %619 = vector.broadcast %618 : vector<1x256xf32> to vector<4x256xf32>
    %620 = arith.mulf %616, %619 : vector<4x256xf32>
    %c16_i32_353 = arith.constant 16 : i32
    %621 = tpu.dynamic_rotate %614 by %c16_i32_353 dim 1 : vector<4x256xf32>, i32 -> vector<4x256xf32>
    %c1_354 = arith.constant 1 : index
    %c0_355 = arith.constant 0 : index
    %c0_356 = arith.constant 0 : index
    %622 = vector.load %arg3[%c1_354, %c0_355, %c0_356] : memref<9x1x256xf32, #tpu.memory_space<vmem>>, vector<1x1x256xf32>
    %623 = vector.shape_cast %622 : vector<1x1x256xf32> to vector<1x256xf32>
    %624 = vector.broadcast %623 : vector<1x256xf32> to vector<4x256xf32>
    %625 = arith.mulf %621, %624 : vector<4x256xf32>
    %c15_i32_357 = arith.constant 15 : i32
    %626 = tpu.dynamic_rotate %614 by %c15_i32_357 dim 1 : vector<4x256xf32>, i32 -> vector<4x256xf32>
    %c2_358 = arith.constant 2 : index
    %c0_359 = arith.constant 0 : index
    %c0_360 = arith.constant 0 : index
    %627 = vector.load %arg3[%c2_358, %c0_359, %c0_360] : memref<9x1x256xf32, #tpu.memory_space<vmem>>, vector<1x1x256xf32>
    %628 = vector.shape_cast %627 : vector<1x1x256xf32> to vector<1x256xf32>
    %629 = vector.broadcast %628 : vector<1x256xf32> to vector<4x256xf32>
    %630 = arith.mulf %626, %629 : vector<4x256xf32>
    %c1_i32_361 = arith.constant 1 : i32
    %631 = tpu.dynamic_rotate %614 by %c1_i32_361 dim 1 : vector<4x256xf32>, i32 -> vector<4x256xf32>
    %c3_362 = arith.constant 3 : index
    %c0_363 = arith.constant 0 : index
    %c0_364 = arith.constant 0 : index
    %632 = vector.load %arg3[%c3_362, %c0_363, %c0_364] : memref<9x1x256xf32, #tpu.memory_space<vmem>>, vector<1x1x256xf32>
    %633 = vector.shape_cast %632 : vector<1x1x256xf32> to vector<1x256xf32>
    %634 = vector.broadcast %633 : vector<1x256xf32> to vector<4x256xf32>
    %635 = arith.mulf %631, %634 : vector<4x256xf32>
    %c4_365 = arith.constant 4 : index
    %c0_366 = arith.constant 0 : index
    %c0_367 = arith.constant 0 : index
    %636 = vector.load %arg3[%c4_365, %c0_366, %c0_367] : memref<9x1x256xf32, #tpu.memory_space<vmem>>, vector<1x1x256xf32>
    %637 = vector.shape_cast %636 : vector<1x1x256xf32> to vector<1x256xf32>
    %638 = vector.broadcast %637 : vector<1x256xf32> to vector<4x256xf32>
    %639 = arith.mulf %614, %638 : vector<4x256xf32>
    %c255_i32_368 = arith.constant 255 : i32
    %640 = tpu.dynamic_rotate %614 by %c255_i32_368 dim 1 : vector<4x256xf32>, i32 -> vector<4x256xf32>
    %c5_369 = arith.constant 5 : index
    %c0_370 = arith.constant 0 : index
    %c0_371 = arith.constant 0 : index
    %641 = vector.load %arg3[%c5_369, %c0_370, %c0_371] : memref<9x1x256xf32, #tpu.memory_space<vmem>>, vector<1x1x256xf32>
    %642 = vector.shape_cast %641 : vector<1x1x256xf32> to vector<1x256xf32>
    %643 = vector.broadcast %642 : vector<1x256xf32> to vector<4x256xf32>
    %644 = arith.mulf %640, %643 : vector<4x256xf32>
    %c241_i32_372 = arith.constant 241 : i32
    %645 = tpu.dynamic_rotate %614 by %c241_i32_372 dim 1 : vector<4x256xf32>, i32 -> vector<4x256xf32>
    %c6_373 = arith.constant 6 : index
    %c0_374 = arith.constant 0 : index
    %c0_375 = arith.constant 0 : index
    %646 = vector.load %arg3[%c6_373, %c0_374, %c0_375] : memref<9x1x256xf32, #tpu.memory_space<vmem>>, vector<1x1x256xf32>
    %647 = vector.shape_cast %646 : vector<1x1x256xf32> to vector<1x256xf32>
    %648 = vector.broadcast %647 : vector<1x256xf32> to vector<4x256xf32>
    %649 = arith.mulf %645, %648 : vector<4x256xf32>
    %c240_i32_376 = arith.constant 240 : i32
    %650 = tpu.dynamic_rotate %614 by %c240_i32_376 dim 1 : vector<4x256xf32>, i32 -> vector<4x256xf32>
    %c7_377 = arith.constant 7 : index
    %c0_378 = arith.constant 0 : index
    %c0_379 = arith.constant 0 : index
    %651 = vector.load %arg3[%c7_377, %c0_378, %c0_379] : memref<9x1x256xf32, #tpu.memory_space<vmem>>, vector<1x1x256xf32>
    %652 = vector.shape_cast %651 : vector<1x1x256xf32> to vector<1x256xf32>
    %653 = vector.broadcast %652 : vector<1x256xf32> to vector<4x256xf32>
    %654 = arith.mulf %650, %653 : vector<4x256xf32>
    %c239_i32_380 = arith.constant 239 : i32
    %655 = tpu.dynamic_rotate %614 by %c239_i32_380 dim 1 : vector<4x256xf32>, i32 -> vector<4x256xf32>
    %c8_381 = arith.constant 8 : index
    %c0_382 = arith.constant 0 : index
    %c0_383 = arith.constant 0 : index
    %656 = vector.load %arg3[%c8_381, %c0_382, %c0_383] : memref<9x1x256xf32, #tpu.memory_space<vmem>>, vector<1x1x256xf32>
    %657 = vector.shape_cast %656 : vector<1x1x256xf32> to vector<1x256xf32>
    %658 = vector.broadcast %657 : vector<1x256xf32> to vector<4x256xf32>
    %659 = arith.mulf %655, %658 : vector<4x256xf32>
    %660 = tpu.concatenate %620, %625, %630, %635, %639, %644, %649, %654, %659 in 0 : vector<4x256xf32>, vector<4x256xf32>, vector<4x256xf32>, vector<4x256xf32>, vector<4x256xf32>, vector<4x256xf32>, vector<4x256xf32>, vector<4x256xf32>, vector<4x256xf32> -> vector<36x256xf32>
    %661 = arith.truncf %660 : vector<36x256xf32> to vector<36x256xbf16>
    %cst_384 = arith.constant dense<0.000000e+00> : vector<4x256xf32>
    %662 = tpu.matmul %615, %661, %cst_384 {dimension_numbers = #tpu.dot_dimension_numbers<[1], [0], [0], [1], [0, 0, 1, 1], [], []>} : vector<4x36xbf16>, vector<36x256xbf16>, vector<4x256xf32> -> vector<4x256xf32>
    %c0_385 = arith.constant 0 : index
    %c0_386 = arith.constant 0 : index
    %663 = vector.load %arg18[%c0_385, %c0_386] : memref<4x1xf32, #tpu.memory_space<vmem>>, vector<4x1xf32>
    %664 = vector.broadcast %663 : vector<4x1xf32> to vector<4x256xf32>
    %665 = arith.addf %662, %664 : vector<4x256xf32>
    %cst_387 = arith.constant dense<0.000000e+00> : vector<4xf32>
    %666 = vector.multi_reduction <add>, %614, %cst_387 [1] : vector<4x256xf32> to vector<4xf32>
    %667 = vector.shape_cast %666 : vector<4xf32> to vector<4x1xf32>
    %cst_388 = arith.constant 2.560000e+02 : f32
    %668 = vector.broadcast %cst_388 : f32 to vector<4x1xf32>
    %669 = arith.divf %667, %668 : vector<4x1xf32>
    %cst_389 = arith.constant dense<0xFF800000> : vector<1xf32>
    %670 = vector.multi_reduction <maximumf>, %669, %cst_389 [0] : vector<4x1xf32> to vector<1xf32>
    %671 = vector.shape_cast %670 : vector<1xf32> to vector<1x1xf32>
    %672 = vector.broadcast %671 : vector<1x1xf32> to vector<4x1xf32>
    %673 = arith.subf %669, %672 : vector<4x1xf32>
    %674 = math.exp %673 : vector<4x1xf32>
    %cst_390 = arith.constant dense<0.000000e+00> : vector<1xf32>
    %675 = vector.multi_reduction <add>, %674, %cst_390 [0] : vector<4x1xf32> to vector<1xf32>
    %676 = vector.shape_cast %675 : vector<1xf32> to vector<1x1xf32>
    %677 = vector.broadcast %676 : vector<1x1xf32> to vector<4x1xf32>
    %678 = arith.divf %674, %677 : vector<4x1xf32>
    %cst_391 = arith.constant dense<0.000000e+00> : vector<4xf32>
    %679 = vector.multi_reduction <add>, %665, %cst_391 [1] : vector<4x256xf32> to vector<4xf32>
    %680 = vector.shape_cast %679 : vector<4xf32> to vector<4x1xf32>
    %cst_392 = arith.constant 2.560000e+02 : f32
    %681 = vector.broadcast %cst_392 : f32 to vector<4x1xf32>
    %682 = arith.divf %680, %681 : vector<4x1xf32>
    %cst_393 = arith.constant dense<0xFF800000> : vector<1xf32>
    %683 = vector.multi_reduction <maximumf>, %682, %cst_393 [0] : vector<4x1xf32> to vector<1xf32>
    %684 = vector.shape_cast %683 : vector<1xf32> to vector<1x1xf32>
    %685 = vector.broadcast %684 : vector<1x1xf32> to vector<4x1xf32>
    %686 = arith.subf %682, %685 : vector<4x1xf32>
    %687 = math.exp %686 : vector<4x1xf32>
    %cst_394 = arith.constant dense<0.000000e+00> : vector<1xf32>
    %688 = vector.multi_reduction <add>, %687, %cst_394 [0] : vector<4x1xf32> to vector<1xf32>
    %689 = vector.shape_cast %688 : vector<1xf32> to vector<1x1xf32>
    %690 = vector.broadcast %689 : vector<1x1xf32> to vector<4x1xf32>
    %691 = arith.divf %687, %690 : vector<4x1xf32>
    %692 = vector.broadcast %678 : vector<4x1xf32> to vector<4x256xf32>
    %693 = arith.mulf %692, %665 : vector<4x256xf32>
    %cst_395 = arith.constant dense<0.000000e+00> : vector<256xf32>
    %694 = vector.multi_reduction <add>, %693, %cst_395 [0] : vector<4x256xf32> to vector<256xf32>
    %695 = vector.shape_cast %694 : vector<256xf32> to vector<1x256xf32>
    %696 = vector.broadcast %691 : vector<4x1xf32> to vector<4x256xf32>
    %697 = arith.mulf %696, %614 : vector<4x256xf32>
    %cst_396 = arith.constant dense<0.000000e+00> : vector<256xf32>
    %698 = vector.multi_reduction <add>, %697, %cst_396 [0] : vector<4x256xf32> to vector<256xf32>
    %699 = vector.shape_cast %698 : vector<256xf32> to vector<1x256xf32>
    %700 = arith.addf %695, %699 : vector<1x256xf32>
    %701 = arith.negf %700 : vector<1x256xf32>
    %702 = math.exp %701 : vector<1x256xf32>
    %cst_397 = arith.constant 1.000000e+00 : f32
    %703 = vector.broadcast %cst_397 : f32 to vector<1x256xf32>
    %704 = arith.addf %703, %702 : vector<1x256xf32>
    %705 = arith.divf %703, %704 : vector<1x256xf32>
    %c0_398 = arith.constant 0 : index
    %706 = memref.load %arg1[%c0_398] : memref<3xf32, #tpu.memory_space<smem>>
    %cst_399 = arith.constant dense<0.000000e+00> : vector<256xf32>
    %707 = vector.multi_reduction <add>, %665, %cst_399 [0] : vector<4x256xf32> to vector<256xf32>
    %708 = vector.shape_cast %707 : vector<256xf32> to vector<1x256xf32>
    %cst_400 = arith.constant 4.000000e+00 : f32
    %709 = vector.broadcast %cst_400 : f32 to vector<1x256xf32>
    %710 = arith.divf %708, %709 : vector<1x256xf32>
    %711 = vector.broadcast %706 : f32 to vector<1x256xf32>
    %712 = arith.mulf %711, %710 : vector<1x256xf32>
    %c1_401 = arith.constant 1 : index
    %713 = memref.load %arg1[%c1_401] : memref<3xf32, #tpu.memory_space<smem>>
    %cst_402 = arith.constant dense<0xFF800000> : vector<256xf32>
    %714 = vector.multi_reduction <maximumf>, %665, %cst_402 [0] : vector<4x256xf32> to vector<256xf32>
    %715 = vector.shape_cast %714 : vector<256xf32> to vector<1x256xf32>
    %716 = vector.broadcast %713 : f32 to vector<1x256xf32>
    %717 = arith.mulf %716, %715 : vector<1x256xf32>
    %718 = arith.addf %712, %717 : vector<1x256xf32>
    %c2_403 = arith.constant 2 : index
    %719 = memref.load %arg1[%c2_403] : memref<3xf32, #tpu.memory_space<smem>>
    %720 = vector.broadcast %719 : f32 to vector<1x256xf32>
    %721 = arith.addf %718, %720 : vector<1x256xf32>
    %722 = arith.negf %721 : vector<1x256xf32>
    %723 = math.exp %722 : vector<1x256xf32>
    %cst_404 = arith.constant 1.000000e+00 : f32
    %724 = vector.broadcast %cst_404 : f32 to vector<1x256xf32>
    %725 = arith.addf %724, %723 : vector<1x256xf32>
    %726 = arith.divf %724, %725 : vector<1x256xf32>
    %727 = vector.broadcast %705 : vector<1x256xf32> to vector<4x256xf32>
    %728 = arith.mulf %614, %727 : vector<4x256xf32>
    %729 = vector.broadcast %726 : vector<1x256xf32> to vector<4x256xf32>
    %730 = arith.mulf %728, %729 : vector<4x256xf32>
    %731 = tpu.concatenate %184, %366, %548, %730 in 0 : vector<4x256xf32>, vector<4x256xf32>, vector<4x256xf32>, vector<4x256xf32> -> vector<16x256xf32>
    %732 = arith.truncf %731 : vector<16x256xf32> to vector<16x256xbf16>
    %c0_405 = arith.constant 0 : index
    %c0_406 = arith.constant 0 : index
    %733 = vector.load %arg19[%c0_405, %c0_406] : memref<16x16xbf16, #tpu.memory_space<vmem>>, vector<16x16xbf16>
    %cst_407 = arith.constant dense<0.000000e+00> : vector<16x256xf32>
    %734 = tpu.matmul %733, %732, %cst_407 {dimension_numbers = #tpu.dot_dimension_numbers<[1], [0], [0], [1], [0, 0, 1, 1], [], []>} : vector<16x16xbf16>, vector<16x256xbf16>, vector<16x256xf32> -> vector<16x256xf32>
    %c0_408 = arith.constant 0 : index
    %c0_409 = arith.constant 0 : index
    %735 = vector.load %arg20[%c0_408, %c0_409] : memref<16x1xf32, #tpu.memory_space<vmem>>, vector<16x1xf32>
    %736 = vector.broadcast %735 : vector<16x1xf32> to vector<16x256xf32>
    %737 = arith.addf %734, %736 : vector<16x256xf32>
    %738 = arith.truncf %737 : vector<16x256xf32> to vector<16x256xbf16>
    %c0_410 = arith.constant 0 : index
    %c0_411 = arith.constant 0 : index
    %c0_412 = arith.constant 0 : index
    %739 = vector.load %arg26[%c0_410, %c0_411, %c0_412] : memref<1x16x256xbf16, #tpu.memory_space<vmem>>, vector<1x16x256xbf16>
    %740 = vector.shape_cast %739 : vector<1x16x256xbf16> to vector<16x256xbf16>
    %741 = vector.shape_cast %738 : vector<16x256xbf16> to vector<1x16x256xbf16>
    tpu.vector_store %arg26[%c0_410, %c0_411, %c0_412], %741 {strides = array<i32>} : memref<1x16x256xbf16, #tpu.memory_space<vmem>>, vector<1x16x256xbf16>,
    %742 = vector.extract_strided_slice %2 {offsets = [0, 0], sizes = [4, 256], strides = [1, 1]} : vector<16x256xf32> to vector<4x256xf32>
    %743 = vector.extract_strided_slice %2 {offsets = [4, 0], sizes = [4, 256], strides = [1, 1]} : vector<16x256xf32> to vector<4x256xf32>
    %744 = arith.addf %742, %743 : vector<4x256xf32>
    %745 = vector.extract_strided_slice %2 {offsets = [8, 0], sizes = [4, 256], strides = [1, 1]} : vector<16x256xf32> to vector<4x256xf32>
    %746 = arith.addf %744, %745 : vector<4x256xf32>
    %747 = vector.extract_strided_slice %2 {offsets = [12, 0], sizes = [4, 256], strides = [1, 1]} : vector<16x256xf32> to vector<4x256xf32>
    %748 = arith.addf %746, %747 : vector<4x256xf32>
    %c0_413 = arith.constant 0 : index
    %c0_414 = arith.constant 0 : index
    %749 = vector.load %arg21[%c0_413, %c0_414] : memref<16x36xbf16, #tpu.memory_space<vmem>>, vector<16x36xbf16>
    %c17_i32_415 = arith.constant 17 : i32
    %750 = tpu.dynamic_rotate %748 by %c17_i32_415 dim 1 : vector<4x256xf32>, i32 -> vector<4x256xf32>
    %c0_416 = arith.constant 0 : index
    %c0_417 = arith.constant 0 : index
    %c0_418 = arith.constant 0 : index
    %751 = vector.load %arg3[%c0_416, %c0_417, %c0_418] : memref<9x1x256xf32, #tpu.memory_space<vmem>>, vector<1x1x256xf32>
    %752 = vector.shape_cast %751 : vector<1x1x256xf32> to vector<1x256xf32>
    %753 = vector.broadcast %752 : vector<1x256xf32> to vector<4x256xf32>
    %754 = arith.mulf %750, %753 : vector<4x256xf32>
    %c16_i32_419 = arith.constant 16 : i32
    %755 = tpu.dynamic_rotate %748 by %c16_i32_419 dim 1 : vector<4x256xf32>, i32 -> vector<4x256xf32>
    %c1_420 = arith.constant 1 : index
    %c0_421 = arith.constant 0 : index
    %c0_422 = arith.constant 0 : index
    %756 = vector.load %arg3[%c1_420, %c0_421, %c0_422] : memref<9x1x256xf32, #tpu.memory_space<vmem>>, vector<1x1x256xf32>
    %757 = vector.shape_cast %756 : vector<1x1x256xf32> to vector<1x256xf32>
    %758 = vector.broadcast %757 : vector<1x256xf32> to vector<4x256xf32>
    %759 = arith.mulf %755, %758 : vector<4x256xf32>
    %c15_i32_423 = arith.constant 15 : i32
    %760 = tpu.dynamic_rotate %748 by %c15_i32_423 dim 1 : vector<4x256xf32>, i32 -> vector<4x256xf32>
    %c2_424 = arith.constant 2 : index
    %c0_425 = arith.constant 0 : index
    %c0_426 = arith.constant 0 : index
    %761 = vector.load %arg3[%c2_424, %c0_425, %c0_426] : memref<9x1x256xf32, #tpu.memory_space<vmem>>, vector<1x1x256xf32>
    %762 = vector.shape_cast %761 : vector<1x1x256xf32> to vector<1x256xf32>
    %763 = vector.broadcast %762 : vector<1x256xf32> to vector<4x256xf32>
    %764 = arith.mulf %760, %763 : vector<4x256xf32>
    %c1_i32_427 = arith.constant 1 : i32
    %765 = tpu.dynamic_rotate %748 by %c1_i32_427 dim 1 : vector<4x256xf32>, i32 -> vector<4x256xf32>
    %c3_428 = arith.constant 3 : index
    %c0_429 = arith.constant 0 : index
    %c0_430 = arith.constant 0 : index
    %766 = vector.load %arg3[%c3_428, %c0_429, %c0_430] : memref<9x1x256xf32, #tpu.memory_space<vmem>>, vector<1x1x256xf32>
    %767 = vector.shape_cast %766 : vector<1x1x256xf32> to vector<1x256xf32>
    %768 = vector.broadcast %767 : vector<1x256xf32> to vector<4x256xf32>
    %769 = arith.mulf %765, %768 : vector<4x256xf32>
    %c4_431 = arith.constant 4 : index
    %c0_432 = arith.constant 0 : index
    %c0_433 = arith.constant 0 : index
    %770 = vector.load %arg3[%c4_431, %c0_432, %c0_433] : memref<9x1x256xf32, #tpu.memory_space<vmem>>, vector<1x1x256xf32>
    %771 = vector.shape_cast %770 : vector<1x1x256xf32> to vector<1x256xf32>
    %772 = vector.broadcast %771 : vector<1x256xf32> to vector<4x256xf32>
    %773 = arith.mulf %748, %772 : vector<4x256xf32>
    %c255_i32_434 = arith.constant 255 : i32
    %774 = tpu.dynamic_rotate %748 by %c255_i32_434 dim 1 : vector<4x256xf32>, i32 -> vector<4x256xf32>
    %c5_435 = arith.constant 5 : index
    %c0_436 = arith.constant 0 : index
    %c0_437 = arith.constant 0 : index
    %775 = vector.load %arg3[%c5_435, %c0_436, %c0_437] : memref<9x1x256xf32, #tpu.memory_space<vmem>>, vector<1x1x256xf32>
    %776 = vector.shape_cast %775 : vector<1x1x256xf32> to vector<1x256xf32>
    %777 = vector.broadcast %776 : vector<1x256xf32> to vector<4x256xf32>
    %778 = arith.mulf %774, %777 : vector<4x256xf32>
    %c241_i32_438 = arith.constant 241 : i32
    %779 = tpu.dynamic_rotate %748 by %c241_i32_438 dim 1 : vector<4x256xf32>, i32 -> vector<4x256xf32>
    %c6_439 = arith.constant 6 : index
    %c0_440 = arith.constant 0 : index
    %c0_441 = arith.constant 0 : index
    %780 = vector.load %arg3[%c6_439, %c0_440, %c0_441] : memref<9x1x256xf32, #tpu.memory_space<vmem>>, vector<1x1x256xf32>
    %781 = vector.shape_cast %780 : vector<1x1x256xf32> to vector<1x256xf32>
    %782 = vector.broadcast %781 : vector<1x256xf32> to vector<4x256xf32>
    %783 = arith.mulf %779, %782 : vector<4x256xf32>
    %c240_i32_442 = arith.constant 240 : i32
    %784 = tpu.dynamic_rotate %748 by %c240_i32_442 dim 1 : vector<4x256xf32>, i32 -> vector<4x256xf32>
    %c7_443 = arith.constant 7 : index
    %c0_444 = arith.constant 0 : index
    %c0_445 = arith.constant 0 : index
    %785 = vector.load %arg3[%c7_443, %c0_444, %c0_445] : memref<9x1x256xf32, #tpu.memory_space<vmem>>, vector<1x1x256xf32>
    %786 = vector.shape_cast %785 : vector<1x1x256xf32> to vector<1x256xf32>
    %787 = vector.broadcast %786 : vector<1x256xf32> to vector<4x256xf32>
    %788 = arith.mulf %784, %787 : vector<4x256xf32>
    %c239_i32_446 = arith.constant 239 : i32
    %789 = tpu.dynamic_rotate %748 by %c239_i32_446 dim 1 : vector<4x256xf32>, i32 -> vector<4x256xf32>
    %c8_447 = arith.constant 8 : index
    %c0_448 = arith.constant 0 : index
    %c0_449 = arith.constant 0 : index
    %790 = vector.load %arg3[%c8_447, %c0_448, %c0_449] : memref<9x1x256xf32, #tpu.memory_space<vmem>>, vector<1x1x256xf32>
    %791 = vector.shape_cast %790 : vector<1x1x256xf32> to vector<1x256xf32>
    %792 = vector.broadcast %791 : vector<1x256xf32> to vector<4x256xf32>
    %793 = arith.mulf %789, %792 : vector<4x256xf32>
    %794 = tpu.concatenate %754, %759, %764, %769, %773, %778, %783, %788, %793 in 0 : vector<4x256xf32>, vector<4x256xf32>, vector<4x256xf32>, vector<4x256xf32>, vector<4x256xf32>, vector<4x256xf32>, vector<4x256xf32>, vector<4x256xf32>, vector<4x256xf32> -> vector<36x256xf32>
    %795 = arith.truncf %794 : vector<36x256xf32> to vector<36x256xbf16>
    %cst_450 = arith.constant dense<0.000000e+00> : vector<16x256xf32>
    %796 = tpu.matmul %749, %795, %cst_450 {dimension_numbers = #tpu.dot_dimension_numbers<[1], [0], [0], [1], [0, 0, 1, 1], [], []>} : vector<16x36xbf16>, vector<36x256xbf16>, vector<16x256xf32> -> vector<16x256xf32>
    %c0_451 = arith.constant 0 : index
    %c0_452 = arith.constant 0 : index
    %797 = vector.load %arg22[%c0_451, %c0_452] : memref<16x1xf32, #tpu.memory_space<vmem>>, vector<16x1xf32>
    %798 = vector.broadcast %797 : vector<16x1xf32> to vector<16x256xf32>
    %799 = arith.addf %796, %798 : vector<16x256xf32>
    %c0_453 = arith.constant 0 : index
    %c0_454 = arith.constant 0 : index
    %800 = vector.load %arg23[%c0_453, %c0_454] : memref<16x16xf32, #tpu.memory_space<vmem>>, vector<16x16xf32>
    %c0_455 = arith.constant 0 : index
    %c0_456 = arith.constant 0 : index
    %801 = vector.load %arg24[%c0_455, %c0_456] : memref<16x1xf32, #tpu.memory_space<vmem>>, vector<16x1xf32>
    %c0_457 = arith.constant 0 : index
    %c0_458 = arith.constant 0 : index
    %802 = vector.load %arg25[%c0_457, %c0_458] : memref<16x1xf32, #tpu.memory_space<vmem>>, vector<16x1xf32>
    %cst_459 = arith.constant dense<0.000000e+00> : vector<16xf32>
    %803 = vector.multi_reduction <add>, %799, %cst_459 [1] : vector<16x256xf32> to vector<16xf32>
    %804 = vector.shape_cast %803 : vector<16xf32> to vector<16x1xf32>
    %cst_460 = arith.constant 2.560000e+02 : f32
    %805 = vector.broadcast %cst_460 : f32 to vector<16x1xf32>
    %806 = arith.divf %804, %805 : vector<16x1xf32>
    %cst_461 = arith.constant dense<0.000000e+00> : vector<16x1xf32>
    %807 = tpu.matmul %800, %806, %cst_461 {dimension_numbers = #tpu.dot_dimension_numbers<[1], [0], [0], [1], [0, 0, 1, 1], [], []>} : vector<16x16xf32>, vector<16x1xf32>, vector<16x1xf32> -> vector<16x1xf32>
    %808 = vector.broadcast %807 : vector<16x1xf32> to vector<16x256xf32>
    %809 = arith.subf %799, %808 : vector<16x256xf32>
    %810 = arith.mulf %809, %809 : vector<16x256xf32>
    %cst_462 = arith.constant dense<0.000000e+00> : vector<16xf32>
    %811 = vector.multi_reduction <add>, %810, %cst_462 [1] : vector<16x256xf32> to vector<16xf32>
    %812 = vector.shape_cast %811 : vector<16xf32> to vector<16x1xf32>
    %cst_463 = arith.constant 2.560000e+02 : f32
    %813 = vector.broadcast %cst_463 : f32 to vector<16x1xf32>
    %814 = arith.divf %812, %813 : vector<16x1xf32>
    %cst_464 = arith.constant dense<0.000000e+00> : vector<16x1xf32>
    %815 = tpu.matmul %800, %814, %cst_464 {dimension_numbers = #tpu.dot_dimension_numbers<[1], [0], [0], [1], [0, 0, 1, 1], [], []>} : vector<16x16xf32>, vector<16x1xf32>, vector<16x1xf32> -> vector<16x1xf32>
    %cst_465 = arith.constant 9.99999974E-6 : f32
    %816 = vector.broadcast %cst_465 : f32 to vector<16x1xf32>
    %817 = arith.addf %815, %816 : vector<16x1xf32>
    %818 = math.rsqrt %817 : vector<16x1xf32>
    %819 = vector.broadcast %818 : vector<16x1xf32> to vector<16x256xf32>
    %820 = arith.mulf %809, %819 : vector<16x256xf32>
    %821 = vector.broadcast %801 : vector<16x1xf32> to vector<16x256xf32>
    %822 = arith.mulf %820, %821 : vector<16x256xf32>
    %823 = vector.broadcast %802 : vector<16x1xf32> to vector<16x256xf32>
    %824 = arith.addf %822, %823 : vector<16x256xf32>
    %825 = arith.truncf %824 : vector<16x256xf32> to vector<16x256xbf16>
    %c0_466 = arith.constant 0 : index
    %c0_467 = arith.constant 0 : index
    %c0_468 = arith.constant 0 : index
    %826 = vector.load %arg27[%c0_466, %c0_467, %c0_468] : memref<1x16x256xbf16, #tpu.memory_space<vmem>>, vector<1x16x256xbf16>
    %827 = vector.shape_cast %826 : vector<1x16x256xbf16> to vector<16x256xbf16>
    %828 = vector.shape_cast %825 : vector<16x256xbf16> to vector<1x16x256xbf16>
    tpu.vector_store %arg27[%c0_466, %c0_467, %c0_468], %828 {strides = array<i32>} : memref<1x16x256xbf16, #tpu.memory_space<vmem>>, vector<1x16x256xbf16>,
    return
  }
  func.func @transform_0(%arg0: i32) -> i32 {
    %c0_i32 = arith.constant 0 : i32
    %c0_i32_0 = arith.constant 0 : i32
    return %c0_i32 : i32
  }
  func.func @transform_1(%arg0: i32) -> (i32, i32, i32) {
    %c0_i32 = arith.constant 0 : i32
    %c0_i32_0 = arith.constant 0 : i32
    %c0_i32_1 = arith.constant 0 : i32
    return %arg0, %c0_i32, %c0_i32_0 : i32, i32, i32
  }
  func.func @transform_2(%arg0: i32) -> (i32, i32, i32) {
    %c0_i32 = arith.constant 0 : i32
    %c0_i32_0 = arith.constant 0 : i32
    %c0_i32_1 = arith.constant 0 : i32
    %c0_i32_2 = arith.constant 0 : i32
    return %c0_i32, %c0_i32_0, %c0_i32_1 : i32, i32, i32
  }
  func.func @transform_3(%arg0: i32) -> (i32, i32) {
    %c0_i32 = arith.constant 0 : i32
    %c0_i32_0 = arith.constant 0 : i32
    %c0_i32_1 = arith.constant 0 : i32
    return %c0_i32, %c0_i32_0 : i32, i32
  }
  func.func @transform_4(%arg0: i32) -> (i32, i32) {
    %c0_i32 = arith.constant 0 : i32
    %c0_i32_0 = arith.constant 0 : i32
    %c0_i32_1 = arith.constant 0 : i32
    return %c0_i32, %c0_i32_0 : i32, i32
  }
  func.func @transform_5(%arg0: i32) -> (i32, i32) {
    %c0_i32 = arith.constant 0 : i32
    %c0_i32_0 = arith.constant 0 : i32
    %c0_i32_1 = arith.constant 0 : i32
    return %c0_i32, %c0_i32_0 : i32, i32
  }
  func.func @transform_6(%arg0: i32) -> (i32, i32) {
    %c0_i32 = arith.constant 0 : i32
    %c0_i32_0 = arith.constant 0 : i32
    %c0_i32_1 = arith.constant 0 : i32
    return %c0_i32, %c0_i32_0 : i32, i32
  }
  func.func @transform_7(%arg0: i32) -> (i32, i32) {
    %c0_i32 = arith.constant 0 : i32
    %c0_i32_0 = arith.constant 0 : i32
    %c0_i32_1 = arith.constant 0 : i32
    return %c0_i32, %c0_i32_0 : i32, i32
  }
  func.func @transform_8(%arg0: i32) -> (i32, i32) {
    %c0_i32 = arith.constant 0 : i32
    %c0_i32_0 = arith.constant 0 : i32
    %c0_i32_1 = arith.constant 0 : i32
    return %c0_i32, %c0_i32_0 : i32, i32
  }
  func.func @transform_9(%arg0: i32) -> (i32, i32) {
    %c0_i32 = arith.constant 0 : i32
    %c0_i32_0 = arith.constant 0 : i32
    %c0_i32_1 = arith.constant 0 : i32
    return %c0_i32, %c0_i32_0 : i32, i32
  }
  func.func @transform_10(%arg0: i32) -> (i32, i32) {
    %c0_i32 = arith.constant 0 : i32
    %c0_i32_0 = arith.constant 0 : i32
    %c0_i32_1 = arith.constant 0 : i32
    return %c0_i32, %c0_i32_0 : i32, i32
  }
  func.func @transform_11(%arg0: i32) -> (i32, i32) {
    %c0_i32 = arith.constant 0 : i32
    %c0_i32_0 = arith.constant 0 : i32
    %c0_i32_1 = arith.constant 0 : i32
    return %c0_i32, %c0_i32_0 : i32, i32
  }
  func.func @transform_12(%arg0: i32) -> (i32, i32) {
    %c0_i32 = arith.constant 0 : i32
    %c0_i32_0 = arith.constant 0 : i32
    %c0_i32_1 = arith.constant 0 : i32
    return %c0_i32, %c0_i32_0 : i32, i32
  }
  func.func @transform_13(%arg0: i32) -> (i32, i32) {
    %c0_i32 = arith.constant 0 : i32
    %c0_i32_0 = arith.constant 0 : i32
    %c0_i32_1 = arith.constant 0 : i32
    return %c0_i32, %c0_i32_0 : i32, i32
  }
  func.func @transform_14(%arg0: i32) -> (i32, i32) {
    %c0_i32 = arith.constant 0 : i32
    %c0_i32_0 = arith.constant 0 : i32
    %c0_i32_1 = arith.constant 0 : i32
    return %c0_i32, %c0_i32_0 : i32, i32
  }
  func.func @transform_15(%arg0: i32) -> (i32, i32) {
    %c0_i32 = arith.constant 0 : i32
    %c0_i32_0 = arith.constant 0 : i32
    %c0_i32_1 = arith.constant 0 : i32
    return %c0_i32, %c0_i32_0 : i32, i32
  }
  func.func @transform_16(%arg0: i32) -> (i32, i32) {
    %c0_i32 = arith.constant 0 : i32
    %c0_i32_0 = arith.constant 0 : i32
    %c0_i32_1 = arith.constant 0 : i32
    return %c0_i32, %c0_i32_0 : i32, i32
  }
  func.func @transform_17(%arg0: i32) -> (i32, i32) {
    %c0_i32 = arith.constant 0 : i32
    %c0_i32_0 = arith.constant 0 : i32
    %c0_i32_1 = arith.constant 0 : i32
    return %c0_i32, %c0_i32_0 : i32, i32
  }
  func.func @transform_18(%arg0: i32) -> (i32, i32) {
    %c0_i32 = arith.constant 0 : i32
    %c0_i32_0 = arith.constant 0 : i32
    %c0_i32_1 = arith.constant 0 : i32
    return %c0_i32, %c0_i32_0 : i32, i32
  }
  func.func @transform_19(%arg0: i32) -> (i32, i32) {
    %c0_i32 = arith.constant 0 : i32
    %c0_i32_0 = arith.constant 0 : i32
    %c0_i32_1 = arith.constant 0 : i32
    return %c0_i32, %c0_i32_0 : i32, i32
  }
  func.func @transform_20(%arg0: i32) -> (i32, i32) {
    %c0_i32 = arith.constant 0 : i32
    %c0_i32_0 = arith.constant 0 : i32
    %c0_i32_1 = arith.constant 0 : i32
    return %c0_i32, %c0_i32_0 : i32, i32
  }
  func.func @transform_21(%arg0: i32) -> (i32, i32) {
    %c0_i32 = arith.constant 0 : i32
    %c0_i32_0 = arith.constant 0 : i32
    %c0_i32_1 = arith.constant 0 : i32
    return %c0_i32, %c0_i32_0 : i32, i32
  }
  func.func @transform_22(%arg0: i32) -> (i32, i32) {
    %c0_i32 = arith.constant 0 : i32
    %c0_i32_0 = arith.constant 0 : i32
    %c0_i32_1 = arith.constant 0 : i32
    return %c0_i32, %c0_i32_0 : i32, i32
  }
  func.func @transform_23(%arg0: i32) -> (i32, i32) {
    %c0_i32 = arith.constant 0 : i32
    %c0_i32_0 = arith.constant 0 : i32
    %c0_i32_1 = arith.constant 0 : i32
    return %c0_i32, %c0_i32_0 : i32, i32
  }
  func.func @transform_24(%arg0: i32) -> (i32, i32) {
    %c0_i32 = arith.constant 0 : i32
    %c0_i32_0 = arith.constant 0 : i32
    %c0_i32_1 = arith.constant 0 : i32
    return %c0_i32, %c0_i32_0 : i32, i32
  }
  func.func @transform_25(%arg0: i32) -> (i32, i32, i32) {
    %c0_i32 = arith.constant 0 : i32
    %c0_i32_0 = arith.constant 0 : i32
    %c0_i32_1 = arith.constant 0 : i32
    return %arg0, %c0_i32, %c0_i32_0 : i32, i32, i32
  }
  func.func @transform_26(%arg0: i32) -> (i32, i32, i32) {
    %c0_i32 = arith.constant 0 : i32
    %c0_i32_0 = arith.constant 0 : i32
    %c0_i32_1 = arith.constant 0 : i32
    return %arg0, %c0_i32, %c0_i32_0 : i32, i32, i32
  }
}

</mosaic_0001>

<llo_original>
// kernel: bottleneck_forward.4
$region0: #{bottleneck_forward.4}
  #allocation0 [shape = 'u32[]', space=smem, size = 0x4, offset = 0x4, fixed_abs, tag = 'smem constant byte address 0x4 - core index']
  #allocation1 [shape = 'u32[72,128]{1,0:T(1,128)}', space=vmem, size = 0x9000, scoped, tag = 'internal scratch']
  %s0 = inlined_call_operand.vmem [shape: f32[2,64,256], index: 0, kind: input, shape index: {}]
  %s1 = inlined_call_operand.vmem [shape: bf16[16,64], index: 1, kind: input, shape index: {}]
  %s2 = inlined_call_operand.vmem [shape: f32[16,1], index: 2, kind: input, shape index: {}]
  %s3 = inlined_call_operand.vmem [shape: f32[16,1], index: 3, kind: input, shape index: {}]
  %s4 = inlined_call_operand.vmem [shape: f32[16,16], index: 4, kind: input, shape index: {}]
  %s5 = inlined_call_operand.vmem [shape: bf16[2,16,256], index: 5, kind: output, shape index: {}]
  %s6 = sld [smem:[#allocation0]]
  $region53: #{bottleneck_forward.4} parent=0
    _
  %s8 = ssub.s32 1, %s6
  %s9 = scalar_select 0, %s8, %s6
  loop: start=0, step=1, limit=4
  $region2: #{bottleneck_forward.4} parent=0 // loop_pre_header
    _
  $region3: #{bottleneck_forward.4} parent=0 // loop_header
    %s11 = sphi 0, %s15
    %p12 = scmp.ge.s32.totalorder %s11, 4
    %s21 = sphi 0, %s23
    %s24 = sphi 0, %s21
    %s25 = sphi 0, %s24
    %s41 = sphi 0, %s25
    %s45 = sphi 0, %s45
    %s47 = sphi 0, %s45
    %s48 = sphi 0, %s47
    %s62 = sphi 0, %s48
    %s66 = sphi 0, %s66
    %s68 = sphi 0, %s66
    %s69 = sphi 0, %s68
    %s83 = sphi 0, %s69
    %s87 = sphi 0, %s87
    %s89 = sphi 0, %s87
    %s90 = sphi 0, %s89
    %s104 = sphi 0, %s90
    %s108 = sphi 0, %s108
    %s110 = sphi 0, %s108
    %s111 = sphi 0, %s110
    %s125 = sphi 0, %s111
    %s131 = sphi 0, %s133
    %s134 = sphi 0, %s131
    %s135 = sphi 0, %s134
    %s151 = sphi 0, %s135
  $region4: #{bottleneck_forward.4} parent=0 // loop_header_branch
    %14 = sbr.rel (%p12) target = $region8
  $region5: #{bottleneck_forward.4} parent=0 // loop_body
    %s16 = ssub.s32 %s11, 1
    %s17 = ssub.s32 %s11, 2
    %s18 = sadd.s32 %s11, 1
    %s19 = ssub.s32 %s11, %s18
    %p20 = scmp.eq.s32.totalorder %s19, 0
    %s22 = sadd.s32 %s21, 1
    %s23 = scalar_select %p20, %s21, %s22
    %p26 = pneg %p20
    %p27 = scmp.eq.s32.totalorder %s11, 1
    %p28 = por %p26, %p27
    %p29 = scmp.ne.s32.totalorder %s21, %s24
    %p30 = scmp.eq.s32.totalorder %s11, 0
    %p31 = por %p29, %p30
    %p32 = scmp.ne.s32.totalorder %s21, %s24
    %p33 = scmp.eq.s32.totalorder %s16, 1
    %p34 = por %p32, %p33
    %p35 = scmp.ne.s32.totalorder %s24, %s25
    %p36 = scmp.eq.s32.totalorder %s16, 0
    %p37 = por %p35, %p36
    %p38 = scmp.ne.s32.totalorder %s24, %s25
    %p39 = scmp.eq.s32.totalorder %s17, 1
    %p40 = por %p38, %p39
    %p42 = scmp.ne.s32.totalorder %s25, %s41
    %p43 = scmp.eq.s32.totalorder %s17, 0
    %p44 = por %p42, %p43
    %s46 = sadd.s32 %s45, 1
    %p49 = scmp.eq.s32.totalorder %s11, 1
    %p50 = scmp.ne.s32.totalorder %s45, %s47
    %p51 = scmp.eq.s32.totalorder %s11, 0
    %p52 = por %p50, %p51
    %p53 = scmp.ne.s32.totalorder %s45, %s47
    %p54 = scmp.eq.s32.totalorder %s16, 1
    %p55 = por %p53, %p54
    %p56 = scmp.ne.s32.totalorder %s47, %s48
    %p57 = scmp.eq.s32.totalorder %s16, 0
    %p58 = por %p56, %p57
    %p59 = scmp.ne.s32.totalorder %s47, %s48
    %p60 = scmp.eq.s32.totalorder %s17, 1
    %p61 = por %p59, %p60
    %p63 = scmp.ne.s32.totalorder %s48, %s62
    %p64 = scmp.eq.s32.totalorder %s17, 0
    %p65 = por %p63, %p64
    %s67 = sadd.s32 %s66, 1
    %p70 = scmp.eq.s32.totalorder %s11, 1
    %p71 = scmp.ne.s32.totalorder %s66, %s68
    %p72 = scmp.eq.s32.totalorder %s11, 0
    %p73 = por %p71, %p72
    %p74 = scmp.ne.s32.totalorder %s66, %s68
    %p75 = scmp.eq.s32.totalorder %s16, 1
    %p76 = por %p74, %p75
    %p77 = scmp.ne.s32.totalorder %s68, %s69
    %p78 = scmp.eq.s32.totalorder %s16, 0
    %p79 = por %p77, %p78
    %p80 = scmp.ne.s32.totalorder %s68, %s69
    %p81 = scmp.eq.s32.totalorder %s17, 1
    %p82 = por %p80, %p81
    %p84 = scmp.ne.s32.totalorder %s69, %s83
    %p85 = scmp.eq.s32.totalorder %s17, 0
    %p86 = por %p84, %p85
    %s88 = sadd.s32 %s87, 1
    %p91 = scmp.eq.s32.totalorder %s11, 1
    %p92 = scmp.ne.s32.totalorder %s87, %s89
    %p93 = scmp.eq.s32.totalorder %s11, 0
    %p94 = por %p92, %p93
    %p95 = scmp.ne.s32.totalorder %s87, %s89
    %p96 = scmp.eq.s32.totalorder %s16, 1
    %p97 = por %p95, %p96
    %p98 = scmp.ne.s32.totalorder %s89, %s90
    %p99 = scmp.eq.s32.totalorder %s16, 0
    %p100 = por %p98, %p99
    %p101 = scmp.ne.s32.totalorder %s89, %s90
    %p102 = scmp.eq.s32.totalorder %s17, 1
    %p103 = por %p101, %p102
    %p105 = scmp.ne.s32.totalorder %s90, %s104
    %p106 = scmp.eq.s32.totalorder %s17, 0
    %p107 = por %p105, %p106
    %s109 = sadd.s32 %s108, 1
    %p112 = scmp.eq.s32.totalorder %s11, 1
    %p113 = scmp.ne.s32.totalorder %s108, %s110
    %p114 = scmp.eq.s32.totalorder %s11, 0
    %p115 = por %p113, %p114
    %p116 = scmp.ne.s32.totalorder %s108, %s110
    %p117 = scmp.eq.s32.totalorder %s16, 1
    %p118 = por %p116, %p117
    %p119 = scmp.ne.s32.totalorder %s110, %s111
    %p120 = scmp.eq.s32.totalorder %s16, 0
    %p121 = por %p119, %p120
    %p122 = scmp.ne.s32.totalorder %s110, %s111
    %p123 = scmp.eq.s32.totalorder %s17, 1
    %p124 = por %p122, %p123
    %p126 = scmp.ne.s32.totalorder %s111, %s125
    %p127 = scmp.eq.s32.totalorder %s17, 0
    %p128 = por %p126, %p127
    %s129 = ssub.s32 %s11, %s18
    %p130 = scmp.eq.s32.totalorder %s129, 0
    %s132 = sadd.s32 %s131, 1
    %s133 = scalar_select %p130, %s131, %s132
    %p136 = pneg %p130
    %p137 = scmp.eq.s32.totalorder %s11, 1
    %p138 = por %p136, %p137
    %p139 = scmp.ne.s32.totalorder %s131, %s134
    %p140 = scmp.eq.s32.totalorder %s11, 0
    %p141 = por %p139, %p140
    %p142 = scmp.ne.s32.totalorder %s131, %s134
    %p143 = scmp.eq.s32.totalorder %s16, 1
    %p144 = por %p142, %p143
    %p145 = scmp.ne.s32.totalorder %s134, %s135
    %p146 = scmp.eq.s32.totalorder %s16, 0
    %p147 = por %p145, %p146
    %p148 = scmp.ne.s32.totalorder %s134, %s135
    %p149 = scmp.eq.s32.totalorder %s17, 1
    %p150 = por %p148, %p149
    %p152 = scmp.ne.s32.totalorder %s135, %s151
    %p153 = scmp.eq.s32.totalorder %s17, 0
    %p154 = por %p152, %p153
    %p155 = scmp.le.s32.totalorder 1, %s11
    %p156 = scmp.lt.s32.totalorder %s11, 3
    %p157 = pnand %p155, %p156
    %p158 = pneg %p157
    // Predicated region
    $region9: #{bottleneck_forward.4} parent=5 // pred_check
      _
    $region10: #{bottleneck_forward.4} parent=5 // pred_check_branch
      %160 = sbr.rel (%p157) target = $region12
    $region11: #{bottleneck_forward.4} parent=5 // pred_region
      %s161 = ssub.s32 %s11, 1
      // Predicated region
      $region13: #{bottleneck_forward.4} parent=11 // pred_check
        %p162 = pneg %p58
      $region14: #{bottleneck_forward.4} parent=11 // pred_check_branch
        %164 = sbr.rel (%p162) target = $region16
      $region15: #{bottleneck_forward.4} parent=11 // pred_region
        _
      $region16: #{bottleneck_forward.4} parent=11 // pred_fallthru
        _
      // Predicated region
      $region17: #{bottleneck_forward.4} parent=11 // pred_check
        %p165 = pneg %p79
      $region18: #{bottleneck_forward.4} parent=11 // pred_check_branch
        %167 = sbr.rel (%p165) target = $region20
      $region19: #{bottleneck_forward.4} parent=11 // pred_region
        _
      $region20: #{bottleneck_forward.4} parent=11 // pred_fallthru
        _
      // Predicated region
      $region21: #{bottleneck_forward.4} parent=11 // pred_check
        %p168 = pneg %p100
      $region22: #{bottleneck_forward.4} parent=11 // pred_check_branch
        %170 = sbr.rel (%p168) target = $region24
      $region23: #{bottleneck_forward.4} parent=11 // pred_region
        _
      $region24: #{bottleneck_forward.4} parent=11 // pred_fallthru
        _
      // Predicated region
      $region25: #{bottleneck_forward.4} parent=11 // pred_check
        %p171 = pneg %p121
      $region26: #{bottleneck_forward.4} parent=11 // pred_check_branch
        %173 = sbr.rel (%p171) target = $region28
      $region27: #{bottleneck_forward.4} parent=11 // pred_region
        _
      $region28: #{bottleneck_forward.4} parent=11 // pred_fallthru
        _
    $region12: #{bottleneck_forward.4} parent=5 // pred_fallthru
      _
    %p174 = scmp.lt.s32.totalorder %s11, 2
    // Predicated region
    $region29: #{bottleneck_forward.4} parent=5 // pred_check
      %p175 = pneg %p174
    $region30: #{bottleneck_forward.4} parent=5 // pred_check_branch
      %177 = sbr.rel (%p175) target = $region32
    $region31: #{bottleneck_forward.4} parent=5 // pred_region
      // Predicated region
      $region33: #{bottleneck_forward.4} parent=31 // pred_check
        %p178 = pneg %p31
      $region34: #{bottleneck_forward.4} parent=31 // pred_check_branch
        %180 = sbr.rel (%p178) target = $region36
      $region35: #{bottleneck_forward.4} parent=31 // pred_region
        %p181 = scmp.lt.s32.totalorder %s11, 1
        %s182 = scalar_select %p181, %s11, 1
        %s183 = smul.addr %s182, 16
        %s184 = smul.addr %s183, 8
        %s185 = scalar_lea.vmem %s0, %s184
      $region36: #{bottleneck_forward.4} parent=31 // pred_fallthru
        _
    $region32: #{bottleneck_forward.4} parent=5 // pred_fallthru
      _
    %p186 = scmp.le.s32.totalorder 1, %s11
    %p187 = scmp.lt.s32.totalorder %s11, 3
    %p188 = pnand %p186, %p187
    %p189 = pneg %p188
    // Predicated region
    $region37: #{bottleneck_forward.4} parent=5 // pred_check
      _
    $region38: #{bottleneck_forward.4} parent=5 // pred_check_branch
      %191 = sbr.rel (%p188) target = $region40
    $region39: #{bottleneck_forward.4} parent=5 // pred_region
      %s192 = ssub.s32 %s11, 1
      %p193 = scmp.lt.s32.totalorder %s16, 1
      %s194 = scalar_select %p193, %s16, 1
      %s195 = smul.addr %s194, 16
      %s196 = smul.addr %s195, 8
      %s197 = scalar_lea.vmem %s0, %s196
      %p198 = pneg %p37
      %p199 = pneg %p34
      %p200 = pneg %p58
      %p201 = pneg %p55
      %p202 = pneg %p79
      %p203 = pneg %p76
      %p204 = pneg %p100
      %p205 = pneg %p97
      %p206 = pneg %p121
      %p207 = pneg %p118
      %p208 = pneg %p147
      %p209 = pneg %p144
      %p210 = scmp.lt.s32.totalorder %s16, 1
      %s211 = scalar_select %p210, %s16, 1
      %s212 = smul.addr %s211, 4
      %s213 = smul.addr %s212, 4
      %s214 = scalar_lea.vmem %s5, %s213
      %p215 = scmp.lt.s32.totalorder %s16, 1
      %s216 = scalar_select %p215, %s16, 1
      %s217 = smul.addr %s216, 16
      %s218 = smul.addr %s217, 8
      %s219 = scalar_lea.vmem %s0, %s218
      %p220 = scmp.lt.s32.totalorder %s16, 1
      %s221 = scalar_select %p220, %s16, 1
      %s222 = smul.addr %s221, 4
      %s223 = smul.addr %s222, 4
      %s224 = scalar_lea.vmem %s5, %s223
      %v226 = vld [vmem:[%s1] sm:$0xf]
      %v227 = vld [vmem:[%s1 + $0x4] sm:$0xf]
      %v228 = vld [vmem:[%s219] sm:$0xff]
      %v229 = vld [vmem:[%s219 + $0x8] sm:$0xff]
      %v230 = vld [vmem:[%s219 + $0x10] sm:$0xff]
      %v231 = vld [vmem:[%s219 + $0x18] sm:$0xff]
      %v232 = vld [vmem:[%s219 + $0x20] sm:$0xff]
      %v233 = vld [vmem:[%s219 + $0x28] sm:$0xff]
      %v234 = vld [vmem:[%s219 + $0x30] sm:$0xff]
      %v235 = vld [vmem:[%s219 + $0x38] sm:$0xff]
      %v236 = vld [vmem:[%s219 + $0x40] sm:$0xff]
      %v237 = vld [vmem:[%s219 + $0x48] sm:$0xff]
      %v238 = vld [vmem:[%s219 + $0x50] sm:$0xff]
      %v239 = vld [vmem:[%s219 + $0x58] sm:$0xff]
      %v240 = vld [vmem:[%s219 + $0x60] sm:$0xff]
      %v241 = vld [vmem:[%s219 + $0x68] sm:$0xff]
      %v242 = vld [vmem:[%s219 + $0x70] sm:$0xff]
      %v243 = vld [vmem:[%s219 + $0x78] sm:$0xff]
      %v244 = vpack.c.bf16 %v230, %v228
      %v245 = vpack.c.bf16 %v231, %v229
      %v246 = vpack.c.bf16 %v234, %v232
      %v247 = vpack.c.bf16 %v235, %v233
      %v248 = vpack.c.bf16 %v238, %v236
      %v249 = vpack.c.bf16 %v239, %v237
      %v250 = vpack.c.bf16 %v242, %v240
      %v251 = vpack.c.bf16 %v243, %v241
      %v254 = vunpack.c.l.b16 %v226
      %v255 = vunpack.c.l.b16 %v227
      %v256 = vpack.c.b16 %v255, %v254
      %vm257 = vcmask 523264
      %v259 = vsel %vm257, %v256, 0
      %261 = vmatpush.bf16.msra.mxu0 0
      %262 = vmatpush.bf16.msra.mxu0 0
      %263 = vmatpush.bf16.msra.mxu0 0
      %264 = vmatpush.bf16.msra.mxu0 0
      %265 = vmatpush.bf16.msra.mxu0 %v250
      %266 = vmatpush.bf16.msra.mxu0 %v248
      %267 = vmatpush.bf16.msra.mxu0 %v246
      %268 = vmatpush.bf16.msra.mxu0 %v244
      %269 = vmatmul.bf16.gmra.mxu0 %v259
      %v270 = vpop.f32.mrf.mxu0
      %v271 = vadd.f32 0.0, %v270
      %v272 = vpop.f32.mrf.mxu0
      %v273 = vadd.f32 0.0, %v272
      %274 = vdwg.mxu0
      %275 = vmatpush.bf16.msra.mxu0 0
      %276 = vmatpush.bf16.msra.mxu0 0
      %277 = vmatpush.bf16.msra.mxu0 0
      %278 = vmatpush.bf16.msra.mxu0 0
      %279 = vmatpush.bf16.msra.mxu0 %v251
      %280 = vmatpush.bf16.msra.mxu0 %v249
      %281 = vmatpush.bf16.msra.mxu0 %v247
      %282 = vmatpush.bf16.msra.mxu0 %v245
      %283 = vmatmul.bf16.gmra.mxu0 %v259
      %v284 = vpop.f32.mrf.mxu0
      %v285 = vadd.f32 0.0, %v284
      %v286 = vpop.f32.mrf.mxu0
      %v287 = vadd.f32 0.0, %v286
      %288 = vdwg.mxu0
      %v289 = vld [vmem:[%s4] sm:$0xff]
      %v290 = vld [vmem:[%s4 + $0x8] sm:$0xff]
      %v291 = vld [vmem:[%s2] sm:$0xff]
      %v292 = vld [vmem:[%s2 + $0x8] sm:$0xff]
      %v293 = vld [vmem:[%s3] sm:$0xff]
      %v294 = vld [vmem:[%s3 + $0x8] sm:$0xff]
      %v295 = vadd.f32 %v271, %v285
      %296 = vadd.xlane.f32.xlu0 %v295
      %v297 = vpop.xlane.xlu0 %296
      %v298 = vadd.f32 %v273, %v287
      %299 = vadd.xlane.f32.xlu0 %v298
      %v300 = vpop.xlane.xlu0 %299
      %v301 = vrcp.pop 256.0
      %v302 = vmul.f32 256.0, %v301
      %v303 = vsub.f32 1.0, %v302
      %v304 = vmul.f32 %v301, %v303
      %v305 = vadd.f32 %v301, %v304
      %vm306 = vweird.f32 %v301
      %v307 = vsel %vm306, %v301, %v305
      %v308 = vmul.f32 %v297, %v307
      %v309 = vmul.f32 %v300, %v307
      %vm310 = vcmask 130048
      %v312 = vsel %vm310, %v289, 0
      %v315 = vsel %vm310, %v290, 0
      %317 = vmatpush.msra.mxu0 0.0
      %318 = vmatpush.msra.mxu0 0.0
      %319 = vmatpush.msra.mxu0 0.0
      %320 = vmatpush.msra.mxu0 0.0
      %321 = vmatpush.msra.mxu0 0.0
      %322 = vmatpush.msra.mxu0 0.0
      %323 = vmatpush.msra.mxu0 0.0
      %324 = vmatpush.msra.mxu0 0.0
      %325 = vmatpush.msra.mxu0 0.0
      %326 = vmatpush.msra.mxu0 0.0
      %327 = vmatpush.msra.mxu0 0.0
      %328 = vmatpush.msra.mxu0 0.0
      %329 = vmatpush.msra.mxu0 0.0
      %330 = vmatpush.msra.mxu0 0.0
      %331 = vmatpush.msra.mxu0 %v309
      %332 = vmatpush.msra.mxu0 %v308
      %333 = vmatmul.f32.gmra.mxu0 %v312
      %v334 = vpop.f32.mrf.mxu0
      %v335 = vadd.f32 0.0, %v334
      %336 = vmatmul.f32.gmra.mxu0 %v315
      %v337 = vpop.f32.mrf.mxu0
      %v338 = vadd.f32 0.0, %v337
      %339 = vdwg.mxu0
      %341 = vset.pattern.permute.xlu0 0
      %342 = vperm.xlu0 %341, %v335
      %v343 = vpop.permute.xlu0 %342
      %346 = vset.pattern.permute.xlu0 0
      %347 = vperm.xlu0 %346, %v338
      %v348 = vpop.permute.xlu0 %347
      %v350 = vsub.f32 %v271, %v343
      %v351 = vsub.f32 %v285, %v343
      %v352 = vsub.f32 %v273, %v348
      %v353 = vsub.f32 %v287, %v348
      %v354 = vmul.f32 %v350, %v350
      %v355 = vmul.f32 %v351, %v351
      %v356 = vmul.f32 %v352, %v352
      %v357 = vmul.f32 %v353, %v353
      %v358 = vadd.f32 %v354, %v355
      %359 = vadd.xlane.f32.xlu0 %v358
      %v360 = vpop.xlane.xlu0 %359
      %v361 = vadd.f32 %v356, %v357
      %362 = vadd.xlane.f32.xlu0 %v361
      %v363 = vpop.xlane.xlu0 %362
      %v364 = vmul.f32 %v360, %v307
      %v365 = vmul.f32 %v363, %v307
      %366 = vmatpush.msra.mxu0 0.0
      %367 = vmatpush.msra.mxu0 0.0
      %368 = vmatpush.msra.mxu0 0.0
      %369 = vmatpush.msra.mxu0 0.0
      %370 = vmatpush.msra.mxu0 0.0
      %371 = vmatpush.msra.mxu0 0.0
      %372 = vmatpush.msra.mxu0 0.0
      %373 = vmatpush.msra.mxu0 0.0
      %374 = vmatpush.msra.mxu0 0.0
      %375 = vmatpush.msra.mxu0 0.0
      %376 = vmatpush.msra.mxu0 0.0
      %377 = vmatpush.msra.mxu0 0.0
      %378 = vmatpush.msra.mxu0 0.0
      %379 = vmatpush.msra.mxu0 0.0
      %380 = vmatpush.msra.mxu0 %v365
      %381 = vmatpush.msra.mxu0 %v364
      %382 = vmatmul.f32.gmra.mxu0 %v312
      %v383 = vpop.f32.mrf.mxu0
      %v384 = vadd.f32 1e-05, %v383
      %385 = vmatmul.f32.gmra.mxu0 %v315
      %v386 = vpop.f32.mrf.mxu0
      %v387 = vadd.f32 1e-05, %v386
      %388 = vdwg.mxu0
      %v389 = vrsqrt.pop %v384
      %v390 = vmul.f32 %v389, %v384
      %v391 = vmul.f32 %v390, %v389
      %v392 = vmul.f32 0.5, %v391
      %v393 = vsub.f32 1.5, %v392
      %v394 = vmul.f32 %v389, %v393
      %vm395 = vweird.f32 %v384
      %vm396 = vweird.f32 %v389
      %vm397 = vmor %vm395, %vm396
      %v398 = vsel %vm397, %v389, %v394
      %v399 = vrsqrt.pop %v387
      %v400 = vmul.f32 %v399, %v387
      %v401 = vmul.f32 %v400, %v399
      %v402 = vmul.f32 0.5, %v401
      %v403 = vsub.f32 1.5, %v402
      %v404 = vmul.f32 %v399, %v403
      %vm405 = vweird.f32 %v387
      %vm406 = vweird.f32 %v399
      %vm407 = vmor %vm405, %vm406
      %v408 = vsel %vm407, %v399, %v404
      %410 = vset.pattern.permute.xlu0 0
      %411 = vperm.xlu0 %410, %v398
      %v412 = vpop.permute.xlu0 %411
      %415 = vset.pattern.permute.xlu0 0
      %416 = vperm.xlu0 %415, %v408
      %v417 = vpop.permute.xlu0 %416
      %v419 = vmul.f32 %v350, %v412
      %v420 = vmul.f32 %v351, %v412
      %v421 = vmul.f32 %v352, %v417
      %v422 = vmul.f32 %v353, %v417
      %424 = vset.pattern.permute.xlu0 0
      %425 = vperm.xlu0 %424, %v291
      %v426 = vpop.permute.xlu0 %425
      %429 = vset.pattern.permute.xlu0 0
      %430 = vperm.xlu0 %429, %v292
      %v431 = vpop.permute.xlu0 %430
      %v433 = vmul.f32 %v419, %v426
      %v434 = vmul.f32 %v420, %v426
      %v435 = vmul.f32 %v421, %v431
      %v436 = vmul.f32 %v422, %v431
      %438 = vset.pattern.permute.xlu0 0
      %439 = vperm.xlu0 %438, %v293
      %v440 = vpop.permute.xlu0 %439
      %443 = vset.pattern.permute.xlu0 0
      %444 = vperm.xlu0 %443, %v294
      %v445 = vpop.permute.xlu0 %444
      %v447 = vadd.f32 %v433, %v440
      %v448 = vadd.f32 %v434, %v440
      %v449 = vadd.f32 %v435, %v445
      %v450 = vadd.f32 %v436, %v445
      %v451 = vpack.c.bf16 %v448, %v447
      %v452 = vpack.c.bf16 %v450, %v449
      %453 = vst [vmem:[%s224] sm:$0xff] %v451
      %454 = vst [vmem:[%s224 + $0x8] sm:$0xff] %v452
      %p455 = scmp.lt.s32.totalorder %s16, 1
      %s456 = scalar_select %p455, %s16, 1
      %s457 = smul.addr %s456, 4
      %s458 = smul.addr %s457, 4
      %s459 = scalar_lea.vmem %s5, %s458
      // Predicated region
      $region41: #{bottleneck_forward.4} parent=39 // pred_check
        %p460 = pneg %p144
      $region42: #{bottleneck_forward.4} parent=39 // pred_check_branch
        %462 = sbr.rel (%p460) target = $region44
      $region43: #{bottleneck_forward.4} parent=39 // pred_region
        _
      $region44: #{bottleneck_forward.4} parent=39 // pred_fallthru
        _
    $region40: #{bottleneck_forward.4} parent=5 // pred_fallthru
      _
    %p463 = scmp.le.s32.totalorder 2, %s11
    // Predicated region
    $region45: #{bottleneck_forward.4} parent=5 // pred_check
      %p464 = pneg %p463
    $region46: #{bottleneck_forward.4} parent=5 // pred_check_branch
      %466 = sbr.rel (%p464) target = $region48
    $region47: #{bottleneck_forward.4} parent=5 // pred_region
      %s467 = ssub.s32 %s11, 2
      // Predicated region
      $region49: #{bottleneck_forward.4} parent=47 // pred_check
        %p468 = pneg %p150
      $region50: #{bottleneck_forward.4} parent=47 // pred_check_branch
        %470 = sbr.rel (%p468) target = $region52
      $region51: #{bottleneck_forward.4} parent=47 // pred_region
        %p471 = scmp.lt.s32.totalorder %s17, 1
        %s472 = scalar_select %p471, %s17, 1
        %s473 = smul.addr %s472, 4
        %s474 = smul.addr %s473, 4
        %s475 = scalar_lea.vmem %s5, %s474
      $region52: #{bottleneck_forward.4} parent=47 // pred_fallthru
        _
    $region48: #{bottleneck_forward.4} parent=5 // pred_fallthru
      _
  $region6: #{bottleneck_forward.4} parent=0 // loop_footer
    %s15 = sadd.s32 1, %s11
  $region7: #{bottleneck_forward.4} parent=0 // loop_footer_branch
    %10 = sbr.rel target = $region3
  $region8: #{bottleneck_forward.4} parent=0 // loop_exit
    _

// kernel: bottleneck_forward.5
$region0: #{bottleneck_forward.5}
  #allocation0 [shape = 'u32[]', space=smem, size = 0x4, offset = 0x4, fixed_abs, tag = 'smem constant byte address 0x4 - core index']
  #allocation1 [shape = 'u32[72,128]{1,0:T(1,128)}', space=vmem, size = 0x9000, scoped, tag = 'internal scratch']
  %s0 = inlined_call_operand.vmem [shape: f32[9,1,256], index: 0, kind: input, shape index: {}]
  %s1 = inlined_call_operand.vmem [shape: bf16[2,16,256], index: 1, kind: input, shape index: {}]
  %s2 = inlined_call_operand.vmem [shape: bf16[16,144], index: 2, kind: input, shape index: {}]
  %s3 = inlined_call_operand.vmem [shape: f32[16,1], index: 3, kind: input, shape index: {}]
  %s4 = inlined_call_operand.vmem [shape: f32[16,1], index: 4, kind: input, shape index: {}]
  %s5 = inlined_call_operand.vmem [shape: bf16[2,16,256], index: 5, kind: output, shape index: {}]
  %s6 = sld [smem:[#allocation0]]
  $region53: #{bottleneck_forward.5} parent=0
    _
  %s8 = ssub.s32 1, %s6
  %s9 = scalar_select 0, %s8, %s6
  loop: start=0, step=1, limit=4
  $region2: #{bottleneck_forward.5} parent=0 // loop_pre_header
    _
  $region3: #{bottleneck_forward.5} parent=0 // loop_header
    %s11 = sphi 0, %s15
    %p12 = scmp.ge.s32.totalorder %s11, 4
    %s19 = sphi 0, %s19
    %s21 = sphi 0, %s19
    %s22 = sphi 0, %s21
    %s36 = sphi 0, %s22
    %s42 = sphi 0, %s44
    %s45 = sphi 0, %s42
    %s46 = sphi 0, %s45
    %s62 = sphi 0, %s46
    %s66 = sphi 0, %s66
    %s68 = sphi 0, %s66
    %s69 = sphi 0, %s68
    %s83 = sphi 0, %s69
    %s87 = sphi 0, %s87
    %s89 = sphi 0, %s87
    %s90 = sphi 0, %s89
    %s104 = sphi 0, %s90
    %s108 = sphi 0, %s108
    %s110 = sphi 0, %s108
    %s111 = sphi 0, %s110
    %s125 = sphi 0, %s111
    %s131 = sphi 0, %s133
    %s134 = sphi 0, %s131
    %s135 = sphi 0, %s134
    %s151 = sphi 0, %s135
  $region4: #{bottleneck_forward.5} parent=0 // loop_header_branch
    %14 = sbr.rel (%p12) target = $region8
  $region5: #{bottleneck_forward.5} parent=0 // loop_body
    %s16 = ssub.s32 %s11, 1
    %s17 = ssub.s32 %s11, 2
    %s18 = sadd.s32 %s11, 1
    %s20 = sadd.s32 %s19, 1
    %p23 = scmp.eq.s32.totalorder %s11, 1
    %p24 = scmp.ne.s32.totalorder %s19, %s21
    %p25 = scmp.eq.s32.totalorder %s11, 0
    %p26 = por %p24, %p25
    %p27 = scmp.ne.s32.totalorder %s19, %s21
    %p28 = scmp.eq.s32.totalorder %s16, 1
    %p29 = por %p27, %p28
    %p30 = scmp.ne.s32.totalorder %s21, %s22
    %p31 = scmp.eq.s32.totalorder %s16, 0
    %p32 = por %p30, %p31
    %p33 = scmp.ne.s32.totalorder %s21, %s22
    %p34 = scmp.eq.s32.totalorder %s17, 1
    %p35 = por %p33, %p34
    %p37 = scmp.ne.s32.totalorder %s22, %s36
    %p38 = scmp.eq.s32.totalorder %s17, 0
    %p39 = por %p37, %p38
    %s40 = ssub.s32 %s11, %s18
    %p41 = scmp.eq.s32.totalorder %s40, 0
    %s43 = sadd.s32 %s42, 1
    %s44 = scalar_select %p41, %s42, %s43
    %p47 = pneg %p41
    %p48 = scmp.eq.s32.totalorder %s11, 1
    %p49 = por %p47, %p48
    %p50 = scmp.ne.s32.totalorder %s42, %s45
    %p51 = scmp.eq.s32.totalorder %s11, 0
    %p52 = por %p50, %p51
    %p53 = scmp.ne.s32.totalorder %s42, %s45
    %p54 = scmp.eq.s32.totalorder %s16, 1
    %p55 = por %p53, %p54
    %p56 = scmp.ne.s32.totalorder %s45, %s46
    %p57 = scmp.eq.s32.totalorder %s16, 0
    %p58 = por %p56, %p57
    %p59 = scmp.ne.s32.totalorder %s45, %s46
    %p60 = scmp.eq.s32.totalorder %s17, 1
    %p61 = por %p59, %p60
    %p63 = scmp.ne.s32.totalorder %s46, %s62
    %p64 = scmp.eq.s32.totalorder %s17, 0
    %p65 = por %p63, %p64
    %s67 = sadd.s32 %s66, 1
    %p70 = scmp.eq.s32.totalorder %s11, 1
    %p71 = scmp.ne.s32.totalorder %s66, %s68
    %p72 = scmp.eq.s32.totalorder %s11, 0
    %p73 = por %p71, %p72
    %p74 = scmp.ne.s32.totalorder %s66, %s68
    %p75 = scmp.eq.s32.totalorder %s16, 1
    %p76 = por %p74, %p75
    %p77 = scmp.ne.s32.totalorder %s68, %s69
    %p78 = scmp.eq.s32.totalorder %s16, 0
    %p79 = por %p77, %p78
    %p80 = scmp.ne.s32.totalorder %s68, %s69
    %p81 = scmp.eq.s32.totalorder %s17, 1
    %p82 = por %p80, %p81
    %p84 = scmp.ne.s32.totalorder %s69, %s83
    %p85 = scmp.eq.s32.totalorder %s17, 0
    %p86 = por %p84, %p85
    %s88 = sadd.s32 %s87, 1
    %p91 = scmp.eq.s32.totalorder %s11, 1
    %p92 = scmp.ne.s32.totalorder %s87, %s89
    %p93 = scmp.eq.s32.totalorder %s11, 0
    %p94 = por %p92, %p93
    %p95 = scmp.ne.s32.totalorder %s87, %s89
    %p96 = scmp.eq.s32.totalorder %s16, 1
    %p97 = por %p95, %p96
    %p98 = scmp.ne.s32.totalorder %s89, %s90
    %p99 = scmp.eq.s32.totalorder %s16, 0
    %p100 = por %p98, %p99
    %p101 = scmp.ne.s32.totalorder %s89, %s90
    %p102 = scmp.eq.s32.totalorder %s17, 1
    %p103 = por %p101, %p102
    %p105 = scmp.ne.s32.totalorder %s90, %s104
    %p106 = scmp.eq.s32.totalorder %s17, 0
    %p107 = por %p105, %p106
    %s109 = sadd.s32 %s108, 1
    %p112 = scmp.eq.s32.totalorder %s11, 1
    %p113 = scmp.ne.s32.totalorder %s108, %s110
    %p114 = scmp.eq.s32.totalorder %s11, 0
    %p115 = por %p113, %p114
    %p116 = scmp.ne.s32.totalorder %s108, %s110
    %p117 = scmp.eq.s32.totalorder %s16, 1
    %p118 = por %p116, %p117
    %p119 = scmp.ne.s32.totalorder %s110, %s111
    %p120 = scmp.eq.s32.totalorder %s16, 0
    %p121 = por %p119, %p120
    %p122 = scmp.ne.s32.totalorder %s110, %s111
    %p123 = scmp.eq.s32.totalorder %s17, 1
    %p124 = por %p122, %p123
    %p126 = scmp.ne.s32.totalorder %s111, %s125
    %p127 = scmp.eq.s32.totalorder %s17, 0
    %p128 = por %p126, %p127
    %s129 = ssub.s32 %s11, %s18
    %p130 = scmp.eq.s32.totalorder %s129, 0
    %s132 = sadd.s32 %s131, 1
    %s133 = scalar_select %p130, %s131, %s132
    %p136 = pneg %p130
    %p137 = scmp.eq.s32.totalorder %s11, 1
    %p138 = por %p136, %p137
    %p139 = scmp.ne.s32.totalorder %s131, %s134
    %p140 = scmp.eq.s32.totalorder %s11, 0
    %p141 = por %p139, %p140
    %p142 = scmp.ne.s32.totalorder %s131, %s134
    %p143 = scmp.eq.s32.totalorder %s16, 1
    %p144 = por %p142, %p143
    %p145 = scmp.ne.s32.totalorder %s134, %s135
    %p146 = scmp.eq.s32.totalorder %s16, 0
    %p147 = por %p145, %p146
    %p148 = scmp.ne.s32.totalorder %s134, %s135
    %p149 = scmp.eq.s32.totalorder %s17, 1
    %p150 = por %p148, %p149
    %p152 = scmp.ne.s32.totalorder %s135, %s151
    %p153 = scmp.eq.s32.totalorder %s17, 0
    %p154 = por %p152, %p153
    %p155 = scmp.le.s32.totalorder 1, %s11
    %p156 = scmp.lt.s32.totalorder %s11, 3
    %p157 = pnand %p155, %p156
    %p158 = pneg %p157
    // Predicated region
    $region9: #{bottleneck_forward.5} parent=5 // pred_check
      _
    $region10: #{bottleneck_forward.5} parent=5 // pred_check_branch
      %160 = sbr.rel (%p157) target = $region12
    $region11: #{bottleneck_forward.5} parent=5 // pred_region
      %s161 = ssub.s32 %s11, 1
      // Predicated region
      $region13: #{bottleneck_forward.5} parent=11 // pred_check
        %p162 = pneg %p32
      $region14: #{bottleneck_forward.5} parent=11 // pred_check_branch
        %164 = sbr.rel (%p162) target = $region16
      $region15: #{bottleneck_forward.5} parent=11 // pred_region
        _
      $region16: #{bottleneck_forward.5} parent=11 // pred_fallthru
        _
      // Predicated region
      $region17: #{bottleneck_forward.5} parent=11 // pred_check
        %p165 = pneg %p79
      $region18: #{bottleneck_forward.5} parent=11 // pred_check_branch
        %167 = sbr.rel (%p165) target = $region20
      $region19: #{bottleneck_forward.5} parent=11 // pred_region
        _
      $region20: #{bottleneck_forward.5} parent=11 // pred_fallthru
        _
      // Predicated region
      $region21: #{bottleneck_forward.5} parent=11 // pred_check
        %p168 = pneg %p100
      $region22: #{bottleneck_forward.5} parent=11 // pred_check_branch
        %170 = sbr.rel (%p168) target = $region24
      $region23: #{bottleneck_forward.5} parent=11 // pred_region
        _
      $region24: #{bottleneck_forward.5} parent=11 // pred_fallthru
        _
      // Predicated region
      $region25: #{bottleneck_forward.5} parent=11 // pred_check
        %p171 = pneg %p121
      $region26: #{bottleneck_forward.5} parent=11 // pred_check_branch
        %173 = sbr.rel (%p171) target = $region28
      $region27: #{bottleneck_forward.5} parent=11 // pred_region
        _
      $region28: #{bottleneck_forward.5} parent=11 // pred_fallthru
        _
    $region12: #{bottleneck_forward.5} parent=5 // pred_fallthru
      _
    %p174 = scmp.lt.s32.totalorder %s11, 2
    // Predicated region
    $region29: #{bottleneck_forward.5} parent=5 // pred_check
      %p175 = pneg %p174
    $region30: #{bottleneck_forward.5} parent=5 // pred_check_branch
      %177 = sbr.rel (%p175) target = $region32
    $region31: #{bottleneck_forward.5} parent=5 // pred_region
      // Predicated region
      $region33: #{bottleneck_forward.5} parent=31 // pred_check
        %p178 = pneg %p52
      $region34: #{bottleneck_forward.5} parent=31 // pred_check_branch
        %180 = sbr.rel (%p178) target = $region36
      $region35: #{bottleneck_forward.5} parent=31 // pred_region
        %p181 = scmp.lt.s32.totalorder %s11, 1
        %s182 = scalar_select %p181, %s11, 1
        %s183 = smul.addr %s182, 4
        %s184 = smul.addr %s183, 4
        %s185 = scalar_lea.vmem %s1, %s184
      $region36: #{bottleneck_forward.5} parent=31 // pred_fallthru
        _
    $region32: #{bottleneck_forward.5} parent=5 // pred_fallthru
      _
    %p186 = scmp.le.s32.totalorder 1, %s11
    %p187 = scmp.lt.s32.totalorder %s11, 3
    %p188 = pnand %p186, %p187
    %p189 = pneg %p188
    // Predicated region
    $region37: #{bottleneck_forward.5} parent=5 // pred_check
      _
    $region38: #{bottleneck_forward.5} parent=5 // pred_check_branch
      %191 = sbr.rel (%p188) target = $region40
    $region39: #{bottleneck_forward.5} parent=5 // pred_region
      %s192 = ssub.s32 %s11, 1
      %p193 = pneg %p32
      %p194 = pneg %p29
      %p195 = scmp.lt.s32.totalorder %s16, 1
      %s196 = scalar_select %p195, %s16, 1
      %s197 = smul.addr %s196, 4
      %s198 = smul.addr %s197, 4
      %s199 = scalar_lea.vmem %s1, %s198
      %p200 = pneg %p58
      %p201 = pneg %p55
      %p202 = pneg %p79
      %p203 = pneg %p76
      %p204 = pneg %p100
      %p205 = pneg %p97
      %p206 = pneg %p121
      %p207 = pneg %p118
      %p208 = pneg %p147
      %p209 = pneg %p144
      %p210 = scmp.lt.s32.totalorder %s16, 1
      %s211 = scalar_select %p210, %s16, 1
      %s212 = smul.addr %s211, 4
      %s213 = smul.addr %s212, 4
      %s214 = scalar_lea.vmem %s5, %s213
      %p215 = scmp.lt.s32.totalorder %s16, 1
      %s216 = scalar_select %p215, %s16, 1
      %s217 = smul.addr %s216, 4
      %s218 = smul.addr %s217, 4
      %s219 = scalar_lea.vmem %s1, %s218
      %p220 = scmp.lt.s32.totalorder %s16, 1
      %s221 = scalar_select %p220, %s16, 1
      %s222 = smul.addr %s221, 4
      %s223 = smul.addr %s222, 4
      %s224 = scalar_lea.vmem %s5, %s223
      %v226 = vld [vmem:[%s219] sm:$0xff]
      %v227 = vld [vmem:[%s219 + $0x8] sm:$0xff]
      %v228 = vunpack.c.l.bf16 %v226
      %v229 = vunpack.c.h.bf16 %v226
      %v230 = vunpack.c.l.bf16 %v227
      %v231 = vunpack.c.h.bf16 %v227
      %232 = vrot.lane.b32.xlu0 %v228, 17
      %v233 = vpop.permute.xlu0 %232
      %234 = vrot.lane.b32.xlu0 %v230, 17
      %v235 = vpop.permute.xlu0 %234
      %236 = vrot.lane.b32.xlu0 %v229, 17
      %v237 = vpop.permute.xlu0 %236
      %238 = vrot.lane.b32.xlu0 %v231, 17
      %v239 = vpop.permute.xlu0 %238
      %v240 = vlaneseq
      %v241 = vand.u32 %v240, 127
      %vm242 = vcmp.lt.s32.totalorder %v241, 17
      %v243 = vsel %vm242, %v233, %v237
      %v244 = vsel %vm242, %v235, %v239
      %v245 = vsel %vm242, %v237, %v233
      %v246 = vsel %vm242, %v239, %v235
      %v247 = vld [vmem:[%s0] sm:$0x3]
      %v249 = vperm.slane %v247, 0
      %v250 = vperm.slane %v247, 1
      %v253 = vmul.f32 %v245, %v249
      %v254 = vmul.f32 %v243, %v250
      %v255 = vmul.f32 %v246, %v249
      %v256 = vmul.f32 %v244, %v250
      %257 = vrot.lane.b32.xlu0 %v228, 16
      %v258 = vpop.permute.xlu0 %257
      %259 = vrot.lane.b32.xlu0 %v230, 16
      %v260 = vpop.permute.xlu0 %259
      %261 = vrot.lane.b32.xlu0 %v229, 16
      %v262 = vpop.permute.xlu0 %261
      %263 = vrot.lane.b32.xlu0 %v231, 16
      %v264 = vpop.permute.xlu0 %263
      %vm265 = vcmp.lt.s32.totalorder %v241, 16
      %v266 = vsel %vm265, %v258, %v262
      %v267 = vsel %vm265, %v260, %v264
      %v268 = vsel %vm265, %v262, %v258
      %v269 = vsel %vm265, %v264, %v260
      %s270 = scalar_lea.vmem %s0, 2
      %v271 = vld [vmem:[%s270] sm:$0x3]
      %v273 = vperm.slane %v271, 0
      %v274 = vperm.slane %v271, 1
      %v277 = vmul.f32 %v268, %v273
      %v278 = vmul.f32 %v266, %v274
      %v279 = vmul.f32 %v269, %v273
      %v280 = vmul.f32 %v267, %v274
      %281 = vrot.lane.b32.xlu0 %v228, 15
      %v282 = vpop.permute.xlu0 %281
      %283 = vrot.lane.b32.xlu0 %v230, 15
      %v284 = vpop.permute.xlu0 %283
      %285 = vrot.lane.b32.xlu0 %v229, 15
      %v286 = vpop.permute.xlu0 %285
      %287 = vrot.lane.b32.xlu0 %v231, 15
      %v288 = vpop.permute.xlu0 %287
      %vm289 = vcmp.lt.s32.totalorder %v241, 15
      %v290 = vsel %vm289, %v282, %v286
      %v291 = vsel %vm289, %v284, %v288
      %v292 = vsel %vm289, %v286, %v282
      %v293 = vsel %vm289, %v288, %v284
      %s294 = scalar_lea.vmem %s0, 4
      %v295 = vld [vmem:[%s294] sm:$0x3]
      %v297 = vperm.slane %v295, 0
      %v298 = vperm.slane %v295, 1
      %v301 = vmul.f32 %v292, %v297
      %v302 = vmul.f32 %v290, %v298
      %v303 = vmul.f32 %v293, %v297
      %v304 = vmul.f32 %v291, %v298
      %305 = vrot.lane.b32.xlu0 %v228, 1
      %v306 = vpop.permute.xlu0 %305
      %307 = vrot.lane.b32.xlu0 %v230, 1
      %v308 = vpop.permute.xlu0 %307
      %309 = vrot.lane.b32.xlu0 %v229, 1
      %v310 = vpop.permute.xlu0 %309
      %311 = vrot.lane.b32.xlu0 %v231, 1
      %v312 = vpop.permute.xlu0 %311
      %vm313 = vcmp.lt.s32.totalorder %v241, 1
      %v314 = vsel %vm313, %v306, %v310
      %v315 = vsel %vm313, %v308, %v312
      %v316 = vsel %vm313, %v310, %v306
      %v317 = vsel %vm313, %v312, %v308
      %s318 = scalar_lea.vmem %s0, 6
      %v319 = vld [vmem:[%s318] sm:$0x3]
      %v321 = vperm.slane %v319, 0
      %v322 = vperm.slane %v319, 1
      %v325 = vmul.f32 %v316, %v321
      %v326 = vmul.f32 %v314, %v322
      %v327 = vmul.f32 %v317, %v321
      %v328 = vmul.f32 %v315, %v322
      %s329 = scalar_lea.vmem %s0, 8
      %v330 = vld [vmem:[%s329] sm:$0x3]
      %v332 = vperm.slane %v330, 0
      %v333 = vperm.slane %v330, 1
      %v336 = vmul.f32 %v228, %v332
      %v337 = vmul.f32 %v229, %v333
      %v338 = vmul.f32 %v230, %v332
      %v339 = vmul.f32 %v231, %v333
      %340 = vrot.lane.b32.xlu0 %v228, 127
      %v341 = vpop.permute.xlu0 %340
      %342 = vrot.lane.b32.xlu0 %v230, 127
      %v343 = vpop.permute.xlu0 %342
      %344 = vrot.lane.b32.xlu0 %v229, 127
      %v345 = vpop.permute.xlu0 %344
      %346 = vrot.lane.b32.xlu0 %v231, 127
      %v347 = vpop.permute.xlu0 %346
      %vm348 = vcmp.lt.s32.totalorder %v241, 127
      %v349 = vsel %vm348, %v341, %v345
      %v350 = vsel %vm348, %v343, %v347
      %v351 = vsel %vm348, %v345, %v341
      %v352 = vsel %vm348, %v347, %v343
      %s353 = scalar_lea.vmem %s0, 10
      %v354 = vld [vmem:[%s353] sm:$0x3]
      %v356 = vperm.slane %v354, 0
      %v357 = vperm.slane %v354, 1
      %v360 = vmul.f32 %v349, %v356
      %v361 = vmul.f32 %v351, %v357
      %v362 = vmul.f32 %v350, %v356
      %v363 = vmul.f32 %v352, %v357
      %364 = vrot.lane.b32.xlu0 %v228, 113
      %v365 = vpop.permute.xlu0 %364
      %366 = vrot.lane.b32.xlu0 %v230, 113
      %v367 = vpop.permute.xlu0 %366
      %368 = vrot.lane.b32.xlu0 %v229, 113
      %v369 = vpop.permute.xlu0 %368
      %370 = vrot.lane.b32.xlu0 %v231, 113
      %v371 = vpop.permute.xlu0 %370
      %vm372 = vcmp.lt.s32.totalorder %v241, 113
      %v373 = vsel %vm372, %v365, %v369
      %v374 = vsel %vm372, %v367, %v371
      %v375 = vsel %vm372, %v369, %v365
      %v376 = vsel %vm372, %v371, %v367
      %s377 = scalar_lea.vmem %s0, 12
      %v378 = vld [vmem:[%s377] sm:$0x3]
      %v380 = vperm.slane %v378, 0
      %v381 = vperm.slane %v378, 1
      %v384 = vmul.f32 %v373, %v380
      %v385 = vmul.f32 %v375, %v381
      %v386 = vmul.f32 %v374, %v380
      %v387 = vmul.f32 %v376, %v381
      %388 = vrot.lane.b32.xlu0 %v228, 112
      %v389 = vpop.permute.xlu0 %388
      %390 = vrot.lane.b32.xlu0 %v230, 112
      %v391 = vpop.permute.xlu0 %390
      %392 = vrot.lane.b32.xlu0 %v229, 112
      %v393 = vpop.permute.xlu0 %392
      %394 = vrot.lane.b32.xlu0 %v231, 112
      %v395 = vpop.permute.xlu0 %394
      %vm396 = vcmp.lt.s32.totalorder %v241, 112
      %v397 = vsel %vm396, %v389, %v393
      %v398 = vsel %vm396, %v391, %v395
      %v399 = vsel %vm396, %v393, %v389
      %v400 = vsel %vm396, %v395, %v391
      %s401 = scalar_lea.vmem %s0, 14
      %v402 = vld [vmem:[%s401] sm:$0x3]
      %v404 = vperm.slane %v402, 0
      %v405 = vperm.slane %v402, 1
      %v408 = vmul.f32 %v397, %v404
      %v409 = vmul.f32 %v399, %v405
      %v410 = vmul.f32 %v398, %v404
      %v411 = vmul.f32 %v400, %v405
      %412 = vrot.lane.b32.xlu0 %v228, 111
      %v413 = vpop.permute.xlu0 %412
      %414 = vrot.lane.b32.xlu0 %v230, 111
      %v415 = vpop.permute.xlu0 %414
      %416 = vrot.lane.b32.xlu0 %v229, 111
      %v417 = vpop.permute.xlu0 %416
      %418 = vrot.lane.b32.xlu0 %v231, 111
      %v419 = vpop.permute.xlu0 %418
      %vm420 = vcmp.lt.s32.totalorder %v241, 111
      %v421 = vsel %vm420, %v413, %v417
      %v422 = vsel %vm420, %v415, %v419
      %v423 = vsel %vm420, %v417, %v413
      %v424 = vsel %vm420, %v419, %v415
      %s425 = scalar_lea.vmem %s0, 16
      %v426 = vld [vmem:[%s425] sm:$0x3]
      %v428 = vperm.slane %v426, 0
      %v429 = vperm.slane %v426, 1
      %v432 = vmul.f32 %v421, %v428
      %v433 = vmul.f32 %v423, %v429
      %v434 = vmul.f32 %v422, %v428
      %v435 = vmul.f32 %v424, %v429
      %v436 = vpack.c.bf16 %v255, %v253
      %v437 = vpack.c.bf16 %v256, %v254
      %v438 = vpack.c.bf16 %v279, %v277
      %v439 = vpack.c.bf16 %v280, %v278
      %v440 = vpack.c.bf16 %v303, %v301
      %v441 = vpack.c.bf16 %v304, %v302
      %v442 = vpack.c.bf16 %v327, %v325
      %v443 = vpack.c.bf16 %v328, %v326
      %v444 = vpack.c.bf16 %v338, %v336
      %v445 = vpack.c.bf16 %v339, %v337
      %v446 = vpack.c.bf16 %v362, %v360
      %v447 = vpack.c.bf16 %v363, %v361
      %v448 = vpack.c.bf16 %v386, %v384
      %v449 = vpack.c.bf16 %v387, %v385
      %v450 = vpack.c.bf16 %v410, %v408
      %v451 = vpack.c.bf16 %v411, %v409
      %v452 = vpack.c.bf16 %v434, %v432
      %v453 = vpack.c.bf16 %v435, %v433
      %v454 = vld [vmem:[%s2] sm:$0xff]
      %v455 = vld [vmem:[%s2 + $0x8] sm:$0xff]
      %v458 = vunpack.c.l.b16 %v454
      %v459 = vunpack.c.h.b16 %v454
      %v460 = vunpack.c.l.b16 %v455
      %v461 = vunpack.c.h.b16 %v455
      %v462 = vpack.c.b16 %v460, %v458
      %v463 = vpack.c.b16 %v461, %v459
      %vm465 = vcmask 130048
      %v467 = vsel %vm465, %v463, 0
      %469 = vmatpush.bf16.msra.mxu0 %v450
      %470 = vmatpush.bf16.msra.mxu0 %v448
      %471 = vmatpush.bf16.msra.mxu0 %v446
      %472 = vmatpush.bf16.msra.mxu0 %v444
      %473 = vmatpush.bf16.msra.mxu0 %v442
      %474 = vmatpush.bf16.msra.mxu0 %v440
      %475 = vmatpush.bf16.msra.mxu0 %v438
      %476 = vmatpush.bf16.msra.mxu0 %v436
      %477 = vmatmul.bf16.gmra.mxu0 %v462
      %v478 = vpop.f32.mrf.mxu0
      %v479 = vadd.f32 0.0, %v478
      %v480 = vpop.f32.mrf.mxu0
      %v481 = vadd.f32 0.0, %v480
      %482 = vdwg.mxu0
      %483 = vmatpush.bf16.msra.mxu0 0
      %484 = vmatpush.bf16.msra.mxu0 0
      %485 = vmatpush.bf16.msra.mxu0 0
      %486 = vmatpush.bf16.msra.mxu0 0
      %487 = vmatpush.bf16.msra.mxu0 0
      %488 = vmatpush.bf16.msra.mxu0 0
      %489 = vmatpush.bf16.msra.mxu0 0
      %490 = vmatpush.bf16.msra.mxu0 %v452
      %491 = vmatmul.bf16.gmra.mxu0 %v467
      %v492 = vpop.f32.mrf.mxu0
      %v493 = vadd.f32 %v479, %v492
      %v494 = vpop.f32.mrf.mxu0
      %v495 = vadd.f32 %v481, %v494
      %496 = vdwg.mxu0
      %497 = vmatpush.bf16.msra.mxu0 %v451
      %498 = vmatpush.bf16.msra.mxu0 %v449
      %499 = vmatpush.bf16.msra.mxu0 %v447
      %500 = vmatpush.bf16.msra.mxu0 %v445
      %501 = vmatpush.bf16.msra.mxu0 %v443
      %502 = vmatpush.bf16.msra.mxu0 %v441
      %503 = vmatpush.bf16.msra.mxu0 %v439
      %504 = vmatpush.bf16.msra.mxu0 %v437
      %505 = vmatmul.bf16.gmra.mxu0 %v462
      %v506 = vpop.f32.mrf.mxu0
      %v507 = vadd.f32 0.0, %v506
      %v508 = vpop.f32.mrf.mxu0
      %v509 = vadd.f32 0.0, %v508
      %510 = vdwg.mxu0
      %511 = vmatpush.bf16.msra.mxu0 0
      %512 = vmatpush.bf16.msra.mxu0 0
      %513 = vmatpush.bf16.msra.mxu0 0
      %514 = vmatpush.bf16.msra.mxu0 0
      %515 = vmatpush.bf16.msra.mxu0 0
      %516 = vmatpush.bf16.msra.mxu0 0
      %517 = vmatpush.bf16.msra.mxu0 0
      %518 = vmatpush.bf16.msra.mxu0 %v453
      %519 = vmatmul.bf16.gmra.mxu0 %v467
      %v520 = vpop.f32.mrf.mxu0
      %v521 = vadd.f32 %v507, %v520
      %v522 = vpop.f32.mrf.mxu0
      %v523 = vadd.f32 %v509, %v522
      %524 = vdwg.mxu0
      %v525 = vld [vmem:[%s3] sm:$0xff]
      %v526 = vld [vmem:[%s3 + $0x8] sm:$0xff]
      %528 = vset.pattern.permute.xlu0 0
      %529 = vperm.xlu0 %528, %v525
      %v530 = vpop.permute.xlu0 %529
      %533 = vset.pattern.permute.xlu0 0
      %534 = vperm.xlu0 %533, %v526
      %v535 = vpop.permute.xlu0 %534
      %v537 = vmul.f32 %v493, %v530
      %v538 = vmul.f32 %v521, %v530
      %v539 = vmul.f32 %v495, %v535
      %v540 = vmul.f32 %v523, %v535
      %v541 = vld [vmem:[%s4] sm:$0xff]
      %v542 = vld [vmem:[%s4 + $0x8] sm:$0xff]
      %544 = vset.pattern.permute.xlu0 0
      %545 = vperm.xlu0 %544, %v541
      %v546 = vpop.permute.xlu0 %545
      %549 = vset.pattern.permute.xlu0 0
      %550 = vperm.xlu0 %549, %v542
      %v551 = vpop.permute.xlu0 %550
      %v553 = vadd.f32 %v537, %v546
      %v554 = vadd.f32 %v538, %v546
      %v555 = vadd.f32 %v539, %v551
      %v556 = vadd.f32 %v540, %v551
      %v557 = vpack.c.bf16 %v554, %v553
      %v558 = vpack.c.bf16 %v556, %v555
      %559 = vst [vmem:[%s224] sm:$0xff] %v557
      %560 = vst [vmem:[%s224 + $0x8] sm:$0xff] %v558
      %p561 = scmp.lt.s32.totalorder %s16, 1
      %s562 = scalar_select %p561, %s16, 1
      %s563 = smul.addr %s562, 4
      %s564 = smul.addr %s563, 4
      %s565 = scalar_lea.vmem %s5, %s564
      // Predicated region
      $region41: #{bottleneck_forward.5} parent=39 // pred_check
        %p566 = pneg %p144
      $region42: #{bottleneck_forward.5} parent=39 // pred_check_branch
        %568 = sbr.rel (%p566) target = $region44
      $region43: #{bottleneck_forward.5} parent=39 // pred_region
        _
      $region44: #{bottleneck_forward.5} parent=39 // pred_fallthru
        _
    $region40: #{bottleneck_forward.5} parent=5 // pred_fallthru
      _
    %p569 = scmp.le.s32.totalorder 2, %s11
    // Predicated region
    $region45: #{bottleneck_forward.5} parent=5 // pred_check
      %p570 = pneg %p569
    $region46: #{bottleneck_forward.5} parent=5 // pred_check_branch
      %572 = sbr.rel (%p570) target = $region48
    $region47: #{bottleneck_forward.5} parent=5 // pred_region
      %s573 = ssub.s32 %s11, 2
      // Predicated region
      $region49: #{bottleneck_forward.5} parent=47 // pred_check
        %p574 = pneg %p150
      $region50: #{bottleneck_forward.5} parent=47 // pred_check_branch
        %576 = sbr.rel (%p574) target = $region52
      $region51: #{bottleneck_forward.5} parent=47 // pred_region
        %p577 = scmp.lt.s32.totalorder %s17, 1
        %s578 = scalar_select %p577, %s17, 1
        %s579 = smul.addr %s578, 4
        %s580 = smul.addr %s579, 4
        %s581 = scalar_lea.vmem %s5, %s580
      $region52: #{bottleneck_forward.5} parent=47 // pred_fallthru
        _
    $region48: #{bottleneck_forward.5} parent=5 // pred_fallthru
      _
  $region6: #{bottleneck_forward.5} parent=0 // loop_footer
    %s15 = sadd.s32 1, %s11
  $region7: #{bottleneck_forward.5} parent=0 // loop_footer_branch
    %10 = sbr.rel target = $region3
  $region8: #{bottleneck_forward.5} parent=0 // loop_exit
    _

// kernel: bottleneck_forward.7
$region0: #{bottleneck_forward.7}
  #allocation0 [shape = 'u32[]', space=smem, size = 0x4, offset = 0x4, fixed_abs, tag = 'smem constant byte address 0x4 - core index']
  #allocation1 [shape = 'u32[72,128]{1,0:T(1,128)}', space=vmem, size = 0x9000, scoped, tag = 'internal scratch']
  %s0 = inlined_call_operand.vmem [shape: bf16[2,16,256], index: 0, kind: input, shape index: {}]
  %s1 = inlined_call_operand.vmem [shape: bf16[2,16,256], index: 1, kind: input, shape index: {}]
  %s2 = inlined_call_operand.vmem [shape: bf16[64,16], index: 2, kind: input, shape index: {}]
  %s3 = inlined_call_operand.vmem [shape: f32[64,1], index: 3, kind: input, shape index: {}]
  %s4 = inlined_call_operand.vmem [shape: f32[64,1], index: 4, kind: input, shape index: {}]
  %s5 = inlined_call_operand.vmem [shape: f32[2,64,256], index: 5, kind: input, shape index: {}]
  %s6 = inlined_call_operand.vmem [shape: f32[2,64,256], index: 6, kind: output, shape index: {}]
  %s7 = sld [smem:[#allocation0]]
  $region57: #{bottleneck_forward.7} parent=0
    _
  %s9 = ssub.s32 1, %s7
  %s10 = scalar_select 0, %s9, %s7
  loop: start=0, step=1, limit=4
  $region2: #{bottleneck_forward.7} parent=0 // loop_pre_header
    _
  $region3: #{bottleneck_forward.7} parent=0 // loop_header
    %s12 = sphi 0, %s16
    %p13 = scmp.ge.s32.totalorder %s12, 4
    %s22 = sphi 0, %s24
    %s25 = sphi 0, %s22
    %s26 = sphi 0, %s25
    %s42 = sphi 0, %s26
    %s48 = sphi 0, %s50
    %s51 = sphi 0, %s48
    %s52 = sphi 0, %s51
    %s68 = sphi 0, %s52
    %s72 = sphi 0, %s72
    %s74 = sphi 0, %s72
    %s75 = sphi 0, %s74
    %s89 = sphi 0, %s75
    %s93 = sphi 0, %s93
    %s95 = sphi 0, %s93
    %s96 = sphi 0, %s95
    %s110 = sphi 0, %s96
    %s114 = sphi 0, %s114
    %s116 = sphi 0, %s114
    %s117 = sphi 0, %s116
    %s131 = sphi 0, %s117
    %s137 = sphi 0, %s139
    %s140 = sphi 0, %s137
    %s141 = sphi 0, %s140
    %s157 = sphi 0, %s141
    %s163 = sphi 0, %s165
    %s166 = sphi 0, %s163
    %s167 = sphi 0, %s166
    %s183 = sphi 0, %s167
  $region4: #{bottleneck_forward.7} parent=0 // loop_header_branch
    %15 = sbr.rel (%p13) target = $region8
  $region5: #{bottleneck_forward.7} parent=0 // loop_body
    %s17 = ssub.s32 %s12, 1
    %s18 = ssub.s32 %s12, 2
    %s19 = sadd.s32 %s12, 1
    %s20 = ssub.s32 %s12, %s19
    %p21 = scmp.eq.s32.totalorder %s20, 0
    %s23 = sadd.s32 %s22, 1
    %s24 = scalar_select %p21, %s22, %s23
    %p27 = pneg %p21
    %p28 = scmp.eq.s32.totalorder %s12, 1
    %p29 = por %p27, %p28
    %p30 = scmp.ne.s32.totalorder %s22, %s25
    %p31 = scmp.eq.s32.totalorder %s12, 0
    %p32 = por %p30, %p31
    %p33 = scmp.ne.s32.totalorder %s22, %s25
    %p34 = scmp.eq.s32.totalorder %s17, 1
    %p35 = por %p33, %p34
    %p36 = scmp.ne.s32.totalorder %s25, %s26
    %p37 = scmp.eq.s32.totalorder %s17, 0
    %p38 = por %p36, %p37
    %p39 = scmp.ne.s32.totalorder %s25, %s26
    %p40 = scmp.eq.s32.totalorder %s18, 1
    %p41 = por %p39, %p40
    %p43 = scmp.ne.s32.totalorder %s26, %s42
    %p44 = scmp.eq.s32.totalorder %s18, 0
    %p45 = por %p43, %p44
    %s46 = ssub.s32 %s12, %s19
    %p47 = scmp.eq.s32.totalorder %s46, 0
    %s49 = sadd.s32 %s48, 1
    %s50 = scalar_select %p47, %s48, %s49
    %p53 = pneg %p47
    %p54 = scmp.eq.s32.totalorder %s12, 1
    %p55 = por %p53, %p54
    %p56 = scmp.ne.s32.totalorder %s48, %s51
    %p57 = scmp.eq.s32.totalorder %s12, 0
    %p58 = por %p56, %p57
    %p59 = scmp.ne.s32.totalorder %s48, %s51
    %p60 = scmp.eq.s32.totalorder %s17, 1
    %p61 = por %p59, %p60
    %p62 = scmp.ne.s32.totalorder %s51, %s52
    %p63 = scmp.eq.s32.totalorder %s17, 0
    %p64 = por %p62, %p63
    %p65 = scmp.ne.s32.totalorder %s51, %s52
    %p66 = scmp.eq.s32.totalorder %s18, 1
    %p67 = por %p65, %p66
    %p69 = scmp.ne.s32.totalorder %s52, %s68
    %p70 = scmp.eq.s32.totalorder %s18, 0
    %p71 = por %p69, %p70
    %s73 = sadd.s32 %s72, 1
    %p76 = scmp.eq.s32.totalorder %s12, 1
    %p77 = scmp.ne.s32.totalorder %s72, %s74
    %p78 = scmp.eq.s32.totalorder %s12, 0
    %p79 = por %p77, %p78
    %p80 = scmp.ne.s32.totalorder %s72, %s74
    %p81 = scmp.eq.s32.totalorder %s17, 1
    %p82 = por %p80, %p81
    %p83 = scmp.ne.s32.totalorder %s74, %s75
    %p84 = scmp.eq.s32.totalorder %s17, 0
    %p85 = por %p83, %p84
    %p86 = scmp.ne.s32.totalorder %s74, %s75
    %p87 = scmp.eq.s32.totalorder %s18, 1
    %p88 = por %p86, %p87
    %p90 = scmp.ne.s32.totalorder %s75, %s89
    %p91 = scmp.eq.s32.totalorder %s18, 0
    %p92 = por %p90, %p91
    %s94 = sadd.s32 %s93, 1
    %p97 = scmp.eq.s32.totalorder %s12, 1
    %p98 = scmp.ne.s32.totalorder %s93, %s95
    %p99 = scmp.eq.s32.totalorder %s12, 0
    %p100 = por %p98, %p99
    %p101 = scmp.ne.s32.totalorder %s93, %s95
    %p102 = scmp.eq.s32.totalorder %s17, 1
    %p103 = por %p101, %p102
    %p104 = scmp.ne.s32.totalorder %s95, %s96
    %p105 = scmp.eq.s32.totalorder %s17, 0
    %p106 = por %p104, %p105
    %p107 = scmp.ne.s32.totalorder %s95, %s96
    %p108 = scmp.eq.s32.totalorder %s18, 1
    %p109 = por %p107, %p108
    %p111 = scmp.ne.s32.totalorder %s96, %s110
    %p112 = scmp.eq.s32.totalorder %s18, 0
    %p113 = por %p111, %p112
    %s115 = sadd.s32 %s114, 1
    %p118 = scmp.eq.s32.totalorder %s12, 1
    %p119 = scmp.ne.s32.totalorder %s114, %s116
    %p120 = scmp.eq.s32.totalorder %s12, 0
    %p121 = por %p119, %p120
    %p122 = scmp.ne.s32.totalorder %s114, %s116
    %p123 = scmp.eq.s32.totalorder %s17, 1
    %p124 = por %p122, %p123
    %p125 = scmp.ne.s32.totalorder %s116, %s117
    %p126 = scmp.eq.s32.totalorder %s17, 0
    %p127 = por %p125, %p126
    %p128 = scmp.ne.s32.totalorder %s116, %s117
    %p129 = scmp.eq.s32.totalorder %s18, 1
    %p130 = por %p128, %p129
    %p132 = scmp.ne.s32.totalorder %s117, %s131
    %p133 = scmp.eq.s32.totalorder %s18, 0
    %p134 = por %p132, %p133
    %s135 = ssub.s32 %s12, %s19
    %p136 = scmp.eq.s32.totalorder %s135, 0
    %s138 = sadd.s32 %s137, 1
    %s139 = scalar_select %p136, %s137, %s138
    %p142 = pneg %p136
    %p143 = scmp.eq.s32.totalorder %s12, 1
    %p144 = por %p142, %p143
    %p145 = scmp.ne.s32.totalorder %s137, %s140
    %p146 = scmp.eq.s32.totalorder %s12, 0
    %p147 = por %p145, %p146
    %p148 = scmp.ne.s32.totalorder %s137, %s140
    %p149 = scmp.eq.s32.totalorder %s17, 1
    %p150 = por %p148, %p149
    %p151 = scmp.ne.s32.totalorder %s140, %s141
    %p152 = scmp.eq.s32.totalorder %s17, 0
    %p153 = por %p151, %p152
    %p154 = scmp.ne.s32.totalorder %s140, %s141
    %p155 = scmp.eq.s32.totalorder %s18, 1
    %p156 = por %p154, %p155
    %p158 = scmp.ne.s32.totalorder %s141, %s157
    %p159 = scmp.eq.s32.totalorder %s18, 0
    %p160 = por %p158, %p159
    %s161 = ssub.s32 %s12, %s19
    %p162 = scmp.eq.s32.totalorder %s161, 0
    %s164 = sadd.s32 %s163, 1
    %s165 = scalar_select %p162, %s163, %s164
    %p168 = pneg %p162
    %p169 = scmp.eq.s32.totalorder %s12, 1
    %p170 = por %p168, %p169
    %p171 = scmp.ne.s32.totalorder %s163, %s166
    %p172 = scmp.eq.s32.totalorder %s12, 0
    %p173 = por %p171, %p172
    %p174 = scmp.ne.s32.totalorder %s163, %s166
    %p175 = scmp.eq.s32.totalorder %s17, 1
    %p176 = por %p174, %p175
    %p177 = scmp.ne.s32.totalorder %s166, %s167
    %p178 = scmp.eq.s32.totalorder %s17, 0
    %p179 = por %p177, %p178
    %p180 = scmp.ne.s32.totalorder %s166, %s167
    %p181 = scmp.eq.s32.totalorder %s18, 1
    %p182 = por %p180, %p181
    %p184 = scmp.ne.s32.totalorder %s167, %s183
    %p185 = scmp.eq.s32.totalorder %s18, 0
    %p186 = por %p184, %p185
    %p187 = scmp.le.s32.totalorder 1, %s12
    %p188 = scmp.lt.s32.totalorder %s12, 3
    %p189 = pnand %p187, %p188
    %p190 = pneg %p189
    // Predicated region
    $region9: #{bottleneck_forward.7} parent=5 // pred_check
      _
    $region10: #{bottleneck_forward.7} parent=5 // pred_check_branch
      %192 = sbr.rel (%p189) target = $region12
    $region11: #{bottleneck_forward.7} parent=5 // pred_region
      %s193 = ssub.s32 %s12, 1
      // Predicated region
      $region13: #{bottleneck_forward.7} parent=11 // pred_check
        %p194 = pneg %p85
      $region14: #{bottleneck_forward.7} parent=11 // pred_check_branch
        %196 = sbr.rel (%p194) target = $region16
      $region15: #{bottleneck_forward.7} parent=11 // pred_region
        _
      $region16: #{bottleneck_forward.7} parent=11 // pred_fallthru
        _
      // Predicated region
      $region17: #{bottleneck_forward.7} parent=11 // pred_check
        %p197 = pneg %p106
      $region18: #{bottleneck_forward.7} parent=11 // pred_check_branch
        %199 = sbr.rel (%p197) target = $region20
      $region19: #{bottleneck_forward.7} parent=11 // pred_region
        _
      $region20: #{bottleneck_forward.7} parent=11 // pred_fallthru
        _
      // Predicated region
      $region21: #{bottleneck_forward.7} parent=11 // pred_check
        %p200 = pneg %p127
      $region22: #{bottleneck_forward.7} parent=11 // pred_check_branch
        %202 = sbr.rel (%p200) target = $region24
      $region23: #{bottleneck_forward.7} parent=11 // pred_region
        _
      $region24: #{bottleneck_forward.7} parent=11 // pred_fallthru
        _
    $region12: #{bottleneck_forward.7} parent=5 // pred_fallthru
      _
    %p203 = scmp.lt.s32.totalorder %s12, 2
    // Predicated region
    $region25: #{bottleneck_forward.7} parent=5 // pred_check
      %p204 = pneg %p203
    $region26: #{bottleneck_forward.7} parent=5 // pred_check_branch
      %206 = sbr.rel (%p204) target = $region28
    $region27: #{bottleneck_forward.7} parent=5 // pred_region
      // Predicated region
      $region29: #{bottleneck_forward.7} parent=27 // pred_check
        %p207 = pneg %p32
      $region30: #{bottleneck_forward.7} parent=27 // pred_check_branch
        %209 = sbr.rel (%p207) target = $region32
      $region31: #{bottleneck_forward.7} parent=27 // pred_region
        %p210 = scmp.lt.s32.totalorder %s12, 1
        %s211 = scalar_select %p210, %s12, 1
        %s212 = smul.addr %s211, 4
        %s213 = smul.addr %s212, 4
        %s214 = scalar_lea.vmem %s0, %s213
      $region32: #{bottleneck_forward.7} parent=27 // pred_fallthru
        _
      // Predicated region
      $region33: #{bottleneck_forward.7} parent=27 // pred_check
        %p215 = pneg %p58
      $region34: #{bottleneck_forward.7} parent=27 // pred_check_branch
        %217 = sbr.rel (%p215) target = $region36
      $region35: #{bottleneck_forward.7} parent=27 // pred_region
        %p218 = scmp.lt.s32.totalorder %s12, 1
        %s219 = scalar_select %p218, %s12, 1
        %s220 = smul.addr %s219, 4
        %s221 = smul.addr %s220, 4
        %s222 = scalar_lea.vmem %s1, %s221
      $region36: #{bottleneck_forward.7} parent=27 // pred_fallthru
        _
      // Predicated region
      $region37: #{bottleneck_forward.7} parent=27 // pred_check
        %p223 = pneg %p147
      $region38: #{bottleneck_forward.7} parent=27 // pred_check_branch
        %225 = sbr.rel (%p223) target = $region40
      $region39: #{bottleneck_forward.7} parent=27 // pred_region
        %p226 = scmp.lt.s32.totalorder %s12, 1
        %s227 = scalar_select %p226, %s12, 1
        %s228 = smul.addr %s227, 16
        %s229 = smul.addr %s228, 8
        %s230 = scalar_lea.vmem %s5, %s229
      $region40: #{bottleneck_forward.7} parent=27 // pred_fallthru
        _
    $region28: #{bottleneck_forward.7} parent=5 // pred_fallthru
      _
    %p231 = scmp.le.s32.totalorder 1, %s12
    %p232 = scmp.lt.s32.totalorder %s12, 3
    %p233 = pnand %p231, %p232
    %p234 = pneg %p233
    // Predicated region
    $region41: #{bottleneck_forward.7} parent=5 // pred_check
      _
    $region42: #{bottleneck_forward.7} parent=5 // pred_check_branch
      %236 = sbr.rel (%p233) target = $region44
    $region43: #{bottleneck_forward.7} parent=5 // pred_region
      %s237 = ssub.s32 %s12, 1
      %p238 = scmp.lt.s32.totalorder %s17, 1
      %s239 = scalar_select %p238, %s17, 1
      %s240 = smul.addr %s239, 4
      %s241 = smul.addr %s240, 4
      %s242 = scalar_lea.vmem %s0, %s241
      %p243 = pneg %p38
      %p244 = pneg %p35
      %p245 = scmp.lt.s32.totalorder %s17, 1
      %s246 = scalar_select %p245, %s17, 1
      %s247 = smul.addr %s246, 4
      %s248 = smul.addr %s247, 4
      %s249 = scalar_lea.vmem %s1, %s248
      %p250 = pneg %p64
      %p251 = pneg %p61
      %p252 = pneg %p85
      %p253 = pneg %p82
      %p254 = pneg %p106
      %p255 = pneg %p103
      %p256 = pneg %p127
      %p257 = pneg %p124
      %p258 = scmp.lt.s32.totalorder %s17, 1
      %s259 = scalar_select %p258, %s17, 1
      %s260 = smul.addr %s259, 16
      %s261 = smul.addr %s260, 8
      %s262 = scalar_lea.vmem %s5, %s261
      %p263 = pneg %p153
      %p264 = pneg %p150
      %p265 = pneg %p179
      %p266 = pneg %p176
      %p267 = scmp.lt.s32.totalorder %s17, 1
      %s268 = scalar_select %p267, %s17, 1
      %s269 = smul.addr %s268, 16
      %s270 = smul.addr %s269, 8
      %s271 = scalar_lea.vmem %s6, %s270
      %p272 = scmp.lt.s32.totalorder %s17, 1
      %s273 = scalar_select %p272, %s17, 1
      %s274 = smul.addr %s273, 4
      %s275 = smul.addr %s274, 4
      %s276 = scalar_lea.vmem %s0, %s275
      %p277 = scmp.lt.s32.totalorder %s17, 1
      %s278 = scalar_select %p277, %s17, 1
      %s279 = smul.addr %s278, 4
      %s280 = smul.addr %s279, 4
      %s281 = scalar_lea.vmem %s1, %s280
      %p282 = scmp.lt.s32.totalorder %s17, 1
      %s283 = scalar_select %p282, %s17, 1
      %s284 = smul.addr %s283, 16
      %s285 = smul.addr %s284, 8
      %s286 = scalar_lea.vmem %s5, %s285
      %p287 = scmp.lt.s32.totalorder %s17, 1
      %s288 = scalar_select %p287, %s17, 1
      %s289 = smul.addr %s288, 16
      %s290 = smul.addr %s289, 8
      %s291 = scalar_lea.vmem %s6, %s290
      %v293 = vld [vmem:[%s276] sm:$0xff]
      %v294 = vld [vmem:[%s276 + $0x8] sm:$0xff]
      %v295 = vunpack.c.l.bf16 %v293
      %v296 = vunpack.c.h.bf16 %v293
      %v297 = vunpack.c.l.bf16 %v294
      %v298 = vunpack.c.h.bf16 %v294
      %v299 = vld [vmem:[%s281] sm:$0xff]
      %v300 = vld [vmem:[%s281 + $0x8] sm:$0xff]
      %v301 = vunpack.c.l.bf16 %v299
      %v302 = vunpack.c.h.bf16 %v299
      %v303 = vunpack.c.l.bf16 %v300
      %v304 = vunpack.c.h.bf16 %v300
      %v305 = vmul.f32 %v295, %v301
      %v306 = vmul.f32 %v296, %v302
      %v307 = vmul.f32 %v297, %v303
      %v308 = vmul.f32 %v298, %v304
      %v309 = vpack.c.bf16 %v307, %v305
      %v310 = vpack.c.bf16 %v308, %v306
      %v311 = vld [vmem:[%s2] sm:$0xf]
      %v312 = vld [vmem:[%s2 + $0x4] sm:$0xf]
      %v313 = vld [vmem:[%s2 + $0x8] sm:$0xf]
      %v314 = vld [vmem:[%s2 + $0xc] sm:$0xf]
      %v315 = vld [vmem:[%s2 + $0x10] sm:$0xf]
      %v316 = vld [vmem:[%s2 + $0x14] sm:$0xf]
      %v317 = vld [vmem:[%s2 + $0x18] sm:$0xf]
      %v318 = vld [vmem:[%s2 + $0x1c] sm:$0xf]
      %v327 = vunpack.c.l.b16 %v311
      %v328 = vunpack.c.l.b16 %v312
      %v329 = vunpack.c.l.b16 %v313
      %v330 = vunpack.c.l.b16 %v314
      %v331 = vunpack.c.l.b16 %v315
      %v332 = vunpack.c.l.b16 %v316
      %v333 = vunpack.c.l.b16 %v317
      %v334 = vunpack.c.l.b16 %v318
      %v335 = vpack.c.b16 %v328, %v327
      %v336 = vpack.c.b16 %v330, %v329
      %v337 = vpack.c.b16 %v332, %v331
      %v338 = vpack.c.b16 %v334, %v333
      %vm339 = vcmask 130048
      %v341 = vsel %vm339, %v335, 0
      %v344 = vsel %vm339, %v336, 0
      %v347 = vsel %vm339, %v337, 0
      %v350 = vsel %vm339, %v338, 0
      %352 = vmatpush.bf16.msra.mxu0 0
      %353 = vmatpush.bf16.msra.mxu0 0
      %354 = vmatpush.bf16.msra.mxu0 0
      %355 = vmatpush.bf16.msra.mxu0 0
      %356 = vmatpush.bf16.msra.mxu0 0
      %357 = vmatpush.bf16.msra.mxu0 0
      %358 = vmatpush.bf16.msra.mxu0 0
      %359 = vmatpush.bf16.msra.mxu0 %v309
      %360 = vmatmul.bf16.gmra.mxu0 %v341
      %v361 = vpop.f32.mrf.mxu0
      %v362 = vadd.f32 0.0, %v361
      %v363 = vpop.f32.mrf.mxu0
      %v364 = vadd.f32 0.0, %v363
      %365 = vmatmul.bf16.gmra.mxu0 %v344
      %v366 = vpop.f32.mrf.mxu0
      %v367 = vadd.f32 0.0, %v366
      %v368 = vpop.f32.mrf.mxu0
      %v369 = vadd.f32 0.0, %v368
      %370 = vmatmul.bf16.gmra.mxu0 %v347
      %v371 = vpop.f32.mrf.mxu0
      %v372 = vadd.f32 0.0, %v371
      %v373 = vpop.f32.mrf.mxu0
      %v374 = vadd.f32 0.0, %v373
      %375 = vmatmul.bf16.gmra.mxu0 %v350
      %v376 = vpop.f32.mrf.mxu0
      %v377 = vadd.f32 0.0, %v376
      %v378 = vpop.f32.mrf.mxu0
      %v379 = vadd.f32 0.0, %v378
      %380 = vdwg.mxu0
      %381 = vmatpush.bf16.msra.mxu0 0
      %382 = vmatpush.bf16.msra.mxu0 0
      %383 = vmatpush.bf16.msra.mxu0 0
      %384 = vmatpush.bf16.msra.mxu0 0
      %385 = vmatpush.bf16.msra.mxu0 0
      %386 = vmatpush.bf16.msra.mxu0 0
      %387 = vmatpush.bf16.msra.mxu0 0
      %388 = vmatpush.bf16.msra.mxu0 %v310
      %389 = vmatmul.bf16.gmra.mxu0 %v341
      %v390 = vpop.f32.mrf.mxu0
      %v391 = vadd.f32 0.0, %v390
      %v392 = vpop.f32.mrf.mxu0
      %v393 = vadd.f32 0.0, %v392
      %394 = vmatmul.bf16.gmra.mxu0 %v344
      %v395 = vpop.f32.mrf.mxu0
      %v396 = vadd.f32 0.0, %v395
      %v397 = vpop.f32.mrf.mxu0
      %v398 = vadd.f32 0.0, %v397
      %399 = vmatmul.bf16.gmra.mxu0 %v347
      %v400 = vpop.f32.mrf.mxu0
      %v401 = vadd.f32 0.0, %v400
      %v402 = vpop.f32.mrf.mxu0
      %v403 = vadd.f32 0.0, %v402
      %404 = vmatmul.bf16.gmra.mxu0 %v350
      %v405 = vpop.f32.mrf.mxu0
      %v406 = vadd.f32 0.0, %v405
      %v407 = vpop.f32.mrf.mxu0
      %v408 = vadd.f32 0.0, %v407
      %409 = vdwg.mxu0
      %v410 = vld [vmem:[%s3] sm:$0xff]
      %v411 = vld [vmem:[%s3 + $0x8] sm:$0xff]
      %v412 = vld [vmem:[%s3 + $0x10] sm:$0xff]
      %v413 = vld [vmem:[%s3 + $0x18] sm:$0xff]
      %v414 = vld [vmem:[%s3 + $0x20] sm:$0xff]
      %v415 = vld [vmem:[%s3 + $0x28] sm:$0xff]
      %v416 = vld [vmem:[%s3 + $0x30] sm:$0xff]
      %v417 = vld [vmem:[%s3 + $0x38] sm:$0xff]
      %419 = vset.pattern.permute.xlu0 0
      %420 = vperm.xlu0 %419, %v410
      %v421 = vpop.permute.xlu0 %420
      %424 = vset.pattern.permute.xlu0 0
      %425 = vperm.xlu0 %424, %v411
      %v426 = vpop.permute.xlu0 %425
      %429 = vset.pattern.permute.xlu0 0
      %430 = vperm.xlu0 %429, %v412
      %v431 = vpop.permute.xlu0 %430
      %434 = vset.pattern.permute.xlu0 0
      %435 = vperm.xlu0 %434, %v413
      %v436 = vpop.permute.xlu0 %435
      %439 = vset.pattern.permute.xlu0 0
      %440 = vperm.xlu0 %439, %v414
      %v441 = vpop.permute.xlu0 %440
      %444 = vset.pattern.permute.xlu0 0
      %445 = vperm.xlu0 %444, %v415
      %v446 = vpop.permute.xlu0 %445
      %449 = vset.pattern.permute.xlu0 0
      %450 = vperm.xlu0 %449, %v416
      %v451 = vpop.permute.xlu0 %450
      %454 = vset.pattern.permute.xlu0 0
      %455 = vperm.xlu0 %454, %v417
      %v456 = vpop.permute.xlu0 %455
      %v458 = vmul.f32 %v362, %v421
      %v459 = vmul.f32 %v391, %v421
      %v460 = vmul.f32 %v364, %v426
      %v461 = vmul.f32 %v393, %v426
      %v462 = vmul.f32 %v367, %v431
      %v463 = vmul.f32 %v396, %v431
      %v464 = vmul.f32 %v369, %v436
      %v465 = vmul.f32 %v398, %v436
      %v466 = vmul.f32 %v372, %v441
      %v467 = vmul.f32 %v401, %v441
      %v468 = vmul.f32 %v374, %v446
      %v469 = vmul.f32 %v403, %v446
      %v470 = vmul.f32 %v377, %v451
      %v471 = vmul.f32 %v406, %v451
      %v472 = vmul.f32 %v379, %v456
      %v473 = vmul.f32 %v408, %v456
      %v474 = vld [vmem:[%s4] sm:$0xff]
      %v475 = vld [vmem:[%s4 + $0x8] sm:$0xff]
      %v476 = vld [vmem:[%s4 + $0x10] sm:$0xff]
      %v477 = vld [vmem:[%s4 + $0x18] sm:$0xff]
      %v478 = vld [vmem:[%s4 + $0x20] sm:$0xff]
      %v479 = vld [vmem:[%s4 + $0x28] sm:$0xff]
      %v480 = vld [vmem:[%s4 + $0x30] sm:$0xff]
      %v481 = vld [vmem:[%s4 + $0x38] sm:$0xff]
      %483 = vset.pattern.permute.xlu0 0
      %484 = vperm.xlu0 %483, %v474
      %v485 = vpop.permute.xlu0 %484
      %488 = vset.pattern.permute.xlu0 0
      %489 = vperm.xlu0 %488, %v475
      %v490 = vpop.permute.xlu0 %489
      %493 = vset.pattern.permute.xlu0 0
      %494 = vperm.xlu0 %493, %v476
      %v495 = vpop.permute.xlu0 %494
      %498 = vset.pattern.permute.xlu0 0
      %499 = vperm.xlu0 %498, %v477
      %v500 = vpop.permute.xlu0 %499
      %503 = vset.pattern.permute.xlu0 0
      %504 = vperm.xlu0 %503, %v478
      %v505 = vpop.permute.xlu0 %504
      %508 = vset.pattern.permute.xlu0 0
      %509 = vperm.xlu0 %508, %v479
      %v510 = vpop.permute.xlu0 %509
      %513 = vset.pattern.permute.xlu0 0
      %514 = vperm.xlu0 %513, %v480
      %v515 = vpop.permute.xlu0 %514
      %518 = vset.pattern.permute.xlu0 0
      %519 = vperm.xlu0 %518, %v481
      %v520 = vpop.permute.xlu0 %519
      %v522 = vadd.f32 %v458, %v485
      %v523 = vadd.f32 %v459, %v485
      %v524 = vadd.f32 %v460, %v490
      %v525 = vadd.f32 %v461, %v490
      %v526 = vadd.f32 %v462, %v495
      %v527 = vadd.f32 %v463, %v495
      %v528 = vadd.f32 %v464, %v500
      %v529 = vadd.f32 %v465, %v500
      %v530 = vadd.f32 %v466, %v505
      %v531 = vadd.f32 %v467, %v505
      %v532 = vadd.f32 %v468, %v510
      %v533 = vadd.f32 %v469, %v510
      %v534 = vadd.f32 %v470, %v515
      %v535 = vadd.f32 %v471, %v515
      %v536 = vadd.f32 %v472, %v520
      %v537 = vadd.f32 %v473, %v520
      %v538 = vld [vmem:[%s286] sm:$0xff]
      %v539 = vld [vmem:[%s286 + $0x8] sm:$0xff]
      %v540 = vld [vmem:[%s286 + $0x10] sm:$0xff]
      %v541 = vld [vmem:[%s286 + $0x18] sm:$0xff]
      %v542 = vld [vmem:[%s286 + $0x20] sm:$0xff]
      %v543 = vld [vmem:[%s286 + $0x28] sm:$0xff]
      %v544 = vld [vmem:[%s286 + $0x30] sm:$0xff]
      %v545 = vld [vmem:[%s286 + $0x38] sm:$0xff]
      %v546 = vld [vmem:[%s286 + $0x40] sm:$0xff]
      %v547 = vld [vmem:[%s286 + $0x48] sm:$0xff]
      %v548 = vld [vmem:[%s286 + $0x50] sm:$0xff]
      %v549 = vld [vmem:[%s286 + $0x58] sm:$0xff]
      %v550 = vld [vmem:[%s286 + $0x60] sm:$0xff]
      %v551 = vld [vmem:[%s286 + $0x68] sm:$0xff]
      %v552 = vld [vmem:[%s286 + $0x70] sm:$0xff]
      %v553 = vld [vmem:[%s286 + $0x78] sm:$0xff]
      %v554 = vadd.f32 %v522, %v538
      %v555 = vadd.f32 %v523, %v539
      %v556 = vadd.f32 %v524, %v540
      %v557 = vadd.f32 %v525, %v541
      %v558 = vadd.f32 %v526, %v542
      %v559 = vadd.f32 %v527, %v543
      %v560 = vadd.f32 %v528, %v544
      %v561 = vadd.f32 %v529, %v545
      %v562 = vadd.f32 %v530, %v546
      %v563 = vadd.f32 %v531, %v547
      %v564 = vadd.f32 %v532, %v548
      %v565 = vadd.f32 %v533, %v549
      %v566 = vadd.f32 %v534, %v550
      %v567 = vadd.f32 %v535, %v551
      %v568 = vadd.f32 %v536, %v552
      %v569 = vadd.f32 %v537, %v553
      %570 = vst [vmem:[%s291] sm:$0xff] %v554
      %571 = vst [vmem:[%s291 + $0x8] sm:$0xff] %v555
      %572 = vst [vmem:[%s291 + $0x10] sm:$0xff] %v556
      %573 = vst [vmem:[%s291 + $0x18] sm:$0xff] %v557
      %574 = vst [vmem:[%s291 + $0x20] sm:$0xff] %v558
      %575 = vst [vmem:[%s291 + $0x28] sm:$0xff] %v559
      %576 = vst [vmem:[%s291 + $0x30] sm:$0xff] %v560
      %577 = vst [vmem:[%s291 + $0x38] sm:$0xff] %v561
      %578 = vst [vmem:[%s291 + $0x40] sm:$0xff] %v562
      %579 = vst [vmem:[%s291 + $0x48] sm:$0xff] %v563
      %580 = vst [vmem:[%s291 + $0x50] sm:$0xff] %v564
      %581 = vst [vmem:[%s291 + $0x58] sm:$0xff] %v565
      %582 = vst [vmem:[%s291 + $0x60] sm:$0xff] %v566
      %583 = vst [vmem:[%s291 + $0x68] sm:$0xff] %v567
      %584 = vst [vmem:[%s291 + $0x70] sm:$0xff] %v568
      %585 = vst [vmem:[%s291 + $0x78] sm:$0xff] %v569
      %p586 = scmp.lt.s32.totalorder %s17, 1
      %s587 = scalar_select %p586, %s17, 1
      %s588 = smul.addr %s587, 16
      %s589 = smul.addr %s588, 8
      %s590 = scalar_lea.vmem %s6, %s589
      // Predicated region
      $region45: #{bottleneck_forward.7} parent=43 // pred_check
        %p591 = pneg %p176
      $region46: #{bottleneck_forward.7} parent=43 // pred_check_branch
        %593 = sbr.rel (%p591) target = $region48
      $region47: #{bottleneck_forward.7} parent=43 // pred_region
        _
      $region48: #{bottleneck_forward.7} parent=43 // pred_fallthru
        _
    $region44: #{bottleneck_forward.7} parent=5 // pred_fallthru
      _
    %p594 = scmp.le.s32.totalorder 2, %s12
    // Predicated region
    $region49: #{bottleneck_forward.7} parent=5 // pred_check
      %p595 = pneg %p594
    $region50: #{bottleneck_forward.7} parent=5 // pred_check_branch
      %597 = sbr.rel (%p595) target = $region52
    $region51: #{bottleneck_forward.7} parent=5 // pred_region
      %s598 = ssub.s32 %s12, 2
      // Predicated region
      $region53: #{bottleneck_forward.7} parent=51 // pred_check
        %p599 = pneg %p182
      $region54: #{bottleneck_forward.7} parent=51 // pred_check_branch
        %601 = sbr.rel (%p599) target = $region56
      $region55: #{bottleneck_forward.7} parent=51 // pred_region
        %p602 = scmp.lt.s32.totalorder %s18, 1
        %s603 = scalar_select %p602, %s18, 1
        %s604 = smul.addr %s603, 16
        %s605 = smul.addr %s604, 8
        %s606 = scalar_lea.vmem %s6, %s605
      $region56: #{bottleneck_forward.7} parent=51 // pred_fallthru
        _
    $region52: #{bottleneck_forward.7} parent=5 // pred_fallthru
      _
  $region6: #{bottleneck_forward.7} parent=0 // loop_footer
    %s16 = sadd.s32 1, %s12
  $region7: #{bottleneck_forward.7} parent=0 // loop_footer_branch
    %11 = sbr.rel target = $region3
  $region8: #{bottleneck_forward.7} parent=0 // loop_exit
    _

// kernel: bottleneck_forward.6
$region0: #{bottleneck_forward.6}
  #allocation0 [shape = 'u32[]', space=smem, size = 0x4, offset = 0x4, fixed_abs, tag = 'smem constant byte address 0x4 - core index']
  #allocation1 [shape = 'u32[72,128]{1,0:T(1,128)}', space=vmem, size = 0x9000, scoped, tag = 'internal scratch']
  %s0 = inlined_call_operand.vmem [shape: f32[3], index: 0, kind: input, shape index: {}]
  %s1 = inlined_call_operand.vmem [shape: bf16[2,16,256], index: 1, kind: input, shape index: {}]
  %s2 = inlined_call_operand.vmem [shape: f32[9,1,256], index: 2, kind: input, shape index: {}]
  %s3 = inlined_call_operand.vmem [shape: f32[256,16], index: 3, kind: input, shape index: {}]
  %s4 = inlined_call_operand.vmem [shape: f32[256,16], index: 4, kind: input, shape index: {}]
  %s5 = inlined_call_operand.vmem [shape: f32[16,256], index: 5, kind: input, shape index: {}]
  %s6 = inlined_call_operand.vmem [shape: f32[16,256], index: 6, kind: input, shape index: {}]
  %s7 = inlined_call_operand.vmem [shape: f32[32,4], index: 7, kind: input, shape index: {}]
  %s8 = inlined_call_operand.vmem [shape: f32[32,1], index: 8, kind: input, shape index: {}]
  %s9 = inlined_call_operand.vmem [shape: f32[4,32], index: 9, kind: input, shape index: {}]
  %s10 = inlined_call_operand.vmem [shape: f32[4,1], index: 10, kind: input, shape index: {}]
  %s11 = inlined_call_operand.vmem [shape: f32[4,32], index: 11, kind: input, shape index: {}]
  %s12 = inlined_call_operand.vmem [shape: f32[4,1], index: 12, kind: input, shape index: {}]
  %s13 = inlined_call_operand.vmem [shape: f32[4,4], index: 13, kind: input, shape index: {}]
  %s14 = inlined_call_operand.vmem [shape: f32[4,1], index: 14, kind: input, shape index: {}]
  %s15 = inlined_call_operand.vmem [shape: f32[4,1], index: 15, kind: input, shape index: {}]
  %s16 = inlined_call_operand.vmem [shape: bf16[4,36], index: 16, kind: input, shape index: {}]
  %s17 = inlined_call_operand.vmem [shape: f32[4,1], index: 17, kind: input, shape index: {}]
  %s18 = inlined_call_operand.vmem [shape: bf16[16,16], index: 18, kind: input, shape index: {}]
  %s19 = inlined_call_operand.vmem [shape: f32[16,1], index: 19, kind: input, shape index: {}]
  %s20 = inlined_call_operand.vmem [shape: bf16[16,36], index: 20, kind: input, shape index: {}]
  %s21 = inlined_call_operand.vmem [shape: f32[16,1], index: 21, kind: input, shape index: {}]
  %s22 = inlined_call_operand.vmem [shape: f32[16,16], index: 22, kind: input, shape index: {}]
  %s23 = inlined_call_operand.vmem [shape: f32[16,1], index: 23, kind: input, shape index: {}]
  %s24 = inlined_call_operand.vmem [shape: f32[16,1], index: 24, kind: input, shape index: {}]
  %s25 = inlined_call_operand.vmem [shape: bf16[2,16,256], index: 25, kind: output, shape index: {0}]
  %s26 = inlined_call_operand.vmem [shape: bf16[2,16,256], index: 26, kind: output, shape index: {1}]
  %27 = xla_tuple %s25, %s26
  %s28 = sld [smem:[#allocation0]]
  $region145: #{bottleneck_forward.6} parent=0
    _
  %s30 = ssub.s32 1, %s28
  %s31 = scalar_select 0, %s30, %s28
  $region1: #{bottleneck_forward.6} parent=0
    #allocation2 [shape = 'u8[512]{0}', space=smem, size = 0x200, scoped, tag = 'input window, operand 0, single buffered']
    #allocation3 [shape = 's32[2]{0}', space=sflag, size = 0x8, scoped, tag = 'scoped memory for bottleneck_forward.6']
    %32 = vsyncpa [#allocation3], 0
    loop: start=0, step=1, limit=4
    $region2: #{bottleneck_forward.6} parent=1 // loop_pre_header
      _
    $region3: #{bottleneck_forward.6} parent=1 // loop_header
      %s34 = sphi 0, %s38
      %p35 = scmp.ge.s32.totalorder %s34, 4
      %s42 = sphi 0, %s42
      %s44 = sphi 0, %s42
      %s45 = sphi 0, %s44
      %s59 = sphi 0, %s45
      %s65 = sphi 0, %s67
      %s68 = sphi 0, %s65
      %s69 = sphi 0, %s68
      %s85 = sphi 0, %s69
      %s89 = sphi 0, %s89
      %s91 = sphi 0, %s89
      %s92 = sphi 0, %s91
      %s106 = sphi 0, %s92
      %s110 = sphi 0, %s110
      %s112 = sphi 0, %s110
      %s113 = sphi 0, %s112
      %s127 = sphi 0, %s113
      %s131 = sphi 0, %s131
      %s133 = sphi 0, %s131
      %s134 = sphi 0, %s133
      %s148 = sphi 0, %s134
      %s152 = sphi 0, %s152
      %s154 = sphi 0, %s152
      %s155 = sphi 0, %s154
      %s169 = sphi 0, %s155
      %s173 = sphi 0, %s173
      %s175 = sphi 0, %s173
      %s176 = sphi 0, %s175
      %s190 = sphi 0, %s176
      %s194 = sphi 0, %s194
      %s196 = sphi 0, %s194
      %s197 = sphi 0, %s196
      %s211 = sphi 0, %s197
      %s215 = sphi 0, %s215
      %s217 = sphi 0, %s215
      %s218 = sphi 0, %s217
      %s232 = sphi 0, %s218
      %s236 = sphi 0, %s236
      %s238 = sphi 0, %s236
      %s239 = sphi 0, %s238
      %s253 = sphi 0, %s239
      %s257 = sphi 0, %s257
      %s259 = sphi 0, %s257
      %s260 = sphi 0, %s259
      %s274 = sphi 0, %s260
      %s278 = sphi 0, %s278
      %s280 = sphi 0, %s278
      %s281 = sphi 0, %s280
      %s295 = sphi 0, %s281
      %s299 = sphi 0, %s299
      %s301 = sphi 0, %s299
      %s302 = sphi 0, %s301
      %s316 = sphi 0, %s302
      %s320 = sphi 0, %s320
      %s322 = sphi 0, %s320
      %s323 = sphi 0, %s322
      %s337 = sphi 0, %s323
      %s341 = sphi 0, %s341
      %s343 = sphi 0, %s341
      %s344 = sphi 0, %s343
      %s358 = sphi 0, %s344
      %s362 = sphi 0, %s362
      %s364 = sphi 0, %s362
      %s365 = sphi 0, %s364
      %s379 = sphi 0, %s365
      %s383 = sphi 0, %s383
      %s385 = sphi 0, %s383
      %s386 = sphi 0, %s385
      %s400 = sphi 0, %s386
      %s404 = sphi 0, %s404
      %s406 = sphi 0, %s404
      %s407 = sphi 0, %s406
      %s421 = sphi 0, %s407
      %s425 = sphi 0, %s425
      %s427 = sphi 0, %s425
      %s428 = sphi 0, %s427
      %s442 = sphi 0, %s428
      %s446 = sphi 0, %s446
      %s448 = sphi 0, %s446
      %s449 = sphi 0, %s448
      %s463 = sphi 0, %s449
      %s467 = sphi 0, %s467
      %s469 = sphi 0, %s467
      %s470 = sphi 0, %s469
      %s484 = sphi 0, %s470
      %s488 = sphi 0, %s488
      %s490 = sphi 0, %s488
      %s491 = sphi 0, %s490
      %s505 = sphi 0, %s491
      %s509 = sphi 0, %s509
      %s511 = sphi 0, %s509
      %s512 = sphi 0, %s511
      %s526 = sphi 0, %s512
      %s530 = sphi 0, %s530
      %s532 = sphi 0, %s530
      %s533 = sphi 0, %s532
      %s547 = sphi 0, %s533
      %s551 = sphi 0, %s551
      %s553 = sphi 0, %s551
      %s554 = sphi 0, %s553
      %s568 = sphi 0, %s554
      %s574 = sphi 0, %s576
      %s577 = sphi 0, %s574
      %s578 = sphi 0, %s577
      %s594 = sphi 0, %s578
      %s600 = sphi 0, %s602
      %s603 = sphi 0, %s600
      %s604 = sphi 0, %s603
      %s620 = sphi 0, %s604
    $region4: #{bottleneck_forward.6} parent=1 // loop_header_branch
      %37 = sbr.rel (%p35) target = $region8
    $region5: #{bottleneck_forward.6} parent=1 // loop_body
      %s39 = ssub.s32 %s34, 1
      %s40 = ssub.s32 %s34, 2
      %s41 = sadd.s32 %s34, 1
      %s43 = sadd.s32 %s42, 1
      %p46 = scmp.eq.s32.totalorder %s34, 1
      %p47 = scmp.ne.s32.totalorder %s42, %s44
      %p48 = scmp.eq.s32.totalorder %s34, 0
      %p49 = por %p47, %p48
      %p50 = scmp.ne.s32.totalorder %s42, %s44
      %p51 = scmp.eq.s32.totalorder %s39, 1
      %p52 = por %p50, %p51
      %p53 = scmp.ne.s32.totalorder %s44, %s45
      %p54 = scmp.eq.s32.totalorder %s39, 0
      %p55 = por %p53, %p54
      %p56 = scmp.ne.s32.totalorder %s44, %s45
      %p57 = scmp.eq.s32.totalorder %s40, 1
      %p58 = por %p56, %p57
      %p60 = scmp.ne.s32.totalorder %s45, %s59
      %p61 = scmp.eq.s32.totalorder %s40, 0
      %p62 = por %p60, %p61
      %s63 = ssub.s32 %s34, %s41
      %p64 = scmp.eq.s32.totalorder %s63, 0
      %s66 = sadd.s32 %s65, 1
      %s67 = scalar_select %p64, %s65, %s66
      %p70 = pneg %p64
      %p71 = scmp.eq.s32.totalorder %s34, 1
      %p72 = por %p70, %p71
      %p73 = scmp.ne.s32.totalorder %s65, %s68
      %p74 = scmp.eq.s32.totalorder %s34, 0
      %p75 = por %p73, %p74
      %p76 = scmp.ne.s32.totalorder %s65, %s68
      %p77 = scmp.eq.s32.totalorder %s39, 1
      %p78 = por %p76, %p77
      %p79 = scmp.ne.s32.totalorder %s68, %s69
      %p80 = scmp.eq.s32.totalorder %s39, 0
      %p81 = por %p79, %p80
      %p82 = scmp.ne.s32.totalorder %s68, %s69
      %p83 = scmp.eq.s32.totalorder %s40, 1
      %p84 = por %p82, %p83
      %p86 = scmp.ne.s32.totalorder %s69, %s85
      %p87 = scmp.eq.s32.totalorder %s40, 0
      %p88 = por %p86, %p87
      %s90 = sadd.s32 %s89, 1
      %p93 = scmp.eq.s32.totalorder %s34, 1
      %p94 = scmp.ne.s32.totalorder %s89, %s91
      %p95 = scmp.eq.s32.totalorder %s34, 0
      %p96 = por %p94, %p95
      %p97 = scmp.ne.s32.totalorder %s89, %s91
      %p98 = scmp.eq.s32.totalorder %s39, 1
      %p99 = por %p97, %p98
      %p100 = scmp.ne.s32.totalorder %s91, %s92
      %p101 = scmp.eq.s32.totalorder %s39, 0
      %p102 = por %p100, %p101
      %p103 = scmp.ne.s32.totalorder %s91, %s92
      %p104 = scmp.eq.s32.totalorder %s40, 1
      %p105 = por %p103, %p104
      %p107 = scmp.ne.s32.totalorder %s92, %s106
      %p108 = scmp.eq.s32.totalorder %s40, 0
      %p109 = por %p107, %p108
      %s111 = sadd.s32 %s110, 1
      %p114 = scmp.eq.s32.totalorder %s34, 1
      %p115 = scmp.ne.s32.totalorder %s110, %s112
      %p116 = scmp.eq.s32.totalorder %s34, 0
      %p117 = por %p115, %p116
      %p118 = scmp.ne.s32.totalorder %s110, %s112
      %p119 = scmp.eq.s32.totalorder %s39, 1
      %p120 = por %p118, %p119
      %p121 = scmp.ne.s32.totalorder %s112, %s113
      %p122 = scmp.eq.s32.totalorder %s39, 0
      %p123 = por %p121, %p122
      %p124 = scmp.ne.s32.totalorder %s112, %s113
      %p125 = scmp.eq.s32.totalorder %s40, 1
      %p126 = por %p124, %p125
      %p128 = scmp.ne.s32.totalorder %s113, %s127
      %p129 = scmp.eq.s32.totalorder %s40, 0
      %p130 = por %p128, %p129
      %s132 = sadd.s32 %s131, 1
      %p135 = scmp.eq.s32.totalorder %s34, 1
      %p136 = scmp.ne.s32.totalorder %s131, %s133
      %p137 = scmp.eq.s32.totalorder %s34, 0
      %p138 = por %p136, %p137
      %p139 = scmp.ne.s32.totalorder %s131, %s133
      %p140 = scmp.eq.s32.totalorder %s39, 1
      %p141 = por %p139, %p140
      %p142 = scmp.ne.s32.totalorder %s133, %s134
      %p143 = scmp.eq.s32.totalorder %s39, 0
      %p144 = por %p142, %p143
      %p145 = scmp.ne.s32.totalorder %s133, %s134
      %p146 = scmp.eq.s32.totalorder %s40, 1
      %p147 = por %p145, %p146
      %p149 = scmp.ne.s32.totalorder %s134, %s148
      %p150 = scmp.eq.s32.totalorder %s40, 0
      %p151 = por %p149, %p150
      %s153 = sadd.s32 %s152, 1
      %p156 = scmp.eq.s32.totalorder %s34, 1
      %p157 = scmp.ne.s32.totalorder %s152, %s154
      %p158 = scmp.eq.s32.totalorder %s34, 0
      %p159 = por %p157, %p158
      %p160 = scmp.ne.s32.totalorder %s152, %s154
      %p161 = scmp.eq.s32.totalorder %s39, 1
      %p162 = por %p160, %p161
      %p163 = scmp.ne.s32.totalorder %s154, %s155
      %p164 = scmp.eq.s32.totalorder %s39, 0
      %p165 = por %p163, %p164
      %p166 = scmp.ne.s32.totalorder %s154, %s155
      %p167 = scmp.eq.s32.totalorder %s40, 1
      %p168 = por %p166, %p167
      %p170 = scmp.ne.s32.totalorder %s155, %s169
      %p171 = scmp.eq.s32.totalorder %s40, 0
      %p172 = por %p170, %p171
      %s174 = sadd.s32 %s173, 1
      %p177 = scmp.eq.s32.totalorder %s34, 1
      %p178 = scmp.ne.s32.totalorder %s173, %s175
      %p179 = scmp.eq.s32.totalorder %s34, 0
      %p180 = por %p178, %p179
      %p181 = scmp.ne.s32.totalorder %s173, %s175
      %p182 = scmp.eq.s32.totalorder %s39, 1
      %p183 = por %p181, %p182
      %p184 = scmp.ne.s32.totalorder %s175, %s176
      %p185 = scmp.eq.s32.totalorder %s39, 0
      %p186 = por %p184, %p185
      %p187 = scmp.ne.s32.totalorder %s175, %s176
      %p188 = scmp.eq.s32.totalorder %s40, 1
      %p189 = por %p187, %p188
      %p191 = scmp.ne.s32.totalorder %s176, %s190
      %p192 = scmp.eq.s32.totalorder %s40, 0
      %p193 = por %p191, %p192
      %s195 = sadd.s32 %s194, 1
      %p198 = scmp.eq.s32.totalorder %s34, 1
      %p199 = scmp.ne.s32.totalorder %s194, %s196
      %p200 = scmp.eq.s32.totalorder %s34, 0
      %p201 = por %p199, %p200
      %p202 = scmp.ne.s32.totalorder %s194, %s196
      %p203 = scmp.eq.s32.totalorder %s39, 1
      %p204 = por %p202, %p203
      %p205 = scmp.ne.s32.totalorder %s196, %s197
      %p206 = scmp.eq.s32.totalorder %s39, 0
      %p207 = por %p205, %p206
      %p208 = scmp.ne.s32.totalorder %s196, %s197
      %p209 = scmp.eq.s32.totalorder %s40, 1
      %p210 = por %p208, %p209
      %p212 = scmp.ne.s32.totalorder %s197, %s211
      %p213 = scmp.eq.s32.totalorder %s40, 0
      %p214 = por %p212, %p213
      %s216 = sadd.s32 %s215, 1
      %p219 = scmp.eq.s32.totalorder %s34, 1
      %p220 = scmp.ne.s32.totalorder %s215, %s217
      %p221 = scmp.eq.s32.totalorder %s34, 0
      %p222 = por %p220, %p221
      %p223 = scmp.ne.s32.totalorder %s215, %s217
      %p224 = scmp.eq.s32.totalorder %s39, 1
      %p225 = por %p223, %p224
      %p226 = scmp.ne.s32.totalorder %s217, %s218
      %p227 = scmp.eq.s32.totalorder %s39, 0
      %p228 = por %p226, %p227
      %p229 = scmp.ne.s32.totalorder %s217, %s218
      %p230 = scmp.eq.s32.totalorder %s40, 1
      %p231 = por %p229, %p230
      %p233 = scmp.ne.s32.totalorder %s218, %s232
      %p234 = scmp.eq.s32.totalorder %s40, 0
      %p235 = por %p233, %p234
      %s237 = sadd.s32 %s236, 1
      %p240 = scmp.eq.s32.totalorder %s34, 1
      %p241 = scmp.ne.s32.totalorder %s236, %s238
      %p242 = scmp.eq.s32.totalorder %s34, 0
      %p243 = por %p241, %p242
      %p244 = scmp.ne.s32.totalorder %s236, %s238
      %p245 = scmp.eq.s32.totalorder %s39, 1
      %p246 = por %p244, %p245
      %p247 = scmp.ne.s32.totalorder %s238, %s239
      %p248 = scmp.eq.s32.totalorder %s39, 0
      %p249 = por %p247, %p248
      %p250 = scmp.ne.s32.totalorder %s238, %s239
      %p251 = scmp.eq.s32.totalorder %s40, 1
      %p252 = por %p250, %p251
      %p254 = scmp.ne.s32.totalorder %s239, %s253
      %p255 = scmp.eq.s32.totalorder %s40, 0
      %p256 = por %p254, %p255
      %s258 = sadd.s32 %s257, 1
      %p261 = scmp.eq.s32.totalorder %s34, 1
      %p262 = scmp.ne.s32.totalorder %s257, %s259
      %p263 = scmp.eq.s32.totalorder %s34, 0
      %p264 = por %p262, %p263
      %p265 = scmp.ne.s32.totalorder %s257, %s259
      %p266 = scmp.eq.s32.totalorder %s39, 1
      %p267 = por %p265, %p266
      %p268 = scmp.ne.s32.totalorder %s259, %s260
      %p269 = scmp.eq.s32.totalorder %s39, 0
      %p270 = por %p268, %p269
      %p271 = scmp.ne.s32.totalorder %s259, %s260
      %p272 = scmp.eq.s32.totalorder %s40, 1
      %p273 = por %p271, %p272
      %p275 = scmp.ne.s32.totalorder %s260, %s274
      %p276 = scmp.eq.s32.totalorder %s40, 0
      %p277 = por %p275, %p276
      %s279 = sadd.s32 %s278, 1
      %p282 = scmp.eq.s32.totalorder %s34, 1
      %p283 = scmp.ne.s32.totalorder %s278, %s280
      %p284 = scmp.eq.s32.totalorder %s34, 0
      %p285 = por %p283, %p284
      %p286 = scmp.ne.s32.totalorder %s278, %s280
      %p287 = scmp.eq.s32.totalorder %s39, 1
      %p288 = por %p286, %p287
      %p289 = scmp.ne.s32.totalorder %s280, %s281
      %p290 = scmp.eq.s32.totalorder %s39, 0
      %p291 = por %p289, %p290
      %p292 = scmp.ne.s32.totalorder %s280, %s281
      %p293 = scmp.eq.s32.totalorder %s40, 1
      %p294 = por %p292, %p293
      %p296 = scmp.ne.s32.totalorder %s281, %s295
      %p297 = scmp.eq.s32.totalorder %s40, 0
      %p298 = por %p296, %p297
      %s300 = sadd.s32 %s299, 1
      %p303 = scmp.eq.s32.totalorder %s34, 1
      %p304 = scmp.ne.s32.totalorder %s299, %s301
      %p305 = scmp.eq.s32.totalorder %s34, 0
      %p306 = por %p304, %p305
      %p307 = scmp.ne.s32.totalorder %s299, %s301
      %p308 = scmp.eq.s32.totalorder %s39, 1
      %p309 = por %p307, %p308
      %p310 = scmp.ne.s32.totalorder %s301, %s302
      %p311 = scmp.eq.s32.totalorder %s39, 0
      %p312 = por %p310, %p311
      %p313 = scmp.ne.s32.totalorder %s301, %s302
      %p314 = scmp.eq.s32.totalorder %s40, 1
      %p315 = por %p313, %p314
      %p317 = scmp.ne.s32.totalorder %s302, %s316
      %p318 = scmp.eq.s32.totalorder %s40, 0
      %p319 = por %p317, %p318
      %s321 = sadd.s32 %s320, 1
      %p324 = scmp.eq.s32.totalorder %s34, 1
      %p325 = scmp.ne.s32.totalorder %s320, %s322
      %p326 = scmp.eq.s32.totalorder %s34, 0
      %p327 = por %p325, %p326
      %p328 = scmp.ne.s32.totalorder %s320, %s322
      %p329 = scmp.eq.s32.totalorder %s39, 1
      %p330 = por %p328, %p329
      %p331 = scmp.ne.s32.totalorder %s322, %s323
      %p332 = scmp.eq.s32.totalorder %s39, 0
      %p333 = por %p331, %p332
      %p334 = scmp.ne.s32.totalorder %s322, %s323
      %p335 = scmp.eq.s32.totalorder %s40, 1
      %p336 = por %p334, %p335
      %p338 = scmp.ne.s32.totalorder %s323, %s337
      %p339 = scmp.eq.s32.totalorder %s40, 0
      %p340 = por %p338, %p339
      %s342 = sadd.s32 %s341, 1
      %p345 = scmp.eq.s32.totalorder %s34, 1
      %p346 = scmp.ne.s32.totalorder %s341, %s343
      %p347 = scmp.eq.s32.totalorder %s34, 0
      %p348 = por %p346, %p347
      %p349 = scmp.ne.s32.totalorder %s341, %s343
      %p350 = scmp.eq.s32.totalorder %s39, 1
      %p351 = por %p349, %p350
      %p352 = scmp.ne.s32.totalorder %s343, %s344
      %p353 = scmp.eq.s32.totalorder %s39, 0
      %p354 = por %p352, %p353
      %p355 = scmp.ne.s32.totalorder %s343, %s344
      %p356 = scmp.eq.s32.totalorder %s40, 1
      %p357 = por %p355, %p356
      %p359 = scmp.ne.s32.totalorder %s344, %s358
      %p360 = scmp.eq.s32.totalorder %s40, 0
      %p361 = por %p359, %p360
      %s363 = sadd.s32 %s362, 1
      %p366 = scmp.eq.s32.totalorder %s34, 1
      %p367 = scmp.ne.s32.totalorder %s362, %s364
      %p368 = scmp.eq.s32.totalorder %s34, 0
      %p369 = por %p367, %p368
      %p370 = scmp.ne.s32.totalorder %s362, %s364
      %p371 = scmp.eq.s32.totalorder %s39, 1
      %p372 = por %p370, %p371
      %p373 = scmp.ne.s32.totalorder %s364, %s365
      %p374 = scmp.eq.s32.totalorder %s39, 0
      %p375 = por %p373, %p374
      %p376 = scmp.ne.s32.totalorder %s364, %s365
      %p377 = scmp.eq.s32.totalorder %s40, 1
      %p378 = por %p376, %p377
      %p380 = scmp.ne.s32.totalorder %s365, %s379
      %p381 = scmp.eq.s32.totalorder %s40, 0
      %p382 = por %p380, %p381
      %s384 = sadd.s32 %s383, 1
      %p387 = scmp.eq.s32.totalorder %s34, 1
      %p388 = scmp.ne.s32.totalorder %s383, %s385
      %p389 = scmp.eq.s32.totalorder %s34, 0
      %p390 = por %p388, %p389
      %p391 = scmp.ne.s32.totalorder %s383, %s385
      %p392 = scmp.eq.s32.totalorder %s39, 1
      %p393 = por %p391, %p392
      %p394 = scmp.ne.s32.totalorder %s385, %s386
      %p395 = scmp.eq.s32.totalorder %s39, 0
      %p396 = por %p394, %p395
      %p397 = scmp.ne.s32.totalorder %s385, %s386
      %p398 = scmp.eq.s32.totalorder %s40, 1
      %p399 = por %p397, %p398
      %p401 = scmp.ne.s32.totalorder %s386, %s400
      %p402 = scmp.eq.s32.totalorder %s40, 0
      %p403 = por %p401, %p402
      %s405 = sadd.s32 %s404, 1
      %p408 = scmp.eq.s32.totalorder %s34, 1
      %p409 = scmp.ne.s32.totalorder %s404, %s406
      %p410 = scmp.eq.s32.totalorder %s34, 0
      %p411 = por %p409, %p410
      %p412 = scmp.ne.s32.totalorder %s404, %s406
      %p413 = scmp.eq.s32.totalorder %s39, 1
      %p414 = por %p412, %p413
      %p415 = scmp.ne.s32.totalorder %s406, %s407
      %p416 = scmp.eq.s32.totalorder %s39, 0
      %p417 = por %p415, %p416
      %p418 = scmp.ne.s32.totalorder %s406, %s407
      %p419 = scmp.eq.s32.totalorder %s40, 1
      %p420 = por %p418, %p419
      %p422 = scmp.ne.s32.totalorder %s407, %s421
      %p423 = scmp.eq.s32.totalorder %s40, 0
      %p424 = por %p422, %p423
      %s426 = sadd.s32 %s425, 1
      %p429 = scmp.eq.s32.totalorder %s34, 1
      %p430 = scmp.ne.s32.totalorder %s425, %s427
      %p431 = scmp.eq.s32.totalorder %s34, 0
      %p432 = por %p430, %p431
      %p433 = scmp.ne.s32.totalorder %s425, %s427
      %p434 = scmp.eq.s32.totalorder %s39, 1
      %p435 = por %p433, %p434
      %p436 = scmp.ne.s32.totalorder %s427, %s428
      %p437 = scmp.eq.s32.totalorder %s39, 0
      %p438 = por %p436, %p437
      %p439 = scmp.ne.s32.totalorder %s427, %s428
      %p440 = scmp.eq.s32.totalorder %s40, 1
      %p441 = por %p439, %p440
      %p443 = scmp.ne.s32.totalorder %s428, %s442
      %p444 = scmp.eq.s32.totalorder %s40, 0
      %p445 = por %p443, %p444
      %s447 = sadd.s32 %s446, 1
      %p450 = scmp.eq.s32.totalorder %s34, 1
      %p451 = scmp.ne.s32.totalorder %s446, %s448
      %p452 = scmp.eq.s32.totalorder %s34, 0
      %p453 = por %p451, %p452
      %p454 = scmp.ne.s32.totalorder %s446, %s448
      %p455 = scmp.eq.s32.totalorder %s39, 1
      %p456 = por %p454, %p455
      %p457 = scmp.ne.s32.totalorder %s448, %s449
      %p458 = scmp.eq.s32.totalorder %s39, 0
      %p459 = por %p457, %p458
      %p460 = scmp.ne.s32.totalorder %s448, %s449
      %p461 = scmp.eq.s32.totalorder %s40, 1
      %p462 = por %p460, %p461
      %p464 = scmp.ne.s32.totalorder %s449, %s463
      %p465 = scmp.eq.s32.totalorder %s40, 0
      %p466 = por %p464, %p465
      %s468 = sadd.s32 %s467, 1
      %p471 = scmp.eq.s32.totalorder %s34, 1
      %p472 = scmp.ne.s32.totalorder %s467, %s469
      %p473 = scmp.eq.s32.totalorder %s34, 0
      %p474 = por %p472, %p473
      %p475 = scmp.ne.s32.totalorder %s467, %s469
      %p476 = scmp.eq.s32.totalorder %s39, 1
      %p477 = por %p475, %p476
      %p478 = scmp.ne.s32.totalorder %s469, %s470
      %p479 = scmp.eq.s32.totalorder %s39, 0
      %p480 = por %p478, %p479
      %p481 = scmp.ne.s32.totalorder %s469, %s470
      %p482 = scmp.eq.s32.totalorder %s40, 1
      %p483 = por %p481, %p482
      %p485 = scmp.ne.s32.totalorder %s470, %s484
      %p486 = scmp.eq.s32.totalorder %s40, 0
      %p487 = por %p485, %p486
      %s489 = sadd.s32 %s488, 1
      %p492 = scmp.eq.s32.totalorder %s34, 1
      %p493 = scmp.ne.s32.totalorder %s488, %s490
      %p494 = scmp.eq.s32.totalorder %s34, 0
      %p495 = por %p493, %p494
      %p496 = scmp.ne.s32.totalorder %s488, %s490
      %p497 = scmp.eq.s32.totalorder %s39, 1
      %p498 = por %p496, %p497
      %p499 = scmp.ne.s32.totalorder %s490, %s491
      %p500 = scmp.eq.s32.totalorder %s39, 0
      %p501 = por %p499, %p500
      %p502 = scmp.ne.s32.totalorder %s490, %s491
      %p503 = scmp.eq.s32.totalorder %s40, 1
      %p504 = por %p502, %p503
      %p506 = scmp.ne.s32.totalorder %s491, %s505
      %p507 = scmp.eq.s32.totalorder %s40, 0
      %p508 = por %p506, %p507
      %s510 = sadd.s32 %s509, 1
      %p513 = scmp.eq.s32.totalorder %s34, 1
      %p514 = scmp.ne.s32.totalorder %s509, %s511
      %p515 = scmp.eq.s32.totalorder %s34, 0
      %p516 = por %p514, %p515
      %p517 = scmp.ne.s32.totalorder %s509, %s511
      %p518 = scmp.eq.s32.totalorder %s39, 1
      %p519 = por %p517, %p518
      %p520 = scmp.ne.s32.totalorder %s511, %s512
      %p521 = scmp.eq.s32.totalorder %s39, 0
      %p522 = por %p520, %p521
      %p523 = scmp.ne.s32.totalorder %s511, %s512
      %p524 = scmp.eq.s32.totalorder %s40, 1
      %p525 = por %p523, %p524
      %p527 = scmp.ne.s32.totalorder %s512, %s526
      %p528 = scmp.eq.s32.totalorder %s40, 0
      %p529 = por %p527, %p528
      %s531 = sadd.s32 %s530, 1
      %p534 = scmp.eq.s32.totalorder %s34, 1
      %p535 = scmp.ne.s32.totalorder %s530, %s532
      %p536 = scmp.eq.s32.totalorder %s34, 0
      %p537 = por %p535, %p536
      %p538 = scmp.ne.s32.totalorder %s530, %s532
      %p539 = scmp.eq.s32.totalorder %s39, 1
      %p540 = por %p538, %p539
      %p541 = scmp.ne.s32.totalorder %s532, %s533
      %p542 = scmp.eq.s32.totalorder %s39, 0
      %p543 = por %p541, %p542
      %p544 = scmp.ne.s32.totalorder %s532, %s533
      %p545 = scmp.eq.s32.totalorder %s40, 1
      %p546 = por %p544, %p545
      %p548 = scmp.ne.s32.totalorder %s533, %s547
      %p549 = scmp.eq.s32.totalorder %s40, 0
      %p550 = por %p548, %p549
      %s552 = sadd.s32 %s551, 1
      %p555 = scmp.eq.s32.totalorder %s34, 1
      %p556 = scmp.ne.s32.totalorder %s551, %s553
      %p557 = scmp.eq.s32.totalorder %s34, 0
      %p558 = por %p556, %p557
      %p559 = scmp.ne.s32.totalorder %s551, %s553
      %p560 = scmp.eq.s32.totalorder %s39, 1
      %p561 = por %p559, %p560
      %p562 = scmp.ne.s32.totalorder %s553, %s554
      %p563 = scmp.eq.s32.totalorder %s39, 0
      %p564 = por %p562, %p563
      %p565 = scmp.ne.s32.totalorder %s553, %s554
      %p566 = scmp.eq.s32.totalorder %s40, 1
      %p567 = por %p565, %p566
      %p569 = scmp.ne.s32.totalorder %s554, %s568
      %p570 = scmp.eq.s32.totalorder %s40, 0
      %p571 = por %p569, %p570
      %s572 = ssub.s32 %s34, %s41
      %p573 = scmp.eq.s32.totalorder %s572, 0
      %s575 = sadd.s32 %s574, 1
      %s576 = scalar_select %p573, %s574, %s575
      %p579 = pneg %p573
      %p580 = scmp.eq.s32.totalorder %s34, 1
      %p581 = por %p579, %p580
      %p582 = scmp.ne.s32.totalorder %s574, %s577
      %p583 = scmp.eq.s32.totalorder %s34, 0
      %p584 = por %p582, %p583
      %p585 = scmp.ne.s32.totalorder %s574, %s577
      %p586 = scmp.eq.s32.totalorder %s39, 1
      %p587 = por %p585, %p586
      %p588 = scmp.ne.s32.totalorder %s577, %s578
      %p589 = scmp.eq.s32.totalorder %s39, 0
      %p590 = por %p588, %p589
      %p591 = scmp.ne.s32.totalorder %s577, %s578
      %p592 = scmp.eq.s32.totalorder %s40, 1
      %p593 = por %p591, %p592
      %p595 = scmp.ne.s32.totalorder %s578, %s594
      %p596 = scmp.eq.s32.totalorder %s40, 0
      %p597 = por %p595, %p596
      %s598 = ssub.s32 %s34, %s41
      %p599 = scmp.eq.s32.totalorder %s598, 0
      %s601 = sadd.s32 %s600, 1
      %s602 = scalar_select %p599, %s600, %s601
      %p605 = pneg %p599
      %p606 = scmp.eq.s32.totalorder %s34, 1
      %p607 = por %p605, %p606
      %p608 = scmp.ne.s32.totalorder %s600, %s603
      %p609 = scmp.eq.s32.totalorder %s34, 0
      %p610 = por %p608, %p609
      %p611 = scmp.ne.s32.totalorder %s600, %s603
      %p612 = scmp.eq.s32.totalorder %s39, 1
      %p613 = por %p611, %p612
      %p614 = scmp.ne.s32.totalorder %s603, %s604
      %p615 = scmp.eq.s32.totalorder %s39, 0
      %p616 = por %p614, %p615
      %p617 = scmp.ne.s32.totalorder %s603, %s604
      %p618 = scmp.eq.s32.totalorder %s40, 1
      %p619 = por %p617, %p618
      %p621 = scmp.ne.s32.totalorder %s604, %s620
      %p622 = scmp.eq.s32.totalorder %s40, 0
      %p623 = por %p621, %p622
      %p624 = scmp.le.s32.totalorder 1, %s34
      %p625 = scmp.lt.s32.totalorder %s34, 3
      %p626 = pnand %p624, %p625
      %p627 = pneg %p626
      // Predicated region
      $region9: #{bottleneck_forward.6} parent=5 // pred_check
        _
      $region10: #{bottleneck_forward.6} parent=5 // pred_check_branch
        %629 = sbr.rel (%p626) target = $region12
      $region11: #{bottleneck_forward.6} parent=5 // pred_region
        %s630 = ssub.s32 %s34, 1
        // Predicated region
        $region13: #{bottleneck_forward.6} parent=11 // pred_check
          %p631 = pneg %p55
        $region14: #{bottleneck_forward.6} parent=11 // pred_check_branch
          %633 = sbr.rel (%p631) target = $region16
        $region15: #{bottleneck_forward.6} parent=11 // pred_region
          %635 = vsyncadd [#allocation3], 0
          %s637 = sshll.u32 %s0, 4
          %s638 = int_to_ptr.vmem [resolvable:$true] %s637
          %640 = dma.vmem_to_smem %s638, 16, [#allocation2], [#allocation3]
        $region16: #{bottleneck_forward.6} parent=11 // pred_fallthru
          _
        // Predicated region
        $region17: #{bottleneck_forward.6} parent=11 // pred_check
          %p641 = pneg %p102
        $region18: #{bottleneck_forward.6} parent=11 // pred_check_branch
          %643 = sbr.rel (%p641) target = $region20
        $region19: #{bottleneck_forward.6} parent=11 // pred_region
          _
        $region20: #{bottleneck_forward.6} parent=11 // pred_fallthru
          _
        // Predicated region
        $region21: #{bottleneck_forward.6} parent=11 // pred_check
          %p644 = pneg %p123
        $region22: #{bottleneck_forward.6} parent=11 // pred_check_branch
          %646 = sbr.rel (%p644) target = $region24
        $region23: #{bottleneck_forward.6} parent=11 // pred_region
          _
        $region24: #{bottleneck_forward.6} parent=11 // pred_fallthru
          _
        // Predicated region
        $region25: #{bottleneck_forward.6} parent=11 // pred_check
          %p647 = pneg %p144
        $region26: #{bottleneck_forward.6} parent=11 // pred_check_branch
          %649 = sbr.rel (%p647) target = $region28
        $region27: #{bottleneck_forward.6} parent=11 // pred_region
          _
        $region28: #{bottleneck_forward.6} parent=11 // pred_fallthru
          _
        // Predicated region
        $region29: #{bottleneck_forward.6} parent=11 // pred_check
          %p650 = pneg %p165
        $region30: #{bottleneck_forward.6} parent=11 // pred_check_branch
          %652 = sbr.rel (%p650) target = $region32
        $region31: #{bottleneck_forward.6} parent=11 // pred_region
          _
        $region32: #{bottleneck_forward.6} parent=11 // pred_fallthru
          _
        // Predicated region
        $region33: #{bottleneck_forward.6} parent=11 // pred_check
          %p653 = pneg %p186
        $region34: #{bottleneck_forward.6} parent=11 // pred_check_branch
          %655 = sbr.rel (%p653) target = $region36
        $region35: #{bottleneck_forward.6} parent=11 // pred_region
          _
        $region36: #{bottleneck_forward.6} parent=11 // pred_fallthru
          _
        // Predicated region
        $region37: #{bottleneck_forward.6} parent=11 // pred_check
          %p656 = pneg %p207
        $region38: #{bottleneck_forward.6} parent=11 // pred_check_branch
          %658 = sbr.rel (%p656) target = $region40
        $region39: #{bottleneck_forward.6} parent=11 // pred_region
          _
        $region40: #{bottleneck_forward.6} parent=11 // pred_fallthru
          _
        // Predicated region
        $region41: #{bottleneck_forward.6} parent=11 // pred_check
          %p659 = pneg %p228
        $region42: #{bottleneck_forward.6} parent=11 // pred_check_branch
          %661 = sbr.rel (%p659) target = $region44
        $region43: #{bottleneck_forward.6} parent=11 // pred_region
          _
        $region44: #{bottleneck_forward.6} parent=11 // pred_fallthru
          _
        // Predicated region
        $region45: #{bottleneck_forward.6} parent=11 // pred_check
          %p662 = pneg %p249
        $region46: #{bottleneck_forward.6} parent=11 // pred_check_branch
          %664 = sbr.rel (%p662) target = $region48
        $region47: #{bottleneck_forward.6} parent=11 // pred_region
          _
        $region48: #{bottleneck_forward.6} parent=11 // pred_fallthru
          _
        // Predicated region
        $region49: #{bottleneck_forward.6} parent=11 // pred_check
          %p665 = pneg %p270
        $region50: #{bottleneck_forward.6} parent=11 // pred_check_branch
          %667 = sbr.rel (%p665) target = $region52
        $region51: #{bottleneck_forward.6} parent=11 // pred_region
          _
        $region52: #{bottleneck_forward.6} parent=11 // pred_fallthru
          _
        // Predicated region
        $region53: #{bottleneck_forward.6} parent=11 // pred_check
          %p668 = pneg %p291
        $region54: #{bottleneck_forward.6} parent=11 // pred_check_branch
          %670 = sbr.rel (%p668) target = $region56
        $region55: #{bottleneck_forward.6} parent=11 // pred_region
          _
        $region56: #{bottleneck_forward.6} parent=11 // pred_fallthru
          _
        // Predicated region
        $region57: #{bottleneck_forward.6} parent=11 // pred_check
          %p671 = pneg %p312
        $region58: #{bottleneck_forward.6} parent=11 // pred_check_branch
          %673 = sbr.rel (%p671) target = $region60
        $region59: #{bottleneck_forward.6} parent=11 // pred_region
          _
        $region60: #{bottleneck_forward.6} parent=11 // pred_fallthru
          _
        // Predicated region
        $region61: #{bottleneck_forward.6} parent=11 // pred_check
          %p674 = pneg %p333
        $region62: #{bottleneck_forward.6} parent=11 // pred_check_branch
          %676 = sbr.rel (%p674) target = $region64
        $region63: #{bottleneck_forward.6} parent=11 // pred_region
          _
        $region64: #{bottleneck_forward.6} parent=11 // pred_fallthru
          _
        // Predicated region
        $region65: #{bottleneck_forward.6} parent=11 // pred_check
          %p677 = pneg %p354
        $region66: #{bottleneck_forward.6} parent=11 // pred_check_branch
          %679 = sbr.rel (%p677) target = $region68
        $region67: #{bottleneck_forward.6} parent=11 // pred_region
          _
        $region68: #{bottleneck_forward.6} parent=11 // pred_fallthru
          _
        // Predicated region
        $region69: #{bottleneck_forward.6} parent=11 // pred_check
          %p680 = pneg %p375
        $region70: #{bottleneck_forward.6} parent=11 // pred_check_branch
          %682 = sbr.rel (%p680) target = $region72
        $region71: #{bottleneck_forward.6} parent=11 // pred_region
          _
        $region72: #{bottleneck_forward.6} parent=11 // pred_fallthru
          _
        // Predicated region
        $region73: #{bottleneck_forward.6} parent=11 // pred_check
          %p683 = pneg %p396
        $region74: #{bottleneck_forward.6} parent=11 // pred_check_branch
          %685 = sbr.rel (%p683) target = $region76
        $region75: #{bottleneck_forward.6} parent=11 // pred_region
          _
        $region76: #{bottleneck_forward.6} parent=11 // pred_fallthru
          _
        // Predicated region
        $region77: #{bottleneck_forward.6} parent=11 // pred_check
          %p686 = pneg %p417
        $region78: #{bottleneck_forward.6} parent=11 // pred_check_branch
          %688 = sbr.rel (%p686) target = $region80
        $region79: #{bottleneck_forward.6} parent=11 // pred_region
          _
        $region80: #{bottleneck_forward.6} parent=11 // pred_fallthru
          _
        // Predicated region
        $region81: #{bottleneck_forward.6} parent=11 // pred_check
          %p689 = pneg %p438
        $region82: #{bottleneck_forward.6} parent=11 // pred_check_branch
          %691 = sbr.rel (%p689) target = $region84
        $region83: #{bottleneck_forward.6} parent=11 // pred_region
          _
        $region84: #{bottleneck_forward.6} parent=11 // pred_fallthru
          _
        // Predicated region
        $region85: #{bottleneck_forward.6} parent=11 // pred_check
          %p692 = pneg %p459
        $region86: #{bottleneck_forward.6} parent=11 // pred_check_branch
          %694 = sbr.rel (%p692) target = $region88
        $region87: #{bottleneck_forward.6} parent=11 // pred_region
          _
        $region88: #{bottleneck_forward.6} parent=11 // pred_fallthru
          _
        // Predicated region
        $region89: #{bottleneck_forward.6} parent=11 // pred_check
          %p695 = pneg %p480
        $region90: #{bottleneck_forward.6} parent=11 // pred_check_branch
          %697 = sbr.rel (%p695) target = $region92
        $region91: #{bottleneck_forward.6} parent=11 // pred_region
          _
        $region92: #{bottleneck_forward.6} parent=11 // pred_fallthru
          _
        // Predicated region
        $region93: #{bottleneck_forward.6} parent=11 // pred_check
          %p698 = pneg %p501
        $region94: #{bottleneck_forward.6} parent=11 // pred_check_branch
          %700 = sbr.rel (%p698) target = $region96
        $region95: #{bottleneck_forward.6} parent=11 // pred_region
          _
        $region96: #{bottleneck_forward.6} parent=11 // pred_fallthru
          _
        // Predicated region
        $region97: #{bottleneck_forward.6} parent=11 // pred_check
          %p701 = pneg %p522
        $region98: #{bottleneck_forward.6} parent=11 // pred_check_branch
          %703 = sbr.rel (%p701) target = $region100
        $region99: #{bottleneck_forward.6} parent=11 // pred_region
          _
        $region100: #{bottleneck_forward.6} parent=11 // pred_fallthru
          _
        // Predicated region
        $region101: #{bottleneck_forward.6} parent=11 // pred_check
          %p704 = pneg %p543
        $region102: #{bottleneck_forward.6} parent=11 // pred_check_branch
          %706 = sbr.rel (%p704) target = $region104
        $region103: #{bottleneck_forward.6} parent=11 // pred_region
          _
        $region104: #{bottleneck_forward.6} parent=11 // pred_fallthru
          _
        // Predicated region
        $region105: #{bottleneck_forward.6} parent=11 // pred_check
          %p707 = pneg %p564
        $region106: #{bottleneck_forward.6} parent=11 // pred_check_branch
          %709 = sbr.rel (%p707) target = $region108
        $region107: #{bottleneck_forward.6} parent=11 // pred_region
          _
        $region108: #{bottleneck_forward.6} parent=11 // pred_fallthru
          _
      $region12: #{bottleneck_forward.6} parent=5 // pred_fallthru
        _
      %p710 = scmp.lt.s32.totalorder %s34, 2
      // Predicated region
      $region109: #{bottleneck_forward.6} parent=5 // pred_check
        %p711 = pneg %p710
      $region110: #{bottleneck_forward.6} parent=5 // pred_check_branch
        %713 = sbr.rel (%p711) target = $region112
      $region111: #{bottleneck_forward.6} parent=5 // pred_region
        // Predicated region
        $region113: #{bottleneck_forward.6} parent=111 // pred_check
          %p714 = pneg %p75
        $region114: #{bottleneck_forward.6} parent=111 // pred_check_branch
          %716 = sbr.rel (%p714) target = $region116
        $region115: #{bottleneck_forward.6} parent=111 // pred_region
          %p717 = scmp.lt.s32.totalorder %s34, 1
          %s718 = scalar_select %p717, %s34, 1
          %s719 = smul.addr %s718, 4
          %s720 = smul.addr %s719, 4
          %s721 = scalar_lea.vmem %s1, %s720
        $region116: #{bottleneck_forward.6} parent=111 // pred_fallthru
          _
      $region112: #{bottleneck_forward.6} parent=5 // pred_fallthru
        _
      %p722 = scmp.le.s32.totalorder 1, %s34
      %p723 = scmp.lt.s32.totalorder %s34, 3
      %p724 = pnand %p722, %p723
      %p725 = pneg %p724
      // Predicated region
      $region117: #{bottleneck_forward.6} parent=5 // pred_check
        _
      $region118: #{bottleneck_forward.6} parent=5 // pred_check_branch
        %727 = sbr.rel (%p724) target = $region120
      $region119: #{bottleneck_forward.6} parent=5 // pred_region
        %s728 = ssub.s32 %s34, 1
        // Predicated region
        $region121: #{bottleneck_forward.6} parent=119 // pred_check
          %p729 = pneg %p55
        $region122: #{bottleneck_forward.6} parent=119 // pred_check_branch
          %731 = sbr.rel (%p729) target = $region124
        $region123: #{bottleneck_forward.6} parent=119 // pred_region
          %733 = dma.done [#allocation3], 16
        $region124: #{bottleneck_forward.6} parent=119 // pred_fallthru
          _
        %734 = sfence
        %p735 = pneg %p55
        %p736 = pneg %p52
        %p737 = scmp.lt.s32.totalorder %s39, 1
        %s738 = scalar_select %p737, %s39, 1
        %s739 = smul.addr %s738, 4
        %s740 = smul.addr %s739, 4
        %s741 = scalar_lea.vmem %s1, %s740
        %p742 = pneg %p81
        %p743 = pneg %p78
        %p744 = pneg %p102
        %p745 = pneg %p99
        %p746 = pneg %p123
        %p747 = pneg %p120
        %p748 = pneg %p144
        %p749 = pneg %p141
        %p750 = pneg %p165
        %p751 = pneg %p162
        %p752 = pneg %p186
        %p753 = pneg %p183
        %p754 = pneg %p207
        %p755 = pneg %p204
        %p756 = pneg %p228
        %p757 = pneg %p225
        %p758 = pneg %p249
        %p759 = pneg %p246
        %p760 = pneg %p270
        %p761 = pneg %p267
        %p762 = pneg %p291
        %p763 = pneg %p288
        %p764 = pneg %p312
        %p765 = pneg %p309
        %p766 = pneg %p333
        %p767 = pneg %p330
        %p768 = pneg %p354
        %p769 = pneg %p351
        %p770 = pneg %p375
        %p771 = pneg %p372
        %p772 = pneg %p396
        %p773 = pneg %p393
        %p774 = pneg %p417
        %p775 = pneg %p414
        %p776 = pneg %p438
        %p777 = pneg %p435
        %p778 = pneg %p459
        %p779 = pneg %p456
        %p780 = pneg %p480
        %p781 = pneg %p477
        %p782 = pneg %p501
        %p783 = pneg %p498
        %p784 = pneg %p522
        %p785 = pneg %p519
        %p786 = pneg %p543
        %p787 = pneg %p540
        %p788 = pneg %p564
        %p789 = pneg %p561
        %p790 = pneg %p590
        %p791 = pneg %p587
        %p792 = scmp.lt.s32.totalorder %s39, 1
        %s793 = scalar_select %p792, %s39, 1
        %s794 = smul.addr %s793, 4
        %s795 = smul.addr %s794, 4
        %s796 = scalar_lea.vmem %s25, %s795
        %p797 = pneg %p616
        %p798 = pneg %p613
        %p799 = scmp.lt.s32.totalorder %s39, 1
        %s800 = scalar_select %p799, %s39, 1
        %s801 = smul.addr %s800, 4
        %s802 = smul.addr %s801, 4
        %s803 = scalar_lea.vmem %s26, %s802
        %p804 = scmp.lt.s32.totalorder %s39, 1
        %s805 = scalar_select %p804, %s39, 1
        %s806 = smul.addr %s805, 4
        %s807 = smul.addr %s806, 4
        %s808 = scalar_lea.vmem %s1, %s807
        %p809 = scmp.lt.s32.totalorder %s39, 1
        %s810 = scalar_select %p809, %s39, 1
        %s811 = smul.addr %s810, 4
        %s812 = smul.addr %s811, 4
        %s813 = scalar_lea.vmem %s25, %s812
        %p814 = scmp.lt.s32.totalorder %s39, 1
        %s815 = scalar_select %p814, %s39, 1
        %s816 = smul.addr %s815, 4
        %s817 = smul.addr %s816, 4
        %s818 = scalar_lea.vmem %s26, %s817
        %v820 = vld [vmem:[%s808] sm:$0xff]
        %v821 = vld [vmem:[%s808 + $0x8] sm:$0xff]
        %v822 = vunpack.c.l.bf16 %v820
        %v823 = vunpack.c.h.bf16 %v820
        %v824 = vunpack.c.l.bf16 %v821
        %v825 = vunpack.c.h.bf16 %v821
        %v826 = vld [vmem:[%s3] sm:$0xff]
        %v827 = vld [vmem:[%s3 + $0x8] sm:$0xff]
        %v828 = vld [vmem:[%s3 + $0x10] sm:$0xff]
        %v829 = vld [vmem:[%s3 + $0x18] sm:$0xff]
        %v830 = vld [vmem:[%s3 + $0x20] sm:$0xff]
        %v831 = vld [vmem:[%s3 + $0x28] sm:$0xff]
        %v832 = vld [vmem:[%s3 + $0x30] sm:$0xff]
        %v833 = vld [vmem:[%s3 + $0x38] sm:$0xff]
        %v834 = vld [vmem:[%s3 + $0x40] sm:$0xff]
        %v835 = vld [vmem:[%s3 + $0x48] sm:$0xff]
        %v836 = vld [vmem:[%s3 + $0x50] sm:$0xff]
        %v837 = vld [vmem:[%s3 + $0x58] sm:$0xff]
        %v838 = vld [vmem:[%s3 + $0x60] sm:$0xff]
        %v839 = vld [vmem:[%s3 + $0x68] sm:$0xff]
        %v840 = vld [vmem:[%s3 + $0x70] sm:$0xff]
        %v841 = vld [vmem:[%s3 + $0x78] sm:$0xff]
        %v842 = vld [vmem:[%s3 + $0x80] sm:$0xff]
        %v843 = vld [vmem:[%s3 + $0x88] sm:$0xff]
        %v844 = vld [vmem:[%s3 + $0x90] sm:$0xff]
        %v845 = vld [vmem:[%s3 + $0x98] sm:$0xff]
        %v846 = vld [vmem:[%s3 + $0xa0] sm:$0xff]
        %v847 = vld [vmem:[%s3 + $0xa8] sm:$0xff]
        %v848 = vld [vmem:[%s3 + $0xb0] sm:$0xff]
        %v849 = vld [vmem:[%s3 + $0xb8] sm:$0xff]
        %v850 = vld [vmem:[%s3 + $0xc0] sm:$0xff]
        %v851 = vld [vmem:[%s3 + $0xc8] sm:$0xff]
        %v852 = vld [vmem:[%s3 + $0xd0] sm:$0xff]
        %v853 = vld [vmem:[%s3 + $0xd8] sm:$0xff]
        %v854 = vld [vmem:[%s3 + $0xe0] sm:$0xff]
        %v855 = vld [vmem:[%s3 + $0xe8] sm:$0xff]
        %v856 = vld [vmem:[%s3 + $0xf0] sm:$0xff]
        %v857 = vld [vmem:[%s3 + $0xf8] sm:$0xff]
        %858 = vmatpush.msra.mxu0 %v841
        %859 = vmatpush.msra.mxu0 %v840
        %860 = vmatpush.msra.mxu0 %v839
        %861 = vmatpush.msra.mxu0 %v838
        %862 = vmatpush.msra.mxu0 %v837
        %863 = vmatpush.msra.mxu0 %v836
        %864 = vmatpush.msra.mxu0 %v835
        %865 = vmatpush.msra.mxu0 %v834
        %866 = vmatpush.msra.mxu0 %v833
        %867 = vmatpush.msra.mxu0 %v832
        %868 = vmatpush.msra.mxu0 %v831
        %869 = vmatpush.msra.mxu0 %v830
        %870 = vmatpush.msra.mxu0 %v829
        %871 = vmatpush.msra.mxu0 %v828
        %872 = vmatpush.msra.mxu0 %v827
        %873 = vmatpush.msra.mxu0 %v826
        %874 = vmatmul.f32.gmra.mxu0 %v822
        %v875 = vpop.f32.mrf.mxu0
        %v876 = vadd.f32 0.0, %v875
        %877 = vdwg.mxu0
        %878 = vmatpush.msra.mxu0 %v857
        %879 = vmatpush.msra.mxu0 %v856
        %880 = vmatpush.msra.mxu0 %v855
        %881 = vmatpush.msra.mxu0 %v854
        %882 = vmatpush.msra.mxu0 %v853
        %883 = vmatpush.msra.mxu0 %v852
        %884 = vmatpush.msra.mxu0 %v851
        %885 = vmatpush.msra.mxu0 %v850
        %886 = vmatpush.msra.mxu0 %v849
        %887 = vmatpush.msra.mxu0 %v848
        %888 = vmatpush.msra.mxu0 %v847
        %889 = vmatpush.msra.mxu0 %v846
        %890 = vmatpush.msra.mxu0 %v845
        %891 = vmatpush.msra.mxu0 %v844
        %892 = vmatpush.msra.mxu0 %v843
        %893 = vmatpush.msra.mxu0 %v842
        %894 = vmatmul.f32.gmra.mxu0 %v823
        %v895 = vpop.f32.mrf.mxu0
        %v896 = vadd.f32 %v876, %v895
        %897 = vdwg.mxu0
        %v898 = vld [vmem:[%s4] sm:$0xff]
        %v899 = vld [vmem:[%s4 + $0x8] sm:$0xff]
        %v900 = vld [vmem:[%s4 + $0x10] sm:$0xff]
        %v901 = vld [vmem:[%s4 + $0x18] sm:$0xff]
        %v902 = vld [vmem:[%s4 + $0x20] sm:$0xff]
        %v903 = vld [vmem:[%s4 + $0x28] sm:$0xff]
        %v904 = vld [vmem:[%s4 + $0x30] sm:$0xff]
        %v905 = vld [vmem:[%s4 + $0x38] sm:$0xff]
        %v906 = vld [vmem:[%s4 + $0x40] sm:$0xff]
        %v907 = vld [vmem:[%s4 + $0x48] sm:$0xff]
        %v908 = vld [vmem:[%s4 + $0x50] sm:$0xff]
        %v909 = vld [vmem:[%s4 + $0x58] sm:$0xff]
        %v910 = vld [vmem:[%s4 + $0x60] sm:$0xff]
        %v911 = vld [vmem:[%s4 + $0x68] sm:$0xff]
        %v912 = vld [vmem:[%s4 + $0x70] sm:$0xff]
        %v913 = vld [vmem:[%s4 + $0x78] sm:$0xff]
        %v914 = vld [vmem:[%s4 + $0x80] sm:$0xff]
        %v915 = vld [vmem:[%s4 + $0x88] sm:$0xff]
        %v916 = vld [vmem:[%s4 + $0x90] sm:$0xff]
        %v917 = vld [vmem:[%s4 + $0x98] sm:$0xff]
        %v918 = vld [vmem:[%s4 + $0xa0] sm:$0xff]
        %v919 = vld [vmem:[%s4 + $0xa8] sm:$0xff]
        %v920 = vld [vmem:[%s4 + $0xb0] sm:$0xff]
        %v921 = vld [vmem:[%s4 + $0xb8] sm:$0xff]
        %v922 = vld [vmem:[%s4 + $0xc0] sm:$0xff]
        %v923 = vld [vmem:[%s4 + $0xc8] sm:$0xff]
        %v924 = vld [vmem:[%s4 + $0xd0] sm:$0xff]
        %v925 = vld [vmem:[%s4 + $0xd8] sm:$0xff]
        %v926 = vld [vmem:[%s4 + $0xe0] sm:$0xff]
        %v927 = vld [vmem:[%s4 + $0xe8] sm:$0xff]
        %v928 = vld [vmem:[%s4 + $0xf0] sm:$0xff]
        %v929 = vld [vmem:[%s4 + $0xf8] sm:$0xff]
        %930 = vmatpush.msra.mxu0 %v913
        %931 = vmatpush.msra.mxu0 %v912
        %932 = vmatpush.msra.mxu0 %v911
        %933 = vmatpush.msra.mxu0 %v910
        %934 = vmatpush.msra.mxu0 %v909
        %935 = vmatpush.msra.mxu0 %v908
        %936 = vmatpush.msra.mxu0 %v907
        %937 = vmatpush.msra.mxu0 %v906
        %938 = vmatpush.msra.mxu0 %v905
        %939 = vmatpush.msra.mxu0 %v904
        %940 = vmatpush.msra.mxu0 %v903
        %941 = vmatpush.msra.mxu0 %v902
        %942 = vmatpush.msra.mxu0 %v901
        %943 = vmatpush.msra.mxu0 %v900
        %944 = vmatpush.msra.mxu0 %v899
        %945 = vmatpush.msra.mxu0 %v898
        %946 = vmatmul.f32.gmra.mxu0 %v822
        %v947 = vpop.f32.mrf.mxu0
        %v948 = vadd.f32 0.0, %v947
        %949 = vdwg.mxu0
        %950 = vmatpush.msra.mxu0 %v929
        %951 = vmatpush.msra.mxu0 %v928
        %952 = vmatpush.msra.mxu0 %v927
        %953 = vmatpush.msra.mxu0 %v926
        %954 = vmatpush.msra.mxu0 %v925
        %955 = vmatpush.msra.mxu0 %v924
        %956 = vmatpush.msra.mxu0 %v923
        %957 = vmatpush.msra.mxu0 %v922
        %958 = vmatpush.msra.mxu0 %v921
        %959 = vmatpush.msra.mxu0 %v920
        %960 = vmatpush.msra.mxu0 %v919
        %961 = vmatpush.msra.mxu0 %v918
        %962 = vmatpush.msra.mxu0 %v917
        %963 = vmatpush.msra.mxu0 %v916
        %964 = vmatpush.msra.mxu0 %v915
        %965 = vmatpush.msra.mxu0 %v914
        %966 = vmatmul.f32.gmra.mxu0 %v823
        %v967 = vpop.f32.mrf.mxu0
        %v968 = vadd.f32 %v948, %v967
        %969 = vdwg.mxu0
        %v970 = vld [vmem:[%s7] sm:$0xff]
        %v971 = vld [vmem:[%s7 + $0x8] sm:$0xff]
        %v972 = vld [vmem:[%s7 + $0x10] sm:$0xff]
        %v973 = vld [vmem:[%s7 + $0x18] sm:$0xff]
        %v974 = vld [vmem:[%s8] sm:$0xff]
        %v975 = vld [vmem:[%s8 + $0x8] sm:$0xff]
        %v976 = vld [vmem:[%s8 + $0x10] sm:$0xff]
        %v977 = vld [vmem:[%s8 + $0x18] sm:$0xff]
        %979 = vset.pattern.permute.xlu0 0
        %980 = vperm.xlu0 %979, %v974
        %v981 = vpop.permute.xlu0 %980
        %984 = vset.pattern.permute.xlu0 0
        %985 = vperm.xlu0 %984, %v975
        %v986 = vpop.permute.xlu0 %985
        %989 = vset.pattern.permute.xlu0 0
        %990 = vperm.xlu0 %989, %v976
        %v991 = vpop.permute.xlu0 %990
        %994 = vset.pattern.permute.xlu0 0
        %995 = vperm.xlu0 %994, %v977
        %v996 = vpop.permute.xlu0 %995
        %vm998 = vcmask 31744
        %v1000 = vsel %vm998, %v970, 0
        %v1003 = vsel %vm998, %v971, 0
        %v1006 = vsel %vm998, %v972, 0
        %v1009 = vsel %vm998, %v973, 0
        %vm1011 = vcmask 1043456
        %v1013 = vsel %vm1011, %v896, 0
        %1015 = vmatpush.msra.mxu0 0.0
        %1016 = vmatpush.msra.mxu0 0.0
        %1017 = vmatpush.msra.mxu0 0.0
        %1018 = vmatpush.msra.mxu0 0.0
        %1019 = vmatpush.msra.mxu0 0.0
        %1020 = vmatpush.msra.mxu0 0.0
        %1021 = vmatpush.msra.mxu0 0.0
        %1022 = vmatpush.msra.mxu0 0.0
        %1023 = vmatpush.msra.mxu0 0.0
        %1024 = vmatpush.msra.mxu0 0.0
        %1025 = vmatpush.msra.mxu0 0.0
        %1026 = vmatpush.msra.mxu0 0.0
        %1027 = vmatpush.msra.mxu0 0.0
        %1028 = vmatpush.msra.mxu0 0.0
        %1029 = vmatpush.msra.mxu0 0.0
        %1030 = vmatpush.msra.mxu0 %v1013
        %1031 = vmatmul.f32.gmra.mxu0 %v1000
        %v1032 = vpop.f32.mrf.mxu0
        %v1033 = vadd.f32 %v981, %v1032
        %1034 = vmatmul.f32.gmra.mxu0 %v1003
        %v1035 = vpop.f32.mrf.mxu0
        %v1036 = vadd.f32 %v986, %v1035
        %1037 = vmatmul.f32.gmra.mxu0 %v1006
        %v1038 = vpop.f32.mrf.mxu0
        %v1039 = vadd.f32 %v991, %v1038
        %1040 = vmatmul.f32.gmra.mxu0 %v1009
        %v1041 = vpop.f32.mrf.mxu0
        %v1042 = vadd.f32 %v996, %v1041
        %1043 = vdwg.mxu0
        %v1045 = vsel %vm1011, %v968, 0
        %1047 = vmatpush.msra.mxu0 0.0
        %1048 = vmatpush.msra.mxu0 0.0
        %1049 = vmatpush.msra.mxu0 0.0
        %1050 = vmatpush.msra.mxu0 0.0
        %1051 = vmatpush.msra.mxu0 0.0
        %1052 = vmatpush.msra.mxu0 0.0
        %1053 = vmatpush.msra.mxu0 0.0
        %1054 = vmatpush.msra.mxu0 0.0
        %1055 = vmatpush.msra.mxu0 0.0
        %1056 = vmatpush.msra.mxu0 0.0
        %1057 = vmatpush.msra.mxu0 0.0
        %1058 = vmatpush.msra.mxu0 0.0
        %1059 = vmatpush.msra.mxu0 0.0
        %1060 = vmatpush.msra.mxu0 0.0
        %1061 = vmatpush.msra.mxu0 0.0
        %1062 = vmatpush.msra.mxu0 %v1045
        %1063 = vmatmul.f32.gmra.mxu0 %v1000
        %v1064 = vpop.f32.mrf.mxu0
        %v1065 = vadd.f32 %v981, %v1064
        %1066 = vmatmul.f32.gmra.mxu0 %v1003
        %v1067 = vpop.f32.mrf.mxu0
        %v1068 = vadd.f32 %v986, %v1067
        %1069 = vmatmul.f32.gmra.mxu0 %v1006
        %v1070 = vpop.f32.mrf.mxu0
        %v1071 = vadd.f32 %v991, %v1070
        %1072 = vmatmul.f32.gmra.mxu0 %v1009
        %v1073 = vpop.f32.mrf.mxu0
        %v1074 = vadd.f32 %v996, %v1073
        %1075 = vdwg.mxu0
        %v1076 = vld [vmem:[%s9] sm:$0xf]
        %v1077 = vld [vmem:[%s10] sm:$0xf]
        %1079 = vset.pattern.permute.xlu0 0
        %1080 = vperm.xlu0 %1079, %v1077
        %v1081 = vpop.permute.xlu0 %1080
        %vm1083 = vcmask 261120
        %v1085 = vsel %vm1083, %v1076, 0
        %1087 = vmatpush.msra.mxu0 0.0
        %1088 = vmatpush.msra.mxu0 0.0
        %1089 = vmatpush.msra.mxu0 0.0
        %1090 = vmatpush.msra.mxu0 0.0
        %1091 = vmatpush.msra.mxu0 0.0
        %1092 = vmatpush.msra.mxu0 0.0
        %1093 = vmatpush.msra.mxu0 0.0
        %1094 = vmatpush.msra.mxu0 0.0
        %1095 = vmatpush.msra.mxu0 0.0
        %1096 = vmatpush.msra.mxu0 0.0
        %1097 = vmatpush.msra.mxu0 0.0
        %1098 = vmatpush.msra.mxu0 0.0
        %1099 = vmatpush.msra.mxu0 %v1042
        %1100 = vmatpush.msra.mxu0 %v1039
        %1101 = vmatpush.msra.mxu0 %v1036
        %1102 = vmatpush.msra.mxu0 %v1033
        %1103 = vmatmul.f32.gmra.mxu0 %v1085
        %v1104 = vpop.f32.mrf.mxu0
        %v1105 = vadd.f32 %v1081, %v1104
        %1106 = vdwg.mxu0
        %v1107 = vxor.u32 %v1105, 2147483648
        %v1108 = vmul.f32 %v1107, 1.442695
        %v1109 = vpow.pop %v1108
        %v1110 = vadd.f32 %v1109, 1.0
        %v1111 = vrcp.pop %v1110
        %v1112 = vmul.f32 %v1110, %v1111
        %v1113 = vsub.f32 1.0, %v1112
        %v1114 = vmul.f32 %v1111, %v1113
        %v1115 = vadd.f32 %v1111, %v1114
        %vm1116 = vweird.f32 %v1110
        %vm1117 = vweird.f32 %v1111
        %vm1118 = vmor %vm1116, %vm1117
        %v1119 = vsel %vm1118, %v1111, %v1115
        %v1120 = vand.u32 2147483647, %v1110
        %vm1121 = vcmp.eq.f32.partialorder %v1120, 8.507059e+37
        %v1122 = vand.u32 %v1110, 2147483648
        %v1123 = vor.u32 1.1754944e-38, %v1122
        %v1124 = vsel %vm1121, %v1123, %v1119
        %v1125 = vmul.f32 1.0, %v1124
        %v1126 = vld [vmem:[%s11] sm:$0xf]
        %v1127 = vld [vmem:[%s12] sm:$0xf]
        %1129 = vset.pattern.permute.xlu0 0
        %1130 = vperm.xlu0 %1129, %v1127
        %v1131 = vpop.permute.xlu0 %1130
        %v1134 = vsel %vm1083, %v1126, 0
        %1136 = vmatpush.msra.mxu0 0.0
        %1137 = vmatpush.msra.mxu0 0.0
        %1138 = vmatpush.msra.mxu0 0.0
        %1139 = vmatpush.msra.mxu0 0.0
        %1140 = vmatpush.msra.mxu0 0.0
        %1141 = vmatpush.msra.mxu0 0.0
        %1142 = vmatpush.msra.mxu0 0.0
        %1143 = vmatpush.msra.mxu0 0.0
        %1144 = vmatpush.msra.mxu0 0.0
        %1145 = vmatpush.msra.mxu0 0.0
        %1146 = vmatpush.msra.mxu0 0.0
        %1147 = vmatpush.msra.mxu0 0.0
        %1148 = vmatpush.msra.mxu0 %v1074
        %1149 = vmatpush.msra.mxu0 %v1071
        %1150 = vmatpush.msra.mxu0 %v1068
        %1151 = vmatpush.msra.mxu0 %v1065
        %1152 = vmatmul.f32.gmra.mxu0 %v1134
        %v1153 = vpop.f32.mrf.mxu0
        %v1154 = vadd.f32 %v1131, %v1153
        %1155 = vdwg.mxu0
        %v1156 = vxor.u32 %v1154, 2147483648
        %v1157 = vmul.f32 %v1156, 1.442695
        %v1158 = vpow.pop %v1157
        %v1159 = vadd.f32 %v1158, 1.0
        %v1160 = vrcp.pop %v1159
        %v1161 = vmul.f32 %v1159, %v1160
        %v1162 = vsub.f32 1.0, %v1161
        %v1163 = vmul.f32 %v1160, %v1162
        %v1164 = vadd.f32 %v1160, %v1163
        %vm1165 = vweird.f32 %v1159
        %vm1166 = vweird.f32 %v1160
        %vm1167 = vmor %vm1165, %vm1166
        %v1168 = vsel %vm1167, %v1160, %v1164
        %v1169 = vand.u32 2147483647, %v1159
        %vm1170 = vcmp.eq.f32.partialorder %v1169, 8.507059e+37
        %v1171 = vand.u32 %v1159, 2147483648
        %v1172 = vor.u32 1.1754944e-38, %v1171
        %v1173 = vsel %vm1170, %v1172, %v1168
        %v1174 = vmul.f32 1.0, %v1173
        %v1175 = vld [vmem:[%s5] sm:$0xff]
        %v1176 = vld [vmem:[%s5 + $0x8] sm:$0xff]
        %v1177 = vld [vmem:[%s5 + $0x10] sm:$0xff]
        %v1178 = vld [vmem:[%s5 + $0x18] sm:$0xff]
        %vm1179 = vcmask 130048
        %v1181 = vsel %vm1179, %v1125, 0
        %1183 = vmatpush.msra.mxu0 0.0
        %1184 = vmatpush.msra.mxu0 0.0
        %1185 = vmatpush.msra.mxu0 0.0
        %1186 = vmatpush.msra.mxu0 0.0
        %1187 = vmatpush.msra.mxu0 0.0
        %1188 = vmatpush.msra.mxu0 0.0
        %1189 = vmatpush.msra.mxu0 0.0
        %1190 = vmatpush.msra.mxu0 0.0
        %1191 = vmatpush.msra.mxu0 0.0
        %1192 = vmatpush.msra.mxu0 0.0
        %1193 = vmatpush.msra.mxu0 0.0
        %1194 = vmatpush.msra.mxu0 0.0
        %1195 = vmatpush.msra.mxu0 0.0
        %1196 = vmatpush.msra.mxu0 0.0
        %1197 = vmatpush.msra.mxu0 %v1177
        %1198 = vmatpush.msra.mxu0 %v1175
        %1199 = vmatmul.f32.gmra.mxu0 %v1181
        %v1200 = vpop.f32.mrf.mxu0
        %v1201 = vadd.f32 0.0, %v1200
        %1202 = vdwg.mxu0
        %1203 = vmatpush.msra.mxu0 0.0
        %1204 = vmatpush.msra.mxu0 0.0
        %1205 = vmatpush.msra.mxu0 0.0
        %1206 = vmatpush.msra.mxu0 0.0
        %1207 = vmatpush.msra.mxu0 0.0
        %1208 = vmatpush.msra.mxu0 0.0
        %1209 = vmatpush.msra.mxu0 0.0
        %1210 = vmatpush.msra.mxu0 0.0
        %1211 = vmatpush.msra.mxu0 0.0
        %1212 = vmatpush.msra.mxu0 0.0
        %1213 = vmatpush.msra.mxu0 0.0
        %1214 = vmatpush.msra.mxu0 0.0
        %1215 = vmatpush.msra.mxu0 0.0
        %1216 = vmatpush.msra.mxu0 0.0
        %1217 = vmatpush.msra.mxu0 %v1178
        %1218 = vmatpush.msra.mxu0 %v1176
        %1219 = vmatmul.f32.gmra.mxu0 %v1181
        %v1220 = vpop.f32.mrf.mxu0
        %v1221 = vadd.f32 0.0, %v1220
        %1222 = vdwg.mxu0
        %v1223 = vld [vmem:[%s6] sm:$0xff]
        %v1224 = vld [vmem:[%s6 + $0x8] sm:$0xff]
        %v1225 = vld [vmem:[%s6 + $0x10] sm:$0xff]
        %v1226 = vld [vmem:[%s6 + $0x18] sm:$0xff]
        %v1228 = vsel %vm1179, %v1174, 0
        %1230 = vmatpush.msra.mxu0 0.0
        %1231 = vmatpush.msra.mxu0 0.0
        %1232 = vmatpush.msra.mxu0 0.0
        %1233 = vmatpush.msra.mxu0 0.0
        %1234 = vmatpush.msra.mxu0 0.0
        %1235 = vmatpush.msra.mxu0 0.0
        %1236 = vmatpush.msra.mxu0 0.0
        %1237 = vmatpush.msra.mxu0 0.0
        %1238 = vmatpush.msra.mxu0 0.0
        %1239 = vmatpush.msra.mxu0 0.0
        %1240 = vmatpush.msra.mxu0 0.0
        %1241 = vmatpush.msra.mxu0 0.0
        %1242 = vmatpush.msra.mxu0 0.0
        %1243 = vmatpush.msra.mxu0 0.0
        %1244 = vmatpush.msra.mxu0 %v1225
        %1245 = vmatpush.msra.mxu0 %v1223
        %1246 = vmatmul.f32.gmra.mxu0 %v1228
        %v1247 = vpop.f32.mrf.mxu0
        %v1248 = vadd.f32 0.0, %v1247
        %1249 = vdwg.mxu0
        %1250 = vmatpush.msra.mxu0 0.0
        %1251 = vmatpush.msra.mxu0 0.0
        %1252 = vmatpush.msra.mxu0 0.0
        %1253 = vmatpush.msra.mxu0 0.0
        %1254 = vmatpush.msra.mxu0 0.0
        %1255 = vmatpush.msra.mxu0 0.0
        %1256 = vmatpush.msra.mxu0 0.0
        %1257 = vmatpush.msra.mxu0 0.0
        %1258 = vmatpush.msra.mxu0 0.0
        %1259 = vmatpush.msra.mxu0 0.0
        %1260 = vmatpush.msra.mxu0 0.0
        %1261 = vmatpush.msra.mxu0 0.0
        %1262 = vmatpush.msra.mxu0 0.0
        %1263 = vmatpush.msra.mxu0 0.0
        %1264 = vmatpush.msra.mxu0 %v1226
        %1265 = vmatpush.msra.mxu0 %v1224
        %1266 = vmatmul.f32.gmra.mxu0 %v1228
        %v1267 = vpop.f32.mrf.mxu0
        %v1268 = vadd.f32 0.0, %v1267
        %1269 = vdwg.mxu0
        %v1270 = vmul.f32 %v1201, %v1248
        %v1271 = vmul.f32 %v1221, %v1268
        %v1272 = vmul.f32 %v1270, %v822
        %v1273 = vmul.f32 %v1271, %v823
        %v1274 = vld [vmem:[%s13] sm:$0xf]
        %v1275 = vld [vmem:[%s14] sm:$0xf]
        %v1276 = vld [vmem:[%s15] sm:$0xf]
        %v1277 = vsel %vm1011, %v1272, 0.0
        %v1278 = vsel %vm1011, %v1273, 0.0
        %v1279 = vadd.f32 %v1277, %v1278
        %1280 = vadd.xlane.f32.xlu0 %v1279
        %v1281 = vpop.xlane.xlu0 %1280
        %v1282 = vrcp.pop 256.0
        %v1283 = vmul.f32 256.0, %v1282
        %v1284 = vsub.f32 1.0, %v1283
        %v1285 = vmul.f32 %v1282, %v1284
        %v1286 = vadd.f32 %v1282, %v1285
        %vm1287 = vweird.f32 %v1282
        %v1288 = vsel %vm1287, %v1282, %v1286
        %v1289 = vmul.f32 %v1281, %v1288
        %v1291 = vsel %vm998, %v1274, 0
        %v1294 = vsel %vm1011, %v1289, 0
        %1296 = vmatpush.msra.mxu0 0.0
        %1297 = vmatpush.msra.mxu0 0.0
        %1298 = vmatpush.msra.mxu0 0.0
        %1299 = vmatpush.msra.mxu0 0.0
        %1300 = vmatpush.msra.mxu0 0.0
        %1301 = vmatpush.msra.mxu0 0.0
        %1302 = vmatpush.msra.mxu0 0.0
        %1303 = vmatpush.msra.mxu0 0.0
        %1304 = vmatpush.msra.mxu0 0.0
        %1305 = vmatpush.msra.mxu0 0.0
        %1306 = vmatpush.msra.mxu0 0.0
        %1307 = vmatpush.msra.mxu0 0.0
        %1308 = vmatpush.msra.mxu0 0.0
        %1309 = vmatpush.msra.mxu0 0.0
        %1310 = vmatpush.msra.mxu0 0.0
        %1311 = vmatpush.msra.mxu0 %v1294
        %1312 = vmatmul.f32.gmra.mxu0 %v1291
        %v1313 = vpop.f32.mrf.mxu0
        %v1314 = vadd.f32 0.0, %v1313
        %1315 = vdwg.mxu0
        %1317 = vset.pattern.permute.xlu0 0
        %1318 = vperm.xlu0 %1317, %v1314
        %v1319 = vpop.permute.xlu0 %1318
        %v1321 = vsub.f32 %v1272, %v1319
        %v1322 = vsub.f32 %v1273, %v1319
        %v1323 = vmul.f32 %v1321, %v1321
        %v1324 = vmul.f32 %v1322, %v1322
        %v1325 = vsel %vm1011, %v1323, 0.0
        %v1326 = vsel %vm1011, %v1324, 0.0
        %v1327 = vadd.f32 %v1325, %v1326
        %1328 = vadd.xlane.f32.xlu0 %v1327
        %v1329 = vpop.xlane.xlu0 %1328
        %v1330 = vmul.f32 %v1329, %v1288
        %v1332 = vsel %vm1011, %v1330, 0
        %1334 = vmatpush.msra.mxu0 0.0
        %1335 = vmatpush.msra.mxu0 0.0
        %1336 = vmatpush.msra.mxu0 0.0
        %1337 = vmatpush.msra.mxu0 0.0
        %1338 = vmatpush.msra.mxu0 0.0
        %1339 = vmatpush.msra.mxu0 0.0
        %1340 = vmatpush.msra.mxu0 0.0
        %1341 = vmatpush.msra.mxu0 0.0
        %1342 = vmatpush.msra.mxu0 0.0
        %1343 = vmatpush.msra.mxu0 0.0
        %1344 = vmatpush.msra.mxu0 0.0
        %1345 = vmatpush.msra.mxu0 0.0
        %1346 = vmatpush.msra.mxu0 0.0
        %1347 = vmatpush.msra.mxu0 0.0
        %1348 = vmatpush.msra.mxu0 0.0
        %1349 = vmatpush.msra.mxu0 %v1332
        %1350 = vmatmul.f32.gmra.mxu0 %v1291
        %v1351 = vpop.f32.mrf.mxu0
        %v1352 = vadd.f32 1e-05, %v1351
        %1353 = vdwg.mxu0
        %v1354 = vrsqrt.pop %v1352
        %v1355 = vmul.f32 %v1354, %v1352
        %v1356 = vmul.f32 %v1355, %v1354
        %v1357 = vmul.f32 0.5, %v1356
        %v1358 = vsub.f32 1.5, %v1357
        %v1359 = vmul.f32 %v1354, %v1358
        %vm1360 = vweird.f32 %v1352
        %vm1361 = vweird.f32 %v1354
        %vm1362 = vmor %vm1360, %vm1361
        %v1363 = vsel %vm1362, %v1354, %v1359
        %1365 = vset.pattern.permute.xlu0 0
        %1366 = vperm.xlu0 %1365, %v1363
        %v1367 = vpop.permute.xlu0 %1366
        %v1369 = vmul.f32 %v1321, %v1367
        %v1370 = vmul.f32 %v1322, %v1367
        %1372 = vset.pattern.permute.xlu0 0
        %1373 = vperm.xlu0 %1372, %v1275
        %v1374 = vpop.permute.xlu0 %1373
        %v1376 = vmul.f32 %v1369, %v1374
        %v1377 = vmul.f32 %v1370, %v1374
        %1379 = vset.pattern.permute.xlu0 0
        %1380 = vperm.xlu0 %1379, %v1276
        %v1381 = vpop.permute.xlu0 %1380
        %v1383 = vadd.f32 %v1376, %v1381
        %v1384 = vadd.f32 %v1377, %v1381
        %v1385 = vld [vmem:[%s16] sm:$0x3]
        %1386 = vrot.lane.b32.xlu0 %v1383, 17
        %v1387 = vpop.permute.xlu0 %1386
        %1388 = vrot.lane.b32.xlu0 %v1384, 17
        %v1389 = vpop.permute.xlu0 %1388
        %v1390 = vlaneseq
        %v1391 = vand.u32 %v1390, 127
        %vm1392 = vcmp.lt.s32.totalorder %v1391, 17
        %v1393 = vsel %vm1392, %v1387, %v1389
        %v1394 = vsel %vm1392, %v1389, %v1387
        %v1395 = vld [vmem:[%s2] sm:$0x3]
        %v1397 = vperm.slane %v1395, 0
        %v1398 = vperm.slane %v1395, 1
        %v1401 = vmul.f32 %v1394, %v1397
        %v1402 = vmul.f32 %v1393, %v1398
        %1403 = vrot.lane.b32.xlu0 %v1383, 16
        %v1404 = vpop.permute.xlu0 %1403
        %1405 = vrot.lane.b32.xlu0 %v1384, 16
        %v1406 = vpop.permute.xlu0 %1405
        %vm1407 = vcmp.lt.s32.totalorder %v1391, 16
        %v1408 = vsel %vm1407, %v1404, %v1406
        %v1409 = vsel %vm1407, %v1406, %v1404
        %s1410 = scalar_lea.vmem %s2, 2
        %v1411 = vld [vmem:[%s1410] sm:$0x3]
        %v1413 = vperm.slane %v1411, 0
        %v1414 = vperm.slane %v1411, 1
        %v1417 = vmul.f32 %v1409, %v1413
        %v1418 = vmul.f32 %v1408, %v1414
        %1419 = vrot.lane.b32.xlu0 %v1383, 15
        %v1420 = vpop.permute.xlu0 %1419
        %1421 = vrot.lane.b32.xlu0 %v1384, 15
        %v1422 = vpop.permute.xlu0 %1421
        %vm1423 = vcmp.lt.s32.totalorder %v1391, 15
        %v1424 = vsel %vm1423, %v1420, %v1422
        %v1425 = vsel %vm1423, %v1422, %v1420
        %s1426 = scalar_lea.vmem %s2, 4
        %v1427 = vld [vmem:[%s1426] sm:$0x3]
        %v1429 = vperm.slane %v1427, 0
        %v1430 = vperm.slane %v1427, 1
        %v1433 = vmul.f32 %v1425, %v1429
        %v1434 = vmul.f32 %v1424, %v1430
        %1435 = vrot.lane.b32.xlu0 %v1383, 1
        %v1436 = vpop.permute.xlu0 %1435
        %1437 = vrot.lane.b32.xlu0 %v1384, 1
        %v1438 = vpop.permute.xlu0 %1437
        %vm1439 = vcmp.lt.s32.totalorder %v1391, 1
        %v1440 = vsel %vm1439, %v1436, %v1438
        %v1441 = vsel %vm1439, %v1438, %v1436
        %s1442 = scalar_lea.vmem %s2, 6
        %v1443 = vld [vmem:[%s1442] sm:$0x3]
        %v1445 = vperm.slane %v1443, 0
        %v1446 = vperm.slane %v1443, 1
        %v1449 = vmul.f32 %v1441, %v1445
        %v1450 = vmul.f32 %v1440, %v1446
        %s1451 = scalar_lea.vmem %s2, 8
        %v1452 = vld [vmem:[%s1451] sm:$0x3]
        %v1454 = vperm.slane %v1452, 0
        %v1455 = vperm.slane %v1452, 1
        %v1458 = vmul.f32 %v1383, %v1454
        %v1459 = vmul.f32 %v1384, %v1455
        %1460 = vrot.lane.b32.xlu0 %v1383, 127
        %v1461 = vpop.permute.xlu0 %1460
        %1462 = vrot.lane.b32.xlu0 %v1384, 127
        %v1463 = vpop.permute.xlu0 %1462
        %vm1464 = vcmp.lt.s32.totalorder %v1391, 127
        %v1465 = vsel %vm1464, %v1461, %v1463
        %v1466 = vsel %vm1464, %v1463, %v1461
        %s1467 = scalar_lea.vmem %s2, 10
        %v1468 = vld [vmem:[%s1467] sm:$0x3]
        %v1470 = vperm.slane %v1468, 0
        %v1471 = vperm.slane %v1468, 1
        %v1474 = vmul.f32 %v1465, %v1470
        %v1475 = vmul.f32 %v1466, %v1471
        %1476 = vrot.lane.b32.xlu0 %v1383, 113
        %v1477 = vpop.permute.xlu0 %1476
        %1478 = vrot.lane.b32.xlu0 %v1384, 113
        %v1479 = vpop.permute.xlu0 %1478
        %vm1480 = vcmp.lt.s32.totalorder %v1391, 113
        %v1481 = vsel %vm1480, %v1477, %v1479
        %v1482 = vsel %vm1480, %v1479, %v1477
        %s1483 = scalar_lea.vmem %s2, 12
        %v1484 = vld [vmem:[%s1483] sm:$0x3]
        %v1486 = vperm.slane %v1484, 0
        %v1487 = vperm.slane %v1484, 1
        %v1490 = vmul.f32 %v1481, %v1486
        %v1491 = vmul.f32 %v1482, %v1487
        %1492 = vrot.lane.b32.xlu0 %v1383, 112
        %v1493 = vpop.permute.xlu0 %1492
        %1494 = vrot.lane.b32.xlu0 %v1384, 112
        %v1495 = vpop.permute.xlu0 %1494
        %vm1496 = vcmp.lt.s32.totalorder %v1391, 112
        %v1497 = vsel %vm1496, %v1493, %v1495
        %v1498 = vsel %vm1496, %v1495, %v1493
        %s1499 = scalar_lea.vmem %s2, 14
        %v1500 = vld [vmem:[%s1499] sm:$0x3]
        %v1502 = vperm.slane %v1500, 0
        %v1503 = vperm.slane %v1500, 1
        %v1506 = vmul.f32 %v1497, %v1502
        %v1507 = vmul.f32 %v1498, %v1503
        %1508 = vrot.lane.b32.xlu0 %v1383, 111
        %v1509 = vpop.permute.xlu0 %1508
        %1510 = vrot.lane.b32.xlu0 %v1384, 111
        %v1511 = vpop.permute.xlu0 %1510
        %vm1512 = vcmp.lt.s32.totalorder %v1391, 111
        %v1513 = vsel %vm1512, %v1509, %v1511
        %v1514 = vsel %vm1512, %v1511, %v1509
        %s1515 = scalar_lea.vmem %s2, 16
        %v1516 = vld [vmem:[%s1515] sm:$0x3]
        %v1518 = vperm.slane %v1516, 0
        %v1519 = vperm.slane %v1516, 1
        %v1522 = vmul.f32 %v1513, %v1518
        %v1523 = vmul.f32 %v1514, %v1519
        %v1526 = vrot.slane %v1417, 4
        %v1527 = vrot.slane %v1418, 4
        %v1532 = vrot.slane %v1449, 4
        %v1533 = vrot.slane %v1450, 4
        %v1538 = vrot.slane %v1474, 4
        %v1539 = vrot.slane %v1475, 4
        %v1544 = vrot.slane %v1506, 4
        %v1545 = vrot.slane %v1507, 4
        %v1548 = vsel %vm1011, %v1401, %v1526
        %v1549 = vsel %vm1011, %v1402, %v1527
        %v1550 = vsel %vm1011, %v1433, %v1532
        %v1551 = vsel %vm1011, %v1434, %v1533
        %v1552 = vsel %vm1011, %v1458, %v1538
        %v1553 = vsel %vm1011, %v1459, %v1539
        %v1554 = vsel %vm1011, %v1490, %v1544
        %v1555 = vsel %vm1011, %v1491, %v1545
        %v1556 = vpack.c.bf16 %v1550, %v1548
        %v1557 = vpack.c.bf16 %v1551, %v1549
        %v1558 = vpack.c.bf16 %v1554, %v1552
        %v1559 = vpack.c.bf16 %v1555, %v1553
        %v1560 = vpack.c.bf16 %v1522, %v1522
        %v1561 = vpack.c.bf16 %v1523, %v1523
        %v1562 = vld [vmem:[%s17] sm:$0xf]
        %1564 = vset.pattern.permute.xlu0 0
        %1565 = vperm.xlu0 %1564, %v1562
        %v1566 = vpop.permute.xlu0 %1565
        %vm1568 = vcmask 293888
        %v1570 = vsel %vm1568, %v1385, 0
        %vm1572 = vcmask 1041408
        %v1574 = vsel %vm1572, %v1560, 0
        %v1577 = vsel %vm1572, %v1561, 0
        %1579 = vmatpush.bf16.msra.mxu0 0
        %1580 = vmatpush.bf16.msra.mxu0 0
        %1581 = vmatpush.bf16.msra.mxu0 0
        %1582 = vmatpush.bf16.msra.mxu0 0
        %1583 = vmatpush.bf16.msra.mxu0 0
        %1584 = vmatpush.bf16.msra.mxu0 %v1574
        %1585 = vmatpush.bf16.msra.mxu0 %v1558
        %1586 = vmatpush.bf16.msra.mxu0 %v1556
        %1587 = vmatmul.bf16.gmra.mxu0 %v1570
        %v1588 = vpop.f32.mrf.mxu0
        %v1589 = vadd.f32 %v1566, %v1588
        %v1590 = vpop.f32.mrf.mxu0
        %1591 = vdwg.mxu0
        %1592 = vmatpush.bf16.msra.mxu0 0
        %1593 = vmatpush.bf16.msra.mxu0 0
        %1594 = vmatpush.bf16.msra.mxu0 0
        %1595 = vmatpush.bf16.msra.mxu0 0
        %1596 = vmatpush.bf16.msra.mxu0 0
        %1597 = vmatpush.bf16.msra.mxu0 %v1577
        %1598 = vmatpush.bf16.msra.mxu0 %v1559
        %1599 = vmatpush.bf16.msra.mxu0 %v1557
        %1600 = vmatmul.bf16.gmra.mxu0 %v1570
        %v1601 = vpop.f32.mrf.mxu0
        %v1602 = vadd.f32 %v1566, %v1601
        %v1603 = vpop.f32.mrf.mxu0
        %1604 = vdwg.mxu0
        %v1605 = vsel %vm1011, %v1383, 0.0
        %v1606 = vsel %vm1011, %v1384, 0.0
        %v1607 = vadd.f32 %v1605, %v1606
        %1608 = vadd.xlane.f32.xlu0 %v1607
        %v1609 = vpop.xlane.xlu0 %1608
        %v1610 = vmul.f32 %v1609, %v1288
        %v1611 = vsel %vm1011, %v1610, -inf
        %v1612 = vrot.slane %v1611, 4
        %v1613 = vmax.f32 %v1611, %v1612
        %v1614 = vrot.slane %v1613, 2
        %v1615 = vmax.f32 %v1613, %v1614
        %v1616 = vrot.slane %v1615, 1
        %v1617 = vmax.f32 %v1615, %v1616
        %v1618 = vsub.f32 %v1610, %v1617
        %v1619 = vmul.f32 %v1618, 1.442695
        %v1620 = vpow.pop %v1619
        %v1621 = vsel %vm1011, %v1620, 0.0
        %v1622 = vrot.slane %v1621, 4
        %v1623 = vadd.f32 %v1621, %v1622
        %v1624 = vrot.slane %v1623, 2
        %v1625 = vadd.f32 %v1623, %v1624
        %v1626 = vrot.slane %v1625, 1
        %v1627 = vadd.f32 %v1625, %v1626
        %v1628 = vrcp.pop %v1627
        %v1629 = vmul.f32 %v1627, %v1628
        %v1630 = vsub.f32 1.0, %v1629
        %v1631 = vmul.f32 %v1628, %v1630
        %v1632 = vadd.f32 %v1628, %v1631
        %vm1633 = vweird.f32 %v1627
        %vm1634 = vweird.f32 %v1628
        %vm1635 = vmor %vm1633, %vm1634
        %v1636 = vsel %vm1635, %v1628, %v1632
        %v1637 = vand.u32 2147483647, %v1627
        %vm1638 = vcmp.eq.f32.partialorder %v1637, 8.507059e+37
        %v1639 = vand.u32 %v1627, 2147483648
        %v1640 = vor.u32 1.1754944e-38, %v1639
        %v1641 = vsel %vm1638, %v1640, %v1636
        %v1642 = vmul.f32 %v1620, %v1641
        %v1643 = vsel %vm1011, %v1589, 0.0
        %v1644 = vsel %vm1011, %v1602, 0.0
        %v1645 = vadd.f32 %v1643, %v1644
        %1646 = vadd.xlane.f32.xlu0 %v1645
        %v1647 = vpop.xlane.xlu0 %1646
        %v1648 = vmul.f32 %v1647, %v1288
        %v1649 = vsel %vm1011, %v1648, -inf
        %v1650 = vrot.slane %v1649, 4
        %v1651 = vmax.f32 %v1649, %v1650
        %v1652 = vrot.slane %v1651, 2
        %v1653 = vmax.f32 %v1651, %v1652
        %v1654 = vrot.slane %v1653, 1
        %v1655 = vmax.f32 %v1653, %v1654
        %v1656 = vsub.f32 %v1648, %v1655
        %v1657 = vmul.f32 %v1656, 1.442695
        %v1658 = vpow.pop %v1657
        %v1659 = vsel %vm1011, %v1658, 0.0
        %v1660 = vrot.slane %v1659, 4
        %v1661 = vadd.f32 %v1659, %v1660
        %v1662 = vrot.slane %v1661, 2
        %v1663 = vadd.f32 %v1661, %v1662
        %v1664 = vrot.slane %v1663, 1
        %v1665 = vadd.f32 %v1663, %v1664
        %v1666 = vrcp.pop %v1665
        %v1667 = vmul.f32 %v1665, %v1666
        %v1668 = vsub.f32 1.0, %v1667
        %v1669 = vmul.f32 %v1666, %v1668
        %v1670 = vadd.f32 %v1666, %v1669
        %vm1671 = vweird.f32 %v1665
        %vm1672 = vweird.f32 %v1666
        %vm1673 = vmor %vm1671, %vm1672
        %v1674 = vsel %vm1673, %v1666, %v1670
        %v1675 = vand.u32 2147483647, %v1665
        %vm1676 = vcmp.eq.f32.partialorder %v1675, 8.507059e+37
        %v1677 = vand.u32 %v1665, 2147483648
        %v1678 = vor.u32 1.1754944e-38, %v1677
        %v1679 = vsel %vm1676, %v1678, %v1674
        %v1680 = vmul.f32 %v1658, %v1679
        %v1681 = vmul.f32 %v1642, %v1589
        %v1682 = vmul.f32 %v1642, %v1602
        %v1683 = vsel %vm1011, %v1681, 0.0
        %v1684 = vrot.slane %v1683, 4
        %v1685 = vadd.f32 %v1683, %v1684
        %v1686 = vrot.slane %v1685, 2
        %v1687 = vadd.f32 %v1685, %v1686
        %v1688 = vrot.slane %v1687, 1
        %v1689 = vadd.f32 %v1687, %v1688
        %v1690 = vsel %vm1011, %v1682, 0.0
        %v1691 = vrot.slane %v1690, 4
        %v1692 = vadd.f32 %v1690, %v1691
        %v1693 = vrot.slane %v1692, 2
        %v1694 = vadd.f32 %v1692, %v1693
        %v1695 = vrot.slane %v1694, 1
        %v1696 = vadd.f32 %v1694, %v1695
        %v1697 = vmul.f32 %v1680, %v1383
        %v1698 = vmul.f32 %v1680, %v1384
        %v1699 = vsel %vm1011, %v1697, 0.0
        %v1700 = vrot.slane %v1699, 4
        %v1701 = vadd.f32 %v1699, %v1700
        %v1702 = vrot.slane %v1701, 2
        %v1703 = vadd.f32 %v1701, %v1702
        %v1704 = vrot.slane %v1703, 1
        %v1705 = vadd.f32 %v1703, %v1704
        %v1706 = vsel %vm1011, %v1698, 0.0
        %v1707 = vrot.slane %v1706, 4
        %v1708 = vadd.f32 %v1706, %v1707
        %v1709 = vrot.slane %v1708, 2
        %v1710 = vadd.f32 %v1708, %v1709
        %v1711 = vrot.slane %v1710, 1
        %v1712 = vadd.f32 %v1710, %v1711
        %v1713 = vadd.f32 %v1689, %v1705
        %v1714 = vadd.f32 %v1696, %v1712
        %v1715 = vxor.u32 %v1713, 2147483648
        %v1716 = vxor.u32 %v1714, 2147483648
        %v1717 = vmul.f32 %v1715, 1.442695
        %v1718 = vpow.pop %v1717
        %v1719 = vmul.f32 %v1716, 1.442695
        %v1720 = vpow.pop %v1719
        %v1721 = vadd.f32 %v1718, 1.0
        %v1722 = vadd.f32 %v1720, 1.0
        %v1723 = vrcp.pop %v1721
        %v1724 = vmul.f32 %v1721, %v1723
        %v1725 = vsub.f32 1.0, %v1724
        %v1726 = vmul.f32 %v1723, %v1725
        %v1727 = vadd.f32 %v1723, %v1726
        %vm1728 = vweird.f32 %v1721
        %vm1729 = vweird.f32 %v1723
        %vm1730 = vmor %vm1728, %vm1729
        %v1731 = vsel %vm1730, %v1723, %v1727
        %v1732 = vand.u32 2147483647, %v1721
        %vm1733 = vcmp.eq.f32.partialorder %v1732, 8.507059e+37
        %v1734 = vand.u32 %v1721, 2147483648
        %v1735 = vor.u32 1.1754944e-38, %v1734
        %v1736 = vsel %vm1733, %v1735, %v1731
        %v1737 = vmul.f32 1.0, %v1736
        %v1738 = vrcp.pop %v1722
        %v1739 = vmul.f32 %v1722, %v1738
        %v1740 = vsub.f32 1.0, %v1739
        %v1741 = vmul.f32 %v1738, %v1740
        %v1742 = vadd.f32 %v1738, %v1741
        %vm1743 = vweird.f32 %v1722
        %vm1744 = vweird.f32 %v1738
        %vm1745 = vmor %vm1743, %vm1744
        %v1746 = vsel %vm1745, %v1738, %v1742
        %v1747 = vand.u32 2147483647, %v1722
        %vm1748 = vcmp.eq.f32.partialorder %v1747, 8.507059e+37
        %v1749 = vand.u32 %v1722, 2147483648
        %v1750 = vor.u32 1.1754944e-38, %v1749
        %v1751 = vsel %vm1748, %v1750, %v1746
        %v1752 = vmul.f32 1.0, %v1751
        %s1753 = sld [smem:[#allocation2]]
        %v1754 = vrot.slane %v1643, 4
        %v1755 = vadd.f32 %v1643, %v1754
        %v1756 = vrot.slane %v1755, 2
        %v1757 = vadd.f32 %v1755, %v1756
        %v1758 = vrot.slane %v1757, 1
        %v1759 = vadd.f32 %v1757, %v1758
        %v1760 = vrot.slane %v1644, 4
        %v1761 = vadd.f32 %v1644, %v1760
        %v1762 = vrot.slane %v1761, 2
        %v1763 = vadd.f32 %v1761, %v1762
        %v1764 = vrot.slane %v1763, 1
        %v1765 = vadd.f32 %v1763, %v1764
        %v1766 = vrcp.pop 4.0
        %v1767 = vmul.f32 4.0, %v1766
        %v1768 = vsub.f32 1.0, %v1767
        %v1769 = vmul.f32 %v1766, %v1768
        %v1770 = vadd.f32 %v1766, %v1769
        %vm1771 = vweird.f32 %v1766
        %v1772 = vsel %vm1771, %v1766, %v1770
        %v1773 = vmul.f32 %v1759, %v1772
        %v1774 = vmul.f32 %v1765, %v1772
        %v1775 = vstv %s1753
        %v1776 = vmul.f32 %v1775, %v1773
        %v1777 = vmul.f32 %v1775, %v1774
        %s1778 = sld [smem:[#allocation2 + $0x1]]
        %v1779 = vsel %vm1011, %v1589, -inf
        %v1780 = vrot.slane %v1779, 4
        %v1781 = vmax.f32 %v1779, %v1780
        %v1782 = vrot.slane %v1781, 2
        %v1783 = vmax.f32 %v1781, %v1782
        %v1784 = vrot.slane %v1783, 1
        %v1785 = vmax.f32 %v1783, %v1784
        %v1786 = vsel %vm1011, %v1602, -inf
        %v1787 = vrot.slane %v1786, 4
        %v1788 = vmax.f32 %v1786, %v1787
        %v1789 = vrot.slane %v1788, 2
        %v1790 = vmax.f32 %v1788, %v1789
        %v1791 = vrot.slane %v1790, 1
        %v1792 = vmax.f32 %v1790, %v1791
        %v1793 = vstv %s1778
        %v1794 = vmul.f32 %v1793, %v1785
        %v1795 = vmul.f32 %v1793, %v1792
        %v1796 = vadd.f32 %v1776, %v1794
        %v1797 = vadd.f32 %v1777, %v1795
        %s1798 = sld [smem:[#allocation2 + $0x2]]
        %v1799 = vstv %s1798
        %v1800 = vadd.f32 %v1796, %v1799
        %v1801 = vadd.f32 %v1797, %v1799
        %v1802 = vxor.u32 %v1800, 2147483648
        %v1803 = vxor.u32 %v1801, 2147483648
        %v1804 = vmul.f32 %v1802, 1.442695
        %v1805 = vpow.pop %v1804
        %v1806 = vmul.f32 %v1803, 1.442695
        %v1807 = vpow.pop %v1806
        %v1808 = vadd.f32 %v1805, 1.0
        %v1809 = vadd.f32 %v1807, 1.0
        %v1810 = vrcp.pop %v1808
        %v1811 = vmul.f32 %v1808, %v1810
        %v1812 = vsub.f32 1.0, %v1811
        %v1813 = vmul.f32 %v1810, %v1812
        %v1814 = vadd.f32 %v1810, %v1813
        %vm1815 = vweird.f32 %v1808
        %vm1816 = vweird.f32 %v1810
        %vm1817 = vmor %vm1815, %vm1816
        %v1818 = vsel %vm1817, %v1810, %v1814
        %v1819 = vand.u32 2147483647, %v1808
        %vm1820 = vcmp.eq.f32.partialorder %v1819, 8.507059e+37
        %v1821 = vand.u32 %v1808, 2147483648
        %v1822 = vor.u32 1.1754944e-38, %v1821
        %v1823 = vsel %vm1820, %v1822, %v1818
        %v1824 = vmul.f32 1.0, %v1823
        %v1825 = vrcp.pop %v1809
        %v1826 = vmul.f32 %v1809, %v1825
        %v1827 = vsub.f32 1.0, %v1826
        %v1828 = vmul.f32 %v1825, %v1827
        %v1829 = vadd.f32 %v1825, %v1828
        %vm1830 = vweird.f32 %v1809
        %vm1831 = vweird.f32 %v1825
        %vm1832 = vmor %vm1830, %vm1831
        %v1833 = vsel %vm1832, %v1825, %v1829
        %v1834 = vand.u32 2147483647, %v1809
        %vm1835 = vcmp.eq.f32.partialorder %v1834, 8.507059e+37
        %v1836 = vand.u32 %v1809, 2147483648
        %v1837 = vor.u32 1.1754944e-38, %v1836
        %v1838 = vsel %vm1835, %v1837, %v1833
        %v1839 = vmul.f32 1.0, %v1838
        %v1840 = vmul.f32 %v1383, %v1737
        %v1841 = vmul.f32 %v1384, %v1752
        %v1842 = vmul.f32 %v1840, %v1824
        %v1843 = vmul.f32 %v1841, %v1839
        %v1846 = vrot.slane %v822, 4
        %v1847 = vrot.slane %v823, 4
        %1850 = vmatpush.msra.mxu0 %v841
        %1851 = vmatpush.msra.mxu0 %v840
        %1852 = vmatpush.msra.mxu0 %v839
        %1853 = vmatpush.msra.mxu0 %v838
        %1854 = vmatpush.msra.mxu0 %v837
        %1855 = vmatpush.msra.mxu0 %v836
        %1856 = vmatpush.msra.mxu0 %v835
        %1857 = vmatpush.msra.mxu0 %v834
        %1858 = vmatpush.msra.mxu0 %v833
        %1859 = vmatpush.msra.mxu0 %v832
        %1860 = vmatpush.msra.mxu0 %v831
        %1861 = vmatpush.msra.mxu0 %v830
        %1862 = vmatpush.msra.mxu0 %v829
        %1863 = vmatpush.msra.mxu0 %v828
        %1864 = vmatpush.msra.mxu0 %v827
        %1865 = vmatpush.msra.mxu0 %v826
        %1866 = vmatmul.f32.gmra.mxu0 %v1846
        %v1867 = vpop.f32.mrf.mxu0
        %v1868 = vadd.f32 0.0, %v1867
        %1869 = vdwg.mxu0
        %1870 = vmatpush.msra.mxu0 %v857
        %1871 = vmatpush.msra.mxu0 %v856
        %1872 = vmatpush.msra.mxu0 %v855
        %1873 = vmatpush.msra.mxu0 %v854
        %1874 = vmatpush.msra.mxu0 %v853
        %1875 = vmatpush.msra.mxu0 %v852
        %1876 = vmatpush.msra.mxu0 %v851
        %1877 = vmatpush.msra.mxu0 %v850
        %1878 = vmatpush.msra.mxu0 %v849
        %1879 = vmatpush.msra.mxu0 %v848
        %1880 = vmatpush.msra.mxu0 %v847
        %1881 = vmatpush.msra.mxu0 %v846
        %1882 = vmatpush.msra.mxu0 %v845
        %1883 = vmatpush.msra.mxu0 %v844
        %1884 = vmatpush.msra.mxu0 %v843
        %1885 = vmatpush.msra.mxu0 %v842
        %1886 = vmatmul.f32.gmra.mxu0 %v1847
        %v1887 = vpop.f32.mrf.mxu0
        %v1888 = vadd.f32 %v1868, %v1887
        %1889 = vdwg.mxu0
        %1890 = vmatpush.msra.mxu0 %v913
        %1891 = vmatpush.msra.mxu0 %v912
        %1892 = vmatpush.msra.mxu0 %v911
        %1893 = vmatpush.msra.mxu0 %v910
        %1894 = vmatpush.msra.mxu0 %v909
        %1895 = vmatpush.msra.mxu0 %v908
        %1896 = vmatpush.msra.mxu0 %v907
        %1897 = vmatpush.msra.mxu0 %v906
        %1898 = vmatpush.msra.mxu0 %v905
        %1899 = vmatpush.msra.mxu0 %v904
        %1900 = vmatpush.msra.mxu0 %v903
        %1901 = vmatpush.msra.mxu0 %v902
        %1902 = vmatpush.msra.mxu0 %v901
        %1903 = vmatpush.msra.mxu0 %v900
        %1904 = vmatpush.msra.mxu0 %v899
        %1905 = vmatpush.msra.mxu0 %v898
        %1906 = vmatmul.f32.gmra.mxu0 %v1846
        %v1907 = vpop.f32.mrf.mxu0
        %v1908 = vadd.f32 0.0, %v1907
        %1909 = vdwg.mxu0
        %1910 = vmatpush.msra.mxu0 %v929
        %1911 = vmatpush.msra.mxu0 %v928
        %1912 = vmatpush.msra.mxu0 %v927
        %1913 = vmatpush.msra.mxu0 %v926
        %1914 = vmatpush.msra.mxu0 %v925
        %1915 = vmatpush.msra.mxu0 %v924
        %1916 = vmatpush.msra.mxu0 %v923
        %1917 = vmatpush.msra.mxu0 %v922
        %1918 = vmatpush.msra.mxu0 %v921
        %1919 = vmatpush.msra.mxu0 %v920
        %1920 = vmatpush.msra.mxu0 %v919
        %1921 = vmatpush.msra.mxu0 %v918
        %1922 = vmatpush.msra.mxu0 %v917
        %1923 = vmatpush.msra.mxu0 %v916
        %1924 = vmatpush.msra.mxu0 %v915
        %1925 = vmatpush.msra.mxu0 %v914
        %1926 = vmatmul.f32.gmra.mxu0 %v1847
        %v1927 = vpop.f32.mrf.mxu0
        %v1928 = vadd.f32 %v1908, %v1927
        %1929 = vdwg.mxu0
        %v1931 = vsel %vm1011, %v1888, 0
        %1933 = vmatpush.msra.mxu0 0.0
        %1934 = vmatpush.msra.mxu0 0.0
        %1935 = vmatpush.msra.mxu0 0.0
        %1936 = vmatpush.msra.mxu0 0.0
        %1937 = vmatpush.msra.mxu0 0.0
        %1938 = vmatpush.msra.mxu0 0.0
        %1939 = vmatpush.msra.mxu0 0.0
        %1940 = vmatpush.msra.mxu0 0.0
        %1941 = vmatpush.msra.mxu0 0.0
        %1942 = vmatpush.msra.mxu0 0.0
        %1943 = vmatpush.msra.mxu0 0.0
        %1944 = vmatpush.msra.mxu0 0.0
        %1945 = vmatpush.msra.mxu0 0.0
        %1946 = vmatpush.msra.mxu0 0.0
        %1947 = vmatpush.msra.mxu0 0.0
        %1948 = vmatpush.msra.mxu0 %v1931
        %1949 = vmatmul.f32.gmra.mxu0 %v1000
        %v1950 = vpop.f32.mrf.mxu0
        %v1951 = vadd.f32 %v981, %v1950
        %1952 = vmatmul.f32.gmra.mxu0 %v1003
        %v1953 = vpop.f32.mrf.mxu0
        %v1954 = vadd.f32 %v986, %v1953
        %1955 = vmatmul.f32.gmra.mxu0 %v1006
        %v1956 = vpop.f32.mrf.mxu0
        %v1957 = vadd.f32 %v991, %v1956
        %1958 = vmatmul.f32.gmra.mxu0 %v1009
        %v1959 = vpop.f32.mrf.mxu0
        %v1960 = vadd.f32 %v996, %v1959
        %1961 = vdwg.mxu0
        %v1963 = vsel %vm1011, %v1928, 0
        %1965 = vmatpush.msra.mxu0 0.0
        %1966 = vmatpush.msra.mxu0 0.0
        %1967 = vmatpush.msra.mxu0 0.0
        %1968 = vmatpush.msra.mxu0 0.0
        %1969 = vmatpush.msra.mxu0 0.0
        %1970 = vmatpush.msra.mxu0 0.0
        %1971 = vmatpush.msra.mxu0 0.0
        %1972 = vmatpush.msra.mxu0 0.0
        %1973 = vmatpush.msra.mxu0 0.0
        %1974 = vmatpush.msra.mxu0 0.0
        %1975 = vmatpush.msra.mxu0 0.0
        %1976 = vmatpush.msra.mxu0 0.0
        %1977 = vmatpush.msra.mxu0 0.0
        %1978 = vmatpush.msra.mxu0 0.0
        %1979 = vmatpush.msra.mxu0 0.0
        %1980 = vmatpush.msra.mxu0 %v1963
        %1981 = vmatmul.f32.gmra.mxu0 %v1000
        %v1982 = vpop.f32.mrf.mxu0
        %v1983 = vadd.f32 %v981, %v1982
        %1984 = vmatmul.f32.gmra.mxu0 %v1003
        %v1985 = vpop.f32.mrf.mxu0
        %v1986 = vadd.f32 %v986, %v1985
        %1987 = vmatmul.f32.gmra.mxu0 %v1006
        %v1988 = vpop.f32.mrf.mxu0
        %v1989 = vadd.f32 %v991, %v1988
        %1990 = vmatmul.f32.gmra.mxu0 %v1009
        %v1991 = vpop.f32.mrf.mxu0
        %v1992 = vadd.f32 %v996, %v1991
        %1993 = vdwg.mxu0
        %1994 = vmatpush.msra.mxu0 0.0
        %1995 = vmatpush.msra.mxu0 0.0
        %1996 = vmatpush.msra.mxu0 0.0
        %1997 = vmatpush.msra.mxu0 0.0
        %1998 = vmatpush.msra.mxu0 0.0
        %1999 = vmatpush.msra.mxu0 0.0
        %2000 = vmatpush.msra.mxu0 0.0
        %2001 = vmatpush.msra.mxu0 0.0
        %2002 = vmatpush.msra.mxu0 0.0
        %2003 = vmatpush.msra.mxu0 0.0
        %2004 = vmatpush.msra.mxu0 0.0
        %2005 = vmatpush.msra.mxu0 0.0
        %2006 = vmatpush.msra.mxu0 %v1960
        %2007 = vmatpush.msra.mxu0 %v1957
        %2008 = vmatpush.msra.mxu0 %v1954
        %2009 = vmatpush.msra.mxu0 %v1951
        %2010 = vmatmul.f32.gmra.mxu0 %v1085
        %v2011 = vpop.f32.mrf.mxu0
        %v2012 = vadd.f32 %v1081, %v2011
        %2013 = vdwg.mxu0
        %v2014 = vxor.u32 %v2012, 2147483648
        %v2015 = vmul.f32 %v2014, 1.442695
        %v2016 = vpow.pop %v2015
        %v2017 = vadd.f32 %v2016, 1.0
        %v2018 = vrcp.pop %v2017
        %v2019 = vmul.f32 %v2017, %v2018
        %v2020 = vsub.f32 1.0, %v2019
        %v2021 = vmul.f32 %v2018, %v2020
        %v2022 = vadd.f32 %v2018, %v2021
        %vm2023 = vweird.f32 %v2017
        %vm2024 = vweird.f32 %v2018
        %vm2025 = vmor %vm2023, %vm2024
        %v2026 = vsel %vm2025, %v2018, %v2022
        %v2027 = vand.u32 2147483647, %v2017
        %vm2028 = vcmp.eq.f32.partialorder %v2027, 8.507059e+37
        %v2029 = vand.u32 %v2017, 2147483648
        %v2030 = vor.u32 1.1754944e-38, %v2029
        %v2031 = vsel %vm2028, %v2030, %v2026
        %v2032 = vmul.f32 1.0, %v2031
        %2033 = vmatpush.msra.mxu0 0.0
        %2034 = vmatpush.msra.mxu0 0.0
        %2035 = vmatpush.msra.mxu0 0.0
        %2036 = vmatpush.msra.mxu0 0.0
        %2037 = vmatpush.msra.mxu0 0.0
        %2038 = vmatpush.msra.mxu0 0.0
        %2039 = vmatpush.msra.mxu0 0.0
        %2040 = vmatpush.msra.mxu0 0.0
        %2041 = vmatpush.msra.mxu0 0.0
        %2042 = vmatpush.msra.mxu0 0.0
        %2043 = vmatpush.msra.mxu0 0.0
        %2044 = vmatpush.msra.mxu0 0.0
        %2045 = vmatpush.msra.mxu0 %v1992
        %2046 = vmatpush.msra.mxu0 %v1989
        %2047 = vmatpush.msra.mxu0 %v1986
        %2048 = vmatpush.msra.mxu0 %v1983
        %2049 = vmatmul.f32.gmra.mxu0 %v1134
        %v2050 = vpop.f32.mrf.mxu0
        %v2051 = vadd.f32 %v1131, %v2050
        %2052 = vdwg.mxu0
        %v2053 = vxor.u32 %v2051, 2147483648
        %v2054 = vmul.f32 %v2053, 1.442695
        %v2055 = vpow.pop %v2054
        %v2056 = vadd.f32 %v2055, 1.0
        %v2057 = vrcp.pop %v2056
        %v2058 = vmul.f32 %v2056, %v2057
        %v2059 = vsub.f32 1.0, %v2058
        %v2060 = vmul.f32 %v2057, %v2059
        %v2061 = vadd.f32 %v2057, %v2060
        %vm2062 = vweird.f32 %v2056
        %vm2063 = vweird.f32 %v2057
        %vm2064 = vmor %vm2062, %vm2063
        %v2065 = vsel %vm2064, %v2057, %v2061
        %v2066 = vand.u32 2147483647, %v2056
        %vm2067 = vcmp.eq.f32.partialorder %v2066, 8.507059e+37
        %v2068 = vand.u32 %v2056, 2147483648
        %v2069 = vor.u32 1.1754944e-38, %v2068
        %v2070 = vsel %vm2067, %v2069, %v2065
        %v2071 = vmul.f32 1.0, %v2070
        %v2073 = vsel %vm1179, %v2032, 0
        %2075 = vmatpush.msra.mxu0 0.0
        %2076 = vmatpush.msra.mxu0 0.0
        %2077 = vmatpush.msra.mxu0 0.0
        %2078 = vmatpush.msra.mxu0 0.0
        %2079 = vmatpush.msra.mxu0 0.0
        %2080 = vmatpush.msra.mxu0 0.0
        %2081 = vmatpush.msra.mxu0 0.0
        %2082 = vmatpush.msra.mxu0 0.0
        %2083 = vmatpush.msra.mxu0 0.0
        %2084 = vmatpush.msra.mxu0 0.0
        %2085 = vmatpush.msra.mxu0 0.0
        %2086 = vmatpush.msra.mxu0 0.0
        %2087 = vmatpush.msra.mxu0 0.0
        %2088 = vmatpush.msra.mxu0 0.0
        %2089 = vmatpush.msra.mxu0 %v1177
        %2090 = vmatpush.msra.mxu0 %v1175
        %2091 = vmatmul.f32.gmra.mxu0 %v2073
        %v2092 = vpop.f32.mrf.mxu0
        %v2093 = vadd.f32 0.0, %v2092
        %2094 = vdwg.mxu0
        %2095 = vmatpush.msra.mxu0 0.0
        %2096 = vmatpush.msra.mxu0 0.0
        %2097 = vmatpush.msra.mxu0 0.0
        %2098 = vmatpush.msra.mxu0 0.0
        %2099 = vmatpush.msra.mxu0 0.0
        %2100 = vmatpush.msra.mxu0 0.0
        %2101 = vmatpush.msra.mxu0 0.0
        %2102 = vmatpush.msra.mxu0 0.0
        %2103 = vmatpush.msra.mxu0 0.0
        %2104 = vmatpush.msra.mxu0 0.0
        %2105 = vmatpush.msra.mxu0 0.0
        %2106 = vmatpush.msra.mxu0 0.0
        %2107 = vmatpush.msra.mxu0 0.0
        %2108 = vmatpush.msra.mxu0 0.0
        %2109 = vmatpush.msra.mxu0 %v1178
        %2110 = vmatpush.msra.mxu0 %v1176
        %2111 = vmatmul.f32.gmra.mxu0 %v2073
        %v2112 = vpop.f32.mrf.mxu0
        %v2113 = vadd.f32 0.0, %v2112
        %2114 = vdwg.mxu0
        %v2116 = vsel %vm1179, %v2071, 0
        %2118 = vmatpush.msra.mxu0 0.0
        %2119 = vmatpush.msra.mxu0 0.0
        %2120 = vmatpush.msra.mxu0 0.0
        %2121 = vmatpush.msra.mxu0 0.0
        %2122 = vmatpush.msra.mxu0 0.0
        %2123 = vmatpush.msra.mxu0 0.0
        %2124 = vmatpush.msra.mxu0 0.0
        %2125 = vmatpush.msra.mxu0 0.0
        %2126 = vmatpush.msra.mxu0 0.0
        %2127 = vmatpush.msra.mxu0 0.0
        %2128 = vmatpush.msra.mxu0 0.0
        %2129 = vmatpush.msra.mxu0 0.0
        %2130 = vmatpush.msra.mxu0 0.0
        %2131 = vmatpush.msra.mxu0 0.0
        %2132 = vmatpush.msra.mxu0 %v1225
        %2133 = vmatpush.msra.mxu0 %v1223
        %2134 = vmatmul.f32.gmra.mxu0 %v2116
        %v2135 = vpop.f32.mrf.mxu0
        %v2136 = vadd.f32 0.0, %v2135
        %2137 = vdwg.mxu0
        %2138 = vmatpush.msra.mxu0 0.0
        %2139 = vmatpush.msra.mxu0 0.0
        %2140 = vmatpush.msra.mxu0 0.0
        %2141 = vmatpush.msra.mxu0 0.0
        %2142 = vmatpush.msra.mxu0 0.0
        %2143 = vmatpush.msra.mxu0 0.0
        %2144 = vmatpush.msra.mxu0 0.0
        %2145 = vmatpush.msra.mxu0 0.0
        %2146 = vmatpush.msra.mxu0 0.0
        %2147 = vmatpush.msra.mxu0 0.0
        %2148 = vmatpush.msra.mxu0 0.0
        %2149 = vmatpush.msra.mxu0 0.0
        %2150 = vmatpush.msra.mxu0 0.0
        %2151 = vmatpush.msra.mxu0 0.0
        %2152 = vmatpush.msra.mxu0 %v1226
        %2153 = vmatpush.msra.mxu0 %v1224
        %2154 = vmatmul.f32.gmra.mxu0 %v2116
        %v2155 = vpop.f32.mrf.mxu0
        %v2156 = vadd.f32 0.0, %v2155
        %2157 = vdwg.mxu0
        %v2158 = vmul.f32 %v2093, %v2136
        %v2159 = vmul.f32 %v2113, %v2156
        %v2160 = vmul.f32 %v2158, %v1846
        %v2161 = vmul.f32 %v2159, %v1847
        %v2162 = vsel %vm1011, %v2160, 0.0
        %v2163 = vsel %vm1011, %v2161, 0.0
        %v2164 = vadd.f32 %v2162, %v2163
        %2165 = vadd.xlane.f32.xlu0 %v2164
        %v2166 = vpop.xlane.xlu0 %2165
        %v2167 = vmul.f32 %v2166, %v1288
        %v2169 = vsel %vm1011, %v2167, 0
        %2171 = vmatpush.msra.mxu0 0.0
        %2172 = vmatpush.msra.mxu0 0.0
        %2173 = vmatpush.msra.mxu0 0.0
        %2174 = vmatpush.msra.mxu0 0.0
        %2175 = vmatpush.msra.mxu0 0.0
        %2176 = vmatpush.msra.mxu0 0.0
        %2177 = vmatpush.msra.mxu0 0.0
        %2178 = vmatpush.msra.mxu0 0.0
        %2179 = vmatpush.msra.mxu0 0.0
        %2180 = vmatpush.msra.mxu0 0.0
        %2181 = vmatpush.msra.mxu0 0.0
        %2182 = vmatpush.msra.mxu0 0.0
        %2183 = vmatpush.msra.mxu0 0.0
        %2184 = vmatpush.msra.mxu0 0.0
        %2185 = vmatpush.msra.mxu0 0.0
        %2186 = vmatpush.msra.mxu0 %v2169
        %2187 = vmatmul.f32.gmra.mxu0 %v1291
        %v2188 = vpop.f32.mrf.mxu0
        %v2189 = vadd.f32 0.0, %v2188
        %2190 = vdwg.mxu0
        %2192 = vset.pattern.permute.xlu0 0
        %2193 = vperm.xlu0 %2192, %v2189
        %v2194 = vpop.permute.xlu0 %2193
        %v2196 = vsub.f32 %v2160, %v2194
        %v2197 = vsub.f32 %v2161, %v2194
        %v2198 = vmul.f32 %v2196, %v2196
        %v2199 = vmul.f32 %v2197, %v2197
        %v2200 = vsel %vm1011, %v2198, 0.0
        %v2201 = vsel %vm1011, %v2199, 0.0
        %v2202 = vadd.f32 %v2200, %v2201
        %2203 = vadd.xlane.f32.xlu0 %v2202
        %v2204 = vpop.xlane.xlu0 %2203
        %v2205 = vmul.f32 %v2204, %v1288
        %v2207 = vsel %vm1011, %v2205, 0
        %2209 = vmatpush.msra.mxu0 0.0
        %2210 = vmatpush.msra.mxu0 0.0
        %2211 = vmatpush.msra.mxu0 0.0
        %2212 = vmatpush.msra.mxu0 0.0
        %2213 = vmatpush.msra.mxu0 0.0
        %2214 = vmatpush.msra.mxu0 0.0
        %2215 = vmatpush.msra.mxu0 0.0
        %2216 = vmatpush.msra.mxu0 0.0
        %2217 = vmatpush.msra.mxu0 0.0
        %2218 = vmatpush.msra.mxu0 0.0
        %2219 = vmatpush.msra.mxu0 0.0
        %2220 = vmatpush.msra.mxu0 0.0
        %2221 = vmatpush.msra.mxu0 0.0
        %2222 = vmatpush.msra.mxu0 0.0
        %2223 = vmatpush.msra.mxu0 0.0
        %2224 = vmatpush.msra.mxu0 %v2207
        %2225 = vmatmul.f32.gmra.mxu0 %v1291
        %v2226 = vpop.f32.mrf.mxu0
        %v2227 = vadd.f32 1e-05, %v2226
        %2228 = vdwg.mxu0
        %v2229 = vrsqrt.pop %v2227
        %v2230 = vmul.f32 %v2229, %v2227
        %v2231 = vmul.f32 %v2230, %v2229
        %v2232 = vmul.f32 0.5, %v2231
        %v2233 = vsub.f32 1.5, %v2232
        %v2234 = vmul.f32 %v2229, %v2233
        %vm2235 = vweird.f32 %v2227
        %vm2236 = vweird.f32 %v2229
        %vm2237 = vmor %vm2235, %vm2236
        %v2238 = vsel %vm2237, %v2229, %v2234
        %2240 = vset.pattern.permute.xlu0 0
        %2241 = vperm.xlu0 %2240, %v2238
        %v2242 = vpop.permute.xlu0 %2241
        %v2244 = vmul.f32 %v2196, %v2242
        %v2245 = vmul.f32 %v2197, %v2242
        %v2246 = vmul.f32 %v2244, %v1374
        %v2247 = vmul.f32 %v2245, %v1374
        %v2248 = vadd.f32 %v2246, %v1381
        %v2249 = vadd.f32 %v2247, %v1381
        %2250 = vrot.lane.b32.xlu0 %v2248, 17
        %v2251 = vpop.permute.xlu0 %2250
        %2252 = vrot.lane.b32.xlu0 %v2249, 17
        %v2253 = vpop.permute.xlu0 %2252
        %v2254 = vsel %vm1392, %v2251, %v2253
        %v2255 = vsel %vm1392, %v2253, %v2251
        %v2256 = vmul.f32 %v2255, %v1397
        %v2257 = vmul.f32 %v2254, %v1398
        %2258 = vrot.lane.b32.xlu0 %v2248, 16
        %v2259 = vpop.permute.xlu0 %2258
        %2260 = vrot.lane.b32.xlu0 %v2249, 16
        %v2261 = vpop.permute.xlu0 %2260
        %v2262 = vsel %vm1407, %v2259, %v2261
        %v2263 = vsel %vm1407, %v2261, %v2259
        %v2264 = vmul.f32 %v2263, %v1413
        %v2265 = vmul.f32 %v2262, %v1414
        %2266 = vrot.lane.b32.xlu0 %v2248, 15
        %v2267 = vpop.permute.xlu0 %2266
        %2268 = vrot.lane.b32.xlu0 %v2249, 15
        %v2269 = vpop.permute.xlu0 %2268
        %v2270 = vsel %vm1423, %v2267, %v2269
        %v2271 = vsel %vm1423, %v2269, %v2267
        %v2272 = vmul.f32 %v2271, %v1429
        %v2273 = vmul.f32 %v2270, %v1430
        %2274 = vrot.lane.b32.xlu0 %v2248, 1
        %v2275 = vpop.permute.xlu0 %2274
        %2276 = vrot.lane.b32.xlu0 %v2249, 1
        %v2277 = vpop.permute.xlu0 %2276
        %v2278 = vsel %vm1439, %v2275, %v2277
        %v2279 = vsel %vm1439, %v2277, %v2275
        %v2280 = vmul.f32 %v2279, %v1445
        %v2281 = vmul.f32 %v2278, %v1446
        %v2282 = vmul.f32 %v2248, %v1454
        %v2283 = vmul.f32 %v2249, %v1455
        %2284 = vrot.lane.b32.xlu0 %v2248, 127
        %v2285 = vpop.permute.xlu0 %2284
        %2286 = vrot.lane.b32.xlu0 %v2249, 127
        %v2287 = vpop.permute.xlu0 %2286
        %v2288 = vsel %vm1464, %v2285, %v2287
        %v2289 = vsel %vm1464, %v2287, %v2285
        %v2290 = vmul.f32 %v2288, %v1470
        %v2291 = vmul.f32 %v2289, %v1471
        %2292 = vrot.lane.b32.xlu0 %v2248, 113
        %v2293 = vpop.permute.xlu0 %2292
        %2294 = vrot.lane.b32.xlu0 %v2249, 113
        %v2295 = vpop.permute.xlu0 %2294
        %v2296 = vsel %vm1480, %v2293, %v2295
        %v2297 = vsel %vm1480, %v2295, %v2293
        %v2298 = vmul.f32 %v2296, %v1486
        %v2299 = vmul.f32 %v2297, %v1487
        %2300 = vrot.lane.b32.xlu0 %v2248, 112
        %v2301 = vpop.permute.xlu0 %2300
        %2302 = vrot.lane.b32.xlu0 %v2249, 112
        %v2303 = vpop.permute.xlu0 %2302
        %v2304 = vsel %vm1496, %v2301, %v2303
        %v2305 = vsel %vm1496, %v2303, %v2301
        %v2306 = vmul.f32 %v2304, %v1502
        %v2307 = vmul.f32 %v2305, %v1503
        %2308 = vrot.lane.b32.xlu0 %v2248, 111
        %v2309 = vpop.permute.xlu0 %2308
        %2310 = vrot.lane.b32.xlu0 %v2249, 111
        %v2311 = vpop.permute.xlu0 %2310
        %v2312 = vsel %vm1512, %v2309, %v2311
        %v2313 = vsel %vm1512, %v2311, %v2309
        %v2314 = vmul.f32 %v2312, %v1518
        %v2315 = vmul.f32 %v2313, %v1519
        %v2318 = vrot.slane %v2264, 4
        %v2319 = vrot.slane %v2265, 4
        %v2324 = vrot.slane %v2280, 4
        %v2325 = vrot.slane %v2281, 4
        %v2330 = vrot.slane %v2290, 4
        %v2331 = vrot.slane %v2291, 4
        %v2336 = vrot.slane %v2306, 4
        %v2337 = vrot.slane %v2307, 4
        %v2340 = vsel %vm1011, %v2256, %v2318
        %v2341 = vsel %vm1011, %v2257, %v2319
        %v2342 = vsel %vm1011, %v2272, %v2324
        %v2343 = vsel %vm1011, %v2273, %v2325
        %v2344 = vsel %vm1011, %v2282, %v2330
        %v2345 = vsel %vm1011, %v2283, %v2331
        %v2346 = vsel %vm1011, %v2298, %v2336
        %v2347 = vsel %vm1011, %v2299, %v2337
        %v2348 = vpack.c.bf16 %v2342, %v2340
        %v2349 = vpack.c.bf16 %v2343, %v2341
        %v2350 = vpack.c.bf16 %v2346, %v2344
        %v2351 = vpack.c.bf16 %v2347, %v2345
        %v2352 = vpack.c.bf16 %v2314, %v2314
        %v2353 = vpack.c.bf16 %v2315, %v2315
        %v2355 = vsel %vm1572, %v2352, 0
        %v2358 = vsel %vm1572, %v2353, 0
        %2360 = vmatpush.bf16.msra.mxu0 0
        %2361 = vmatpush.bf16.msra.mxu0 0
        %2362 = vmatpush.bf16.msra.mxu0 0
        %2363 = vmatpush.bf16.msra.mxu0 0
        %2364 = vmatpush.bf16.msra.mxu0 0
        %2365 = vmatpush.bf16.msra.mxu0 %v2355
        %2366 = vmatpush.bf16.msra.mxu0 %v2350
        %2367 = vmatpush.bf16.msra.mxu0 %v2348
        %2368 = vmatmul.bf16.gmra.mxu0 %v1570
        %v2369 = vpop.f32.mrf.mxu0
        %v2370 = vadd.f32 %v1566, %v2369
        %v2371 = vpop.f32.mrf.mxu0
        %2372 = vdwg.mxu0
        %2373 = vmatpush.bf16.msra.mxu0 0
        %2374 = vmatpush.bf16.msra.mxu0 0
        %2375 = vmatpush.bf16.msra.mxu0 0
        %2376 = vmatpush.bf16.msra.mxu0 0
        %2377 = vmatpush.bf16.msra.mxu0 0
        %2378 = vmatpush.bf16.msra.mxu0 %v2358
        %2379 = vmatpush.bf16.msra.mxu0 %v2351
        %2380 = vmatpush.bf16.msra.mxu0 %v2349
        %2381 = vmatmul.bf16.gmra.mxu0 %v1570
        %v2382 = vpop.f32.mrf.mxu0
        %v2383 = vadd.f32 %v1566, %v2382
        %v2384 = vpop.f32.mrf.mxu0
        %2385 = vdwg.mxu0
        %v2386 = vsel %vm1011, %v2248, 0.0
        %v2387 = vsel %vm1011, %v2249, 0.0
        %v2388 = vadd.f32 %v2386, %v2387
        %2389 = vadd.xlane.f32.xlu0 %v2388
        %v2390 = vpop.xlane.xlu0 %2389
        %v2391 = vmul.f32 %v2390, %v1288
        %v2392 = vsel %vm1011, %v2391, -inf
        %v2393 = vrot.slane %v2392, 4
        %v2394 = vmax.f32 %v2392, %v2393
        %v2395 = vrot.slane %v2394, 2
        %v2396 = vmax.f32 %v2394, %v2395
        %v2397 = vrot.slane %v2396, 1
        %v2398 = vmax.f32 %v2396, %v2397
        %v2399 = vsub.f32 %v2391, %v2398
        %v2400 = vmul.f32 %v2399, 1.442695
        %v2401 = vpow.pop %v2400
        %v2402 = vsel %vm1011, %v2401, 0.0
        %v2403 = vrot.slane %v2402, 4
        %v2404 = vadd.f32 %v2402, %v2403
        %v2405 = vrot.slane %v2404, 2
        %v2406 = vadd.f32 %v2404, %v2405
        %v2407 = vrot.slane %v2406, 1
        %v2408 = vadd.f32 %v2406, %v2407
        %v2409 = vrcp.pop %v2408
        %v2410 = vmul.f32 %v2408, %v2409
        %v2411 = vsub.f32 1.0, %v2410
        %v2412 = vmul.f32 %v2409, %v2411
        %v2413 = vadd.f32 %v2409, %v2412
        %vm2414 = vweird.f32 %v2408
        %vm2415 = vweird.f32 %v2409
        %vm2416 = vmor %vm2414, %vm2415
        %v2417 = vsel %vm2416, %v2409, %v2413
        %v2418 = vand.u32 2147483647, %v2408
        %vm2419 = vcmp.eq.f32.partialorder %v2418, 8.507059e+37
        %v2420 = vand.u32 %v2408, 2147483648
        %v2421 = vor.u32 1.1754944e-38, %v2420
        %v2422 = vsel %vm2419, %v2421, %v2417
        %v2423 = vmul.f32 %v2401, %v2422
        %v2424 = vsel %vm1011, %v2370, 0.0
        %v2425 = vsel %vm1011, %v2383, 0.0
        %v2426 = vadd.f32 %v2424, %v2425
        %2427 = vadd.xlane.f32.xlu0 %v2426
        %v2428 = vpop.xlane.xlu0 %2427
        %v2429 = vmul.f32 %v2428, %v1288
        %v2430 = vsel %vm1011, %v2429, -inf
        %v2431 = vrot.slane %v2430, 4
        %v2432 = vmax.f32 %v2430, %v2431
        %v2433 = vrot.slane %v2432, 2
        %v2434 = vmax.f32 %v2432, %v2433
        %v2435 = vrot.slane %v2434, 1
        %v2436 = vmax.f32 %v2434, %v2435
        %v2437 = vsub.f32 %v2429, %v2436
        %v2438 = vmul.f32 %v2437, 1.442695
        %v2439 = vpow.pop %v2438
        %v2440 = vsel %vm1011, %v2439, 0.0
        %v2441 = vrot.slane %v2440, 4
        %v2442 = vadd.f32 %v2440, %v2441
        %v2443 = vrot.slane %v2442, 2
        %v2444 = vadd.f32 %v2442, %v2443
        %v2445 = vrot.slane %v2444, 1
        %v2446 = vadd.f32 %v2444, %v2445
        %v2447 = vrcp.pop %v2446
        %v2448 = vmul.f32 %v2446, %v2447
        %v2449 = vsub.f32 1.0, %v2448
        %v2450 = vmul.f32 %v2447, %v2449
        %v2451 = vadd.f32 %v2447, %v2450
        %vm2452 = vweird.f32 %v2446
        %vm2453 = vweird.f32 %v2447
        %vm2454 = vmor %vm2452, %vm2453
        %v2455 = vsel %vm2454, %v2447, %v2451
        %v2456 = vand.u32 2147483647, %v2446
        %vm2457 = vcmp.eq.f32.partialorder %v2456, 8.507059e+37
        %v2458 = vand.u32 %v2446, 2147483648
        %v2459 = vor.u32 1.1754944e-38, %v2458
        %v2460 = vsel %vm2457, %v2459, %v2455
        %v2461 = vmul.f32 %v2439, %v2460
        %v2462 = vmul.f32 %v2423, %v2370
        %v2463 = vmul.f32 %v2423, %v2383
        %v2464 = vsel %vm1011, %v2462, 0.0
        %v2465 = vrot.slane %v2464, 4
        %v2466 = vadd.f32 %v2464, %v2465
        %v2467 = vrot.slane %v2466, 2
        %v2468 = vadd.f32 %v2466, %v2467
        %v2469 = vrot.slane %v2468, 1
        %v2470 = vadd.f32 %v2468, %v2469
        %v2471 = vsel %vm1011, %v2463, 0.0
        %v2472 = vrot.slane %v2471, 4
        %v2473 = vadd.f32 %v2471, %v2472
        %v2474 = vrot.slane %v2473, 2
        %v2475 = vadd.f32 %v2473, %v2474
        %v2476 = vrot.slane %v2475, 1
        %v2477 = vadd.f32 %v2475, %v2476
        %v2478 = vmul.f32 %v2461, %v2248
        %v2479 = vmul.f32 %v2461, %v2249
        %v2480 = vsel %vm1011, %v2478, 0.0
        %v2481 = vrot.slane %v2480, 4
        %v2482 = vadd.f32 %v2480, %v2481
        %v2483 = vrot.slane %v2482, 2
        %v2484 = vadd.f32 %v2482, %v2483
        %v2485 = vrot.slane %v2484, 1
        %v2486 = vadd.f32 %v2484, %v2485
        %v2487 = vsel %vm1011, %v2479, 0.0
        %v2488 = vrot.slane %v2487, 4
        %v2489 = vadd.f32 %v2487, %v2488
        %v2490 = vrot.slane %v2489, 2
        %v2491 = vadd.f32 %v2489, %v2490
        %v2492 = vrot.slane %v2491, 1
        %v2493 = vadd.f32 %v2491, %v2492
        %v2494 = vadd.f32 %v2470, %v2486
        %v2495 = vadd.f32 %v2477, %v2493
        %v2496 = vxor.u32 %v2494, 2147483648
        %v2497 = vxor.u32 %v2495, 2147483648
        %v2498 = vmul.f32 %v2496, 1.442695
        %v2499 = vpow.pop %v2498
        %v2500 = vmul.f32 %v2497, 1.442695
        %v2501 = vpow.pop %v2500
        %v2502 = vadd.f32 %v2499, 1.0
        %v2503 = vadd.f32 %v2501, 1.0
        %v2504 = vrcp.pop %v2502
        %v2505 = vmul.f32 %v2502, %v2504
        %v2506 = vsub.f32 1.0, %v2505
        %v2507 = vmul.f32 %v2504, %v2506
        %v2508 = vadd.f32 %v2504, %v2507
        %vm2509 = vweird.f32 %v2502
        %vm2510 = vweird.f32 %v2504
        %vm2511 = vmor %vm2509, %vm2510
        %v2512 = vsel %vm2511, %v2504, %v2508
        %v2513 = vand.u32 2147483647, %v2502
        %vm2514 = vcmp.eq.f32.partialorder %v2513, 8.507059e+37
        %v2515 = vand.u32 %v2502, 2147483648
        %v2516 = vor.u32 1.1754944e-38, %v2515
        %v2517 = vsel %vm2514, %v2516, %v2512
        %v2518 = vmul.f32 1.0, %v2517
        %v2519 = vrcp.pop %v2503
        %v2520 = vmul.f32 %v2503, %v2519
        %v2521 = vsub.f32 1.0, %v2520
        %v2522 = vmul.f32 %v2519, %v2521
        %v2523 = vadd.f32 %v2519, %v2522
        %vm2524 = vweird.f32 %v2503
        %vm2525 = vweird.f32 %v2519
        %vm2526 = vmor %vm2524, %vm2525
        %v2527 = vsel %vm2526, %v2519, %v2523
        %v2528 = vand.u32 2147483647, %v2503
        %vm2529 = vcmp.eq.f32.partialorder %v2528, 8.507059e+37
        %v2530 = vand.u32 %v2503, 2147483648
        %v2531 = vor.u32 1.1754944e-38, %v2530
        %v2532 = vsel %vm2529, %v2531, %v2527
        %v2533 = vmul.f32 1.0, %v2532
        %v2534 = vrot.slane %v2424, 4
        %v2535 = vadd.f32 %v2424, %v2534
        %v2536 = vrot.slane %v2535, 2
        %v2537 = vadd.f32 %v2535, %v2536
        %v2538 = vrot.slane %v2537, 1
        %v2539 = vadd.f32 %v2537, %v2538
        %v2540 = vrot.slane %v2425, 4
        %v2541 = vadd.f32 %v2425, %v2540
        %v2542 = vrot.slane %v2541, 2
        %v2543 = vadd.f32 %v2541, %v2542
        %v2544 = vrot.slane %v2543, 1
        %v2545 = vadd.f32 %v2543, %v2544
        %v2546 = vmul.f32 %v2539, %v1772
        %v2547 = vmul.f32 %v2545, %v1772
        %v2548 = vmul.f32 %v1775, %v2546
        %v2549 = vmul.f32 %v1775, %v2547
        %v2550 = vsel %vm1011, %v2370, -inf
        %v2551 = vrot.slane %v2550, 4
        %v2552 = vmax.f32 %v2550, %v2551
        %v2553 = vrot.slane %v2552, 2
        %v2554 = vmax.f32 %v2552, %v2553
        %v2555 = vrot.slane %v2554, 1
        %v2556 = vmax.f32 %v2554, %v2555
        %v2557 = vsel %vm1011, %v2383, -inf
        %v2558 = vrot.slane %v2557, 4
        %v2559 = vmax.f32 %v2557, %v2558
        %v2560 = vrot.slane %v2559, 2
        %v2561 = vmax.f32 %v2559, %v2560
        %v2562 = vrot.slane %v2561, 1
        %v2563 = vmax.f32 %v2561, %v2562
        %v2564 = vmul.f32 %v1793, %v2556
        %v2565 = vmul.f32 %v1793, %v2563
        %v2566 = vadd.f32 %v2548, %v2564
        %v2567 = vadd.f32 %v2549, %v2565
        %v2568 = vadd.f32 %v2566, %v1799
        %v2569 = vadd.f32 %v2567, %v1799
        %v2570 = vxor.u32 %v2568, 2147483648
        %v2571 = vxor.u32 %v2569, 2147483648
        %v2572 = vmul.f32 %v2570, 1.442695
        %v2573 = vpow.pop %v2572
        %v2574 = vmul.f32 %v2571, 1.442695
        %v2575 = vpow.pop %v2574
        %v2576 = vadd.f32 %v2573, 1.0
        %v2577 = vadd.f32 %v2575, 1.0
        %v2578 = vrcp.pop %v2576
        %v2579 = vmul.f32 %v2576, %v2578
        %v2580 = vsub.f32 1.0, %v2579
        %v2581 = vmul.f32 %v2578, %v2580
        %v2582 = vadd.f32 %v2578, %v2581
        %vm2583 = vweird.f32 %v2576
        %vm2584 = vweird.f32 %v2578
        %vm2585 = vmor %vm2583, %vm2584
        %v2586 = vsel %vm2585, %v2578, %v2582
        %v2587 = vand.u32 2147483647, %v2576
        %vm2588 = vcmp.eq.f32.partialorder %v2587, 8.507059e+37
        %v2589 = vand.u32 %v2576, 2147483648
        %v2590 = vor.u32 1.1754944e-38, %v2589
        %v2591 = vsel %vm2588, %v2590, %v2586
        %v2592 = vmul.f32 1.0, %v2591
        %v2593 = vrcp.pop %v2577
        %v2594 = vmul.f32 %v2577, %v2593
        %v2595 = vsub.f32 1.0, %v2594
        %v2596 = vmul.f32 %v2593, %v2595
        %v2597 = vadd.f32 %v2593, %v2596
        %vm2598 = vweird.f32 %v2577
        %vm2599 = vweird.f32 %v2593
        %vm2600 = vmor %vm2598, %vm2599
        %v2601 = vsel %vm2600, %v2593, %v2597
        %v2602 = vand.u32 2147483647, %v2577
        %vm2603 = vcmp.eq.f32.partialorder %v2602, 8.507059e+37
        %v2604 = vand.u32 %v2577, 2147483648
        %v2605 = vor.u32 1.1754944e-38, %v2604
        %v2606 = vsel %vm2603, %v2605, %v2601
        %v2607 = vmul.f32 1.0, %v2606
        %v2608 = vmul.f32 %v2248, %v2518
        %v2609 = vmul.f32 %v2249, %v2533
        %v2610 = vmul.f32 %v2608, %v2592
        %v2611 = vmul.f32 %v2609, %v2607
        %2612 = vmatpush.msra.mxu0 %v841
        %2613 = vmatpush.msra.mxu0 %v840
        %2614 = vmatpush.msra.mxu0 %v839
        %2615 = vmatpush.msra.mxu0 %v838
        %2616 = vmatpush.msra.mxu0 %v837
        %2617 = vmatpush.msra.mxu0 %v836
        %2618 = vmatpush.msra.mxu0 %v835
        %2619 = vmatpush.msra.mxu0 %v834
        %2620 = vmatpush.msra.mxu0 %v833
        %2621 = vmatpush.msra.mxu0 %v832
        %2622 = vmatpush.msra.mxu0 %v831
        %2623 = vmatpush.msra.mxu0 %v830
        %2624 = vmatpush.msra.mxu0 %v829
        %2625 = vmatpush.msra.mxu0 %v828
        %2626 = vmatpush.msra.mxu0 %v827
        %2627 = vmatpush.msra.mxu0 %v826
        %2628 = vmatmul.f32.gmra.mxu0 %v824
        %v2629 = vpop.f32.mrf.mxu0
        %v2630 = vadd.f32 0.0, %v2629
        %2631 = vdwg.mxu0
        %2632 = vmatpush.msra.mxu0 %v857
        %2633 = vmatpush.msra.mxu0 %v856
        %2634 = vmatpush.msra.mxu0 %v855
        %2635 = vmatpush.msra.mxu0 %v854
        %2636 = vmatpush.msra.mxu0 %v853
        %2637 = vmatpush.msra.mxu0 %v852
        %2638 = vmatpush.msra.mxu0 %v851
        %2639 = vmatpush.msra.mxu0 %v850
        %2640 = vmatpush.msra.mxu0 %v849
        %2641 = vmatpush.msra.mxu0 %v848
        %2642 = vmatpush.msra.mxu0 %v847
        %2643 = vmatpush.msra.mxu0 %v846
        %2644 = vmatpush.msra.mxu0 %v845
        %2645 = vmatpush.msra.mxu0 %v844
        %2646 = vmatpush.msra.mxu0 %v843
        %2647 = vmatpush.msra.mxu0 %v842
        %2648 = vmatmul.f32.gmra.mxu0 %v825
        %v2649 = vpop.f32.mrf.mxu0
        %v2650 = vadd.f32 %v2630, %v2649
        %2651 = vdwg.mxu0
        %2652 = vmatpush.msra.mxu0 %v913
        %2653 = vmatpush.msra.mxu0 %v912
        %2654 = vmatpush.msra.mxu0 %v911
        %2655 = vmatpush.msra.mxu0 %v910
        %2656 = vmatpush.msra.mxu0 %v909
        %2657 = vmatpush.msra.mxu0 %v908
        %2658 = vmatpush.msra.mxu0 %v907
        %2659 = vmatpush.msra.mxu0 %v906
        %2660 = vmatpush.msra.mxu0 %v905
        %2661 = vmatpush.msra.mxu0 %v904
        %2662 = vmatpush.msra.mxu0 %v903
        %2663 = vmatpush.msra.mxu0 %v902
        %2664 = vmatpush.msra.mxu0 %v901
        %2665 = vmatpush.msra.mxu0 %v900
        %2666 = vmatpush.msra.mxu0 %v899
        %2667 = vmatpush.msra.mxu0 %v898
        %2668 = vmatmul.f32.gmra.mxu0 %v824
        %v2669 = vpop.f32.mrf.mxu0
        %v2670 = vadd.f32 0.0, %v2669
        %2671 = vdwg.mxu0
        %2672 = vmatpush.msra.mxu0 %v929
        %2673 = vmatpush.msra.mxu0 %v928
        %2674 = vmatpush.msra.mxu0 %v927
        %2675 = vmatpush.msra.mxu0 %v926
        %2676 = vmatpush.msra.mxu0 %v925
        %2677 = vmatpush.msra.mxu0 %v924
        %2678 = vmatpush.msra.mxu0 %v923
        %2679 = vmatpush.msra.mxu0 %v922
        %2680 = vmatpush.msra.mxu0 %v921
        %2681 = vmatpush.msra.mxu0 %v920
        %2682 = vmatpush.msra.mxu0 %v919
        %2683 = vmatpush.msra.mxu0 %v918
        %2684 = vmatpush.msra.mxu0 %v917
        %2685 = vmatpush.msra.mxu0 %v916
        %2686 = vmatpush.msra.mxu0 %v915
        %2687 = vmatpush.msra.mxu0 %v914
        %2688 = vmatmul.f32.gmra.mxu0 %v825
        %v2689 = vpop.f32.mrf.mxu0
        %v2690 = vadd.f32 %v2670, %v2689
        %2691 = vdwg.mxu0
        %v2693 = vsel %vm1011, %v2650, 0
        %2695 = vmatpush.msra.mxu0 0.0
        %2696 = vmatpush.msra.mxu0 0.0
        %2697 = vmatpush.msra.mxu0 0.0
        %2698 = vmatpush.msra.mxu0 0.0
        %2699 = vmatpush.msra.mxu0 0.0
        %2700 = vmatpush.msra.mxu0 0.0
        %2701 = vmatpush.msra.mxu0 0.0
        %2702 = vmatpush.msra.mxu0 0.0
        %2703 = vmatpush.msra.mxu0 0.0
        %2704 = vmatpush.msra.mxu0 0.0
        %2705 = vmatpush.msra.mxu0 0.0
        %2706 = vmatpush.msra.mxu0 0.0
        %2707 = vmatpush.msra.mxu0 0.0
        %2708 = vmatpush.msra.mxu0 0.0
        %2709 = vmatpush.msra.mxu0 0.0
        %2710 = vmatpush.msra.mxu0 %v2693
        %2711 = vmatmul.f32.gmra.mxu0 %v1000
        %v2712 = vpop.f32.mrf.mxu0
        %v2713 = vadd.f32 %v981, %v2712
        %2714 = vmatmul.f32.gmra.mxu0 %v1003
        %v2715 = vpop.f32.mrf.mxu0
        %v2716 = vadd.f32 %v986, %v2715
        %2717 = vmatmul.f32.gmra.mxu0 %v1006
        %v2718 = vpop.f32.mrf.mxu0
        %v2719 = vadd.f32 %v991, %v2718
        %2720 = vmatmul.f32.gmra.mxu0 %v1009
        %v2721 = vpop.f32.mrf.mxu0
        %v2722 = vadd.f32 %v996, %v2721
        %2723 = vdwg.mxu0
        %v2725 = vsel %vm1011, %v2690, 0
        %2727 = vmatpush.msra.mxu0 0.0
        %2728 = vmatpush.msra.mxu0 0.0
        %2729 = vmatpush.msra.mxu0 0.0
        %2730 = vmatpush.msra.mxu0 0.0
        %2731 = vmatpush.msra.mxu0 0.0
        %2732 = vmatpush.msra.mxu0 0.0
        %2733 = vmatpush.msra.mxu0 0.0
        %2734 = vmatpush.msra.mxu0 0.0
        %2735 = vmatpush.msra.mxu0 0.0
        %2736 = vmatpush.msra.mxu0 0.0
        %2737 = vmatpush.msra.mxu0 0.0
        %2738 = vmatpush.msra.mxu0 0.0
        %2739 = vmatpush.msra.mxu0 0.0
        %2740 = vmatpush.msra.mxu0 0.0
        %2741 = vmatpush.msra.mxu0 0.0
        %2742 = vmatpush.msra.mxu0 %v2725
        %2743 = vmatmul.f32.gmra.mxu0 %v1000
        %v2744 = vpop.f32.mrf.mxu0
        %v2745 = vadd.f32 %v981, %v2744
        %2746 = vmatmul.f32.gmra.mxu0 %v1003
        %v2747 = vpop.f32.mrf.mxu0
        %v2748 = vadd.f32 %v986, %v2747
        %2749 = vmatmul.f32.gmra.mxu0 %v1006
        %v2750 = vpop.f32.mrf.mxu0
        %v2751 = vadd.f32 %v991, %v2750
        %2752 = vmatmul.f32.gmra.mxu0 %v1009
        %v2753 = vpop.f32.mrf.mxu0
        %v2754 = vadd.f32 %v996, %v2753
        %2755 = vdwg.mxu0
        %2756 = vmatpush.msra.mxu0 0.0
        %2757 = vmatpush.msra.mxu0 0.0
        %2758 = vmatpush.msra.mxu0 0.0
        %2759 = vmatpush.msra.mxu0 0.0
        %2760 = vmatpush.msra.mxu0 0.0
        %2761 = vmatpush.msra.mxu0 0.0
        %2762 = vmatpush.msra.mxu0 0.0
        %2763 = vmatpush.msra.mxu0 0.0
        %2764 = vmatpush.msra.mxu0 0.0
        %2765 = vmatpush.msra.mxu0 0.0
        %2766 = vmatpush.msra.mxu0 0.0
        %2767 = vmatpush.msra.mxu0 0.0
        %2768 = vmatpush.msra.mxu0 %v2722
        %2769 = vmatpush.msra.mxu0 %v2719
        %2770 = vmatpush.msra.mxu0 %v2716
        %2771 = vmatpush.msra.mxu0 %v2713
        %2772 = vmatmul.f32.gmra.mxu0 %v1085
        %v2773 = vpop.f32.mrf.mxu0
        %v2774 = vadd.f32 %v1081, %v2773
        %2775 = vdwg.mxu0
        %v2776 = vxor.u32 %v2774, 2147483648
        %v2777 = vmul.f32 %v2776, 1.442695
        %v2778 = vpow.pop %v2777
        %v2779 = vadd.f32 %v2778, 1.0
        %v2780 = vrcp.pop %v2779
        %v2781 = vmul.f32 %v2779, %v2780
        %v2782 = vsub.f32 1.0, %v2781
        %v2783 = vmul.f32 %v2780, %v2782
        %v2784 = vadd.f32 %v2780, %v2783
        %vm2785 = vweird.f32 %v2779
        %vm2786 = vweird.f32 %v2780
        %vm2787 = vmor %vm2785, %vm2786
        %v2788 = vsel %vm2787, %v2780, %v2784
        %v2789 = vand.u32 2147483647, %v2779
        %vm2790 = vcmp.eq.f32.partialorder %v2789, 8.507059e+37
        %v2791 = vand.u32 %v2779, 2147483648
        %v2792 = vor.u32 1.1754944e-38, %v2791
        %v2793 = vsel %vm2790, %v2792, %v2788
        %v2794 = vmul.f32 1.0, %v2793
        %2795 = vmatpush.msra.mxu0 0.0
        %2796 = vmatpush.msra.mxu0 0.0
        %2797 = vmatpush.msra.mxu0 0.0
        %2798 = vmatpush.msra.mxu0 0.0
        %2799 = vmatpush.msra.mxu0 0.0
        %2800 = vmatpush.msra.mxu0 0.0
        %2801 = vmatpush.msra.mxu0 0.0
        %2802 = vmatpush.msra.mxu0 0.0
        %2803 = vmatpush.msra.mxu0 0.0
        %2804 = vmatpush.msra.mxu0 0.0
        %2805 = vmatpush.msra.mxu0 0.0
        %2806 = vmatpush.msra.mxu0 0.0
        %2807 = vmatpush.msra.mxu0 %v2754
        %2808 = vmatpush.msra.mxu0 %v2751
        %2809 = vmatpush.msra.mxu0 %v2748
        %2810 = vmatpush.msra.mxu0 %v2745
        %2811 = vmatmul.f32.gmra.mxu0 %v1134
        %v2812 = vpop.f32.mrf.mxu0
        %v2813 = vadd.f32 %v1131, %v2812
        %2814 = vdwg.mxu0
        %v2815 = vxor.u32 %v2813, 2147483648
        %v2816 = vmul.f32 %v2815, 1.442695
        %v2817 = vpow.pop %v2816
        %v2818 = vadd.f32 %v2817, 1.0
        %v2819 = vrcp.pop %v2818
        %v2820 = vmul.f32 %v2818, %v2819
        %v2821 = vsub.f32 1.0, %v2820
        %v2822 = vmul.f32 %v2819, %v2821
        %v2823 = vadd.f32 %v2819, %v2822
        %vm2824 = vweird.f32 %v2818
        %vm2825 = vweird.f32 %v2819
        %vm2826 = vmor %vm2824, %vm2825
        %v2827 = vsel %vm2826, %v2819, %v2823
        %v2828 = vand.u32 2147483647, %v2818
        %vm2829 = vcmp.eq.f32.partialorder %v2828, 8.507059e+37
        %v2830 = vand.u32 %v2818, 2147483648
        %v2831 = vor.u32 1.1754944e-38, %v2830
        %v2832 = vsel %vm2829, %v2831, %v2827
        %v2833 = vmul.f32 1.0, %v2832
        %v2835 = vsel %vm1179, %v2794, 0
        %2837 = vmatpush.msra.mxu0 0.0
        %2838 = vmatpush.msra.mxu0 0.0
        %2839 = vmatpush.msra.mxu0 0.0
        %2840 = vmatpush.msra.mxu0 0.0
        %2841 = vmatpush.msra.mxu0 0.0
        %2842 = vmatpush.msra.mxu0 0.0
        %2843 = vmatpush.msra.mxu0 0.0
        %2844 = vmatpush.msra.mxu0 0.0
        %2845 = vmatpush.msra.mxu0 0.0
        %2846 = vmatpush.msra.mxu0 0.0
        %2847 = vmatpush.msra.mxu0 0.0
        %2848 = vmatpush.msra.mxu0 0.0
        %2849 = vmatpush.msra.mxu0 0.0
        %2850 = vmatpush.msra.mxu0 0.0
        %2851 = vmatpush.msra.mxu0 %v1177
        %2852 = vmatpush.msra.mxu0 %v1175
        %2853 = vmatmul.f32.gmra.mxu0 %v2835
        %v2854 = vpop.f32.mrf.mxu0
        %v2855 = vadd.f32 0.0, %v2854
        %2856 = vdwg.mxu0
        %2857 = vmatpush.msra.mxu0 0.0
        %2858 = vmatpush.msra.mxu0 0.0
        %2859 = vmatpush.msra.mxu0 0.0
        %2860 = vmatpush.msra.mxu0 0.0
        %2861 = vmatpush.msra.mxu0 0.0
        %2862 = vmatpush.msra.mxu0 0.0
        %2863 = vmatpush.msra.mxu0 0.0
        %2864 = vmatpush.msra.mxu0 0.0
        %2865 = vmatpush.msra.mxu0 0.0
        %2866 = vmatpush.msra.mxu0 0.0
        %2867 = vmatpush.msra.mxu0 0.0
        %2868 = vmatpush.msra.mxu0 0.0
        %2869 = vmatpush.msra.mxu0 0.0
        %2870 = vmatpush.msra.mxu0 0.0
        %2871 = vmatpush.msra.mxu0 %v1178
        %2872 = vmatpush.msra.mxu0 %v1176
        %2873 = vmatmul.f32.gmra.mxu0 %v2835
        %v2874 = vpop.f32.mrf.mxu0
        %v2875 = vadd.f32 0.0, %v2874
        %2876 = vdwg.mxu0
        %v2878 = vsel %vm1179, %v2833, 0
        %2880 = vmatpush.msra.mxu0 0.0
        %2881 = vmatpush.msra.mxu0 0.0
        %2882 = vmatpush.msra.mxu0 0.0
        %2883 = vmatpush.msra.mxu0 0.0
        %2884 = vmatpush.msra.mxu0 0.0
        %2885 = vmatpush.msra.mxu0 0.0
        %2886 = vmatpush.msra.mxu0 0.0
        %2887 = vmatpush.msra.mxu0 0.0
        %2888 = vmatpush.msra.mxu0 0.0
        %2889 = vmatpush.msra.mxu0 0.0
        %2890 = vmatpush.msra.mxu0 0.0
        %2891 = vmatpush.msra.mxu0 0.0
        %2892 = vmatpush.msra.mxu0 0.0
        %2893 = vmatpush.msra.mxu0 0.0
        %2894 = vmatpush.msra.mxu0 %v1225
        %2895 = vmatpush.msra.mxu0 %v1223
        %2896 = vmatmul.f32.gmra.mxu0 %v2878
        %v2897 = vpop.f32.mrf.mxu0
        %v2898 = vadd.f32 0.0, %v2897
        %2899 = vdwg.mxu0
        %2900 = vmatpush.msra.mxu0 0.0
        %2901 = vmatpush.msra.mxu0 0.0
        %2902 = vmatpush.msra.mxu0 0.0
        %2903 = vmatpush.msra.mxu0 0.0
        %2904 = vmatpush.msra.mxu0 0.0
        %2905 = vmatpush.msra.mxu0 0.0
        %2906 = vmatpush.msra.mxu0 0.0
        %2907 = vmatpush.msra.mxu0 0.0
        %2908 = vmatpush.msra.mxu0 0.0
        %2909 = vmatpush.msra.mxu0 0.0
        %2910 = vmatpush.msra.mxu0 0.0
        %2911 = vmatpush.msra.mxu0 0.0
        %2912 = vmatpush.msra.mxu0 0.0
        %2913 = vmatpush.msra.mxu0 0.0
        %2914 = vmatpush.msra.mxu0 %v1226
        %2915 = vmatpush.msra.mxu0 %v1224
        %2916 = vmatmul.f32.gmra.mxu0 %v2878
        %v2917 = vpop.f32.mrf.mxu0
        %v2918 = vadd.f32 0.0, %v2917
        %2919 = vdwg.mxu0
        %v2920 = vmul.f32 %v2855, %v2898
        %v2921 = vmul.f32 %v2875, %v2918
        %v2922 = vmul.f32 %v2920, %v824
        %v2923 = vmul.f32 %v2921, %v825
        %v2924 = vsel %vm1011, %v2922, 0.0
        %v2925 = vsel %vm1011, %v2923, 0.0
        %v2926 = vadd.f32 %v2924, %v2925
        %2927 = vadd.xlane.f32.xlu0 %v2926
        %v2928 = vpop.xlane.xlu0 %2927
        %v2929 = vmul.f32 %v2928, %v1288
        %v2931 = vsel %vm1011, %v2929, 0
        %2933 = vmatpush.msra.mxu0 0.0
        %2934 = vmatpush.msra.mxu0 0.0
        %2935 = vmatpush.msra.mxu0 0.0
        %2936 = vmatpush.msra.mxu0 0.0
        %2937 = vmatpush.msra.mxu0 0.0
        %2938 = vmatpush.msra.mxu0 0.0
        %2939 = vmatpush.msra.mxu0 0.0
        %2940 = vmatpush.msra.mxu0 0.0
        %2941 = vmatpush.msra.mxu0 0.0
        %2942 = vmatpush.msra.mxu0 0.0
        %2943 = vmatpush.msra.mxu0 0.0
        %2944 = vmatpush.msra.mxu0 0.0
        %2945 = vmatpush.msra.mxu0 0.0
        %2946 = vmatpush.msra.mxu0 0.0
        %2947 = vmatpush.msra.mxu0 0.0
        %2948 = vmatpush.msra.mxu0 %v2931
        %2949 = vmatmul.f32.gmra.mxu0 %v1291
        %v2950 = vpop.f32.mrf.mxu0
        %v2951 = vadd.f32 0.0, %v2950
        %2952 = vdwg.mxu0
        %2954 = vset.pattern.permute.xlu0 0
        %2955 = vperm.xlu0 %2954, %v2951
        %v2956 = vpop.permute.xlu0 %2955
        %v2958 = vsub.f32 %v2922, %v2956
        %v2959 = vsub.f32 %v2923, %v2956
        %v2960 = vmul.f32 %v2958, %v2958
        %v2961 = vmul.f32 %v2959, %v2959
        %v2962 = vsel %vm1011, %v2960, 0.0
        %v2963 = vsel %vm1011, %v2961, 0.0
        %v2964 = vadd.f32 %v2962, %v2963
        %2965 = vadd.xlane.f32.xlu0 %v2964
        %v2966 = vpop.xlane.xlu0 %2965
        %v2967 = vmul.f32 %v2966, %v1288
        %v2969 = vsel %vm1011, %v2967, 0
        %2971 = vmatpush.msra.mxu0 0.0
        %2972 = vmatpush.msra.mxu0 0.0
        %2973 = vmatpush.msra.mxu0 0.0
        %2974 = vmatpush.msra.mxu0 0.0
        %2975 = vmatpush.msra.mxu0 0.0
        %2976 = vmatpush.msra.mxu0 0.0
        %2977 = vmatpush.msra.mxu0 0.0
        %2978 = vmatpush.msra.mxu0 0.0
        %2979 = vmatpush.msra.mxu0 0.0
        %2980 = vmatpush.msra.mxu0 0.0
        %2981 = vmatpush.msra.mxu0 0.0
        %2982 = vmatpush.msra.mxu0 0.0
        %2983 = vmatpush.msra.mxu0 0.0
        %2984 = vmatpush.msra.mxu0 0.0
        %2985 = vmatpush.msra.mxu0 0.0
        %2986 = vmatpush.msra.mxu0 %v2969
        %2987 = vmatmul.f32.gmra.mxu0 %v1291
        %v2988 = vpop.f32.mrf.mxu0
        %v2989 = vadd.f32 1e-05, %v2988
        %2990 = vdwg.mxu0
        %v2991 = vrsqrt.pop %v2989
        %v2992 = vmul.f32 %v2991, %v2989
        %v2993 = vmul.f32 %v2992, %v2991
        %v2994 = vmul.f32 0.5, %v2993
        %v2995 = vsub.f32 1.5, %v2994
        %v2996 = vmul.f32 %v2991, %v2995
        %vm2997 = vweird.f32 %v2989
        %vm2998 = vweird.f32 %v2991
        %vm2999 = vmor %vm2997, %vm2998
        %v3000 = vsel %vm2999, %v2991, %v2996
        %3002 = vset.pattern.permute.xlu0 0
        %3003 = vperm.xlu0 %3002, %v3000
        %v3004 = vpop.permute.xlu0 %3003
        %v3006 = vmul.f32 %v2958, %v3004
        %v3007 = vmul.f32 %v2959, %v3004
        %v3008 = vmul.f32 %v3006, %v1374
        %v3009 = vmul.f32 %v3007, %v1374
        %v3010 = vadd.f32 %v3008, %v1381
        %v3011 = vadd.f32 %v3009, %v1381
        %3012 = vrot.lane.b32.xlu0 %v3010, 17
        %v3013 = vpop.permute.xlu0 %3012
        %3014 = vrot.lane.b32.xlu0 %v3011, 17
        %v3015 = vpop.permute.xlu0 %3014
        %v3016 = vsel %vm1392, %v3013, %v3015
        %v3017 = vsel %vm1392, %v3015, %v3013
        %v3018 = vmul.f32 %v3017, %v1397
        %v3019 = vmul.f32 %v3016, %v1398
        %3020 = vrot.lane.b32.xlu0 %v3010, 16
        %v3021 = vpop.permute.xlu0 %3020
        %3022 = vrot.lane.b32.xlu0 %v3011, 16
        %v3023 = vpop.permute.xlu0 %3022
        %v3024 = vsel %vm1407, %v3021, %v3023
        %v3025 = vsel %vm1407, %v3023, %v3021
        %v3026 = vmul.f32 %v3025, %v1413
        %v3027 = vmul.f32 %v3024, %v1414
        %3028 = vrot.lane.b32.xlu0 %v3010, 15
        %v3029 = vpop.permute.xlu0 %3028
        %3030 = vrot.lane.b32.xlu0 %v3011, 15
        %v3031 = vpop.permute.xlu0 %3030
        %v3032 = vsel %vm1423, %v3029, %v3031
        %v3033 = vsel %vm1423, %v3031, %v3029
        %v3034 = vmul.f32 %v3033, %v1429
        %v3035 = vmul.f32 %v3032, %v1430
        %3036 = vrot.lane.b32.xlu0 %v3010, 1
        %v3037 = vpop.permute.xlu0 %3036
        %3038 = vrot.lane.b32.xlu0 %v3011, 1
        %v3039 = vpop.permute.xlu0 %3038
        %v3040 = vsel %vm1439, %v3037, %v3039
        %v3041 = vsel %vm1439, %v3039, %v3037
        %v3042 = vmul.f32 %v3041, %v1445
        %v3043 = vmul.f32 %v3040, %v1446
        %v3044 = vmul.f32 %v3010, %v1454
        %v3045 = vmul.f32 %v3011, %v1455
        %3046 = vrot.lane.b32.xlu0 %v3010, 127
        %v3047 = vpop.permute.xlu0 %3046
        %3048 = vrot.lane.b32.xlu0 %v3011, 127
        %v3049 = vpop.permute.xlu0 %3048
        %v3050 = vsel %vm1464, %v3047, %v3049
        %v3051 = vsel %vm1464, %v3049, %v3047
        %v3052 = vmul.f32 %v3050, %v1470
        %v3053 = vmul.f32 %v3051, %v1471
        %3054 = vrot.lane.b32.xlu0 %v3010, 113
        %v3055 = vpop.permute.xlu0 %3054
        %3056 = vrot.lane.b32.xlu0 %v3011, 113
        %v3057 = vpop.permute.xlu0 %3056
        %v3058 = vsel %vm1480, %v3055, %v3057
        %v3059 = vsel %vm1480, %v3057, %v3055
        %v3060 = vmul.f32 %v3058, %v1486
        %v3061 = vmul.f32 %v3059, %v1487
        %3062 = vrot.lane.b32.xlu0 %v3010, 112
        %v3063 = vpop.permute.xlu0 %3062
        %3064 = vrot.lane.b32.xlu0 %v3011, 112
        %v3065 = vpop.permute.xlu0 %3064
        %v3066 = vsel %vm1496, %v3063, %v3065
        %v3067 = vsel %vm1496, %v3065, %v3063
        %v3068 = vmul.f32 %v3066, %v1502
        %v3069 = vmul.f32 %v3067, %v1503
        %3070 = vrot.lane.b32.xlu0 %v3010, 111
        %v3071 = vpop.permute.xlu0 %3070
        %3072 = vrot.lane.b32.xlu0 %v3011, 111
        %v3073 = vpop.permute.xlu0 %3072
        %v3074 = vsel %vm1512, %v3071, %v3073
        %v3075 = vsel %vm1512, %v3073, %v3071
        %v3076 = vmul.f32 %v3074, %v1518
        %v3077 = vmul.f32 %v3075, %v1519
        %v3080 = vrot.slane %v3026, 4
        %v3081 = vrot.slane %v3027, 4
        %v3086 = vrot.slane %v3042, 4
        %v3087 = vrot.slane %v3043, 4
        %v3092 = vrot.slane %v3052, 4
        %v3093 = vrot.slane %v3053, 4
        %v3098 = vrot.slane %v3068, 4
        %v3099 = vrot.slane %v3069, 4
        %v3102 = vsel %vm1011, %v3018, %v3080
        %v3103 = vsel %vm1011, %v3019, %v3081
        %v3104 = vsel %vm1011, %v3034, %v3086
        %v3105 = vsel %vm1011, %v3035, %v3087
        %v3106 = vsel %vm1011, %v3044, %v3092
        %v3107 = vsel %vm1011, %v3045, %v3093
        %v3108 = vsel %vm1011, %v3060, %v3098
        %v3109 = vsel %vm1011, %v3061, %v3099
        %v3110 = vpack.c.bf16 %v3104, %v3102
        %v3111 = vpack.c.bf16 %v3105, %v3103
        %v3112 = vpack.c.bf16 %v3108, %v3106
        %v3113 = vpack.c.bf16 %v3109, %v3107
        %v3114 = vpack.c.bf16 %v3076, %v3076
        %v3115 = vpack.c.bf16 %v3077, %v3077
        %v3117 = vsel %vm1572, %v3114, 0
        %v3120 = vsel %vm1572, %v3115, 0
        %3122 = vmatpush.bf16.msra.mxu0 0
        %3123 = vmatpush.bf16.msra.mxu0 0
        %3124 = vmatpush.bf16.msra.mxu0 0
        %3125 = vmatpush.bf16.msra.mxu0 0
        %3126 = vmatpush.bf16.msra.mxu0 0
        %3127 = vmatpush.bf16.msra.mxu0 %v3117
        %3128 = vmatpush.bf16.msra.mxu0 %v3112
        %3129 = vmatpush.bf16.msra.mxu0 %v3110
        %3130 = vmatmul.bf16.gmra.mxu0 %v1570
        %v3131 = vpop.f32.mrf.mxu0
        %v3132 = vadd.f32 %v1566, %v3131
        %v3133 = vpop.f32.mrf.mxu0
        %3134 = vdwg.mxu0
        %3135 = vmatpush.bf16.msra.mxu0 0
        %3136 = vmatpush.bf16.msra.mxu0 0
        %3137 = vmatpush.bf16.msra.mxu0 0
        %3138 = vmatpush.bf16.msra.mxu0 0
        %3139 = vmatpush.bf16.msra.mxu0 0
        %3140 = vmatpush.bf16.msra.mxu0 %v3120
        %3141 = vmatpush.bf16.msra.mxu0 %v3113
        %3142 = vmatpush.bf16.msra.mxu0 %v3111
        %3143 = vmatmul.bf16.gmra.mxu0 %v1570
        %v3144 = vpop.f32.mrf.mxu0
        %v3145 = vadd.f32 %v1566, %v3144
        %v3146 = vpop.f32.mrf.mxu0
        %3147 = vdwg.mxu0
        %v3148 = vsel %vm1011, %v3010, 0.0
        %v3149 = vsel %vm1011, %v3011, 0.0
        %v3150 = vadd.f32 %v3148, %v3149
        %3151 = vadd.xlane.f32.xlu0 %v3150
        %v3152 = vpop.xlane.xlu0 %3151
        %v3153 = vmul.f32 %v3152, %v1288
        %v3154 = vsel %vm1011, %v3153, -inf
        %v3155 = vrot.slane %v3154, 4
        %v3156 = vmax.f32 %v3154, %v3155
        %v3157 = vrot.slane %v3156, 2
        %v3158 = vmax.f32 %v3156, %v3157
        %v3159 = vrot.slane %v3158, 1
        %v3160 = vmax.f32 %v3158, %v3159
        %v3161 = vsub.f32 %v3153, %v3160
        %v3162 = vmul.f32 %v3161, 1.442695
        %v3163 = vpow.pop %v3162
        %v3164 = vsel %vm1011, %v3163, 0.0
        %v3165 = vrot.slane %v3164, 4
        %v3166 = vadd.f32 %v3164, %v3165
        %v3167 = vrot.slane %v3166, 2
        %v3168 = vadd.f32 %v3166, %v3167
        %v3169 = vrot.slane %v3168, 1
        %v3170 = vadd.f32 %v3168, %v3169
        %v3171 = vrcp.pop %v3170
        %v3172 = vmul.f32 %v3170, %v3171
        %v3173 = vsub.f32 1.0, %v3172
        %v3174 = vmul.f32 %v3171, %v3173
        %v3175 = vadd.f32 %v3171, %v3174
        %vm3176 = vweird.f32 %v3170
        %vm3177 = vweird.f32 %v3171
        %vm3178 = vmor %vm3176, %vm3177
        %v3179 = vsel %vm3178, %v3171, %v3175
        %v3180 = vand.u32 2147483647, %v3170
        %vm3181 = vcmp.eq.f32.partialorder %v3180, 8.507059e+37
        %v3182 = vand.u32 %v3170, 2147483648
        %v3183 = vor.u32 1.1754944e-38, %v3182
        %v3184 = vsel %vm3181, %v3183, %v3179
        %v3185 = vmul.f32 %v3163, %v3184
        %v3186 = vsel %vm1011, %v3132, 0.0
        %v3187 = vsel %vm1011, %v3145, 0.0
        %v3188 = vadd.f32 %v3186, %v3187
        %3189 = vadd.xlane.f32.xlu0 %v3188
        %v3190 = vpop.xlane.xlu0 %3189
        %v3191 = vmul.f32 %v3190, %v1288
        %v3192 = vsel %vm1011, %v3191, -inf
        %v3193 = vrot.slane %v3192, 4
        %v3194 = vmax.f32 %v3192, %v3193
        %v3195 = vrot.slane %v3194, 2
        %v3196 = vmax.f32 %v3194, %v3195
        %v3197 = vrot.slane %v3196, 1
        %v3198 = vmax.f32 %v3196, %v3197
        %v3199 = vsub.f32 %v3191, %v3198
        %v3200 = vmul.f32 %v3199, 1.442695
        %v3201 = vpow.pop %v3200
        %v3202 = vsel %vm1011, %v3201, 0.0
        %v3203 = vrot.slane %v3202, 4
        %v3204 = vadd.f32 %v3202, %v3203
        %v3205 = vrot.slane %v3204, 2
        %v3206 = vadd.f32 %v3204, %v3205
        %v3207 = vrot.slane %v3206, 1
        %v3208 = vadd.f32 %v3206, %v3207
        %v3209 = vrcp.pop %v3208
        %v3210 = vmul.f32 %v3208, %v3209
        %v3211 = vsub.f32 1.0, %v3210
        %v3212 = vmul.f32 %v3209, %v3211
        %v3213 = vadd.f32 %v3209, %v3212
        %vm3214 = vweird.f32 %v3208
        %vm3215 = vweird.f32 %v3209
        %vm3216 = vmor %vm3214, %vm3215
        %v3217 = vsel %vm3216, %v3209, %v3213
        %v3218 = vand.u32 2147483647, %v3208
        %vm3219 = vcmp.eq.f32.partialorder %v3218, 8.507059e+37
        %v3220 = vand.u32 %v3208, 2147483648
        %v3221 = vor.u32 1.1754944e-38, %v3220
        %v3222 = vsel %vm3219, %v3221, %v3217
        %v3223 = vmul.f32 %v3201, %v3222
        %v3224 = vmul.f32 %v3185, %v3132
        %v3225 = vmul.f32 %v3185, %v3145
        %v3226 = vsel %vm1011, %v3224, 0.0
        %v3227 = vrot.slane %v3226, 4
        %v3228 = vadd.f32 %v3226, %v3227
        %v3229 = vrot.slane %v3228, 2
        %v3230 = vadd.f32 %v3228, %v3229
        %v3231 = vrot.slane %v3230, 1
        %v3232 = vadd.f32 %v3230, %v3231
        %v3233 = vsel %vm1011, %v3225, 0.0
        %v3234 = vrot.slane %v3233, 4
        %v3235 = vadd.f32 %v3233, %v3234
        %v3236 = vrot.slane %v3235, 2
        %v3237 = vadd.f32 %v3235, %v3236
        %v3238 = vrot.slane %v3237, 1
        %v3239 = vadd.f32 %v3237, %v3238
        %v3240 = vmul.f32 %v3223, %v3010
        %v3241 = vmul.f32 %v3223, %v3011
        %v3242 = vsel %vm1011, %v3240, 0.0
        %v3243 = vrot.slane %v3242, 4
        %v3244 = vadd.f32 %v3242, %v3243
        %v3245 = vrot.slane %v3244, 2
        %v3246 = vadd.f32 %v3244, %v3245
        %v3247 = vrot.slane %v3246, 1
        %v3248 = vadd.f32 %v3246, %v3247
        %v3249 = vsel %vm1011, %v3241, 0.0
        %v3250 = vrot.slane %v3249, 4
        %v3251 = vadd.f32 %v3249, %v3250
        %v3252 = vrot.slane %v3251, 2
        %v3253 = vadd.f32 %v3251, %v3252
        %v3254 = vrot.slane %v3253, 1
        %v3255 = vadd.f32 %v3253, %v3254
        %v3256 = vadd.f32 %v3232, %v3248
        %v3257 = vadd.f32 %v3239, %v3255
        %v3258 = vxor.u32 %v3256, 2147483648
        %v3259 = vxor.u32 %v3257, 2147483648
        %v3260 = vmul.f32 %v3258, 1.442695
        %v3261 = vpow.pop %v3260
        %v3262 = vmul.f32 %v3259, 1.442695
        %v3263 = vpow.pop %v3262
        %v3264 = vadd.f32 %v3261, 1.0
        %v3265 = vadd.f32 %v3263, 1.0
        %v3266 = vrcp.pop %v3264
        %v3267 = vmul.f32 %v3264, %v3266
        %v3268 = vsub.f32 1.0, %v3267
        %v3269 = vmul.f32 %v3266, %v3268
        %v3270 = vadd.f32 %v3266, %v3269
        %vm3271 = vweird.f32 %v3264
        %vm3272 = vweird.f32 %v3266
        %vm3273 = vmor %vm3271, %vm3272
        %v3274 = vsel %vm3273, %v3266, %v3270
        %v3275 = vand.u32 2147483647, %v3264
        %vm3276 = vcmp.eq.f32.partialorder %v3275, 8.507059e+37
        %v3277 = vand.u32 %v3264, 2147483648
        %v3278 = vor.u32 1.1754944e-38, %v3277
        %v3279 = vsel %vm3276, %v3278, %v3274
        %v3280 = vmul.f32 1.0, %v3279
        %v3281 = vrcp.pop %v3265
        %v3282 = vmul.f32 %v3265, %v3281
        %v3283 = vsub.f32 1.0, %v3282
        %v3284 = vmul.f32 %v3281, %v3283
        %v3285 = vadd.f32 %v3281, %v3284
        %vm3286 = vweird.f32 %v3265
        %vm3287 = vweird.f32 %v3281
        %vm3288 = vmor %vm3286, %vm3287
        %v3289 = vsel %vm3288, %v3281, %v3285
        %v3290 = vand.u32 2147483647, %v3265
        %vm3291 = vcmp.eq.f32.partialorder %v3290, 8.507059e+37
        %v3292 = vand.u32 %v3265, 2147483648
        %v3293 = vor.u32 1.1754944e-38, %v3292
        %v3294 = vsel %vm3291, %v3293, %v3289
        %v3295 = vmul.f32 1.0, %v3294
        %v3296 = vrot.slane %v3186, 4
        %v3297 = vadd.f32 %v3186, %v3296
        %v3298 = vrot.slane %v3297, 2
        %v3299 = vadd.f32 %v3297, %v3298
        %v3300 = vrot.slane %v3299, 1
        %v3301 = vadd.f32 %v3299, %v3300
        %v3302 = vrot.slane %v3187, 4
        %v3303 = vadd.f32 %v3187, %v3302
        %v3304 = vrot.slane %v3303, 2
        %v3305 = vadd.f32 %v3303, %v3304
        %v3306 = vrot.slane %v3305, 1
        %v3307 = vadd.f32 %v3305, %v3306
        %v3308 = vmul.f32 %v3301, %v1772
        %v3309 = vmul.f32 %v3307, %v1772
        %v3310 = vmul.f32 %v1775, %v3308
        %v3311 = vmul.f32 %v1775, %v3309
        %v3312 = vsel %vm1011, %v3132, -inf
        %v3313 = vrot.slane %v3312, 4
        %v3314 = vmax.f32 %v3312, %v3313
        %v3315 = vrot.slane %v3314, 2
        %v3316 = vmax.f32 %v3314, %v3315
        %v3317 = vrot.slane %v3316, 1
        %v3318 = vmax.f32 %v3316, %v3317
        %v3319 = vsel %vm1011, %v3145, -inf
        %v3320 = vrot.slane %v3319, 4
        %v3321 = vmax.f32 %v3319, %v3320
        %v3322 = vrot.slane %v3321, 2
        %v3323 = vmax.f32 %v3321, %v3322
        %v3324 = vrot.slane %v3323, 1
        %v3325 = vmax.f32 %v3323, %v3324
        %v3326 = vmul.f32 %v1793, %v3318
        %v3327 = vmul.f32 %v1793, %v3325
        %v3328 = vadd.f32 %v3310, %v3326
        %v3329 = vadd.f32 %v3311, %v3327
        %v3330 = vadd.f32 %v3328, %v1799
        %v3331 = vadd.f32 %v3329, %v1799
        %v3332 = vxor.u32 %v3330, 2147483648
        %v3333 = vxor.u32 %v3331, 2147483648
        %v3334 = vmul.f32 %v3332, 1.442695
        %v3335 = vpow.pop %v3334
        %v3336 = vmul.f32 %v3333, 1.442695
        %v3337 = vpow.pop %v3336
        %v3338 = vadd.f32 %v3335, 1.0
        %v3339 = vadd.f32 %v3337, 1.0
        %v3340 = vrcp.pop %v3338
        %v3341 = vmul.f32 %v3338, %v3340
        %v3342 = vsub.f32 1.0, %v3341
        %v3343 = vmul.f32 %v3340, %v3342
        %v3344 = vadd.f32 %v3340, %v3343
        %vm3345 = vweird.f32 %v3338
        %vm3346 = vweird.f32 %v3340
        %vm3347 = vmor %vm3345, %vm3346
        %v3348 = vsel %vm3347, %v3340, %v3344
        %v3349 = vand.u32 2147483647, %v3338
        %vm3350 = vcmp.eq.f32.partialorder %v3349, 8.507059e+37
        %v3351 = vand.u32 %v3338, 2147483648
        %v3352 = vor.u32 1.1754944e-38, %v3351
        %v3353 = vsel %vm3350, %v3352, %v3348
        %v3354 = vmul.f32 1.0, %v3353
        %v3355 = vrcp.pop %v3339
        %v3356 = vmul.f32 %v3339, %v3355
        %v3357 = vsub.f32 1.0, %v3356
        %v3358 = vmul.f32 %v3355, %v3357
        %v3359 = vadd.f32 %v3355, %v3358
        %vm3360 = vweird.f32 %v3339
        %vm3361 = vweird.f32 %v3355
        %vm3362 = vmor %vm3360, %vm3361
        %v3363 = vsel %vm3362, %v3355, %v3359
        %v3364 = vand.u32 2147483647, %v3339
        %vm3365 = vcmp.eq.f32.partialorder %v3364, 8.507059e+37
        %v3366 = vand.u32 %v3339, 2147483648
        %v3367 = vor.u32 1.1754944e-38, %v3366
        %v3368 = vsel %vm3365, %v3367, %v3363
        %v3369 = vmul.f32 1.0, %v3368
        %v3370 = vmul.f32 %v3010, %v3280
        %v3371 = vmul.f32 %v3011, %v3295
        %v3372 = vmul.f32 %v3370, %v3354
        %v3373 = vmul.f32 %v3371, %v3369
        %v3376 = vrot.slane %v824, 4
        %v3377 = vrot.slane %v825, 4
        %3380 = vmatpush.msra.mxu0 %v841
        %3381 = vmatpush.msra.mxu0 %v840
        %3382 = vmatpush.msra.mxu0 %v839
        %3383 = vmatpush.msra.mxu0 %v838
        %3384 = vmatpush.msra.mxu0 %v837
        %3385 = vmatpush.msra.mxu0 %v836
        %3386 = vmatpush.msra.mxu0 %v835
        %3387 = vmatpush.msra.mxu0 %v834
        %3388 = vmatpush.msra.mxu0 %v833
        %3389 = vmatpush.msra.mxu0 %v832
        %3390 = vmatpush.msra.mxu0 %v831
        %3391 = vmatpush.msra.mxu0 %v830
        %3392 = vmatpush.msra.mxu0 %v829
        %3393 = vmatpush.msra.mxu0 %v828
        %3394 = vmatpush.msra.mxu0 %v827
        %3395 = vmatpush.msra.mxu0 %v826
        %3396 = vmatmul.f32.gmra.mxu0 %v3376
        %v3397 = vpop.f32.mrf.mxu0
        %v3398 = vadd.f32 0.0, %v3397
        %3399 = vdwg.mxu0
        %3400 = vmatpush.msra.mxu0 %v857
        %3401 = vmatpush.msra.mxu0 %v856
        %3402 = vmatpush.msra.mxu0 %v855
        %3403 = vmatpush.msra.mxu0 %v854
        %3404 = vmatpush.msra.mxu0 %v853
        %3405 = vmatpush.msra.mxu0 %v852
        %3406 = vmatpush.msra.mxu0 %v851
        %3407 = vmatpush.msra.mxu0 %v850
        %3408 = vmatpush.msra.mxu0 %v849
        %3409 = vmatpush.msra.mxu0 %v848
        %3410 = vmatpush.msra.mxu0 %v847
        %3411 = vmatpush.msra.mxu0 %v846
        %3412 = vmatpush.msra.mxu0 %v845
        %3413 = vmatpush.msra.mxu0 %v844
        %3414 = vmatpush.msra.mxu0 %v843
        %3415 = vmatpush.msra.mxu0 %v842
        %3416 = vmatmul.f32.gmra.mxu0 %v3377
        %v3417 = vpop.f32.mrf.mxu0
        %v3418 = vadd.f32 %v3398, %v3417
        %3419 = vdwg.mxu0
        %3420 = vmatpush.msra.mxu0 %v913
        %3421 = vmatpush.msra.mxu0 %v912
        %3422 = vmatpush.msra.mxu0 %v911
        %3423 = vmatpush.msra.mxu0 %v910
        %3424 = vmatpush.msra.mxu0 %v909
        %3425 = vmatpush.msra.mxu0 %v908
        %3426 = vmatpush.msra.mxu0 %v907
        %3427 = vmatpush.msra.mxu0 %v906
        %3428 = vmatpush.msra.mxu0 %v905
        %3429 = vmatpush.msra.mxu0 %v904
        %3430 = vmatpush.msra.mxu0 %v903
        %3431 = vmatpush.msra.mxu0 %v902
        %3432 = vmatpush.msra.mxu0 %v901
        %3433 = vmatpush.msra.mxu0 %v900
        %3434 = vmatpush.msra.mxu0 %v899
        %3435 = vmatpush.msra.mxu0 %v898
        %3436 = vmatmul.f32.gmra.mxu0 %v3376
        %v3437 = vpop.f32.mrf.mxu0
        %v3438 = vadd.f32 0.0, %v3437
        %3439 = vdwg.mxu0
        %3440 = vmatpush.msra.mxu0 %v929
        %3441 = vmatpush.msra.mxu0 %v928
        %3442 = vmatpush.msra.mxu0 %v927
        %3443 = vmatpush.msra.mxu0 %v926
        %3444 = vmatpush.msra.mxu0 %v925
        %3445 = vmatpush.msra.mxu0 %v924
        %3446 = vmatpush.msra.mxu0 %v923
        %3447 = vmatpush.msra.mxu0 %v922
        %3448 = vmatpush.msra.mxu0 %v921
        %3449 = vmatpush.msra.mxu0 %v920
        %3450 = vmatpush.msra.mxu0 %v919
        %3451 = vmatpush.msra.mxu0 %v918
        %3452 = vmatpush.msra.mxu0 %v917
        %3453 = vmatpush.msra.mxu0 %v916
        %3454 = vmatpush.msra.mxu0 %v915
        %3455 = vmatpush.msra.mxu0 %v914
        %3456 = vmatmul.f32.gmra.mxu0 %v3377
        %v3457 = vpop.f32.mrf.mxu0
        %v3458 = vadd.f32 %v3438, %v3457
        %3459 = vdwg.mxu0
        %v3461 = vsel %vm1011, %v3418, 0
        %3463 = vmatpush.msra.mxu0 0.0
        %3464 = vmatpush.msra.mxu0 0.0
        %3465 = vmatpush.msra.mxu0 0.0
        %3466 = vmatpush.msra.mxu0 0.0
        %3467 = vmatpush.msra.mxu0 0.0
        %3468 = vmatpush.msra.mxu0 0.0
        %3469 = vmatpush.msra.mxu0 0.0
        %3470 = vmatpush.msra.mxu0 0.0
        %3471 = vmatpush.msra.mxu0 0.0
        %3472 = vmatpush.msra.mxu0 0.0
        %3473 = vmatpush.msra.mxu0 0.0
        %3474 = vmatpush.msra.mxu0 0.0
        %3475 = vmatpush.msra.mxu0 0.0
        %3476 = vmatpush.msra.mxu0 0.0
        %3477 = vmatpush.msra.mxu0 0.0
        %3478 = vmatpush.msra.mxu0 %v3461
        %3479 = vmatmul.f32.gmra.mxu0 %v1000
        %v3480 = vpop.f32.mrf.mxu0
        %v3481 = vadd.f32 %v981, %v3480
        %3482 = vmatmul.f32.gmra.mxu0 %v1003
        %v3483 = vpop.f32.mrf.mxu0
        %v3484 = vadd.f32 %v986, %v3483
        %3485 = vmatmul.f32.gmra.mxu0 %v1006
        %v3486 = vpop.f32.mrf.mxu0
        %v3487 = vadd.f32 %v991, %v3486
        %3488 = vmatmul.f32.gmra.mxu0 %v1009
        %v3489 = vpop.f32.mrf.mxu0
        %v3490 = vadd.f32 %v996, %v3489
        %3491 = vdwg.mxu0
        %v3493 = vsel %vm1011, %v3458, 0
        %3495 = vmatpush.msra.mxu0 0.0
        %3496 = vmatpush.msra.mxu0 0.0
        %3497 = vmatpush.msra.mxu0 0.0
        %3498 = vmatpush.msra.mxu0 0.0
        %3499 = vmatpush.msra.mxu0 0.0
        %3500 = vmatpush.msra.mxu0 0.0
        %3501 = vmatpush.msra.mxu0 0.0
        %3502 = vmatpush.msra.mxu0 0.0
        %3503 = vmatpush.msra.mxu0 0.0
        %3504 = vmatpush.msra.mxu0 0.0
        %3505 = vmatpush.msra.mxu0 0.0
        %3506 = vmatpush.msra.mxu0 0.0
        %3507 = vmatpush.msra.mxu0 0.0
        %3508 = vmatpush.msra.mxu0 0.0
        %3509 = vmatpush.msra.mxu0 0.0
        %3510 = vmatpush.msra.mxu0 %v3493
        %3511 = vmatmul.f32.gmra.mxu0 %v1000
        %v3512 = vpop.f32.mrf.mxu0
        %v3513 = vadd.f32 %v981, %v3512
        %3514 = vmatmul.f32.gmra.mxu0 %v1003
        %v3515 = vpop.f32.mrf.mxu0
        %v3516 = vadd.f32 %v986, %v3515
        %3517 = vmatmul.f32.gmra.mxu0 %v1006
        %v3518 = vpop.f32.mrf.mxu0
        %v3519 = vadd.f32 %v991, %v3518
        %3520 = vmatmul.f32.gmra.mxu0 %v1009
        %v3521 = vpop.f32.mrf.mxu0
        %v3522 = vadd.f32 %v996, %v3521
        %3523 = vdwg.mxu0
        %3524 = vmatpush.msra.mxu0 0.0
        %3525 = vmatpush.msra.mxu0 0.0
        %3526 = vmatpush.msra.mxu0 0.0
        %3527 = vmatpush.msra.mxu0 0.0
        %3528 = vmatpush.msra.mxu0 0.0
        %3529 = vmatpush.msra.mxu0 0.0
        %3530 = vmatpush.msra.mxu0 0.0
        %3531 = vmatpush.msra.mxu0 0.0
        %3532 = vmatpush.msra.mxu0 0.0
        %3533 = vmatpush.msra.mxu0 0.0
        %3534 = vmatpush.msra.mxu0 0.0
        %3535 = vmatpush.msra.mxu0 0.0
        %3536 = vmatpush.msra.mxu0 %v3490
        %3537 = vmatpush.msra.mxu0 %v3487
        %3538 = vmatpush.msra.mxu0 %v3484
        %3539 = vmatpush.msra.mxu0 %v3481
        %3540 = vmatmul.f32.gmra.mxu0 %v1085
        %v3541 = vpop.f32.mrf.mxu0
        %v3542 = vadd.f32 %v1081, %v3541
        %3543 = vdwg.mxu0
        %v3544 = vxor.u32 %v3542, 2147483648
        %v3545 = vmul.f32 %v3544, 1.442695
        %v3546 = vpow.pop %v3545
        %v3547 = vadd.f32 %v3546, 1.0
        %v3548 = vrcp.pop %v3547
        %v3549 = vmul.f32 %v3547, %v3548
        %v3550 = vsub.f32 1.0, %v3549
        %v3551 = vmul.f32 %v3548, %v3550
        %v3552 = vadd.f32 %v3548, %v3551
        %vm3553 = vweird.f32 %v3547
        %vm3554 = vweird.f32 %v3548
        %vm3555 = vmor %vm3553, %vm3554
        %v3556 = vsel %vm3555, %v3548, %v3552
        %v3557 = vand.u32 2147483647, %v3547
        %vm3558 = vcmp.eq.f32.partialorder %v3557, 8.507059e+37
        %v3559 = vand.u32 %v3547, 2147483648
        %v3560 = vor.u32 1.1754944e-38, %v3559
        %v3561 = vsel %vm3558, %v3560, %v3556
        %v3562 = vmul.f32 1.0, %v3561
        %3563 = vmatpush.msra.mxu0 0.0
        %3564 = vmatpush.msra.mxu0 0.0
        %3565 = vmatpush.msra.mxu0 0.0
        %3566 = vmatpush.msra.mxu0 0.0
        %3567 = vmatpush.msra.mxu0 0.0
        %3568 = vmatpush.msra.mxu0 0.0
        %3569 = vmatpush.msra.mxu0 0.0
        %3570 = vmatpush.msra.mxu0 0.0
        %3571 = vmatpush.msra.mxu0 0.0
        %3572 = vmatpush.msra.mxu0 0.0
        %3573 = vmatpush.msra.mxu0 0.0
        %3574 = vmatpush.msra.mxu0 0.0
        %3575 = vmatpush.msra.mxu0 %v3522
        %3576 = vmatpush.msra.mxu0 %v3519
        %3577 = vmatpush.msra.mxu0 %v3516
        %3578 = vmatpush.msra.mxu0 %v3513
        %3579 = vmatmul.f32.gmra.mxu0 %v1134
        %v3580 = vpop.f32.mrf.mxu0
        %v3581 = vadd.f32 %v1131, %v3580
        %3582 = vdwg.mxu0
        %v3583 = vxor.u32 %v3581, 2147483648
        %v3584 = vmul.f32 %v3583, 1.442695
        %v3585 = vpow.pop %v3584
        %v3586 = vadd.f32 %v3585, 1.0
        %v3587 = vrcp.pop %v3586
        %v3588 = vmul.f32 %v3586, %v3587
        %v3589 = vsub.f32 1.0, %v3588
        %v3590 = vmul.f32 %v3587, %v3589
        %v3591 = vadd.f32 %v3587, %v3590
        %vm3592 = vweird.f32 %v3586
        %vm3593 = vweird.f32 %v3587
        %vm3594 = vmor %vm3592, %vm3593
        %v3595 = vsel %vm3594, %v3587, %v3591
        %v3596 = vand.u32 2147483647, %v3586
        %vm3597 = vcmp.eq.f32.partialorder %v3596, 8.507059e+37
        %v3598 = vand.u32 %v3586, 2147483648
        %v3599 = vor.u32 1.1754944e-38, %v3598
        %v3600 = vsel %vm3597, %v3599, %v3595
        %v3601 = vmul.f32 1.0, %v3600
        %v3603 = vsel %vm1179, %v3562, 0
        %3605 = vmatpush.msra.mxu0 0.0
        %3606 = vmatpush.msra.mxu0 0.0
        %3607 = vmatpush.msra.mxu0 0.0
        %3608 = vmatpush.msra.mxu0 0.0
        %3609 = vmatpush.msra.mxu0 0.0
        %3610 = vmatpush.msra.mxu0 0.0
        %3611 = vmatpush.msra.mxu0 0.0
        %3612 = vmatpush.msra.mxu0 0.0
        %3613 = vmatpush.msra.mxu0 0.0
        %3614 = vmatpush.msra.mxu0 0.0
        %3615 = vmatpush.msra.mxu0 0.0
        %3616 = vmatpush.msra.mxu0 0.0
        %3617 = vmatpush.msra.mxu0 0.0
        %3618 = vmatpush.msra.mxu0 0.0
        %3619 = vmatpush.msra.mxu0 %v1177
        %3620 = vmatpush.msra.mxu0 %v1175
        %3621 = vmatmul.f32.gmra.mxu0 %v3603
        %v3622 = vpop.f32.mrf.mxu0
        %v3623 = vadd.f32 0.0, %v3622
        %3624 = vdwg.mxu0
        %3625 = vmatpush.msra.mxu0 0.0
        %3626 = vmatpush.msra.mxu0 0.0
        %3627 = vmatpush.msra.mxu0 0.0
        %3628 = vmatpush.msra.mxu0 0.0
        %3629 = vmatpush.msra.mxu0 0.0
        %3630 = vmatpush.msra.mxu0 0.0
        %3631 = vmatpush.msra.mxu0 0.0
        %3632 = vmatpush.msra.mxu0 0.0
        %3633 = vmatpush.msra.mxu0 0.0
        %3634 = vmatpush.msra.mxu0 0.0
        %3635 = vmatpush.msra.mxu0 0.0
        %3636 = vmatpush.msra.mxu0 0.0
        %3637 = vmatpush.msra.mxu0 0.0
        %3638 = vmatpush.msra.mxu0 0.0
        %3639 = vmatpush.msra.mxu0 %v1178
        %3640 = vmatpush.msra.mxu0 %v1176
        %3641 = vmatmul.f32.gmra.mxu0 %v3603
        %v3642 = vpop.f32.mrf.mxu0
        %v3643 = vadd.f32 0.0, %v3642
        %3644 = vdwg.mxu0
        %v3646 = vsel %vm1179, %v3601, 0
        %3648 = vmatpush.msra.mxu0 0.0
        %3649 = vmatpush.msra.mxu0 0.0
        %3650 = vmatpush.msra.mxu0 0.0
        %3651 = vmatpush.msra.mxu0 0.0
        %3652 = vmatpush.msra.mxu0 0.0
        %3653 = vmatpush.msra.mxu0 0.0
        %3654 = vmatpush.msra.mxu0 0.0
        %3655 = vmatpush.msra.mxu0 0.0
        %3656 = vmatpush.msra.mxu0 0.0
        %3657 = vmatpush.msra.mxu0 0.0
        %3658 = vmatpush.msra.mxu0 0.0
        %3659 = vmatpush.msra.mxu0 0.0
        %3660 = vmatpush.msra.mxu0 0.0
        %3661 = vmatpush.msra.mxu0 0.0
        %3662 = vmatpush.msra.mxu0 %v1225
        %3663 = vmatpush.msra.mxu0 %v1223
        %3664 = vmatmul.f32.gmra.mxu0 %v3646
        %v3665 = vpop.f32.mrf.mxu0
        %v3666 = vadd.f32 0.0, %v3665
        %3667 = vdwg.mxu0
        %3668 = vmatpush.msra.mxu0 0.0
        %3669 = vmatpush.msra.mxu0 0.0
        %3670 = vmatpush.msra.mxu0 0.0
        %3671 = vmatpush.msra.mxu0 0.0
        %3672 = vmatpush.msra.mxu0 0.0
        %3673 = vmatpush.msra.mxu0 0.0
        %3674 = vmatpush.msra.mxu0 0.0
        %3675 = vmatpush.msra.mxu0 0.0
        %3676 = vmatpush.msra.mxu0 0.0
        %3677 = vmatpush.msra.mxu0 0.0
        %3678 = vmatpush.msra.mxu0 0.0
        %3679 = vmatpush.msra.mxu0 0.0
        %3680 = vmatpush.msra.mxu0 0.0
        %3681 = vmatpush.msra.mxu0 0.0
        %3682 = vmatpush.msra.mxu0 %v1226
        %3683 = vmatpush.msra.mxu0 %v1224
        %3684 = vmatmul.f32.gmra.mxu0 %v3646
        %v3685 = vpop.f32.mrf.mxu0
        %v3686 = vadd.f32 0.0, %v3685
        %3687 = vdwg.mxu0
        %v3688 = vmul.f32 %v3623, %v3666
        %v3689 = vmul.f32 %v3643, %v3686
        %v3690 = vmul.f32 %v3688, %v3376
        %v3691 = vmul.f32 %v3689, %v3377
        %v3692 = vsel %vm1011, %v3690, 0.0
        %v3693 = vsel %vm1011, %v3691, 0.0
        %v3694 = vadd.f32 %v3692, %v3693
        %3695 = vadd.xlane.f32.xlu0 %v3694
        %v3696 = vpop.xlane.xlu0 %3695
        %v3697 = vmul.f32 %v3696, %v1288
        %v3699 = vsel %vm1011, %v3697, 0
        %3701 = vmatpush.msra.mxu0 0.0
        %3702 = vmatpush.msra.mxu0 0.0
        %3703 = vmatpush.msra.mxu0 0.0
        %3704 = vmatpush.msra.mxu0 0.0
        %3705 = vmatpush.msra.mxu0 0.0
        %3706 = vmatpush.msra.mxu0 0.0
        %3707 = vmatpush.msra.mxu0 0.0
        %3708 = vmatpush.msra.mxu0 0.0
        %3709 = vmatpush.msra.mxu0 0.0
        %3710 = vmatpush.msra.mxu0 0.0
        %3711 = vmatpush.msra.mxu0 0.0
        %3712 = vmatpush.msra.mxu0 0.0
        %3713 = vmatpush.msra.mxu0 0.0
        %3714 = vmatpush.msra.mxu0 0.0
        %3715 = vmatpush.msra.mxu0 0.0
        %3716 = vmatpush.msra.mxu0 %v3699
        %3717 = vmatmul.f32.gmra.mxu0 %v1291
        %v3718 = vpop.f32.mrf.mxu0
        %v3719 = vadd.f32 0.0, %v3718
        %3720 = vdwg.mxu0
        %3722 = vset.pattern.permute.xlu0 0
        %3723 = vperm.xlu0 %3722, %v3719
        %v3724 = vpop.permute.xlu0 %3723
        %v3726 = vsub.f32 %v3690, %v3724
        %v3727 = vsub.f32 %v3691, %v3724
        %v3728 = vmul.f32 %v3726, %v3726
        %v3729 = vmul.f32 %v3727, %v3727
        %v3730 = vsel %vm1011, %v3728, 0.0
        %v3731 = vsel %vm1011, %v3729, 0.0
        %v3732 = vadd.f32 %v3730, %v3731
        %3733 = vadd.xlane.f32.xlu0 %v3732
        %v3734 = vpop.xlane.xlu0 %3733
        %v3735 = vmul.f32 %v3734, %v1288
        %v3737 = vsel %vm1011, %v3735, 0
        %3739 = vmatpush.msra.mxu0 0.0
        %3740 = vmatpush.msra.mxu0 0.0
        %3741 = vmatpush.msra.mxu0 0.0
        %3742 = vmatpush.msra.mxu0 0.0
        %3743 = vmatpush.msra.mxu0 0.0
        %3744 = vmatpush.msra.mxu0 0.0
        %3745 = vmatpush.msra.mxu0 0.0
        %3746 = vmatpush.msra.mxu0 0.0
        %3747 = vmatpush.msra.mxu0 0.0
        %3748 = vmatpush.msra.mxu0 0.0
        %3749 = vmatpush.msra.mxu0 0.0
        %3750 = vmatpush.msra.mxu0 0.0
        %3751 = vmatpush.msra.mxu0 0.0
        %3752 = vmatpush.msra.mxu0 0.0
        %3753 = vmatpush.msra.mxu0 0.0
        %3754 = vmatpush.msra.mxu0 %v3737
        %3755 = vmatmul.f32.gmra.mxu0 %v1291
        %v3756 = vpop.f32.mrf.mxu0
        %v3757 = vadd.f32 1e-05, %v3756
        %3758 = vdwg.mxu0
        %v3759 = vrsqrt.pop %v3757
        %v3760 = vmul.f32 %v3759, %v3757
        %v3761 = vmul.f32 %v3760, %v3759
        %v3762 = vmul.f32 0.5, %v3761
        %v3763 = vsub.f32 1.5, %v3762
        %v3764 = vmul.f32 %v3759, %v3763
        %vm3765 = vweird.f32 %v3757
        %vm3766 = vweird.f32 %v3759
        %vm3767 = vmor %vm3765, %vm3766
        %v3768 = vsel %vm3767, %v3759, %v3764
        %3770 = vset.pattern.permute.xlu0 0
        %3771 = vperm.xlu0 %3770, %v3768
        %v3772 = vpop.permute.xlu0 %3771
        %v3774 = vmul.f32 %v3726, %v3772
        %v3775 = vmul.f32 %v3727, %v3772
        %v3776 = vmul.f32 %v3774, %v1374
        %v3777 = vmul.f32 %v3775, %v1374
        %v3778 = vadd.f32 %v3776, %v1381
        %v3779 = vadd.f32 %v3777, %v1381
        %3780 = vrot.lane.b32.xlu0 %v3778, 17
        %v3781 = vpop.permute.xlu0 %3780
        %3782 = vrot.lane.b32.xlu0 %v3779, 17
        %v3783 = vpop.permute.xlu0 %3782
        %v3784 = vsel %vm1392, %v3781, %v3783
        %v3785 = vsel %vm1392, %v3783, %v3781
        %v3786 = vmul.f32 %v3785, %v1397
        %v3787 = vmul.f32 %v3784, %v1398
        %3788 = vrot.lane.b32.xlu0 %v3778, 16
        %v3789 = vpop.permute.xlu0 %3788
        %3790 = vrot.lane.b32.xlu0 %v3779, 16
        %v3791 = vpop.permute.xlu0 %3790
        %v3792 = vsel %vm1407, %v3789, %v3791
        %v3793 = vsel %vm1407, %v3791, %v3789
        %v3794 = vmul.f32 %v3793, %v1413
        %v3795 = vmul.f32 %v3792, %v1414
        %3796 = vrot.lane.b32.xlu0 %v3778, 15
        %v3797 = vpop.permute.xlu0 %3796
        %3798 = vrot.lane.b32.xlu0 %v3779, 15
        %v3799 = vpop.permute.xlu0 %3798
        %v3800 = vsel %vm1423, %v3797, %v3799
        %v3801 = vsel %vm1423, %v3799, %v3797
        %v3802 = vmul.f32 %v3801, %v1429
        %v3803 = vmul.f32 %v3800, %v1430
        %3804 = vrot.lane.b32.xlu0 %v3778, 1
        %v3805 = vpop.permute.xlu0 %3804
        %3806 = vrot.lane.b32.xlu0 %v3779, 1
        %v3807 = vpop.permute.xlu0 %3806
        %v3808 = vsel %vm1439, %v3805, %v3807
        %v3809 = vsel %vm1439, %v3807, %v3805
        %v3810 = vmul.f32 %v3809, %v1445
        %v3811 = vmul.f32 %v3808, %v1446
        %v3812 = vmul.f32 %v3778, %v1454
        %v3813 = vmul.f32 %v3779, %v1455
        %3814 = vrot.lane.b32.xlu0 %v3778, 127
        %v3815 = vpop.permute.xlu0 %3814
        %3816 = vrot.lane.b32.xlu0 %v3779, 127
        %v3817 = vpop.permute.xlu0 %3816
        %v3818 = vsel %vm1464, %v3815, %v3817
        %v3819 = vsel %vm1464, %v3817, %v3815
        %v3820 = vmul.f32 %v3818, %v1470
        %v3821 = vmul.f32 %v3819, %v1471
        %3822 = vrot.lane.b32.xlu0 %v3778, 113
        %v3823 = vpop.permute.xlu0 %3822
        %3824 = vrot.lane.b32.xlu0 %v3779, 113
        %v3825 = vpop.permute.xlu0 %3824
        %v3826 = vsel %vm1480, %v3823, %v3825
        %v3827 = vsel %vm1480, %v3825, %v3823
        %v3828 = vmul.f32 %v3826, %v1486
        %v3829 = vmul.f32 %v3827, %v1487
        %3830 = vrot.lane.b32.xlu0 %v3778, 112
        %v3831 = vpop.permute.xlu0 %3830
        %3832 = vrot.lane.b32.xlu0 %v3779, 112
        %v3833 = vpop.permute.xlu0 %3832
        %v3834 = vsel %vm1496, %v3831, %v3833
        %v3835 = vsel %vm1496, %v3833, %v3831
        %v3836 = vmul.f32 %v3834, %v1502
        %v3837 = vmul.f32 %v3835, %v1503
        %3838 = vrot.lane.b32.xlu0 %v3778, 111
        %v3839 = vpop.permute.xlu0 %3838
        %3840 = vrot.lane.b32.xlu0 %v3779, 111
        %v3841 = vpop.permute.xlu0 %3840
        %v3842 = vsel %vm1512, %v3839, %v3841
        %v3843 = vsel %vm1512, %v3841, %v3839
        %v3844 = vmul.f32 %v3842, %v1518
        %v3845 = vmul.f32 %v3843, %v1519
        %v3848 = vrot.slane %v3794, 4
        %v3849 = vrot.slane %v3795, 4
        %v3854 = vrot.slane %v3810, 4
        %v3855 = vrot.slane %v3811, 4
        %v3860 = vrot.slane %v3820, 4
        %v3861 = vrot.slane %v3821, 4
        %v3866 = vrot.slane %v3836, 4
        %v3867 = vrot.slane %v3837, 4
        %v3870 = vsel %vm1011, %v3786, %v3848
        %v3871 = vsel %vm1011, %v3787, %v3849
        %v3872 = vsel %vm1011, %v3802, %v3854
        %v3873 = vsel %vm1011, %v3803, %v3855
        %v3874 = vsel %vm1011, %v3812, %v3860
        %v3875 = vsel %vm1011, %v3813, %v3861
        %v3876 = vsel %vm1011, %v3828, %v3866
        %v3877 = vsel %vm1011, %v3829, %v3867
        %v3878 = vpack.c.bf16 %v3872, %v3870
        %v3879 = vpack.c.bf16 %v3873, %v3871
        %v3880 = vpack.c.bf16 %v3876, %v3874
        %v3881 = vpack.c.bf16 %v3877, %v3875
        %v3882 = vpack.c.bf16 %v3844, %v3844
        %v3883 = vpack.c.bf16 %v3845, %v3845
        %v3885 = vsel %vm1572, %v3882, 0
        %v3888 = vsel %vm1572, %v3883, 0
        %3890 = vmatpush.bf16.msra.mxu0 0
        %3891 = vmatpush.bf16.msra.mxu0 0
        %3892 = vmatpush.bf16.msra.mxu0 0
        %3893 = vmatpush.bf16.msra.mxu0 0
        %3894 = vmatpush.bf16.msra.mxu0 0
        %3895 = vmatpush.bf16.msra.mxu0 %v3885
        %3896 = vmatpush.bf16.msra.mxu0 %v3880
        %3897 = vmatpush.bf16.msra.mxu0 %v3878
        %3898 = vmatmul.bf16.gmra.mxu0 %v1570
        %v3899 = vpop.f32.mrf.mxu0
        %v3900 = vadd.f32 %v1566, %v3899
        %v3901 = vpop.f32.mrf.mxu0
        %3902 = vdwg.mxu0
        %3903 = vmatpush.bf16.msra.mxu0 0
        %3904 = vmatpush.bf16.msra.mxu0 0
        %3905 = vmatpush.bf16.msra.mxu0 0
        %3906 = vmatpush.bf16.msra.mxu0 0
        %3907 = vmatpush.bf16.msra.mxu0 0
        %3908 = vmatpush.bf16.msra.mxu0 %v3888
        %3909 = vmatpush.bf16.msra.mxu0 %v3881
        %3910 = vmatpush.bf16.msra.mxu0 %v3879
        %3911 = vmatmul.bf16.gmra.mxu0 %v1570
        %v3912 = vpop.f32.mrf.mxu0
        %v3913 = vadd.f32 %v1566, %v3912
        %v3914 = vpop.f32.mrf.mxu0
        %3915 = vdwg.mxu0
        %v3916 = vsel %vm1011, %v3778, 0.0
        %v3917 = vsel %vm1011, %v3779, 0.0
        %v3918 = vadd.f32 %v3916, %v3917
        %3919 = vadd.xlane.f32.xlu0 %v3918
        %v3920 = vpop.xlane.xlu0 %3919
        %v3921 = vmul.f32 %v3920, %v1288
        %v3922 = vsel %vm1011, %v3921, -inf
        %v3923 = vrot.slane %v3922, 4
        %v3924 = vmax.f32 %v3922, %v3923
        %v3925 = vrot.slane %v3924, 2
        %v3926 = vmax.f32 %v3924, %v3925
        %v3927 = vrot.slane %v3926, 1
        %v3928 = vmax.f32 %v3926, %v3927
        %v3929 = vsub.f32 %v3921, %v3928
        %v3930 = vmul.f32 %v3929, 1.442695
        %v3931 = vpow.pop %v3930
        %v3932 = vsel %vm1011, %v3931, 0.0
        %v3933 = vrot.slane %v3932, 4
        %v3934 = vadd.f32 %v3932, %v3933
        %v3935 = vrot.slane %v3934, 2
        %v3936 = vadd.f32 %v3934, %v3935
        %v3937 = vrot.slane %v3936, 1
        %v3938 = vadd.f32 %v3936, %v3937
        %v3939 = vrcp.pop %v3938
        %v3940 = vmul.f32 %v3938, %v3939
        %v3941 = vsub.f32 1.0, %v3940
        %v3942 = vmul.f32 %v3939, %v3941
        %v3943 = vadd.f32 %v3939, %v3942
        %vm3944 = vweird.f32 %v3938
        %vm3945 = vweird.f32 %v3939
        %vm3946 = vmor %vm3944, %vm3945
        %v3947 = vsel %vm3946, %v3939, %v3943
        %v3948 = vand.u32 2147483647, %v3938
        %vm3949 = vcmp.eq.f32.partialorder %v3948, 8.507059e+37
        %v3950 = vand.u32 %v3938, 2147483648
        %v3951 = vor.u32 1.1754944e-38, %v3950
        %v3952 = vsel %vm3949, %v3951, %v3947
        %v3953 = vmul.f32 %v3931, %v3952
        %v3954 = vsel %vm1011, %v3900, 0.0
        %v3955 = vsel %vm1011, %v3913, 0.0
        %v3956 = vadd.f32 %v3954, %v3955
        %3957 = vadd.xlane.f32.xlu0 %v3956
        %v3958 = vpop.xlane.xlu0 %3957
        %v3959 = vmul.f32 %v3958, %v1288
        %v3960 = vsel %vm1011, %v3959, -inf
        %v3961 = vrot.slane %v3960, 4
        %v3962 = vmax.f32 %v3960, %v3961
        %v3963 = vrot.slane %v3962, 2
        %v3964 = vmax.f32 %v3962, %v3963
        %v3965 = vrot.slane %v3964, 1
        %v3966 = vmax.f32 %v3964, %v3965
        %v3967 = vsub.f32 %v3959, %v3966
        %v3968 = vmul.f32 %v3967, 1.442695
        %v3969 = vpow.pop %v3968
        %v3970 = vsel %vm1011, %v3969, 0.0
        %v3971 = vrot.slane %v3970, 4
        %v3972 = vadd.f32 %v3970, %v3971
        %v3973 = vrot.slane %v3972, 2
        %v3974 = vadd.f32 %v3972, %v3973
        %v3975 = vrot.slane %v3974, 1
        %v3976 = vadd.f32 %v3974, %v3975
        %v3977 = vrcp.pop %v3976
        %v3978 = vmul.f32 %v3976, %v3977
        %v3979 = vsub.f32 1.0, %v3978
        %v3980 = vmul.f32 %v3977, %v3979
        %v3981 = vadd.f32 %v3977, %v3980
        %vm3982 = vweird.f32 %v3976
        %vm3983 = vweird.f32 %v3977
        %vm3984 = vmor %vm3982, %vm3983
        %v3985 = vsel %vm3984, %v3977, %v3981
        %v3986 = vand.u32 2147483647, %v3976
        %vm3987 = vcmp.eq.f32.partialorder %v3986, 8.507059e+37
        %v3988 = vand.u32 %v3976, 2147483648
        %v3989 = vor.u32 1.1754944e-38, %v3988
        %v3990 = vsel %vm3987, %v3989, %v3985
        %v3991 = vmul.f32 %v3969, %v3990
        %v3992 = vmul.f32 %v3953, %v3900
        %v3993 = vmul.f32 %v3953, %v3913
        %v3994 = vsel %vm1011, %v3992, 0.0
        %v3995 = vrot.slane %v3994, 4
        %v3996 = vadd.f32 %v3994, %v3995
        %v3997 = vrot.slane %v3996, 2
        %v3998 = vadd.f32 %v3996, %v3997
        %v3999 = vrot.slane %v3998, 1
        %v4000 = vadd.f32 %v3998, %v3999
        %v4001 = vsel %vm1011, %v3993, 0.0
        %v4002 = vrot.slane %v4001, 4
        %v4003 = vadd.f32 %v4001, %v4002
        %v4004 = vrot.slane %v4003, 2
        %v4005 = vadd.f32 %v4003, %v4004
        %v4006 = vrot.slane %v4005, 1
        %v4007 = vadd.f32 %v4005, %v4006
        %v4008 = vmul.f32 %v3991, %v3778
        %v4009 = vmul.f32 %v3991, %v3779
        %v4010 = vsel %vm1011, %v4008, 0.0
        %v4011 = vrot.slane %v4010, 4
        %v4012 = vadd.f32 %v4010, %v4011
        %v4013 = vrot.slane %v4012, 2
        %v4014 = vadd.f32 %v4012, %v4013
        %v4015 = vrot.slane %v4014, 1
        %v4016 = vadd.f32 %v4014, %v4015
        %v4017 = vsel %vm1011, %v4009, 0.0
        %v4018 = vrot.slane %v4017, 4
        %v4019 = vadd.f32 %v4017, %v4018
        %v4020 = vrot.slane %v4019, 2
        %v4021 = vadd.f32 %v4019, %v4020
        %v4022 = vrot.slane %v4021, 1
        %v4023 = vadd.f32 %v4021, %v4022
        %v4024 = vadd.f32 %v4000, %v4016
        %v4025 = vadd.f32 %v4007, %v4023
        %v4026 = vxor.u32 %v4024, 2147483648
        %v4027 = vxor.u32 %v4025, 2147483648
        %v4028 = vmul.f32 %v4026, 1.442695
        %v4029 = vpow.pop %v4028
        %v4030 = vmul.f32 %v4027, 1.442695
        %v4031 = vpow.pop %v4030
        %v4032 = vadd.f32 %v4029, 1.0
        %v4033 = vadd.f32 %v4031, 1.0
        %v4034 = vrcp.pop %v4032
        %v4035 = vmul.f32 %v4032, %v4034
        %v4036 = vsub.f32 1.0, %v4035
        %v4037 = vmul.f32 %v4034, %v4036
        %v4038 = vadd.f32 %v4034, %v4037
        %vm4039 = vweird.f32 %v4032
        %vm4040 = vweird.f32 %v4034
        %vm4041 = vmor %vm4039, %vm4040
        %v4042 = vsel %vm4041, %v4034, %v4038
        %v4043 = vand.u32 2147483647, %v4032
        %vm4044 = vcmp.eq.f32.partialorder %v4043, 8.507059e+37
        %v4045 = vand.u32 %v4032, 2147483648
        %v4046 = vor.u32 1.1754944e-38, %v4045
        %v4047 = vsel %vm4044, %v4046, %v4042
        %v4048 = vmul.f32 1.0, %v4047
        %v4049 = vrcp.pop %v4033
        %v4050 = vmul.f32 %v4033, %v4049
        %v4051 = vsub.f32 1.0, %v4050
        %v4052 = vmul.f32 %v4049, %v4051
        %v4053 = vadd.f32 %v4049, %v4052
        %vm4054 = vweird.f32 %v4033
        %vm4055 = vweird.f32 %v4049
        %vm4056 = vmor %vm4054, %vm4055
        %v4057 = vsel %vm4056, %v4049, %v4053
        %v4058 = vand.u32 2147483647, %v4033
        %vm4059 = vcmp.eq.f32.partialorder %v4058, 8.507059e+37
        %v4060 = vand.u32 %v4033, 2147483648
        %v4061 = vor.u32 1.1754944e-38, %v4060
        %v4062 = vsel %vm4059, %v4061, %v4057
        %v4063 = vmul.f32 1.0, %v4062
        %v4064 = vrot.slane %v3954, 4
        %v4065 = vadd.f32 %v3954, %v4064
        %v4066 = vrot.slane %v4065, 2
        %v4067 = vadd.f32 %v4065, %v4066
        %v4068 = vrot.slane %v4067, 1
        %v4069 = vadd.f32 %v4067, %v4068
        %v4070 = vrot.slane %v3955, 4
        %v4071 = vadd.f32 %v3955, %v4070
        %v4072 = vrot.slane %v4071, 2
        %v4073 = vadd.f32 %v4071, %v4072
        %v4074 = vrot.slane %v4073, 1
        %v4075 = vadd.f32 %v4073, %v4074
        %v4076 = vmul.f32 %v4069, %v1772
        %v4077 = vmul.f32 %v4075, %v1772
        %v4078 = vmul.f32 %v1775, %v4076
        %v4079 = vmul.f32 %v1775, %v4077
        %v4080 = vsel %vm1011, %v3900, -inf
        %v4081 = vrot.slane %v4080, 4
        %v4082 = vmax.f32 %v4080, %v4081
        %v4083 = vrot.slane %v4082, 2
        %v4084 = vmax.f32 %v4082, %v4083
        %v4085 = vrot.slane %v4084, 1
        %v4086 = vmax.f32 %v4084, %v4085
        %v4087 = vsel %vm1011, %v3913, -inf
        %v4088 = vrot.slane %v4087, 4
        %v4089 = vmax.f32 %v4087, %v4088
        %v4090 = vrot.slane %v4089, 2
        %v4091 = vmax.f32 %v4089, %v4090
        %v4092 = vrot.slane %v4091, 1
        %v4093 = vmax.f32 %v4091, %v4092
        %v4094 = vmul.f32 %v1793, %v4086
        %v4095 = vmul.f32 %v1793, %v4093
        %v4096 = vadd.f32 %v4078, %v4094
        %v4097 = vadd.f32 %v4079, %v4095
        %v4098 = vadd.f32 %v4096, %v1799
        %v4099 = vadd.f32 %v4097, %v1799
        %v4100 = vxor.u32 %v4098, 2147483648
        %v4101 = vxor.u32 %v4099, 2147483648
        %v4102 = vmul.f32 %v4100, 1.442695
        %v4103 = vpow.pop %v4102
        %v4104 = vmul.f32 %v4101, 1.442695
        %v4105 = vpow.pop %v4104
        %v4106 = vadd.f32 %v4103, 1.0
        %v4107 = vadd.f32 %v4105, 1.0
        %v4108 = vrcp.pop %v4106
        %v4109 = vmul.f32 %v4106, %v4108
        %v4110 = vsub.f32 1.0, %v4109
        %v4111 = vmul.f32 %v4108, %v4110
        %v4112 = vadd.f32 %v4108, %v4111
        %vm4113 = vweird.f32 %v4106
        %vm4114 = vweird.f32 %v4108
        %vm4115 = vmor %vm4113, %vm4114
        %v4116 = vsel %vm4115, %v4108, %v4112
        %v4117 = vand.u32 2147483647, %v4106
        %vm4118 = vcmp.eq.f32.partialorder %v4117, 8.507059e+37
        %v4119 = vand.u32 %v4106, 2147483648
        %v4120 = vor.u32 1.1754944e-38, %v4119
        %v4121 = vsel %vm4118, %v4120, %v4116
        %v4122 = vmul.f32 1.0, %v4121
        %v4123 = vrcp.pop %v4107
        %v4124 = vmul.f32 %v4107, %v4123
        %v4125 = vsub.f32 1.0, %v4124
        %v4126 = vmul.f32 %v4123, %v4125
        %v4127 = vadd.f32 %v4123, %v4126
        %vm4128 = vweird.f32 %v4107
        %vm4129 = vweird.f32 %v4123
        %vm4130 = vmor %vm4128, %vm4129
        %v4131 = vsel %vm4130, %v4123, %v4127
        %v4132 = vand.u32 2147483647, %v4107
        %vm4133 = vcmp.eq.f32.partialorder %v4132, 8.507059e+37
        %v4134 = vand.u32 %v4107, 2147483648
        %v4135 = vor.u32 1.1754944e-38, %v4134
        %v4136 = vsel %vm4133, %v4135, %v4131
        %v4137 = vmul.f32 1.0, %v4136
        %v4138 = vmul.f32 %v3778, %v4048
        %v4139 = vmul.f32 %v3779, %v4063
        %v4140 = vmul.f32 %v4138, %v4122
        %v4141 = vmul.f32 %v4139, %v4137
        %v4144 = vrot.slane %v2610, 4
        %v4145 = vrot.slane %v2611, 4
        %v4150 = vrot.slane %v4140, 4
        %v4151 = vrot.slane %v4141, 4
        %v4154 = vsel %vm1011, %v1842, %v4144
        %v4155 = vsel %vm1011, %v1843, %v4145
        %v4156 = vsel %vm1011, %v3372, %v4150
        %v4157 = vsel %vm1011, %v3373, %v4151
        %v4158 = vpack.c.bf16 %v4156, %v4154
        %v4159 = vpack.c.bf16 %v4157, %v4155
        %v4160 = vld [vmem:[%s18] sm:$0xf]
        %v4161 = vld [vmem:[%s18 + $0x4] sm:$0xf]
        %v4162 = vld [vmem:[%s19] sm:$0xff]
        %v4163 = vld [vmem:[%s19 + $0x8] sm:$0xff]
        %4165 = vset.pattern.permute.xlu0 0
        %4166 = vperm.xlu0 %4165, %v4162
        %v4167 = vpop.permute.xlu0 %4166
        %4170 = vset.pattern.permute.xlu0 0
        %4171 = vperm.xlu0 %4170, %v4163
        %v4172 = vpop.permute.xlu0 %4171
        %v4176 = vunpack.c.l.b16 %v4160
        %v4177 = vunpack.c.l.b16 %v4161
        %v4178 = vpack.c.b16 %v4177, %v4176
        %v4180 = vsel %vm1179, %v4178, 0
        %4182 = vmatpush.bf16.msra.mxu0 0
        %4183 = vmatpush.bf16.msra.mxu0 0
        %4184 = vmatpush.bf16.msra.mxu0 0
        %4185 = vmatpush.bf16.msra.mxu0 0
        %4186 = vmatpush.bf16.msra.mxu0 0
        %4187 = vmatpush.bf16.msra.mxu0 0
        %4188 = vmatpush.bf16.msra.mxu0 0
        %4189 = vmatpush.bf16.msra.mxu0 %v4158
        %4190 = vmatmul.bf16.gmra.mxu0 %v4180
        %v4191 = vpop.f32.mrf.mxu0
        %v4192 = vadd.f32 %v4167, %v4191
        %v4193 = vpop.f32.mrf.mxu0
        %v4194 = vadd.f32 %v4172, %v4193
        %4195 = vdwg.mxu0
        %4196 = vmatpush.bf16.msra.mxu0 0
        %4197 = vmatpush.bf16.msra.mxu0 0
        %4198 = vmatpush.bf16.msra.mxu0 0
        %4199 = vmatpush.bf16.msra.mxu0 0
        %4200 = vmatpush.bf16.msra.mxu0 0
        %4201 = vmatpush.bf16.msra.mxu0 0
        %4202 = vmatpush.bf16.msra.mxu0 0
        %4203 = vmatpush.bf16.msra.mxu0 %v4159
        %4204 = vmatmul.bf16.gmra.mxu0 %v4180
        %v4205 = vpop.f32.mrf.mxu0
        %v4206 = vadd.f32 %v4167, %v4205
        %v4207 = vpop.f32.mrf.mxu0
        %v4208 = vadd.f32 %v4172, %v4207
        %4209 = vdwg.mxu0
        %v4210 = vpack.c.bf16 %v4206, %v4192
        %v4211 = vpack.c.bf16 %v4208, %v4194
        %4212 = vst [vmem:[%s813] sm:$0xff] %v4210
        %4213 = vst [vmem:[%s813 + $0x8] sm:$0xff] %v4211
        %v4214 = vadd.f32 %v822, %v1846
        %v4215 = vadd.f32 %v823, %v1847
        %v4216 = vadd.f32 %v4214, %v824
        %v4217 = vadd.f32 %v4215, %v825
        %v4218 = vadd.f32 %v4216, %v3376
        %v4219 = vadd.f32 %v4217, %v3377
        %v4220 = vld [vmem:[%s20] sm:$0xf]
        %v4221 = vld [vmem:[%s20 + $0x4] sm:$0xf]
        %4222 = vrot.lane.b32.xlu0 %v4218, 17
        %v4223 = vpop.permute.xlu0 %4222
        %4224 = vrot.lane.b32.xlu0 %v4219, 17
        %v4225 = vpop.permute.xlu0 %4224
        %v4226 = vsel %vm1392, %v4223, %v4225
        %v4227 = vsel %vm1392, %v4225, %v4223
        %v4228 = vld [vmem:[%s2] sm:$0x3]
        %v4230 = vperm.slane %v4228, 0
        %v4231 = vperm.slane %v4228, 1
        %v4234 = vmul.f32 %v4227, %v4230
        %v4235 = vmul.f32 %v4226, %v4231
        %4236 = vrot.lane.b32.xlu0 %v4218, 16
        %v4237 = vpop.permute.xlu0 %4236
        %4238 = vrot.lane.b32.xlu0 %v4219, 16
        %v4239 = vpop.permute.xlu0 %4238
        %v4240 = vsel %vm1407, %v4237, %v4239
        %v4241 = vsel %vm1407, %v4239, %v4237
        %v4242 = vld [vmem:[%s1410] sm:$0x3]
        %v4244 = vperm.slane %v4242, 0
        %v4245 = vperm.slane %v4242, 1
        %v4248 = vmul.f32 %v4241, %v4244
        %v4249 = vmul.f32 %v4240, %v4245
        %4250 = vrot.lane.b32.xlu0 %v4218, 15
        %v4251 = vpop.permute.xlu0 %4250
        %4252 = vrot.lane.b32.xlu0 %v4219, 15
        %v4253 = vpop.permute.xlu0 %4252
        %v4254 = vsel %vm1423, %v4251, %v4253
        %v4255 = vsel %vm1423, %v4253, %v4251
        %v4256 = vld [vmem:[%s1426] sm:$0x3]
        %v4258 = vperm.slane %v4256, 0
        %v4259 = vperm.slane %v4256, 1
        %v4262 = vmul.f32 %v4255, %v4258
        %v4263 = vmul.f32 %v4254, %v4259
        %4264 = vrot.lane.b32.xlu0 %v4218, 1
        %v4265 = vpop.permute.xlu0 %4264
        %4266 = vrot.lane.b32.xlu0 %v4219, 1
        %v4267 = vpop.permute.xlu0 %4266
        %v4268 = vsel %vm1439, %v4265, %v4267
        %v4269 = vsel %vm1439, %v4267, %v4265
        %v4270 = vld [vmem:[%s1442] sm:$0x3]
        %v4272 = vperm.slane %v4270, 0
        %v4273 = vperm.slane %v4270, 1
        %v4276 = vmul.f32 %v4269, %v4272
        %v4277 = vmul.f32 %v4268, %v4273
        %v4278 = vld [vmem:[%s1451] sm:$0x3]
        %v4280 = vperm.slane %v4278, 0
        %v4281 = vperm.slane %v4278, 1
        %v4284 = vmul.f32 %v4218, %v4280
        %v4285 = vmul.f32 %v4219, %v4281
        %4286 = vrot.lane.b32.xlu0 %v4218, 127
        %v4287 = vpop.permute.xlu0 %4286
        %4288 = vrot.lane.b32.xlu0 %v4219, 127
        %v4289 = vpop.permute.xlu0 %4288
        %v4290 = vsel %vm1464, %v4287, %v4289
        %v4291 = vsel %vm1464, %v4289, %v4287
        %v4292 = vld [vmem:[%s1467] sm:$0x3]
        %v4294 = vperm.slane %v4292, 0
        %v4295 = vperm.slane %v4292, 1
        %v4298 = vmul.f32 %v4290, %v4294
        %v4299 = vmul.f32 %v4291, %v4295
        %4300 = vrot.lane.b32.xlu0 %v4218, 113
        %v4301 = vpop.permute.xlu0 %4300
        %4302 = vrot.lane.b32.xlu0 %v4219, 113
        %v4303 = vpop.permute.xlu0 %4302
        %v4304 = vsel %vm1480, %v4301, %v4303
        %v4305 = vsel %vm1480, %v4303, %v4301
        %v4306 = vld [vmem:[%s1483] sm:$0x3]
        %v4308 = vperm.slane %v4306, 0
        %v4309 = vperm.slane %v4306, 1
        %v4312 = vmul.f32 %v4304, %v4308
        %v4313 = vmul.f32 %v4305, %v4309
        %4314 = vrot.lane.b32.xlu0 %v4218, 112
        %v4315 = vpop.permute.xlu0 %4314
        %4316 = vrot.lane.b32.xlu0 %v4219, 112
        %v4317 = vpop.permute.xlu0 %4316
        %v4318 = vsel %vm1496, %v4315, %v4317
        %v4319 = vsel %vm1496, %v4317, %v4315
        %v4320 = vld [vmem:[%s1499] sm:$0x3]
        %v4322 = vperm.slane %v4320, 0
        %v4323 = vperm.slane %v4320, 1
        %v4326 = vmul.f32 %v4318, %v4322
        %v4327 = vmul.f32 %v4319, %v4323
        %4328 = vrot.lane.b32.xlu0 %v4218, 111
        %v4329 = vpop.permute.xlu0 %4328
        %4330 = vrot.lane.b32.xlu0 %v4219, 111
        %v4331 = vpop.permute.xlu0 %4330
        %v4332 = vsel %vm1512, %v4329, %v4331
        %v4333 = vsel %vm1512, %v4331, %v4329
        %v4334 = vld [vmem:[%s1515] sm:$0x3]
        %v4336 = vperm.slane %v4334, 0
        %v4337 = vperm.slane %v4334, 1
        %v4340 = vmul.f32 %v4332, %v4336
        %v4341 = vmul.f32 %v4333, %v4337
        %v4344 = vrot.slane %v4248, 4
        %v4345 = vrot.slane %v4249, 4
        %v4350 = vrot.slane %v4276, 4
        %v4351 = vrot.slane %v4277, 4
        %v4356 = vrot.slane %v4298, 4
        %v4357 = vrot.slane %v4299, 4
        %v4362 = vrot.slane %v4326, 4
        %v4363 = vrot.slane %v4327, 4
        %v4366 = vsel %vm1011, %v4234, %v4344
        %v4367 = vsel %vm1011, %v4235, %v4345
        %v4368 = vsel %vm1011, %v4262, %v4350
        %v4369 = vsel %vm1011, %v4263, %v4351
        %v4370 = vsel %vm1011, %v4284, %v4356
        %v4371 = vsel %vm1011, %v4285, %v4357
        %v4372 = vsel %vm1011, %v4312, %v4362
        %v4373 = vsel %vm1011, %v4313, %v4363
        %v4374 = vpack.c.bf16 %v4368, %v4366
        %v4375 = vpack.c.bf16 %v4369, %v4367
        %v4376 = vpack.c.bf16 %v4372, %v4370
        %v4377 = vpack.c.bf16 %v4373, %v4371
        %v4378 = vpack.c.bf16 %v4340, %v4340
        %v4379 = vpack.c.bf16 %v4341, %v4341
        %v4380 = vld [vmem:[%s21] sm:$0xff]
        %v4381 = vld [vmem:[%s21 + $0x8] sm:$0xff]
        %4383 = vset.pattern.permute.xlu0 0
        %4384 = vperm.xlu0 %4383, %v4380
        %v4385 = vpop.permute.xlu0 %4384
        %4388 = vset.pattern.permute.xlu0 0
        %4389 = vperm.xlu0 %4388, %v4381
        %v4390 = vpop.permute.xlu0 %4389
        %v4394 = vunpack.c.l.b16 %v4220
        %v4395 = vunpack.c.l.b16 %v4221
        %v4396 = vpack.c.b16 %v4395, %v4394
        %v4398 = vsel %vm1568, %v4396, 0
        %v4401 = vsel %vm1572, %v4378, 0
        %v4404 = vsel %vm1572, %v4379, 0
        %4406 = vmatpush.bf16.msra.mxu0 0
        %4407 = vmatpush.bf16.msra.mxu0 0
        %4408 = vmatpush.bf16.msra.mxu0 0
        %4409 = vmatpush.bf16.msra.mxu0 0
        %4410 = vmatpush.bf16.msra.mxu0 0
        %4411 = vmatpush.bf16.msra.mxu0 %v4401
        %4412 = vmatpush.bf16.msra.mxu0 %v4376
        %4413 = vmatpush.bf16.msra.mxu0 %v4374
        %4414 = vmatmul.bf16.gmra.mxu0 %v4398
        %v4415 = vpop.f32.mrf.mxu0
        %v4416 = vadd.f32 %v4385, %v4415
        %v4417 = vpop.f32.mrf.mxu0
        %v4418 = vadd.f32 %v4390, %v4417
        %4419 = vdwg.mxu0
        %4420 = vmatpush.bf16.msra.mxu0 0
        %4421 = vmatpush.bf16.msra.mxu0 0
        %4422 = vmatpush.bf16.msra.mxu0 0
        %4423 = vmatpush.bf16.msra.mxu0 0
        %4424 = vmatpush.bf16.msra.mxu0 0
        %4425 = vmatpush.bf16.msra.mxu0 %v4404
        %4426 = vmatpush.bf16.msra.mxu0 %v4377
        %4427 = vmatpush.bf16.msra.mxu0 %v4375
        %4428 = vmatmul.bf16.gmra.mxu0 %v4398
        %v4429 = vpop.f32.mrf.mxu0
        %v4430 = vadd.f32 %v4385, %v4429
        %v4431 = vpop.f32.mrf.mxu0
        %v4432 = vadd.f32 %v4390, %v4431
        %4433 = vdwg.mxu0
        %v4434 = vld [vmem:[%s22] sm:$0xff]
        %v4435 = vld [vmem:[%s22 + $0x8] sm:$0xff]
        %v4436 = vld [vmem:[%s23] sm:$0xff]
        %v4437 = vld [vmem:[%s23 + $0x8] sm:$0xff]
        %v4438 = vld [vmem:[%s24] sm:$0xff]
        %v4439 = vld [vmem:[%s24 + $0x8] sm:$0xff]
        %v4440 = vadd.f32 %v4416, %v4430
        %4441 = vadd.xlane.f32.xlu0 %v4440
        %v4442 = vpop.xlane.xlu0 %4441
        %v4443 = vadd.f32 %v4418, %v4432
        %4444 = vadd.xlane.f32.xlu0 %v4443
        %v4445 = vpop.xlane.xlu0 %4444
        %v4446 = vmul.f32 %v4442, %v1288
        %v4447 = vmul.f32 %v4445, %v1288
        %v4449 = vsel %vm1179, %v4434, 0
        %v4452 = vsel %vm1179, %v4435, 0
        %4454 = vmatpush.msra.mxu0 0.0
        %4455 = vmatpush.msra.mxu0 0.0
        %4456 = vmatpush.msra.mxu0 0.0
        %4457 = vmatpush.msra.mxu0 0.0
        %4458 = vmatpush.msra.mxu0 0.0
        %4459 = vmatpush.msra.mxu0 0.0
        %4460 = vmatpush.msra.mxu0 0.0
        %4461 = vmatpush.msra.mxu0 0.0
        %4462 = vmatpush.msra.mxu0 0.0
        %4463 = vmatpush.msra.mxu0 0.0
        %4464 = vmatpush.msra.mxu0 0.0
        %4465 = vmatpush.msra.mxu0 0.0
        %4466 = vmatpush.msra.mxu0 0.0
        %4467 = vmatpush.msra.mxu0 0.0
        %4468 = vmatpush.msra.mxu0 %v4447
        %4469 = vmatpush.msra.mxu0 %v4446
        %4470 = vmatmul.f32.gmra.mxu0 %v4449
        %v4471 = vpop.f32.mrf.mxu0
        %v4472 = vadd.f32 0.0, %v4471
        %4473 = vmatmul.f32.gmra.mxu0 %v4452
        %v4474 = vpop.f32.mrf.mxu0
        %v4475 = vadd.f32 0.0, %v4474
        %4476 = vdwg.mxu0
        %4478 = vset.pattern.permute.xlu0 0
        %4479 = vperm.xlu0 %4478, %v4472
        %v4480 = vpop.permute.xlu0 %4479
        %4483 = vset.pattern.permute.xlu0 0
        %4484 = vperm.xlu0 %4483, %v4475
        %v4485 = vpop.permute.xlu0 %4484
        %v4487 = vsub.f32 %v4416, %v4480
        %v4488 = vsub.f32 %v4430, %v4480
        %v4489 = vsub.f32 %v4418, %v4485
        %v4490 = vsub.f32 %v4432, %v4485
        %v4491 = vmul.f32 %v4487, %v4487
        %v4492 = vmul.f32 %v4488, %v4488
        %v4493 = vmul.f32 %v4489, %v4489
        %v4494 = vmul.f32 %v4490, %v4490
        %v4495 = vadd.f32 %v4491, %v4492
        %4496 = vadd.xlane.f32.xlu0 %v4495
        %v4497 = vpop.xlane.xlu0 %4496
        %v4498 = vadd.f32 %v4493, %v4494
        %4499 = vadd.xlane.f32.xlu0 %v4498
        %v4500 = vpop.xlane.xlu0 %4499
        %v4501 = vmul.f32 %v4497, %v1288
        %v4502 = vmul.f32 %v4500, %v1288
        %4503 = vmatpush.msra.mxu0 0.0
        %4504 = vmatpush.msra.mxu0 0.0
        %4505 = vmatpush.msra.mxu0 0.0
        %4506 = vmatpush.msra.mxu0 0.0
        %4507 = vmatpush.msra.mxu0 0.0
        %4508 = vmatpush.msra.mxu0 0.0
        %4509 = vmatpush.msra.mxu0 0.0
        %4510 = vmatpush.msra.mxu0 0.0
        %4511 = vmatpush.msra.mxu0 0.0
        %4512 = vmatpush.msra.mxu0 0.0
        %4513 = vmatpush.msra.mxu0 0.0
        %4514 = vmatpush.msra.mxu0 0.0
        %4515 = vmatpush.msra.mxu0 0.0
        %4516 = vmatpush.msra.mxu0 0.0
        %4517 = vmatpush.msra.mxu0 %v4502
        %4518 = vmatpush.msra.mxu0 %v4501
        %4519 = vmatmul.f32.gmra.mxu0 %v4449
        %v4520 = vpop.f32.mrf.mxu0
        %v4521 = vadd.f32 1e-05, %v4520
        %4522 = vmatmul.f32.gmra.mxu0 %v4452
        %v4523 = vpop.f32.mrf.mxu0
        %v4524 = vadd.f32 1e-05, %v4523
        %4525 = vdwg.mxu0
        %v4526 = vrsqrt.pop %v4521
        %v4527 = vmul.f32 %v4526, %v4521
        %v4528 = vmul.f32 %v4527, %v4526
        %v4529 = vmul.f32 0.5, %v4528
        %v4530 = vsub.f32 1.5, %v4529
        %v4531 = vmul.f32 %v4526, %v4530
        %vm4532 = vweird.f32 %v4521
        %vm4533 = vweird.f32 %v4526
        %vm4534 = vmor %vm4532, %vm4533
        %v4535 = vsel %vm4534, %v4526, %v4531
        %v4536 = vrsqrt.pop %v4524
        %v4537 = vmul.f32 %v4536, %v4524
        %v4538 = vmul.f32 %v4537, %v4536
        %v4539 = vmul.f32 0.5, %v4538
        %v4540 = vsub.f32 1.5, %v4539
        %v4541 = vmul.f32 %v4536, %v4540
        %vm4542 = vweird.f32 %v4524
        %vm4543 = vweird.f32 %v4536
        %vm4544 = vmor %vm4542, %vm4543
        %v4545 = vsel %vm4544, %v4536, %v4541
        %4547 = vset.pattern.permute.xlu0 0
        %4548 = vperm.xlu0 %4547, %v4535
        %v4549 = vpop.permute.xlu0 %4548
        %4552 = vset.pattern.permute.xlu0 0
        %4553 = vperm.xlu0 %4552, %v4545
        %v4554 = vpop.permute.xlu0 %4553
        %v4556 = vmul.f32 %v4487, %v4549
        %v4557 = vmul.f32 %v4488, %v4549
        %v4558 = vmul.f32 %v4489, %v4554
        %v4559 = vmul.f32 %v4490, %v4554
        %4561 = vset.pattern.permute.xlu0 0
        %4562 = vperm.xlu0 %4561, %v4436
        %v4563 = vpop.permute.xlu0 %4562
        %4566 = vset.pattern.permute.xlu0 0
        %4567 = vperm.xlu0 %4566, %v4437
        %v4568 = vpop.permute.xlu0 %4567
        %v4570 = vmul.f32 %v4556, %v4563
        %v4571 = vmul.f32 %v4557, %v4563
        %v4572 = vmul.f32 %v4558, %v4568
        %v4573 = vmul.f32 %v4559, %v4568
        %4575 = vset.pattern.permute.xlu0 0
        %4576 = vperm.xlu0 %4575, %v4438
        %v4577 = vpop.permute.xlu0 %4576
        %4580 = vset.pattern.permute.xlu0 0
        %4581 = vperm.xlu0 %4580, %v4439
        %v4582 = vpop.permute.xlu0 %4581
        %v4584 = vadd.f32 %v4570, %v4577
        %v4585 = vadd.f32 %v4571, %v4577
        %v4586 = vadd.f32 %v4572, %v4582
        %v4587 = vadd.f32 %v4573, %v4582
        %v4588 = vpack.c.bf16 %v4585, %v4584
        %v4589 = vpack.c.bf16 %v4587, %v4586
        %4590 = vst [vmem:[%s818] sm:$0xff] %v4588
        %4591 = vst [vmem:[%s818 + $0x8] sm:$0xff] %v4589
        %p4592 = scmp.lt.s32.totalorder %s39, 1
        %s4593 = scalar_select %p4592, %s39, 1
        %s4594 = smul.addr %s4593, 4
        %s4595 = smul.addr %s4594, 4
        %s4596 = scalar_lea.vmem %s25, %s4595
        %p4597 = scmp.lt.s32.totalorder %s39, 1
        %s4598 = scalar_select %p4597, %s39, 1
        %s4599 = smul.addr %s4598, 4
        %s4600 = smul.addr %s4599, 4
        %s4601 = scalar_lea.vmem %s26, %s4600
        // Predicated region
        $region125: #{bottleneck_forward.6} parent=119 // pred_check
          %p4602 = pneg %p587
        $region126: #{bottleneck_forward.6} parent=119 // pred_check_branch
          %4604 = sbr.rel (%p4602) target = $region128
        $region127: #{bottleneck_forward.6} parent=119 // pred_region
          _
        $region128: #{bottleneck_forward.6} parent=119 // pred_fallthru
          _
        // Predicated region
        $region129: #{bottleneck_forward.6} parent=119 // pred_check
          %p4605 = pneg %p613
        $region130: #{bottleneck_forward.6} parent=119 // pred_check_branch
          %4607 = sbr.rel (%p4605) target = $region132
        $region131: #{bottleneck_forward.6} parent=119 // pred_region
          _
        $region132: #{bottleneck_forward.6} parent=119 // pred_fallthru
          _
      $region120: #{bottleneck_forward.6} parent=5 // pred_fallthru
        _
      %p4608 = scmp.le.s32.totalorder 2, %s34
      // Predicated region
      $region133: #{bottleneck_forward.6} parent=5 // pred_check
        %p4609 = pneg %p4608
      $region134: #{bottleneck_forward.6} parent=5 // pred_check_branch
        %4611 = sbr.rel (%p4609) target = $region136
      $region135: #{bottleneck_forward.6} parent=5 // pred_region
        %s4612 = ssub.s32 %s34, 2
        // Predicated region
        $region137: #{bottleneck_forward.6} parent=135 // pred_check
          %p4613 = pneg %p593
        $region138: #{bottleneck_forward.6} parent=135 // pred_check_branch
          %4615 = sbr.rel (%p4613) target = $region140
        $region139: #{bottleneck_forward.6} parent=135 // pred_region
          %p4616 = scmp.lt.s32.totalorder %s40, 1
          %s4617 = scalar_select %p4616, %s40, 1
          %s4618 = smul.addr %s4617, 4
          %s4619 = smul.addr %s4618, 4
          %s4620 = scalar_lea.vmem %s25, %s4619
        $region140: #{bottleneck_forward.6} parent=135 // pred_fallthru
          _
        // Predicated region
        $region141: #{bottleneck_forward.6} parent=135 // pred_check
          %p4621 = pneg %p619
        $region142: #{bottleneck_forward.6} parent=135 // pred_check_branch
          %4623 = sbr.rel (%p4621) target = $region144
        $region143: #{bottleneck_forward.6} parent=135 // pred_region
          %p4624 = scmp.lt.s32.totalorder %s40, 1
          %s4625 = scalar_select %p4624, %s40, 1
          %s4626 = smul.addr %s4625, 4
          %s4627 = smul.addr %s4626, 4
          %s4628 = scalar_lea.vmem %s26, %s4627
        $region144: #{bottleneck_forward.6} parent=135 // pred_fallthru
          _
      $region136: #{bottleneck_forward.6} parent=5 // pred_fallthru
        _
    $region6: #{bottleneck_forward.6} parent=1 // loop_footer
      %s38 = sadd.s32 1, %s34
    $region7: #{bottleneck_forward.6} parent=1 // loop_footer_branch
      %33 = sbr.rel target = $region3
    $region8: #{bottleneck_forward.6} parent=1 // loop_exit
      _
    %4629 = vsyncpa [#allocation3], 1
    %s4630 = scalar_lea.sflag [#allocation3], 1
    %4631 = vsyncpa %s4630, 1

</llo_original>
